<compile_context>
chip_gen: v5e
topology: v5e:2x2
jax: 0.10.0
libtpu: 0.0.40
codegen_flags: <defaults>
</compile_context>

<pallas_src>
import numpy as np
import jax
import jax.numpy as jnp
from jax.experimental import pallas as pl
from jax.experimental.pallas import tpu as pltpu


# --------------------------------------------------------------------------- #
# Fused Pallas kernel: block-diag atom/bond embed + PairNet MLP + segment-mask
# readout (grid-axis accumulation) + head MLP (applied at the last grid step).
# --------------------------------------------------------------------------- #
def _tgnn_fused_kernel(pairs_ref, r_ref, inv_ref,
                       we_ref, be_ref,
                       w1_ref, b1_ref, w2_ref, b2_ref, w3_ref, b3_ref,
                       wh1_ref, bh1_ref, wh2_ref, bh2_ref, wh3_ref, bh3_ref,
                       out_ref, acc_ref):
    f32 = jnp.float32
    bf16 = jnp.bfloat16
    i = pl.program_id(0)

    @pl.when(i == 0)
    def _():
        acc_ref[...] = jnp.zeros_like(acc_ref)

    # Fused atom/atom/bond embedding: one block-diagonal (tp, F) @ (F, 384) matmul.
    e = jnp.dot(pairs_ref[...], we_ref[...], preferred_element_type=f32) + be_ref[...]
    e = jnp.maximum(e, 0.0).astype(bf16)                                    # (tp, 384)

    # PairNet MLP: 384 -> 512 -> 256 -> 1024 (bf16 operands, f32 accumulation).
    h = jnp.dot(e, w1_ref[...], preferred_element_type=f32) + b1_ref[...]
    h = jnp.maximum(h, 0.0).astype(bf16)
    h = jnp.dot(h, w2_ref[...], preferred_element_type=f32) + b2_ref[...]
    h = jnp.maximum(h, 0.0).astype(bf16)
    x = jnp.dot(h, w3_ref[...], preferred_element_type=f32) + b3_ref[...]   # (tp, 1024) f32

    # Fused readout: exact 0/1 bf16 segment mask @ x (f32 accumulation over the grid).
    # Padded pair rows have an all-zero mask column, so no in-kernel masking is needed.
    acc_ref[...] += jnp.dot(r_ref[...], x.astype(bf16), preferred_element_type=f32)

    # Head MLP on the tiny [G_pad, 1024] accumulator at the final grid step.
    @pl.when(i == pl.num_programs(0) - 1)
    def _():
        hp = (acc_ref[...] * inv_ref[...]).astype(bf16)   # exact per-graph 1/n in f32
        g = jnp.dot(hp, wh1_ref[...], preferred_element_type=f32) + bh1_ref[...]
        g = jnp.maximum(g, 0.0).astype(bf16)
        g = jnp.dot(g, wh2_ref[...], preferred_element_type=f32) + bh2_ref[...]
        g = jnp.maximum(g, 0.0).astype(bf16)
        out_ref[...] = jnp.dot(g, wh3_ref[...], preferred_element_type=f32) + bh3_ref[...]


# --------------------------------------------------------------------------- #
# Wrapper helpers
# --------------------------------------------------------------------------- #
def build_segment_mask(idx_pairs, P_pad, G_pad):
    """Returns (mask, inv):
       mask: [G_pad, P_pad] bf16, 1.0 for pairs p inside graph g's contiguous segment.
       inv : [G_pad, 1] f32, 1/idx[g] (0 for empty / padded graphs)."""
    idx = jnp.asarray(idx_pairs, jnp.int32)
    G = idx.shape[0]
    offs = jnp.concatenate([jnp.zeros((1,), jnp.int32), jnp.cumsum(idx)[:-1]])
    p = jnp.arange(P_pad, dtype=jnp.int32)[None, :]
    lo = offs[:, None]
    hi = (offs + idx)[:, None]
    mask = ((p >= lo) & (p < hi)).astype(jnp.bfloat16)
    mask = jnp.pad(mask, ((0, G_pad - G), (0, 0)))
    # NOTE: idx[g] == 0 yields a zero output row here, whereas the PyTorch mean over
    # an empty slice would be NaN (intentional, documented divergence).
    inv = jnp.where(idx > 0, 1.0 / jnp.maximum(idx, 1).astype(jnp.float32), 0.0)
    inv = jnp.pad(inv, (0, G_pad - G)).reshape(G_pad, 1)
    return mask, inv


def _pick_tp(P, tp_max=1024):
    """Largest useful pair tile: multiple of 256, capped at tp_max, shrunk for small P."""
    return max(256, min(tp_max, -(-P // 256) * 256))


def tgnn_forward(pairs, idx_pairs, ref_feats, params, naf, nbf, tp=None):
    del ref_feats  # unused by the reference PyTorch forward as well
    P = pairs.shape[0]
    G = int(np.asarray(idx_pairs).shape[0])
    dt = params["w3"].shape[1]
    F_in = 2 * naf + nbf

    if tp is None:
        tp = _pick_tp(P)
    num_tiles = int(pl.cdiv(P, tp))
    P_pad = num_tiles * tp
    G_pad = max(8, -(-G // 8) * 8)

    bf16 = jnp.bfloat16
    cast = lambda a: a.astype(bf16)

    # Streaming inputs in bf16 (halves the per-tile DMA, single-pass MXU).
    pairs_p = jnp.pad(pairs, ((0, P_pad - P), (0, 0))).astype(bf16)     # (P_pad, F_in)
    R, inv = build_segment_mask(idx_pairs, P_pad, G_pad)                # bf16 mask, f32 1/n

    # Block-diagonal embed weight diag(wa, wa, wb): one (F_in, 384) matmul replaces
    # three small matmuls + a stacked-operand reshape.
    W_emb = jnp.zeros((F_in, 384), jnp.float32)
    W_emb = W_emb.at[:naf, :128].set(params["wa"])
    W_emb = W_emb.at[naf:2 * naf, 128:256].set(params["wa"])
    W_emb = W_emb.at[2 * naf:, 256:].set(params["wb"])
    b_emb = jnp.concatenate([params["ba"], params["ba"], params["bb"]], axis=1)  # (1, 384)

    row = lambda i: (i, 0)
    rcol = lambda i: (0, i)
    full = lambda i: (0, 0)

    out = pl.pallas_call(
        _tgnn_fused_kernel,
        out_shape=jax.ShapeDtypeStruct((G_pad, dt), jnp.float32),
        grid=(num_tiles,),
        in_specs=[
            pl.BlockSpec((tp, F_in), row),          # pairs tile (bf16)
            pl.BlockSpec((G_pad, tp), rcol),        # 0/1 segment-mask tile (bf16)
            pl.BlockSpec((G_pad, 1), full),         # per-graph 1/n (f32)
            pl.BlockSpec((F_in, 384), full),        # block-diag embed weight
            pl.BlockSpec((1, 384), full),
            pl.BlockSpec((384, 512), full),         # PairNet fc1
            pl.BlockSpec((1, 512), full),
            pl.BlockSpec((512, 256), full),         # PairNet fc2
            pl.BlockSpec((1, 256), full),
            pl.BlockSpec((256, 1024), full),        # PairNet fc3
            pl.BlockSpec((1, 1024), full),
            pl.BlockSpec((1024, 512), full),        # TGNN fc1
            pl.BlockSpec((1, 512), full),
            pl.BlockSpec((512, 32), full),          # TGNN fc2
            pl.BlockSpec((1, 32), full),
            pl.BlockSpec((32, dt), full),           # TGNN fc3
            pl.BlockSpec((1, dt), full),
        ],
        out_specs=pl.BlockSpec((G_pad, dt), full),
        scratch_shapes=[pltpu.VMEM((G_pad, 1024), jnp.float32)],
        compiler_params=pltpu.CompilerParams(
            dimension_semantics=("arbitrary",),     # grid axis carries the readout accumulation
        ),
    )(pairs_p, R, inv,
      cast(W_emb), b_emb,
      cast(params["wp1"]), params["bp1"],
      cast(params["wp2"]), params["bp2"],
      cast(params["wp3"]), params["bp3"],
      cast(params["w1"]), params["b1"],
      cast(params["w2"]), params["b2"],
      cast(params["w3"]), params["b3"])
    return out[:G]


# --------------------------------------------------------------------------- #
# Deterministic parameter init (torch Linear shapes; stored as [in, out], f32)
# --------------------------------------------------------------------------- #
def init_params(key, naf, nbf, dim_target):
    def lin(k, fi, fo):
        kw, kb = jax.random.split(k)
        s = 1.0 / np.sqrt(fi)
        w = jax.random.uniform(kw, (fi, fo), jnp.float32, -s, s)
        b = jax.random.uniform(kb, (1, fo), jnp.float32, -s, s)
        return w, b

    ks = jax.random.split(key, 8)
    wa, ba = lin(ks[0], naf, 128)                # atom_net
    wb, bb = lin(ks[1], nbf, 128)                # bond_net
    wp1, bp1 = lin(ks[2], 2 * 128 + 128, 512)    # PairNet.fc1
    wp2, bp2 = lin(ks[3], 512, 256)              # PairNet.fc2
    wp3, bp3 = lin(ks[4], 256, 1024)             # PairNet.fc3
    w1, b1 = lin(ks[5], 1024, 512)               # TGNN.fc1
    w2, b2 = lin(ks[6], 512, 32)                 # TGNN.fc2
    w3, b3 = lin(ks[7], 32, dim_target)          # TGNN.fc3
    return dict(
        wa=wa, ba=ba, wb=wb, bb=bb,
        wp1=wp1, bp1=bp1, wp2=wp2, bp2=bp2, wp3=wp3, bp3=bp3,
        w1=w1, b1=b1, w2=w2, b2=b2, w3=w3, b3=b3,
    )


# --------------------------------------------------------------------------- #
# Pure-JAX f32 reference (mirrors the PyTorch forward, incl. the readout loop)
# --------------------------------------------------------------------------- #
def tgnn_reference(pairs, idx_pairs, params, naf, nbf):
    relu = jax.nn.relu
    e1 = relu(pairs[:, :naf] @ params["wa"] + params["ba"])
    e2 = relu(pairs[:, naf:2 * naf] @ params["wa"] + params["ba"])
    eb = relu(pairs[:, 2 * naf:] @ params["wb"] + params["bb"])
    h = relu(jnp.concatenate([e1, e2, eb], axis=1) @ params["wp1"] + params["bp1"])
    h = relu(h @ params["wp2"] + params["bp2"])
    x = h @ params["wp3"] + params["bp3"]
    idx_np = np.asarray(idx_pairs)
    rows, pos = [], 0
    for n in idx_np:
        rows.append(jnp.mean(x[pos:pos + int(n)], axis=0))
        pos += int(n)
    hp = jnp.stack(rows)
    h = relu(hp @ params["w1"] + params["b1"])
    h = relu(h @ params["w2"] + params["b2"])
    return h @ params["w3"] + params["b3"]


# --------------------------------------------------------------------------- #
if __name__ == "__main__":
    naf, nbf, dim_target = 16, 8, 4
    # pairs-per-graph (contiguous segments); P = 500 -> tp picks 512, single grid step
    idx_pairs = np.array([37, 64, 23, 81, 55, 12, 70, 44, 66, 48], dtype=np.int32)
    P = int(idx_pairs.sum())
    G = idx_pairs.shape[0]

    key = jax.random.PRNGKey(0)
    k_pairs, k_ref, k_param = jax.random.split(key, 3)
    pairs = jax.random.normal(k_pairs, (P, 2 * naf + nbf), jnp.float32)
    ref_feats = jax.random.normal(k_ref, (G, nbf), jnp.float32)  # unused (matches torch)
    params = init_params(k_param, naf, nbf, dim_target)

    out = tgnn_forward(pairs, idx_pairs, ref_feats, params, naf, nbf)
    out = jax.block_until_ready(out)

    ref = tgnn_reference(pairs, idx_pairs, params, naf, nbf)
    np.testing.assert_allclose(np.asarray(out), np.asarray(ref), rtol=4e-2, atol=4e-2)

    assert out.shape == (G, dim_target)
    print("KERNEL_OK")
</pallas_src>

<mosaic_0001>
module attributes {stable_mosaic.version = 11 : i64} {
  func.func @_tgnn_fused_kernel(%arg0: i32, %arg1: memref<512x40xbf16, #tpu.memory_space<vmem>>, %arg2: memref<16x512xbf16, #tpu.memory_space<vmem>>, %arg3: memref<16x1xf32, #tpu.memory_space<vmem>>, %arg4: memref<40x384xbf16, #tpu.memory_space<vmem>>, %arg5: memref<1x384xf32, #tpu.memory_space<vmem>>, %arg6: memref<384x512xbf16, #tpu.memory_space<vmem>>, %arg7: memref<1x512xf32, #tpu.memory_space<vmem>>, %arg8: memref<512x256xbf16, #tpu.memory_space<vmem>>, %arg9: memref<1x256xf32, #tpu.memory_space<vmem>>, %arg10: memref<256x1024xbf16, #tpu.memory_space<vmem>>, %arg11: memref<1x1024xf32, #tpu.memory_space<vmem>>, %arg12: memref<1024x512xbf16, #tpu.memory_space<vmem>>, %arg13: memref<1x512xf32, #tpu.memory_space<vmem>>, %arg14: memref<512x32xbf16, #tpu.memory_space<vmem>>, %arg15: memref<1x32xf32, #tpu.memory_space<vmem>>, %arg16: memref<32x4xbf16, #tpu.memory_space<vmem>>, %arg17: memref<1x4xf32, #tpu.memory_space<vmem>>, %arg18: memref<16x4xf32, #tpu.memory_space<vmem>>, %arg19: memref<16x1024xf32, #tpu.memory_space<vmem>>) attributes {dimension_semantics = [#tpu.dimension_semantics<arbitrary>], iteration_bounds = array<i64: 1>, scalar_prefetch = 0 : i64, scratch_operands = 1 : i64, tpu.core_type = #tpu.core_type<tc>, window_params = [{transform_indices = @transform_0, window_bounds = array<i64: 512, 40>}, {transform_indices = @transform_1, window_bounds = array<i64: 16, 512>}, {pipeline_mode = #tpu.pipeline_mode<synchronous>, transform_indices = @transform_2, window_bounds = array<i64: 16, 1>}, {pipeline_mode = #tpu.pipeline_mode<synchronous>, transform_indices = @transform_3, window_bounds = array<i64: 40, 384>}, {pipeline_mode = #tpu.pipeline_mode<synchronous>, transform_indices = @transform_4, window_bounds = array<i64: 1, 384>}, {pipeline_mode = #tpu.pipeline_mode<synchronous>, transform_indices = @transform_5, window_bounds = array<i64: 384, 512>}, {pipeline_mode = #tpu.pipeline_mode<synchronous>, transform_indices = @transform_6, window_bounds = array<i64: 1, 512>}, {pipeline_mode = #tpu.pipeline_mode<synchronous>, transform_indices = @transform_7, window_bounds = array<i64: 512, 256>}, {pipeline_mode = #tpu.pipeline_mode<synchronous>, transform_indices = @transform_8, window_bounds = array<i64: 1, 256>}, {pipeline_mode = #tpu.pipeline_mode<synchronous>, transform_indices = @transform_9, window_bounds = array<i64: 256, 1024>}, {pipeline_mode = #tpu.pipeline_mode<synchronous>, transform_indices = @transform_10, window_bounds = array<i64: 1, 1024>}, {pipeline_mode = #tpu.pipeline_mode<synchronous>, transform_indices = @transform_11, window_bounds = array<i64: 1024, 512>}, {pipeline_mode = #tpu.pipeline_mode<synchronous>, transform_indices = @transform_12, window_bounds = array<i64: 1, 512>}, {pipeline_mode = #tpu.pipeline_mode<synchronous>, transform_indices = @transform_13, window_bounds = array<i64: 512, 32>}, {pipeline_mode = #tpu.pipeline_mode<synchronous>, transform_indices = @transform_14, window_bounds = array<i64: 1, 32>}, {pipeline_mode = #tpu.pipeline_mode<synchronous>, transform_indices = @transform_15, window_bounds = array<i64: 32, 4>}, {pipeline_mode = #tpu.pipeline_mode<synchronous>, transform_indices = @transform_16, window_bounds = array<i64: 1, 4>}, {pipeline_mode = #tpu.pipeline_mode<synchronous>, transform_indices = @transform_17, window_bounds = array<i64: 16, 4>}]} {
    %c0_i32 = arith.constant 0 : i32
    %0 = arith.cmpi eq, %arg0, %c0_i32 : i32
    %1 = arith.extui %0 : i1 to i32
    %c0_i32_0 = arith.constant 0 : i32
    %2 = arith.cmpi ne, %1, %c0_i32_0 : i32
    scf.if %2 {
      %cst_33 = arith.constant 0.000000e+00 : f32
      %42 = vector.broadcast %cst_33 : f32 to vector<16x1024xf32>
      %c0_34 = arith.constant 0 : index
      %c0_35 = arith.constant 0 : index
      %43 = vector.load %arg19[%c0_34, %c0_35] : memref<16x1024xf32, #tpu.memory_space<vmem>>, vector<16x1024xf32>
      tpu.vector_store %arg19[%c0_34, %c0_35], %42 {strides = array<i32>} : memref<16x1024xf32, #tpu.memory_space<vmem>>, vector<16x1024xf32>,
    } else {
    }
    %c0 = arith.constant 0 : index
    %c0_1 = arith.constant 0 : index
    %3 = vector.load %arg1[%c0, %c0_1] : memref<512x40xbf16, #tpu.memory_space<vmem>>, vector<512x40xbf16>
    %c0_2 = arith.constant 0 : index
    %c0_3 = arith.constant 0 : index
    %4 = vector.load %arg4[%c0_2, %c0_3] : memref<40x384xbf16, #tpu.memory_space<vmem>>, vector<40x384xbf16>
    %cst = arith.constant dense<0.000000e+00> : vector<512x384xf32>
    %5 = tpu.matmul %3, %4, %cst {dimension_numbers = #tpu.dot_dimension_numbers<[1], [0], [0], [1], [0, 0, 1, 1], [], []>} : vector<512x40xbf16>, vector<40x384xbf16>, vector<512x384xf32> -> vector<512x384xf32>
    %c0_4 = arith.constant 0 : index
    %c0_5 = arith.constant 0 : index
    %6 = vector.load %arg5[%c0_4, %c0_5] : memref<1x384xf32, #tpu.memory_space<vmem>>, vector<1x384xf32>
    %7 = vector.broadcast %6 : vector<1x384xf32> to vector<512x384xf32>
    %8 = arith.addf %5, %7 : vector<512x384xf32>
    %cst_6 = arith.constant 0.000000e+00 : f32
    %9 = vector.broadcast %cst_6 : f32 to vector<512x384xf32>
    %10 = arith.maximumf %8, %9 : vector<512x384xf32>
    %11 = arith.truncf %10 : vector<512x384xf32> to vector<512x384xbf16>
    %c0_7 = arith.constant 0 : index
    %c0_8 = arith.constant 0 : index
    %12 = vector.load %arg6[%c0_7, %c0_8] : memref<384x512xbf16, #tpu.memory_space<vmem>>, vector<384x512xbf16>
    %cst_9 = arith.constant dense<0.000000e+00> : vector<512x512xf32>
    %13 = tpu.matmul %11, %12, %cst_9 {dimension_numbers = #tpu.dot_dimension_numbers<[1], [0], [0], [1], [0, 0, 1, 1], [], []>} : vector<512x384xbf16>, vector<384x512xbf16>, vector<512x512xf32> -> vector<512x512xf32>
    %c0_10 = arith.constant 0 : index
    %c0_11 = arith.constant 0 : index
    %14 = vector.load %arg7[%c0_10, %c0_11] : memref<1x512xf32, #tpu.memory_space<vmem>>, vector<1x512xf32>
    %15 = vector.broadcast %14 : vector<1x512xf32> to vector<512x512xf32>
    %16 = arith.addf %13, %15 : vector<512x512xf32>
    %cst_12 = arith.constant 0.000000e+00 : f32
    %17 = vector.broadcast %cst_12 : f32 to vector<512x512xf32>
    %18 = arith.maximumf %16, %17 : vector<512x512xf32>
    %19 = arith.truncf %18 : vector<512x512xf32> to vector<512x512xbf16>
    %c0_13 = arith.constant 0 : index
    %c0_14 = arith.constant 0 : index
    %20 = vector.load %arg8[%c0_13, %c0_14] : memref<512x256xbf16, #tpu.memory_space<vmem>>, vector<512x256xbf16>
    %cst_15 = arith.constant dense<0.000000e+00> : vector<512x256xf32>
    %21 = tpu.matmul %19, %20, %cst_15 {dimension_numbers = #tpu.dot_dimension_numbers<[1], [0], [0], [1], [0, 0, 1, 1], [], []>} : vector<512x512xbf16>, vector<512x256xbf16>, vector<512x256xf32> -> vector<512x256xf32>
    %c0_16 = arith.constant 0 : index
    %c0_17 = arith.constant 0 : index
    %22 = vector.load %arg9[%c0_16, %c0_17] : memref<1x256xf32, #tpu.memory_space<vmem>>, vector<1x256xf32>
    %23 = vector.broadcast %22 : vector<1x256xf32> to vector<512x256xf32>
    %24 = arith.addf %21, %23 : vector<512x256xf32>
    %cst_18 = arith.constant 0.000000e+00 : f32
    %25 = vector.broadcast %cst_18 : f32 to vector<512x256xf32>
    %26 = arith.maximumf %24, %25 : vector<512x256xf32>
    %27 = arith.truncf %26 : vector<512x256xf32> to vector<512x256xbf16>
    %c0_19 = arith.constant 0 : index
    %c0_20 = arith.constant 0 : index
    %28 = vector.load %arg10[%c0_19, %c0_20] : memref<256x1024xbf16, #tpu.memory_space<vmem>>, vector<256x1024xbf16>
    %cst_21 = arith.constant dense<0.000000e+00> : vector<512x1024xf32>
    %29 = tpu.matmul %27, %28, %cst_21 {dimension_numbers = #tpu.dot_dimension_numbers<[1], [0], [0], [1], [0, 0, 1, 1], [], []>} : vector<512x256xbf16>, vector<256x1024xbf16>, vector<512x1024xf32> -> vector<512x1024xf32>
    %c0_22 = arith.constant 0 : index
    %c0_23 = arith.constant 0 : index
    %30 = vector.load %arg11[%c0_22, %c0_23] : memref<1x1024xf32, #tpu.memory_space<vmem>>, vector<1x1024xf32>
    %31 = vector.broadcast %30 : vector<1x1024xf32> to vector<512x1024xf32>
    %32 = arith.addf %29, %31 : vector<512x1024xf32>
    %c0_24 = arith.constant 0 : index
    %c0_25 = arith.constant 0 : index
    %33 = vector.load %arg19[%c0_24, %c0_25] : memref<16x1024xf32, #tpu.memory_space<vmem>>, vector<16x1024xf32>
    %c0_26 = arith.constant 0 : index
    %c0_27 = arith.constant 0 : index
    %34 = vector.load %arg2[%c0_26, %c0_27] : memref<16x512xbf16, #tpu.memory_space<vmem>>, vector<16x512xbf16>
    %35 = arith.truncf %32 : vector<512x1024xf32> to vector<512x1024xbf16>
    %cst_28 = arith.constant dense<0.000000e+00> : vector<16x1024xf32>
    %36 = tpu.matmul %34, %35, %cst_28 {dimension_numbers = #tpu.dot_dimension_numbers<[1], [0], [0], [1], [0, 0, 1, 1], [], []>} : vector<16x512xbf16>, vector<512x1024xbf16>, vector<16x1024xf32> -> vector<16x1024xf32>
    %37 = arith.addf %33, %36 : vector<16x1024xf32>
    %c0_29 = arith.constant 0 : index
    %c0_30 = arith.constant 0 : index
    %38 = vector.load %arg19[%c0_29, %c0_30] : memref<16x1024xf32, #tpu.memory_space<vmem>>, vector<16x1024xf32>
    tpu.vector_store %arg19[%c0_29, %c0_30], %37 {strides = array<i32>} : memref<16x1024xf32, #tpu.memory_space<vmem>>, vector<16x1024xf32>,
    %c0_i32_31 = arith.constant 0 : i32
    %39 = arith.cmpi eq, %arg0, %c0_i32_31 : i32
    %40 = arith.extui %39 : i1 to i32
    %c0_i32_32 = arith.constant 0 : i32
    %41 = arith.cmpi ne, %40, %c0_i32_32 : i32
    scf.if %41 {
      %c0_33 = arith.constant 0 : index
      %c0_34 = arith.constant 0 : index
      %42 = vector.load %arg19[%c0_33, %c0_34] : memref<16x1024xf32, #tpu.memory_space<vmem>>, vector<16x1024xf32>
      %c0_35 = arith.constant 0 : index
      %c0_36 = arith.constant 0 : index
      %43 = vector.load %arg3[%c0_35, %c0_36] : memref<16x1xf32, #tpu.memory_space<vmem>>, vector<16x1xf32>
      %44 = vector.broadcast %43 : vector<16x1xf32> to vector<16x1024xf32>
      %45 = arith.mulf %42, %44 : vector<16x1024xf32>
      %46 = arith.truncf %45 : vector<16x1024xf32> to vector<16x1024xbf16>
      %c0_37 = arith.constant 0 : index
      %c0_38 = arith.constant 0 : index
      %47 = vector.load %arg12[%c0_37, %c0_38] : memref<1024x512xbf16, #tpu.memory_space<vmem>>, vector<1024x512xbf16>
      %cst_39 = arith.constant dense<0.000000e+00> : vector<16x512xf32>
      %48 = tpu.matmul %46, %47, %cst_39 {dimension_numbers = #tpu.dot_dimension_numbers<[1], [0], [0], [1], [0, 0, 1, 1], [], []>} : vector<16x1024xbf16>, vector<1024x512xbf16>, vector<16x512xf32> -> vector<16x512xf32>
      %c0_40 = arith.constant 0 : index
      %c0_41 = arith.constant 0 : index
      %49 = vector.load %arg13[%c0_40, %c0_41] : memref<1x512xf32, #tpu.memory_space<vmem>>, vector<1x512xf32>
      %50 = vector.broadcast %49 : vector<1x512xf32> to vector<16x512xf32>
      %51 = arith.addf %48, %50 : vector<16x512xf32>
      %cst_42 = arith.constant 0.000000e+00 : f32
      %52 = vector.broadcast %cst_42 : f32 to vector<16x512xf32>
      %53 = arith.maximumf %51, %52 : vector<16x512xf32>
      %54 = arith.truncf %53 : vector<16x512xf32> to vector<16x512xbf16>
      %c0_43 = arith.constant 0 : index
      %c0_44 = arith.constant 0 : index
      %55 = vector.load %arg14[%c0_43, %c0_44] : memref<512x32xbf16, #tpu.memory_space<vmem>>, vector<512x32xbf16>
      %cst_45 = arith.constant dense<0.000000e+00> : vector<16x32xf32>
      %56 = tpu.matmul %54, %55, %cst_45 {dimension_numbers = #tpu.dot_dimension_numbers<[1], [0], [0], [1], [0, 0, 1, 1], [], []>} : vector<16x512xbf16>, vector<512x32xbf16>, vector<16x32xf32> -> vector<16x32xf32>
      %c0_46 = arith.constant 0 : index
      %c0_47 = arith.constant 0 : index
      %57 = vector.load %arg15[%c0_46, %c0_47] : memref<1x32xf32, #tpu.memory_space<vmem>>, vector<1x32xf32>
      %58 = vector.broadcast %57 : vector<1x32xf32> to vector<16x32xf32>
      %59 = arith.addf %56, %58 : vector<16x32xf32>
      %cst_48 = arith.constant 0.000000e+00 : f32
      %60 = vector.broadcast %cst_48 : f32 to vector<16x32xf32>
      %61 = arith.maximumf %59, %60 : vector<16x32xf32>
      %62 = arith.truncf %61 : vector<16x32xf32> to vector<16x32xbf16>
      %c0_49 = arith.constant 0 : index
      %c0_50 = arith.constant 0 : index
      %63 = vector.load %arg16[%c0_49, %c0_50] : memref<32x4xbf16, #tpu.memory_space<vmem>>, vector<32x4xbf16>
      %cst_51 = arith.constant dense<0.000000e+00> : vector<16x4xf32>
      %64 = tpu.matmul %62, %63, %cst_51 {dimension_numbers = #tpu.dot_dimension_numbers<[1], [0], [0], [1], [0, 0, 1, 1], [], []>} : vector<16x32xbf16>, vector<32x4xbf16>, vector<16x4xf32> -> vector<16x4xf32>
      %c0_52 = arith.constant 0 : index
      %c0_53 = arith.constant 0 : index
      %65 = vector.load %arg17[%c0_52, %c0_53] : memref<1x4xf32, #tpu.memory_space<vmem>>, vector<1x4xf32>
      %66 = vector.broadcast %65 : vector<1x4xf32> to vector<16x4xf32>
      %67 = arith.addf %64, %66 : vector<16x4xf32>
      %c0_54 = arith.constant 0 : index
      %c0_55 = arith.constant 0 : index
      %68 = vector.load %arg18[%c0_54, %c0_55] : memref<16x4xf32, #tpu.memory_space<vmem>>, vector<16x4xf32>
      tpu.vector_store %arg18[%c0_54, %c0_55], %67 {strides = array<i32>} : memref<16x4xf32, #tpu.memory_space<vmem>>, vector<16x4xf32>,
    } else {
    }
    return
  }
  func.func @transform_0(%arg0: i32) -> (i32, i32) {
    %c0_i32 = arith.constant 0 : i32
    %c0_i32_0 = arith.constant 0 : i32
    return %arg0, %c0_i32 : i32, i32
  }
  func.func @transform_1(%arg0: i32) -> (i32, i32) {
    %c0_i32 = arith.constant 0 : i32
    %c0_i32_0 = arith.constant 0 : i32
    return %c0_i32, %arg0 : i32, i32
  }
  func.func @transform_2(%arg0: i32) -> (i32, i32) {
    %c0_i32 = arith.constant 0 : i32
    %c0_i32_0 = arith.constant 0 : i32
    %c0_i32_1 = arith.constant 0 : i32
    return %c0_i32, %c0_i32_0 : i32, i32
  }
  func.func @transform_3(%arg0: i32) -> (i32, i32) {
    %c0_i32 = arith.constant 0 : i32
    %c0_i32_0 = arith.constant 0 : i32
    %c0_i32_1 = arith.constant 0 : i32
    return %c0_i32, %c0_i32_0 : i32, i32
  }
  func.func @transform_4(%arg0: i32) -> (i32, i32) {
    %c0_i32 = arith.constant 0 : i32
    %c0_i32_0 = arith.constant 0 : i32
    %c0_i32_1 = arith.constant 0 : i32
    return %c0_i32, %c0_i32_0 : i32, i32
  }
  func.func @transform_5(%arg0: i32) -> (i32, i32) {
    %c0_i32 = arith.constant 0 : i32
    %c0_i32_0 = arith.constant 0 : i32
    %c0_i32_1 = arith.constant 0 : i32
    return %c0_i32, %c0_i32_0 : i32, i32
  }
  func.func @transform_6(%arg0: i32) -> (i32, i32) {
    %c0_i32 = arith.constant 0 : i32
    %c0_i32_0 = arith.constant 0 : i32
    %c0_i32_1 = arith.constant 0 : i32
    return %c0_i32, %c0_i32_0 : i32, i32
  }
  func.func @transform_7(%arg0: i32) -> (i32, i32) {
    %c0_i32 = arith.constant 0 : i32
    %c0_i32_0 = arith.constant 0 : i32
    %c0_i32_1 = arith.constant 0 : i32
    return %c0_i32, %c0_i32_0 : i32, i32
  }
  func.func @transform_8(%arg0: i32) -> (i32, i32) {
    %c0_i32 = arith.constant 0 : i32
    %c0_i32_0 = arith.constant 0 : i32
    %c0_i32_1 = arith.constant 0 : i32
    return %c0_i32, %c0_i32_0 : i32, i32
  }
  func.func @transform_9(%arg0: i32) -> (i32, i32) {
    %c0_i32 = arith.constant 0 : i32
    %c0_i32_0 = arith.constant 0 : i32
    %c0_i32_1 = arith.constant 0 : i32
    return %c0_i32, %c0_i32_0 : i32, i32
  }
  func.func @transform_10(%arg0: i32) -> (i32, i32) {
    %c0_i32 = arith.constant 0 : i32
    %c0_i32_0 = arith.constant 0 : i32
    %c0_i32_1 = arith.constant 0 : i32
    return %c0_i32, %c0_i32_0 : i32, i32
  }
  func.func @transform_11(%arg0: i32) -> (i32, i32) {
    %c0_i32 = arith.constant 0 : i32
    %c0_i32_0 = arith.constant 0 : i32
    %c0_i32_1 = arith.constant 0 : i32
    return %c0_i32, %c0_i32_0 : i32, i32
  }
  func.func @transform_12(%arg0: i32) -> (i32, i32) {
    %c0_i32 = arith.constant 0 : i32
    %c0_i32_0 = arith.constant 0 : i32
    %c0_i32_1 = arith.constant 0 : i32
    return %c0_i32, %c0_i32_0 : i32, i32
  }
  func.func @transform_13(%arg0: i32) -> (i32, i32) {
    %c0_i32 = arith.constant 0 : i32
    %c0_i32_0 = arith.constant 0 : i32
    %c0_i32_1 = arith.constant 0 : i32
    return %c0_i32, %c0_i32_0 : i32, i32
  }
  func.func @transform_14(%arg0: i32) -> (i32, i32) {
    %c0_i32 = arith.constant 0 : i32
    %c0_i32_0 = arith.constant 0 : i32
    %c0_i32_1 = arith.constant 0 : i32
    return %c0_i32, %c0_i32_0 : i32, i32
  }
  func.func @transform_15(%arg0: i32) -> (i32, i32) {
    %c0_i32 = arith.constant 0 : i32
    %c0_i32_0 = arith.constant 0 : i32
    %c0_i32_1 = arith.constant 0 : i32
    return %c0_i32, %c0_i32_0 : i32, i32
  }
  func.func @transform_16(%arg0: i32) -> (i32, i32) {
    %c0_i32 = arith.constant 0 : i32
    %c0_i32_0 = arith.constant 0 : i32
    %c0_i32_1 = arith.constant 0 : i32
    return %c0_i32, %c0_i32_0 : i32, i32
  }
  func.func @transform_17(%arg0: i32) -> (i32, i32) {
    %c0_i32 = arith.constant 0 : i32
    %c0_i32_0 = arith.constant 0 : i32
    %c0_i32_1 = arith.constant 0 : i32
    return %c0_i32, %c0_i32_0 : i32, i32
  }
}

</mosaic_0001>

<llo_original>
// kernel: tpu_custom_call.1
$region0: #{tpu_custom_call.1}
  #allocation0 [shape = 'u32[]', space=smem, size = 0x4, offset = 0x4, fixed_abs, tag = 'smem constant byte address 0x4 - core index']
  #allocation1 [shape = 'u32[72,128]{1,0:T(1,128)}', space=vmem, size = 0x9000, scoped, tag = 'internal scratch']
  #allocation2 [shape = 'f32[16,1024]{1,0:T(8,128)}', space=vmem, size = 0x10000, scoped, tag = 'scratch operand']
  %s0 = inlined_call_operand.vmem [shape: bf16[512,40], index: 0, kind: input, shape index: {}]
  %s1 = inlined_call_operand.vmem [shape: bf16[16,512], index: 1, kind: input, shape index: {}]
  %s2 = inlined_call_operand.vmem [shape: f32[16,1], index: 2, kind: input, shape index: {}]
  %s3 = inlined_call_operand.vmem [shape: bf16[40,384], index: 3, kind: input, shape index: {}]
  %s4 = inlined_call_operand.vmem [shape: f32[1,384], index: 4, kind: input, shape index: {}]
  %s5 = inlined_call_operand.hbm [shape: bf16[384,512], index: 5, kind: input, shape index: {}]
  %s6 = inlined_call_operand.vmem [shape: f32[1,512], index: 6, kind: input, shape index: {}]
  %s7 = inlined_call_operand.vmem [shape: bf16[512,256], index: 7, kind: input, shape index: {}]
  %s8 = inlined_call_operand.vmem [shape: f32[1,256], index: 8, kind: input, shape index: {}]
  %s9 = inlined_call_operand.hbm [shape: bf16[256,1024], index: 9, kind: input, shape index: {}]
  %s10 = inlined_call_operand.vmem [shape: f32[1,1024], index: 10, kind: input, shape index: {}]
  %s11 = inlined_call_operand.hbm [shape: bf16[1024,512], index: 11, kind: input, shape index: {}]
  %s12 = inlined_call_operand.vmem [shape: f32[1,512], index: 12, kind: input, shape index: {}]
  %s13 = inlined_call_operand.vmem [shape: bf16[512,32], index: 13, kind: input, shape index: {}]
  %s14 = inlined_call_operand.vmem [shape: f32[1,32], index: 14, kind: input, shape index: {}]
  %s15 = inlined_call_operand.vmem [shape: bf16[32,4], index: 15, kind: input, shape index: {}]
  %s16 = inlined_call_operand.vmem [shape: f32[1,4], index: 16, kind: input, shape index: {}]
  %s17 = inlined_call_operand.vmem [shape: f32[16,4], index: 17, kind: output, shape index: {}]
  %s18 = sld [smem:[#allocation0]]
  $region98: #{tpu_custom_call.1} parent=0
    _
  %s20 = ssub.s32 1, %s18
  %s21 = scalar_select 0, %s20, %s18
  $region1: #{tpu_custom_call.1} parent=0
    #allocation3 [shape = 'u8[393216]{0}', space=vmem, size = 0x60000, scoped, tag = 'input window, operand 5, single buffered']
    #allocation4 [shape = 's32[1]{0}', space=sflag, size = 0x4, scoped, tag = 'scoped memory for tpu_custom_call.1']
    #allocation5 [shape = 'u8[524288]{0}', space=vmem, size = 0x80000, scoped, tag = 'input window, operand 9, single buffered']
    #allocation6 [shape = 's32[1]{0}', space=sflag, size = 0x4, scoped, tag = 'scoped memory for tpu_custom_call.1']
    #allocation7 [shape = 'u8[1048576]{0}', space=vmem, size = 0x100000, scoped, tag = 'input window, operand 11, single buffered']
    %22 = vsyncpa [#allocation4], 0
    %23 = vsyncpa [#allocation6], 0
    // Predicated region
    $region2: #{tpu_custom_call.1} parent=1 // pred_check
      _
    $region3: #{tpu_custom_call.1} parent=1 // pred_check_branch
      %25 = sbr.rel (0) target = $region5
    $region4: #{tpu_custom_call.1} parent=1 // pred_region
      _
    $region5: #{tpu_custom_call.1} parent=1 // pred_fallthru
      _
    // Predicated region
    $region6: #{tpu_custom_call.1} parent=1 // pred_check
      _
    $region7: #{tpu_custom_call.1} parent=1 // pred_check_branch
      %27 = sbr.rel (0) target = $region9
    $region8: #{tpu_custom_call.1} parent=1 // pred_region
      _
    $region9: #{tpu_custom_call.1} parent=1 // pred_fallthru
      _
    // Predicated region
    $region10: #{tpu_custom_call.1} parent=1 // pred_check
      _
    $region11: #{tpu_custom_call.1} parent=1 // pred_check_branch
      %29 = sbr.rel (0) target = $region13
    $region12: #{tpu_custom_call.1} parent=1 // pred_region
      _
    $region13: #{tpu_custom_call.1} parent=1 // pred_fallthru
      _
    // Predicated region
    $region14: #{tpu_custom_call.1} parent=1 // pred_check
      _
    $region15: #{tpu_custom_call.1} parent=1 // pred_check_branch
      %31 = sbr.rel (0) target = $region17
    $region16: #{tpu_custom_call.1} parent=1 // pred_region
      _
    $region17: #{tpu_custom_call.1} parent=1 // pred_fallthru
      _
    // Predicated region
    $region18: #{tpu_custom_call.1} parent=1 // pred_check
      _
    $region19: #{tpu_custom_call.1} parent=1 // pred_check_branch
      %33 = sbr.rel (0) target = $region21
    $region20: #{tpu_custom_call.1} parent=1 // pred_region
      _
    $region21: #{tpu_custom_call.1} parent=1 // pred_fallthru
      _
    // Predicated region
    $region22: #{tpu_custom_call.1} parent=1 // pred_check
      _
    $region23: #{tpu_custom_call.1} parent=1 // pred_check_branch
      %35 = sbr.rel (0) target = $region25
    $region24: #{tpu_custom_call.1} parent=1 // pred_region
      %37 = vsyncadd [#allocation4], 0
      %s38 = sshll.u32 %s5, 4
      %s39 = int_to_ptr.hbm [resolvable:$true] %s38
      %s40 = sshll.u32 [#allocation3], 4
      %s41 = int_to_ptr.vmem [resolvable:$true] %s40
      %46 = dma.hbm_to_vmem [thread:$0]  %s39, 12288, %s41, [#allocation4], 256, 256, 16
    $region25: #{tpu_custom_call.1} parent=1 // pred_fallthru
      _
    // Predicated region
    $region26: #{tpu_custom_call.1} parent=1 // pred_check
      _
    $region27: #{tpu_custom_call.1} parent=1 // pred_check_branch
      %48 = sbr.rel (0) target = $region29
    $region28: #{tpu_custom_call.1} parent=1 // pred_region
      _
    $region29: #{tpu_custom_call.1} parent=1 // pred_fallthru
      _
    // Predicated region
    $region30: #{tpu_custom_call.1} parent=1 // pred_check
      _
    $region31: #{tpu_custom_call.1} parent=1 // pred_check_branch
      %50 = sbr.rel (0) target = $region33
    $region32: #{tpu_custom_call.1} parent=1 // pred_region
      _
    $region33: #{tpu_custom_call.1} parent=1 // pred_fallthru
      _
    // Predicated region
    $region34: #{tpu_custom_call.1} parent=1 // pred_check
      _
    $region35: #{tpu_custom_call.1} parent=1 // pred_check_branch
      %52 = sbr.rel (0) target = $region37
    $region36: #{tpu_custom_call.1} parent=1 // pred_region
      _
    $region37: #{tpu_custom_call.1} parent=1 // pred_fallthru
      _
    // Predicated region
    $region38: #{tpu_custom_call.1} parent=1 // pred_check
      _
    $region39: #{tpu_custom_call.1} parent=1 // pred_check_branch
      %54 = sbr.rel (0) target = $region41
    $region40: #{tpu_custom_call.1} parent=1 // pred_region
      %56 = vsyncadd [#allocation6], 0
      %s57 = sshll.u32 %s9, 4
      %s58 = int_to_ptr.hbm [resolvable:$true] %s57
      %s59 = sshll.u32 [#allocation5], 4
      %s60 = int_to_ptr.vmem [resolvable:$true] %s59
      %65 = dma.hbm_to_vmem [thread:$0]  %s58, 16384, %s60, [#allocation6], 512, 512, 32
    $region41: #{tpu_custom_call.1} parent=1 // pred_fallthru
      _
    // Predicated region
    $region42: #{tpu_custom_call.1} parent=1 // pred_check
      _
    $region43: #{tpu_custom_call.1} parent=1 // pred_check_branch
      %67 = sbr.rel (0) target = $region45
    $region44: #{tpu_custom_call.1} parent=1 // pred_region
      _
    $region45: #{tpu_custom_call.1} parent=1 // pred_fallthru
      _
    // Predicated region
    $region46: #{tpu_custom_call.1} parent=1 // pred_check
      _
    $region47: #{tpu_custom_call.1} parent=1 // pred_check_branch
      %69 = sbr.rel (0) target = $region49
    $region48: #{tpu_custom_call.1} parent=1 // pred_region
      %71 = vsyncadd [#allocation6], 0
      %s72 = sshll.u32 %s11, 4
      %s73 = int_to_ptr.hbm [resolvable:$true] %s72
      %s74 = sshll.u32 [#allocation7], 4
      %s75 = int_to_ptr.vmem [resolvable:$true] %s74
      %80 = dma.hbm_to_vmem [thread:$0]  %s73, 32768, %s75, [#allocation6], 256, 256, 16
    $region49: #{tpu_custom_call.1} parent=1 // pred_fallthru
      _
    // Predicated region
    $region50: #{tpu_custom_call.1} parent=1 // pred_check
      _
    $region51: #{tpu_custom_call.1} parent=1 // pred_check_branch
      %82 = sbr.rel (0) target = $region53
    $region52: #{tpu_custom_call.1} parent=1 // pred_region
      _
    $region53: #{tpu_custom_call.1} parent=1 // pred_fallthru
      _
    // Predicated region
    $region54: #{tpu_custom_call.1} parent=1 // pred_check
      _
    $region55: #{tpu_custom_call.1} parent=1 // pred_check_branch
      %84 = sbr.rel (0) target = $region57
    $region56: #{tpu_custom_call.1} parent=1 // pred_region
      _
    $region57: #{tpu_custom_call.1} parent=1 // pred_fallthru
      _
    // Predicated region
    $region58: #{tpu_custom_call.1} parent=1 // pred_check
      _
    $region59: #{tpu_custom_call.1} parent=1 // pred_check_branch
      %86 = sbr.rel (0) target = $region61
    $region60: #{tpu_custom_call.1} parent=1 // pred_region
      _
    $region61: #{tpu_custom_call.1} parent=1 // pred_fallthru
      _
    // Predicated region
    $region62: #{tpu_custom_call.1} parent=1 // pred_check
      _
    $region63: #{tpu_custom_call.1} parent=1 // pred_check_branch
      %88 = sbr.rel (0) target = $region65
    $region64: #{tpu_custom_call.1} parent=1 // pred_region
      _
    $region65: #{tpu_custom_call.1} parent=1 // pred_fallthru
      _
    // Predicated region
    $region66: #{tpu_custom_call.1} parent=1 // pred_check
      _
    $region67: #{tpu_custom_call.1} parent=1 // pred_check_branch
      %90 = sbr.rel (0) target = $region69
    $region68: #{tpu_custom_call.1} parent=1 // pred_region
      _
    $region69: #{tpu_custom_call.1} parent=1 // pred_fallthru
      _
    // Predicated region
    $region70: #{tpu_custom_call.1} parent=1 // pred_check
      _
    $region71: #{tpu_custom_call.1} parent=1 // pred_check_branch
      %92 = sbr.rel (0) target = $region73
    $region72: #{tpu_custom_call.1} parent=1 // pred_region
      %94 = dma.done [#allocation4], 12288
    $region73: #{tpu_custom_call.1} parent=1 // pred_fallthru
      _
    // Predicated region
    $region74: #{tpu_custom_call.1} parent=1 // pred_check
      _
    $region75: #{tpu_custom_call.1} parent=1 // pred_check_branch
      %96 = sbr.rel (0) target = $region77
    $region76: #{tpu_custom_call.1} parent=1 // pred_region
      %98 = dma.done [#allocation6], 16384
    $region77: #{tpu_custom_call.1} parent=1 // pred_fallthru
      _
    // Predicated region
    $region78: #{tpu_custom_call.1} parent=1 // pred_check
      _
    $region79: #{tpu_custom_call.1} parent=1 // pred_check_branch
      %100 = sbr.rel (0) target = $region81
    $region80: #{tpu_custom_call.1} parent=1 // pred_region
      %102 = dma.done [#allocation6], 32768
    $region81: #{tpu_custom_call.1} parent=1 // pred_fallthru
      _
    %p104 = scmp.eq.s32.totalorder 0, 0
    // Predicated region
    $region82: #{tpu_custom_call.1} parent=1 // pred_check
      %p105 = pneg %p104
    $region83: #{tpu_custom_call.1} parent=1 // pred_check_branch
      %107 = sbr.rel (%p105) target = $region85
    $region84: #{tpu_custom_call.1} parent=1 // pred_region
      %108 = vst [vmem:[#allocation2] sm:$0xff] 0.0
      %109 = vst [vmem:[#allocation2 + $0x8] sm:$0xff] 0.0
      %110 = vst [vmem:[#allocation2 + $0x10] sm:$0xff] 0.0
      %111 = vst [vmem:[#allocation2 + $0x18] sm:$0xff] 0.0
      %112 = vst [vmem:[#allocation2 + $0x20] sm:$0xff] 0.0
      %113 = vst [vmem:[#allocation2 + $0x28] sm:$0xff] 0.0
      %114 = vst [vmem:[#allocation2 + $0x30] sm:$0xff] 0.0
      %115 = vst [vmem:[#allocation2 + $0x38] sm:$0xff] 0.0
      %116 = vst [vmem:[#allocation2 + $0x40] sm:$0xff] 0.0
      %117 = vst [vmem:[#allocation2 + $0x48] sm:$0xff] 0.0
      %118 = vst [vmem:[#allocation2 + $0x50] sm:$0xff] 0.0
      %119 = vst [vmem:[#allocation2 + $0x58] sm:$0xff] 0.0
      %120 = vst [vmem:[#allocation2 + $0x60] sm:$0xff] 0.0
      %121 = vst [vmem:[#allocation2 + $0x68] sm:$0xff] 0.0
      %122 = vst [vmem:[#allocation2 + $0x70] sm:$0xff] 0.0
      %123 = vst [vmem:[#allocation2 + $0x78] sm:$0xff] 0.0
    $region85: #{tpu_custom_call.1} parent=1 // pred_fallthru
      _
    %v124 = vld [vmem:[%s0] sm:$0xf]
    %v125 = vld [vmem:[%s0 + $0x4] sm:$0xf]
    %v126 = vld [vmem:[%s0 + $0x8] sm:$0xf]
    %v127 = vld [vmem:[%s0 + $0xc] sm:$0xf]
    %v128 = vld [vmem:[%s0 + $0x10] sm:$0xf]
    %v129 = vld [vmem:[%s0 + $0x14] sm:$0xf]
    %v130 = vld [vmem:[%s0 + $0x18] sm:$0xf]
    %v131 = vld [vmem:[%s0 + $0x1c] sm:$0xf]
    %v132 = vld [vmem:[%s0 + $0x20] sm:$0xf]
    %v133 = vld [vmem:[%s0 + $0x24] sm:$0xf]
    %v134 = vld [vmem:[%s0 + $0x28] sm:$0xf]
    %v135 = vld [vmem:[%s0 + $0x2c] sm:$0xf]
    %v136 = vld [vmem:[%s0 + $0x30] sm:$0xf]
    %v137 = vld [vmem:[%s0 + $0x34] sm:$0xf]
    %v138 = vld [vmem:[%s0 + $0x38] sm:$0xf]
    %v139 = vld [vmem:[%s0 + $0x3c] sm:$0xf]
    %v140 = vld [vmem:[%s0 + $0x40] sm:$0xf]
    %v141 = vld [vmem:[%s0 + $0x44] sm:$0xf]
    %v142 = vld [vmem:[%s0 + $0x48] sm:$0xf]
    %v143 = vld [vmem:[%s0 + $0x4c] sm:$0xf]
    %v144 = vld [vmem:[%s0 + $0x50] sm:$0xf]
    %v145 = vld [vmem:[%s0 + $0x54] sm:$0xf]
    %v146 = vld [vmem:[%s0 + $0x58] sm:$0xf]
    %v147 = vld [vmem:[%s0 + $0x5c] sm:$0xf]
    %v148 = vld [vmem:[%s0 + $0x60] sm:$0xf]
    %v149 = vld [vmem:[%s0 + $0x64] sm:$0xf]
    %v150 = vld [vmem:[%s0 + $0x68] sm:$0xf]
    %v151 = vld [vmem:[%s0 + $0x6c] sm:$0xf]
    %v152 = vld [vmem:[%s0 + $0x70] sm:$0xf]
    %v153 = vld [vmem:[%s0 + $0x74] sm:$0xf]
    %v154 = vld [vmem:[%s0 + $0x78] sm:$0xf]
    %v155 = vld [vmem:[%s0 + $0x7c] sm:$0xf]
    %v156 = vld [vmem:[%s0 + $0x80] sm:$0xf]
    %v157 = vld [vmem:[%s0 + $0x84] sm:$0xf]
    %v158 = vld [vmem:[%s0 + $0x88] sm:$0xf]
    %v159 = vld [vmem:[%s0 + $0x8c] sm:$0xf]
    %v160 = vld [vmem:[%s0 + $0x90] sm:$0xf]
    %v161 = vld [vmem:[%s0 + $0x94] sm:$0xf]
    %v162 = vld [vmem:[%s0 + $0x98] sm:$0xf]
    %v163 = vld [vmem:[%s0 + $0x9c] sm:$0xf]
    %v164 = vld [vmem:[%s0 + $0xa0] sm:$0xf]
    %v165 = vld [vmem:[%s0 + $0xa4] sm:$0xf]
    %v166 = vld [vmem:[%s0 + $0xa8] sm:$0xf]
    %v167 = vld [vmem:[%s0 + $0xac] sm:$0xf]
    %v168 = vld [vmem:[%s0 + $0xb0] sm:$0xf]
    %v169 = vld [vmem:[%s0 + $0xb4] sm:$0xf]
    %v170 = vld [vmem:[%s0 + $0xb8] sm:$0xf]
    %v171 = vld [vmem:[%s0 + $0xbc] sm:$0xf]
    %v172 = vld [vmem:[%s0 + $0xc0] sm:$0xf]
    %v173 = vld [vmem:[%s0 + $0xc4] sm:$0xf]
    %v174 = vld [vmem:[%s0 + $0xc8] sm:$0xf]
    %v175 = vld [vmem:[%s0 + $0xcc] sm:$0xf]
    %v176 = vld [vmem:[%s0 + $0xd0] sm:$0xf]
    %v177 = vld [vmem:[%s0 + $0xd4] sm:$0xf]
    %v178 = vld [vmem:[%s0 + $0xd8] sm:$0xf]
    %v179 = vld [vmem:[%s0 + $0xdc] sm:$0xf]
    %v180 = vld [vmem:[%s0 + $0xe0] sm:$0xf]
    %v181 = vld [vmem:[%s0 + $0xe4] sm:$0xf]
    %v182 = vld [vmem:[%s0 + $0xe8] sm:$0xf]
    %v183 = vld [vmem:[%s0 + $0xec] sm:$0xf]
    %v184 = vld [vmem:[%s0 + $0xf0] sm:$0xf]
    %v185 = vld [vmem:[%s0 + $0xf4] sm:$0xf]
    %v186 = vld [vmem:[%s0 + $0xf8] sm:$0xf]
    %v187 = vld [vmem:[%s0 + $0xfc] sm:$0xf]
    %v188 = vld [vmem:[%s3] sm:$0xff]
    %v189 = vld [vmem:[%s3 + $0x8] sm:$0xf]
    %v190 = vld [vmem:[%s3 + $0xc] sm:$0xff]
    %v191 = vld [vmem:[%s3 + $0x14] sm:$0xf]
    %v192 = vld [vmem:[%s3 + $0x18] sm:$0xff]
    %v193 = vld [vmem:[%s3 + $0x20] sm:$0xf]
    %v194 = vld [vmem:[%s3 + $0x24] sm:$0xff]
    %v195 = vld [vmem:[%s3 + $0x2c] sm:$0xf]
    %v196 = vld [vmem:[%s3 + $0x30] sm:$0xff]
    %v197 = vld [vmem:[%s3 + $0x38] sm:$0xf]
    %v198 = vld [vmem:[%s4] sm:$0x7]
    %v200 = vperm.slane %v198, 0
    %v201 = vperm.slane %v198, 1
    %v202 = vperm.slane %v198, 2
    %v270 = vunpack.c.l.b16 %v124
    %v271 = vunpack.c.l.b16 %v125
    %v272 = vunpack.c.l.b16 %v126
    %v273 = vunpack.c.l.b16 %v127
    %v274 = vunpack.c.l.b16 %v128
    %v275 = vunpack.c.l.b16 %v129
    %v276 = vunpack.c.l.b16 %v130
    %v277 = vunpack.c.l.b16 %v131
    %v278 = vunpack.c.l.b16 %v132
    %v279 = vunpack.c.l.b16 %v133
    %v280 = vunpack.c.l.b16 %v134
    %v281 = vunpack.c.l.b16 %v135
    %v282 = vunpack.c.l.b16 %v136
    %v283 = vunpack.c.l.b16 %v137
    %v284 = vunpack.c.l.b16 %v138
    %v285 = vunpack.c.l.b16 %v139
    %v286 = vunpack.c.l.b16 %v140
    %v287 = vunpack.c.l.b16 %v141
    %v288 = vunpack.c.l.b16 %v142
    %v289 = vunpack.c.l.b16 %v143
    %v290 = vunpack.c.l.b16 %v144
    %v291 = vunpack.c.l.b16 %v145
    %v292 = vunpack.c.l.b16 %v146
    %v293 = vunpack.c.l.b16 %v147
    %v294 = vunpack.c.l.b16 %v148
    %v295 = vunpack.c.l.b16 %v149
    %v296 = vunpack.c.l.b16 %v150
    %v297 = vunpack.c.l.b16 %v151
    %v298 = vunpack.c.l.b16 %v152
    %v299 = vunpack.c.l.b16 %v153
    %v300 = vunpack.c.l.b16 %v154
    %v301 = vunpack.c.l.b16 %v155
    %v302 = vunpack.c.l.b16 %v156
    %v303 = vunpack.c.l.b16 %v157
    %v304 = vunpack.c.l.b16 %v158
    %v305 = vunpack.c.l.b16 %v159
    %v306 = vunpack.c.l.b16 %v160
    %v307 = vunpack.c.l.b16 %v161
    %v308 = vunpack.c.l.b16 %v162
    %v309 = vunpack.c.l.b16 %v163
    %v310 = vunpack.c.l.b16 %v164
    %v311 = vunpack.c.l.b16 %v165
    %v312 = vunpack.c.l.b16 %v166
    %v313 = vunpack.c.l.b16 %v167
    %v314 = vunpack.c.l.b16 %v168
    %v315 = vunpack.c.l.b16 %v169
    %v316 = vunpack.c.l.b16 %v170
    %v317 = vunpack.c.l.b16 %v171
    %v318 = vunpack.c.l.b16 %v172
    %v319 = vunpack.c.l.b16 %v173
    %v320 = vunpack.c.l.b16 %v174
    %v321 = vunpack.c.l.b16 %v175
    %v322 = vunpack.c.l.b16 %v176
    %v323 = vunpack.c.l.b16 %v177
    %v324 = vunpack.c.l.b16 %v178
    %v325 = vunpack.c.l.b16 %v179
    %v326 = vunpack.c.l.b16 %v180
    %v327 = vunpack.c.l.b16 %v181
    %v328 = vunpack.c.l.b16 %v182
    %v329 = vunpack.c.l.b16 %v183
    %v330 = vunpack.c.l.b16 %v184
    %v331 = vunpack.c.l.b16 %v185
    %v332 = vunpack.c.l.b16 %v186
    %v333 = vunpack.c.l.b16 %v187
    %v334 = vpack.c.b16 %v271, %v270
    %v335 = vpack.c.b16 %v273, %v272
    %v336 = vpack.c.b16 %v275, %v274
    %v337 = vpack.c.b16 %v277, %v276
    %v338 = vpack.c.b16 %v279, %v278
    %v339 = vpack.c.b16 %v281, %v280
    %v340 = vpack.c.b16 %v283, %v282
    %v341 = vpack.c.b16 %v285, %v284
    %v342 = vpack.c.b16 %v287, %v286
    %v343 = vpack.c.b16 %v289, %v288
    %v344 = vpack.c.b16 %v291, %v290
    %v345 = vpack.c.b16 %v293, %v292
    %v346 = vpack.c.b16 %v295, %v294
    %v347 = vpack.c.b16 %v297, %v296
    %v348 = vpack.c.b16 %v299, %v298
    %v349 = vpack.c.b16 %v301, %v300
    %v350 = vpack.c.b16 %v303, %v302
    %v351 = vpack.c.b16 %v305, %v304
    %v352 = vpack.c.b16 %v307, %v306
    %v353 = vpack.c.b16 %v309, %v308
    %v354 = vpack.c.b16 %v311, %v310
    %v355 = vpack.c.b16 %v313, %v312
    %v356 = vpack.c.b16 %v315, %v314
    %v357 = vpack.c.b16 %v317, %v316
    %v358 = vpack.c.b16 %v319, %v318
    %v359 = vpack.c.b16 %v321, %v320
    %v360 = vpack.c.b16 %v323, %v322
    %v361 = vpack.c.b16 %v325, %v324
    %v362 = vpack.c.b16 %v327, %v326
    %v363 = vpack.c.b16 %v329, %v328
    %v364 = vpack.c.b16 %v331, %v330
    %v365 = vpack.c.b16 %v333, %v332
    %v376 = vunpack.c.l.b16 %v188
    %v377 = vunpack.c.h.b16 %v188
    %v378 = vunpack.c.l.b16 %v189
    %v379 = vunpack.c.l.b16 %v190
    %v380 = vunpack.c.h.b16 %v190
    %v381 = vunpack.c.l.b16 %v191
    %v382 = vunpack.c.l.b16 %v192
    %v383 = vunpack.c.h.b16 %v192
    %v384 = vunpack.c.l.b16 %v193
    %v385 = vunpack.c.l.b16 %v194
    %v386 = vunpack.c.h.b16 %v194
    %v387 = vunpack.c.l.b16 %v195
    %v388 = vunpack.c.l.b16 %v196
    %v389 = vunpack.c.h.b16 %v196
    %v390 = vunpack.c.l.b16 %v197
    %v391 = vpack.c.b16 %v379, %v376
    %v392 = vpack.c.b16 %v380, %v377
    %v393 = vpack.c.b16 %v381, %v378
    %v394 = vpack.c.b16 %v385, %v382
    %v395 = vpack.c.b16 %v386, %v383
    %v396 = vpack.c.b16 %v387, %v384
    %v397 = vpack.c.b16 %v388, %v388
    %v398 = vpack.c.b16 %v389, %v389
    %v399 = vpack.c.b16 %v390, %v390
    %vm406 = vcmask 326656
    %v408 = vsel %vm406, %v334, 0
    %v411 = vsel %vm406, %v335, 0
    %v414 = vsel %vm406, %v336, 0
    %v417 = vsel %vm406, %v337, 0
    %v420 = vsel %vm406, %v338, 0
    %v423 = vsel %vm406, %v339, 0
    %v426 = vsel %vm406, %v340, 0
    %v429 = vsel %vm406, %v341, 0
    %v432 = vsel %vm406, %v342, 0
    %v435 = vsel %vm406, %v343, 0
    %v438 = vsel %vm406, %v344, 0
    %v441 = vsel %vm406, %v345, 0
    %v444 = vsel %vm406, %v346, 0
    %v447 = vsel %vm406, %v347, 0
    %v450 = vsel %vm406, %v348, 0
    %v453 = vsel %vm406, %v349, 0
    %v456 = vsel %vm406, %v350, 0
    %v459 = vsel %vm406, %v351, 0
    %v462 = vsel %vm406, %v352, 0
    %v465 = vsel %vm406, %v353, 0
    %v468 = vsel %vm406, %v354, 0
    %v471 = vsel %vm406, %v355, 0
    %v474 = vsel %vm406, %v356, 0
    %v477 = vsel %vm406, %v357, 0
    %v480 = vsel %vm406, %v358, 0
    %v483 = vsel %vm406, %v359, 0
    %v486 = vsel %vm406, %v360, 0
    %v489 = vsel %vm406, %v361, 0
    %v492 = vsel %vm406, %v362, 0
    %v495 = vsel %vm406, %v363, 0
    %v498 = vsel %vm406, %v364, 0
    %v501 = vsel %vm406, %v365, 0
    %vm503 = vcmask 1043456
    %v505 = vsel %vm503, %v397, 0
    %v508 = vsel %vm503, %v398, 0
    %v511 = vsel %vm503, %v399, 0
    %513 = vmatpush.bf16.msra.mxu0 0
    %514 = vmatpush.bf16.msra.mxu0 0
    %515 = vmatpush.bf16.msra.mxu0 0
    %516 = vmatpush.bf16.msra.mxu0 0
    %517 = vmatpush.bf16.msra.mxu0 0
    %518 = vmatpush.bf16.msra.mxu0 %v505
    %519 = vmatpush.bf16.msra.mxu0 %v394
    %520 = vmatpush.bf16.msra.mxu0 %v391
    %521 = vmatmul.bf16.gmra.mxu0 %v408
    %v522 = vpop.f32.mrf.mxu0
    %v523 = vadd.f32 %v200, %v522
    %v524 = vpop.f32.mrf.mxu0
    %v525 = vadd.f32 %v200, %v524
    %526 = vmatmul.bf16.gmra.mxu0 %v411
    %v527 = vpop.f32.mrf.mxu0
    %v528 = vadd.f32 %v200, %v527
    %v529 = vpop.f32.mrf.mxu0
    %v530 = vadd.f32 %v200, %v529
    %531 = vmatmul.bf16.gmra.mxu0 %v414
    %v532 = vpop.f32.mrf.mxu0
    %v533 = vadd.f32 %v200, %v532
    %v534 = vpop.f32.mrf.mxu0
    %v535 = vadd.f32 %v200, %v534
    %536 = vmatmul.bf16.gmra.mxu0 %v417
    %v537 = vpop.f32.mrf.mxu0
    %v538 = vadd.f32 %v200, %v537
    %v539 = vpop.f32.mrf.mxu0
    %v540 = vadd.f32 %v200, %v539
    %541 = vmatmul.bf16.gmra.mxu0 %v420
    %v542 = vpop.f32.mrf.mxu0
    %v543 = vadd.f32 %v200, %v542
    %v544 = vpop.f32.mrf.mxu0
    %v545 = vadd.f32 %v200, %v544
    %546 = vmatmul.bf16.gmra.mxu0 %v423
    %v547 = vpop.f32.mrf.mxu0
    %v548 = vadd.f32 %v200, %v547
    %v549 = vpop.f32.mrf.mxu0
    %v550 = vadd.f32 %v200, %v549
    %551 = vmatmul.bf16.gmra.mxu0 %v426
    %v552 = vpop.f32.mrf.mxu0
    %v553 = vadd.f32 %v200, %v552
    %v554 = vpop.f32.mrf.mxu0
    %v555 = vadd.f32 %v200, %v554
    %556 = vmatmul.bf16.gmra.mxu0 %v429
    %v557 = vpop.f32.mrf.mxu0
    %v558 = vadd.f32 %v200, %v557
    %v559 = vpop.f32.mrf.mxu0
    %v560 = vadd.f32 %v200, %v559
    %561 = vmatmul.bf16.gmra.mxu0 %v432
    %v562 = vpop.f32.mrf.mxu0
    %v563 = vadd.f32 %v200, %v562
    %v564 = vpop.f32.mrf.mxu0
    %v565 = vadd.f32 %v200, %v564
    %566 = vmatmul.bf16.gmra.mxu0 %v435
    %v567 = vpop.f32.mrf.mxu0
    %v568 = vadd.f32 %v200, %v567
    %v569 = vpop.f32.mrf.mxu0
    %v570 = vadd.f32 %v200, %v569
    %571 = vmatmul.bf16.gmra.mxu0 %v438
    %v572 = vpop.f32.mrf.mxu0
    %v573 = vadd.f32 %v200, %v572
    %v574 = vpop.f32.mrf.mxu0
    %v575 = vadd.f32 %v200, %v574
    %576 = vmatmul.bf16.gmra.mxu0 %v441
    %v577 = vpop.f32.mrf.mxu0
    %v578 = vadd.f32 %v200, %v577
    %v579 = vpop.f32.mrf.mxu0
    %v580 = vadd.f32 %v200, %v579
    %581 = vmatmul.bf16.gmra.mxu0 %v444
    %v582 = vpop.f32.mrf.mxu0
    %v583 = vadd.f32 %v200, %v582
    %v584 = vpop.f32.mrf.mxu0
    %v585 = vadd.f32 %v200, %v584
    %586 = vmatmul.bf16.gmra.mxu0 %v447
    %v587 = vpop.f32.mrf.mxu0
    %v588 = vadd.f32 %v200, %v587
    %v589 = vpop.f32.mrf.mxu0
    %v590 = vadd.f32 %v200, %v589
    %591 = vmatmul.bf16.gmra.mxu0 %v450
    %v592 = vpop.f32.mrf.mxu0
    %v593 = vadd.f32 %v200, %v592
    %v594 = vpop.f32.mrf.mxu0
    %v595 = vadd.f32 %v200, %v594
    %596 = vmatmul.bf16.gmra.mxu0 %v453
    %v597 = vpop.f32.mrf.mxu0
    %v598 = vadd.f32 %v200, %v597
    %v599 = vpop.f32.mrf.mxu0
    %v600 = vadd.f32 %v200, %v599
    %601 = vmatmul.bf16.gmra.mxu0 %v456
    %v602 = vpop.f32.mrf.mxu0
    %v603 = vadd.f32 %v200, %v602
    %v604 = vpop.f32.mrf.mxu0
    %v605 = vadd.f32 %v200, %v604
    %606 = vmatmul.bf16.gmra.mxu0 %v459
    %v607 = vpop.f32.mrf.mxu0
    %v608 = vadd.f32 %v200, %v607
    %v609 = vpop.f32.mrf.mxu0
    %v610 = vadd.f32 %v200, %v609
    %611 = vmatmul.bf16.gmra.mxu0 %v462
    %v612 = vpop.f32.mrf.mxu0
    %v613 = vadd.f32 %v200, %v612
    %v614 = vpop.f32.mrf.mxu0
    %v615 = vadd.f32 %v200, %v614
    %616 = vmatmul.bf16.gmra.mxu0 %v465
    %v617 = vpop.f32.mrf.mxu0
    %v618 = vadd.f32 %v200, %v617
    %v619 = vpop.f32.mrf.mxu0
    %v620 = vadd.f32 %v200, %v619
    %621 = vmatmul.bf16.gmra.mxu0 %v468
    %v622 = vpop.f32.mrf.mxu0
    %v623 = vadd.f32 %v200, %v622
    %v624 = vpop.f32.mrf.mxu0
    %v625 = vadd.f32 %v200, %v624
    %626 = vmatmul.bf16.gmra.mxu0 %v471
    %v627 = vpop.f32.mrf.mxu0
    %v628 = vadd.f32 %v200, %v627
    %v629 = vpop.f32.mrf.mxu0
    %v630 = vadd.f32 %v200, %v629
    %631 = vmatmul.bf16.gmra.mxu0 %v474
    %v632 = vpop.f32.mrf.mxu0
    %v633 = vadd.f32 %v200, %v632
    %v634 = vpop.f32.mrf.mxu0
    %v635 = vadd.f32 %v200, %v634
    %636 = vmatmul.bf16.gmra.mxu0 %v477
    %v637 = vpop.f32.mrf.mxu0
    %v638 = vadd.f32 %v200, %v637
    %v639 = vpop.f32.mrf.mxu0
    %v640 = vadd.f32 %v200, %v639
    %641 = vmatmul.bf16.gmra.mxu0 %v480
    %v642 = vpop.f32.mrf.mxu0
    %v643 = vadd.f32 %v200, %v642
    %v644 = vpop.f32.mrf.mxu0
    %v645 = vadd.f32 %v200, %v644
    %646 = vmatmul.bf16.gmra.mxu0 %v483
    %v647 = vpop.f32.mrf.mxu0
    %v648 = vadd.f32 %v200, %v647
    %v649 = vpop.f32.mrf.mxu0
    %v650 = vadd.f32 %v200, %v649
    %651 = vmatmul.bf16.gmra.mxu0 %v486
    %v652 = vpop.f32.mrf.mxu0
    %v653 = vadd.f32 %v200, %v652
    %v654 = vpop.f32.mrf.mxu0
    %v655 = vadd.f32 %v200, %v654
    %656 = vmatmul.bf16.gmra.mxu0 %v489
    %v657 = vpop.f32.mrf.mxu0
    %v658 = vadd.f32 %v200, %v657
    %v659 = vpop.f32.mrf.mxu0
    %v660 = vadd.f32 %v200, %v659
    %661 = vmatmul.bf16.gmra.mxu0 %v492
    %v662 = vpop.f32.mrf.mxu0
    %v663 = vadd.f32 %v200, %v662
    %v664 = vpop.f32.mrf.mxu0
    %v665 = vadd.f32 %v200, %v664
    %666 = vmatmul.bf16.gmra.mxu0 %v495
    %v667 = vpop.f32.mrf.mxu0
    %v668 = vadd.f32 %v200, %v667
    %v669 = vpop.f32.mrf.mxu0
    %v670 = vadd.f32 %v200, %v669
    %671 = vmatmul.bf16.gmra.mxu0 %v498
    %v672 = vpop.f32.mrf.mxu0
    %v673 = vadd.f32 %v200, %v672
    %v674 = vpop.f32.mrf.mxu0
    %v675 = vadd.f32 %v200, %v674
    %676 = vmatmul.bf16.gmra.mxu0 %v501
    %v677 = vpop.f32.mrf.mxu0
    %v678 = vadd.f32 %v200, %v677
    %v679 = vpop.f32.mrf.mxu0
    %v680 = vadd.f32 %v200, %v679
    %681 = vdwg.mxu0
    %682 = vmatpush.bf16.msra.mxu0 0
    %683 = vmatpush.bf16.msra.mxu0 0
    %684 = vmatpush.bf16.msra.mxu0 0
    %685 = vmatpush.bf16.msra.mxu0 0
    %686 = vmatpush.bf16.msra.mxu0 0
    %687 = vmatpush.bf16.msra.mxu0 %v508
    %688 = vmatpush.bf16.msra.mxu0 %v395
    %689 = vmatpush.bf16.msra.mxu0 %v392
    %690 = vmatmul.bf16.gmra.mxu0 %v408
    %v691 = vpop.f32.mrf.mxu0
    %v692 = vadd.f32 %v201, %v691
    %v693 = vpop.f32.mrf.mxu0
    %v694 = vadd.f32 %v201, %v693
    %695 = vmatmul.bf16.gmra.mxu0 %v411
    %v696 = vpop.f32.mrf.mxu0
    %v697 = vadd.f32 %v201, %v696
    %v698 = vpop.f32.mrf.mxu0
    %v699 = vadd.f32 %v201, %v698
    %700 = vmatmul.bf16.gmra.mxu0 %v414
    %v701 = vpop.f32.mrf.mxu0
    %v702 = vadd.f32 %v201, %v701
    %v703 = vpop.f32.mrf.mxu0
    %v704 = vadd.f32 %v201, %v703
    %705 = vmatmul.bf16.gmra.mxu0 %v417
    %v706 = vpop.f32.mrf.mxu0
    %v707 = vadd.f32 %v201, %v706
    %v708 = vpop.f32.mrf.mxu0
    %v709 = vadd.f32 %v201, %v708
    %710 = vmatmul.bf16.gmra.mxu0 %v420
    %v711 = vpop.f32.mrf.mxu0
    %v712 = vadd.f32 %v201, %v711
    %v713 = vpop.f32.mrf.mxu0
    %v714 = vadd.f32 %v201, %v713
    %715 = vmatmul.bf16.gmra.mxu0 %v423
    %v716 = vpop.f32.mrf.mxu0
    %v717 = vadd.f32 %v201, %v716
    %v718 = vpop.f32.mrf.mxu0
    %v719 = vadd.f32 %v201, %v718
    %720 = vmatmul.bf16.gmra.mxu0 %v426
    %v721 = vpop.f32.mrf.mxu0
    %v722 = vadd.f32 %v201, %v721
    %v723 = vpop.f32.mrf.mxu0
    %v724 = vadd.f32 %v201, %v723
    %725 = vmatmul.bf16.gmra.mxu0 %v429
    %v726 = vpop.f32.mrf.mxu0
    %v727 = vadd.f32 %v201, %v726
    %v728 = vpop.f32.mrf.mxu0
    %v729 = vadd.f32 %v201, %v728
    %730 = vmatmul.bf16.gmra.mxu0 %v432
    %v731 = vpop.f32.mrf.mxu0
    %v732 = vadd.f32 %v201, %v731
    %v733 = vpop.f32.mrf.mxu0
    %v734 = vadd.f32 %v201, %v733
    %735 = vmatmul.bf16.gmra.mxu0 %v435
    %v736 = vpop.f32.mrf.mxu0
    %v737 = vadd.f32 %v201, %v736
    %v738 = vpop.f32.mrf.mxu0
    %v739 = vadd.f32 %v201, %v738
    %740 = vmatmul.bf16.gmra.mxu0 %v438
    %v741 = vpop.f32.mrf.mxu0
    %v742 = vadd.f32 %v201, %v741
    %v743 = vpop.f32.mrf.mxu0
    %v744 = vadd.f32 %v201, %v743
    %745 = vmatmul.bf16.gmra.mxu0 %v441
    %v746 = vpop.f32.mrf.mxu0
    %v747 = vadd.f32 %v201, %v746
    %v748 = vpop.f32.mrf.mxu0
    %v749 = vadd.f32 %v201, %v748
    %750 = vmatmul.bf16.gmra.mxu0 %v444
    %v751 = vpop.f32.mrf.mxu0
    %v752 = vadd.f32 %v201, %v751
    %v753 = vpop.f32.mrf.mxu0
    %v754 = vadd.f32 %v201, %v753
    %755 = vmatmul.bf16.gmra.mxu0 %v447
    %v756 = vpop.f32.mrf.mxu0
    %v757 = vadd.f32 %v201, %v756
    %v758 = vpop.f32.mrf.mxu0
    %v759 = vadd.f32 %v201, %v758
    %760 = vmatmul.bf16.gmra.mxu0 %v450
    %v761 = vpop.f32.mrf.mxu0
    %v762 = vadd.f32 %v201, %v761
    %v763 = vpop.f32.mrf.mxu0
    %v764 = vadd.f32 %v201, %v763
    %765 = vmatmul.bf16.gmra.mxu0 %v453
    %v766 = vpop.f32.mrf.mxu0
    %v767 = vadd.f32 %v201, %v766
    %v768 = vpop.f32.mrf.mxu0
    %v769 = vadd.f32 %v201, %v768
    %770 = vmatmul.bf16.gmra.mxu0 %v456
    %v771 = vpop.f32.mrf.mxu0
    %v772 = vadd.f32 %v201, %v771
    %v773 = vpop.f32.mrf.mxu0
    %v774 = vadd.f32 %v201, %v773
    %775 = vmatmul.bf16.gmra.mxu0 %v459
    %v776 = vpop.f32.mrf.mxu0
    %v777 = vadd.f32 %v201, %v776
    %v778 = vpop.f32.mrf.mxu0
    %v779 = vadd.f32 %v201, %v778
    %780 = vmatmul.bf16.gmra.mxu0 %v462
    %v781 = vpop.f32.mrf.mxu0
    %v782 = vadd.f32 %v201, %v781
    %v783 = vpop.f32.mrf.mxu0
    %v784 = vadd.f32 %v201, %v783
    %785 = vmatmul.bf16.gmra.mxu0 %v465
    %v786 = vpop.f32.mrf.mxu0
    %v787 = vadd.f32 %v201, %v786
    %v788 = vpop.f32.mrf.mxu0
    %v789 = vadd.f32 %v201, %v788
    %790 = vmatmul.bf16.gmra.mxu0 %v468
    %v791 = vpop.f32.mrf.mxu0
    %v792 = vadd.f32 %v201, %v791
    %v793 = vpop.f32.mrf.mxu0
    %v794 = vadd.f32 %v201, %v793
    %795 = vmatmul.bf16.gmra.mxu0 %v471
    %v796 = vpop.f32.mrf.mxu0
    %v797 = vadd.f32 %v201, %v796
    %v798 = vpop.f32.mrf.mxu0
    %v799 = vadd.f32 %v201, %v798
    %800 = vmatmul.bf16.gmra.mxu0 %v474
    %v801 = vpop.f32.mrf.mxu0
    %v802 = vadd.f32 %v201, %v801
    %v803 = vpop.f32.mrf.mxu0
    %v804 = vadd.f32 %v201, %v803
    %805 = vmatmul.bf16.gmra.mxu0 %v477
    %v806 = vpop.f32.mrf.mxu0
    %v807 = vadd.f32 %v201, %v806
    %v808 = vpop.f32.mrf.mxu0
    %v809 = vadd.f32 %v201, %v808
    %810 = vmatmul.bf16.gmra.mxu0 %v480
    %v811 = vpop.f32.mrf.mxu0
    %v812 = vadd.f32 %v201, %v811
    %v813 = vpop.f32.mrf.mxu0
    %v814 = vadd.f32 %v201, %v813
    %815 = vmatmul.bf16.gmra.mxu0 %v483
    %v816 = vpop.f32.mrf.mxu0
    %v817 = vadd.f32 %v201, %v816
    %v818 = vpop.f32.mrf.mxu0
    %v819 = vadd.f32 %v201, %v818
    %820 = vmatmul.bf16.gmra.mxu0 %v486
    %v821 = vpop.f32.mrf.mxu0
    %v822 = vadd.f32 %v201, %v821
    %v823 = vpop.f32.mrf.mxu0
    %v824 = vadd.f32 %v201, %v823
    %825 = vmatmul.bf16.gmra.mxu0 %v489
    %v826 = vpop.f32.mrf.mxu0
    %v827 = vadd.f32 %v201, %v826
    %v828 = vpop.f32.mrf.mxu0
    %v829 = vadd.f32 %v201, %v828
    %830 = vmatmul.bf16.gmra.mxu0 %v492
    %v831 = vpop.f32.mrf.mxu0
    %v832 = vadd.f32 %v201, %v831
    %v833 = vpop.f32.mrf.mxu0
    %v834 = vadd.f32 %v201, %v833
    %835 = vmatmul.bf16.gmra.mxu0 %v495
    %v836 = vpop.f32.mrf.mxu0
    %v837 = vadd.f32 %v201, %v836
    %v838 = vpop.f32.mrf.mxu0
    %v839 = vadd.f32 %v201, %v838
    %840 = vmatmul.bf16.gmra.mxu0 %v498
    %v841 = vpop.f32.mrf.mxu0
    %v842 = vadd.f32 %v201, %v841
    %v843 = vpop.f32.mrf.mxu0
    %v844 = vadd.f32 %v201, %v843
    %845 = vmatmul.bf16.gmra.mxu0 %v501
    %v846 = vpop.f32.mrf.mxu0
    %v847 = vadd.f32 %v201, %v846
    %v848 = vpop.f32.mrf.mxu0
    %v849 = vadd.f32 %v201, %v848
    %850 = vdwg.mxu0
    %851 = vmatpush.bf16.msra.mxu0 0
    %852 = vmatpush.bf16.msra.mxu0 0
    %853 = vmatpush.bf16.msra.mxu0 0
    %854 = vmatpush.bf16.msra.mxu0 0
    %855 = vmatpush.bf16.msra.mxu0 0
    %856 = vmatpush.bf16.msra.mxu0 %v511
    %857 = vmatpush.bf16.msra.mxu0 %v396
    %858 = vmatpush.bf16.msra.mxu0 %v393
    %859 = vmatmul.bf16.gmra.mxu0 %v408
    %v860 = vpop.f32.mrf.mxu0
    %v861 = vadd.f32 %v202, %v860
    %v862 = vpop.f32.mrf.mxu0
    %v863 = vadd.f32 %v202, %v862
    %864 = vmatmul.bf16.gmra.mxu0 %v411
    %v865 = vpop.f32.mrf.mxu0
    %v866 = vadd.f32 %v202, %v865
    %v867 = vpop.f32.mrf.mxu0
    %v868 = vadd.f32 %v202, %v867
    %869 = vmatmul.bf16.gmra.mxu0 %v414
    %v870 = vpop.f32.mrf.mxu0
    %v871 = vadd.f32 %v202, %v870
    %v872 = vpop.f32.mrf.mxu0
    %v873 = vadd.f32 %v202, %v872
    %874 = vmatmul.bf16.gmra.mxu0 %v417
    %v875 = vpop.f32.mrf.mxu0
    %v876 = vadd.f32 %v202, %v875
    %v877 = vpop.f32.mrf.mxu0
    %v878 = vadd.f32 %v202, %v877
    %879 = vmatmul.bf16.gmra.mxu0 %v420
    %v880 = vpop.f32.mrf.mxu0
    %v881 = vadd.f32 %v202, %v880
    %v882 = vpop.f32.mrf.mxu0
    %v883 = vadd.f32 %v202, %v882
    %884 = vmatmul.bf16.gmra.mxu0 %v423
    %v885 = vpop.f32.mrf.mxu0
    %v886 = vadd.f32 %v202, %v885
    %v887 = vpop.f32.mrf.mxu0
    %v888 = vadd.f32 %v202, %v887
    %889 = vmatmul.bf16.gmra.mxu0 %v426
    %v890 = vpop.f32.mrf.mxu0
    %v891 = vadd.f32 %v202, %v890
    %v892 = vpop.f32.mrf.mxu0
    %v893 = vadd.f32 %v202, %v892
    %894 = vmatmul.bf16.gmra.mxu0 %v429
    %v895 = vpop.f32.mrf.mxu0
    %v896 = vadd.f32 %v202, %v895
    %v897 = vpop.f32.mrf.mxu0
    %v898 = vadd.f32 %v202, %v897
    %899 = vmatmul.bf16.gmra.mxu0 %v432
    %v900 = vpop.f32.mrf.mxu0
    %v901 = vadd.f32 %v202, %v900
    %v902 = vpop.f32.mrf.mxu0
    %v903 = vadd.f32 %v202, %v902
    %904 = vmatmul.bf16.gmra.mxu0 %v435
    %v905 = vpop.f32.mrf.mxu0
    %v906 = vadd.f32 %v202, %v905
    %v907 = vpop.f32.mrf.mxu0
    %v908 = vadd.f32 %v202, %v907
    %909 = vmatmul.bf16.gmra.mxu0 %v438
    %v910 = vpop.f32.mrf.mxu0
    %v911 = vadd.f32 %v202, %v910
    %v912 = vpop.f32.mrf.mxu0
    %v913 = vadd.f32 %v202, %v912
    %914 = vmatmul.bf16.gmra.mxu0 %v441
    %v915 = vpop.f32.mrf.mxu0
    %v916 = vadd.f32 %v202, %v915
    %v917 = vpop.f32.mrf.mxu0
    %v918 = vadd.f32 %v202, %v917
    %919 = vmatmul.bf16.gmra.mxu0 %v444
    %v920 = vpop.f32.mrf.mxu0
    %v921 = vadd.f32 %v202, %v920
    %v922 = vpop.f32.mrf.mxu0
    %v923 = vadd.f32 %v202, %v922
    %924 = vmatmul.bf16.gmra.mxu0 %v447
    %v925 = vpop.f32.mrf.mxu0
    %v926 = vadd.f32 %v202, %v925
    %v927 = vpop.f32.mrf.mxu0
    %v928 = vadd.f32 %v202, %v927
    %929 = vmatmul.bf16.gmra.mxu0 %v450
    %v930 = vpop.f32.mrf.mxu0
    %v931 = vadd.f32 %v202, %v930
    %v932 = vpop.f32.mrf.mxu0
    %v933 = vadd.f32 %v202, %v932
    %934 = vmatmul.bf16.gmra.mxu0 %v453
    %v935 = vpop.f32.mrf.mxu0
    %v936 = vadd.f32 %v202, %v935
    %v937 = vpop.f32.mrf.mxu0
    %v938 = vadd.f32 %v202, %v937
    %939 = vmatmul.bf16.gmra.mxu0 %v456
    %v940 = vpop.f32.mrf.mxu0
    %v941 = vadd.f32 %v202, %v940
    %v942 = vpop.f32.mrf.mxu0
    %v943 = vadd.f32 %v202, %v942
    %944 = vmatmul.bf16.gmra.mxu0 %v459
    %v945 = vpop.f32.mrf.mxu0
    %v946 = vadd.f32 %v202, %v945
    %v947 = vpop.f32.mrf.mxu0
    %v948 = vadd.f32 %v202, %v947
    %949 = vmatmul.bf16.gmra.mxu0 %v462
    %v950 = vpop.f32.mrf.mxu0
    %v951 = vadd.f32 %v202, %v950
    %v952 = vpop.f32.mrf.mxu0
    %v953 = vadd.f32 %v202, %v952
    %954 = vmatmul.bf16.gmra.mxu0 %v465
    %v955 = vpop.f32.mrf.mxu0
    %v956 = vadd.f32 %v202, %v955
    %v957 = vpop.f32.mrf.mxu0
    %v958 = vadd.f32 %v202, %v957
    %959 = vmatmul.bf16.gmra.mxu0 %v468
    %v960 = vpop.f32.mrf.mxu0
    %v961 = vadd.f32 %v202, %v960
    %v962 = vpop.f32.mrf.mxu0
    %v963 = vadd.f32 %v202, %v962
    %964 = vmatmul.bf16.gmra.mxu0 %v471
    %v965 = vpop.f32.mrf.mxu0
    %v966 = vadd.f32 %v202, %v965
    %v967 = vpop.f32.mrf.mxu0
    %v968 = vadd.f32 %v202, %v967
    %969 = vmatmul.bf16.gmra.mxu0 %v474
    %v970 = vpop.f32.mrf.mxu0
    %v971 = vadd.f32 %v202, %v970
    %v972 = vpop.f32.mrf.mxu0
    %v973 = vadd.f32 %v202, %v972
    %974 = vmatmul.bf16.gmra.mxu0 %v477
    %v975 = vpop.f32.mrf.mxu0
    %v976 = vadd.f32 %v202, %v975
    %v977 = vpop.f32.mrf.mxu0
    %v978 = vadd.f32 %v202, %v977
    %979 = vmatmul.bf16.gmra.mxu0 %v480
    %v980 = vpop.f32.mrf.mxu0
    %v981 = vadd.f32 %v202, %v980
    %v982 = vpop.f32.mrf.mxu0
    %v983 = vadd.f32 %v202, %v982
    %984 = vmatmul.bf16.gmra.mxu0 %v483
    %v985 = vpop.f32.mrf.mxu0
    %v986 = vadd.f32 %v202, %v985
    %v987 = vpop.f32.mrf.mxu0
    %v988 = vadd.f32 %v202, %v987
    %989 = vmatmul.bf16.gmra.mxu0 %v486
    %v990 = vpop.f32.mrf.mxu0
    %v991 = vadd.f32 %v202, %v990
    %v992 = vpop.f32.mrf.mxu0
    %v993 = vadd.f32 %v202, %v992
    %994 = vmatmul.bf16.gmra.mxu0 %v489
    %v995 = vpop.f32.mrf.mxu0
    %v996 = vadd.f32 %v202, %v995
    %v997 = vpop.f32.mrf.mxu0
    %v998 = vadd.f32 %v202, %v997
    %999 = vmatmul.bf16.gmra.mxu0 %v492
    %v1000 = vpop.f32.mrf.mxu0
    %v1001 = vadd.f32 %v202, %v1000
    %v1002 = vpop.f32.mrf.mxu0
    %v1003 = vadd.f32 %v202, %v1002
    %1004 = vmatmul.bf16.gmra.mxu0 %v495
    %v1005 = vpop.f32.mrf.mxu0
    %v1006 = vadd.f32 %v202, %v1005
    %v1007 = vpop.f32.mrf.mxu0
    %v1008 = vadd.f32 %v202, %v1007
    %1009 = vmatmul.bf16.gmra.mxu0 %v498
    %v1010 = vpop.f32.mrf.mxu0
    %v1011 = vadd.f32 %v202, %v1010
    %v1012 = vpop.f32.mrf.mxu0
    %v1013 = vadd.f32 %v202, %v1012
    %1014 = vmatmul.bf16.gmra.mxu0 %v501
    %v1015 = vpop.f32.mrf.mxu0
    %v1016 = vadd.f32 %v202, %v1015
    %v1017 = vpop.f32.mrf.mxu0
    %v1018 = vadd.f32 %v202, %v1017
    %1019 = vdwg.mxu0
    %v1020 = vmax.f32 %v523, 0.0
    %v1021 = vmax.f32 %v692, 0.0
    %v1022 = vmax.f32 %v861, 0.0
    %v1023 = vmax.f32 %v525, 0.0
    %v1024 = vmax.f32 %v694, 0.0
    %v1025 = vmax.f32 %v863, 0.0
    %v1026 = vmax.f32 %v528, 0.0
    %v1027 = vmax.f32 %v697, 0.0
    %v1028 = vmax.f32 %v866, 0.0
    %v1029 = vmax.f32 %v530, 0.0
    %v1030 = vmax.f32 %v699, 0.0
    %v1031 = vmax.f32 %v868, 0.0
    %v1032 = vmax.f32 %v533, 0.0
    %v1033 = vmax.f32 %v702, 0.0
    %v1034 = vmax.f32 %v871, 0.0
    %v1035 = vmax.f32 %v535, 0.0
    %v1036 = vmax.f32 %v704, 0.0
    %v1037 = vmax.f32 %v873, 0.0
    %v1038 = vmax.f32 %v538, 0.0
    %v1039 = vmax.f32 %v707, 0.0
    %v1040 = vmax.f32 %v876, 0.0
    %v1041 = vmax.f32 %v540, 0.0
    %v1042 = vmax.f32 %v709, 0.0
    %v1043 = vmax.f32 %v878, 0.0
    %v1044 = vmax.f32 %v543, 0.0
    %v1045 = vmax.f32 %v712, 0.0
    %v1046 = vmax.f32 %v881, 0.0
    %v1047 = vmax.f32 %v545, 0.0
    %v1048 = vmax.f32 %v714, 0.0
    %v1049 = vmax.f32 %v883, 0.0
    %v1050 = vmax.f32 %v548, 0.0
    %v1051 = vmax.f32 %v717, 0.0
    %v1052 = vmax.f32 %v886, 0.0
    %v1053 = vmax.f32 %v550, 0.0
    %v1054 = vmax.f32 %v719, 0.0
    %v1055 = vmax.f32 %v888, 0.0
    %v1056 = vmax.f32 %v553, 0.0
    %v1057 = vmax.f32 %v722, 0.0
    %v1058 = vmax.f32 %v891, 0.0
    %v1059 = vmax.f32 %v555, 0.0
    %v1060 = vmax.f32 %v724, 0.0
    %v1061 = vmax.f32 %v893, 0.0
    %v1062 = vmax.f32 %v558, 0.0
    %v1063 = vmax.f32 %v727, 0.0
    %v1064 = vmax.f32 %v896, 0.0
    %v1065 = vmax.f32 %v560, 0.0
    %v1066 = vmax.f32 %v729, 0.0
    %v1067 = vmax.f32 %v898, 0.0
    %v1068 = vmax.f32 %v563, 0.0
    %v1069 = vmax.f32 %v732, 0.0
    %v1070 = vmax.f32 %v901, 0.0
    %v1071 = vmax.f32 %v565, 0.0
    %v1072 = vmax.f32 %v734, 0.0
    %v1073 = vmax.f32 %v903, 0.0
    %v1074 = vmax.f32 %v568, 0.0
    %v1075 = vmax.f32 %v737, 0.0
    %v1076 = vmax.f32 %v906, 0.0
    %v1077 = vmax.f32 %v570, 0.0
    %v1078 = vmax.f32 %v739, 0.0
    %v1079 = vmax.f32 %v908, 0.0
    %v1080 = vmax.f32 %v573, 0.0
    %v1081 = vmax.f32 %v742, 0.0
    %v1082 = vmax.f32 %v911, 0.0
    %v1083 = vmax.f32 %v575, 0.0
    %v1084 = vmax.f32 %v744, 0.0
    %v1085 = vmax.f32 %v913, 0.0
    %v1086 = vmax.f32 %v578, 0.0
    %v1087 = vmax.f32 %v747, 0.0
    %v1088 = vmax.f32 %v916, 0.0
    %v1089 = vmax.f32 %v580, 0.0
    %v1090 = vmax.f32 %v749, 0.0
    %v1091 = vmax.f32 %v918, 0.0
    %v1092 = vmax.f32 %v583, 0.0
    %v1093 = vmax.f32 %v752, 0.0
    %v1094 = vmax.f32 %v921, 0.0
    %v1095 = vmax.f32 %v585, 0.0
    %v1096 = vmax.f32 %v754, 0.0
    %v1097 = vmax.f32 %v923, 0.0
    %v1098 = vmax.f32 %v588, 0.0
    %v1099 = vmax.f32 %v757, 0.0
    %v1100 = vmax.f32 %v926, 0.0
    %v1101 = vmax.f32 %v590, 0.0
    %v1102 = vmax.f32 %v759, 0.0
    %v1103 = vmax.f32 %v928, 0.0
    %v1104 = vmax.f32 %v593, 0.0
    %v1105 = vmax.f32 %v762, 0.0
    %v1106 = vmax.f32 %v931, 0.0
    %v1107 = vmax.f32 %v595, 0.0
    %v1108 = vmax.f32 %v764, 0.0
    %v1109 = vmax.f32 %v933, 0.0
    %v1110 = vmax.f32 %v598, 0.0
    %v1111 = vmax.f32 %v767, 0.0
    %v1112 = vmax.f32 %v936, 0.0
    %v1113 = vmax.f32 %v600, 0.0
    %v1114 = vmax.f32 %v769, 0.0
    %v1115 = vmax.f32 %v938, 0.0
    %v1116 = vmax.f32 %v603, 0.0
    %v1117 = vmax.f32 %v772, 0.0
    %v1118 = vmax.f32 %v941, 0.0
    %v1119 = vmax.f32 %v605, 0.0
    %v1120 = vmax.f32 %v774, 0.0
    %v1121 = vmax.f32 %v943, 0.0
    %v1122 = vmax.f32 %v608, 0.0
    %v1123 = vmax.f32 %v777, 0.0
    %v1124 = vmax.f32 %v946, 0.0
    %v1125 = vmax.f32 %v610, 0.0
    %v1126 = vmax.f32 %v779, 0.0
    %v1127 = vmax.f32 %v948, 0.0
    %v1128 = vmax.f32 %v613, 0.0
    %v1129 = vmax.f32 %v782, 0.0
    %v1130 = vmax.f32 %v951, 0.0
    %v1131 = vmax.f32 %v615, 0.0
    %v1132 = vmax.f32 %v784, 0.0
    %v1133 = vmax.f32 %v953, 0.0
    %v1134 = vmax.f32 %v618, 0.0
    %v1135 = vmax.f32 %v787, 0.0
    %v1136 = vmax.f32 %v956, 0.0
    %v1137 = vmax.f32 %v620, 0.0
    %v1138 = vmax.f32 %v789, 0.0
    %v1139 = vmax.f32 %v958, 0.0
    %v1140 = vmax.f32 %v623, 0.0
    %v1141 = vmax.f32 %v792, 0.0
    %v1142 = vmax.f32 %v961, 0.0
    %v1143 = vmax.f32 %v625, 0.0
    %v1144 = vmax.f32 %v794, 0.0
    %v1145 = vmax.f32 %v963, 0.0
    %v1146 = vmax.f32 %v628, 0.0
    %v1147 = vmax.f32 %v797, 0.0
    %v1148 = vmax.f32 %v966, 0.0
    %v1149 = vmax.f32 %v630, 0.0
    %v1150 = vmax.f32 %v799, 0.0
    %v1151 = vmax.f32 %v968, 0.0
    %v1152 = vmax.f32 %v633, 0.0
    %v1153 = vmax.f32 %v802, 0.0
    %v1154 = vmax.f32 %v971, 0.0
    %v1155 = vmax.f32 %v635, 0.0
    %v1156 = vmax.f32 %v804, 0.0
    %v1157 = vmax.f32 %v973, 0.0
    %v1158 = vmax.f32 %v638, 0.0
    %v1159 = vmax.f32 %v807, 0.0
    %v1160 = vmax.f32 %v976, 0.0
    %v1161 = vmax.f32 %v640, 0.0
    %v1162 = vmax.f32 %v809, 0.0
    %v1163 = vmax.f32 %v978, 0.0
    %v1164 = vmax.f32 %v643, 0.0
    %v1165 = vmax.f32 %v812, 0.0
    %v1166 = vmax.f32 %v981, 0.0
    %v1167 = vmax.f32 %v645, 0.0
    %v1168 = vmax.f32 %v814, 0.0
    %v1169 = vmax.f32 %v983, 0.0
    %v1170 = vmax.f32 %v648, 0.0
    %v1171 = vmax.f32 %v817, 0.0
    %v1172 = vmax.f32 %v986, 0.0
    %v1173 = vmax.f32 %v650, 0.0
    %v1174 = vmax.f32 %v819, 0.0
    %v1175 = vmax.f32 %v988, 0.0
    %v1176 = vmax.f32 %v653, 0.0
    %v1177 = vmax.f32 %v822, 0.0
    %v1178 = vmax.f32 %v991, 0.0
    %v1179 = vmax.f32 %v655, 0.0
    %v1180 = vmax.f32 %v824, 0.0
    %v1181 = vmax.f32 %v993, 0.0
    %v1182 = vmax.f32 %v658, 0.0
    %v1183 = vmax.f32 %v827, 0.0
    %v1184 = vmax.f32 %v996, 0.0
    %v1185 = vmax.f32 %v660, 0.0
    %v1186 = vmax.f32 %v829, 0.0
    %v1187 = vmax.f32 %v998, 0.0
    %v1188 = vmax.f32 %v663, 0.0
    %v1189 = vmax.f32 %v832, 0.0
    %v1190 = vmax.f32 %v1001, 0.0
    %v1191 = vmax.f32 %v665, 0.0
    %v1192 = vmax.f32 %v834, 0.0
    %v1193 = vmax.f32 %v1003, 0.0
    %v1194 = vmax.f32 %v668, 0.0
    %v1195 = vmax.f32 %v837, 0.0
    %v1196 = vmax.f32 %v1006, 0.0
    %v1197 = vmax.f32 %v670, 0.0
    %v1198 = vmax.f32 %v839, 0.0
    %v1199 = vmax.f32 %v1008, 0.0
    %v1200 = vmax.f32 %v673, 0.0
    %v1201 = vmax.f32 %v842, 0.0
    %v1202 = vmax.f32 %v1011, 0.0
    %v1203 = vmax.f32 %v675, 0.0
    %v1204 = vmax.f32 %v844, 0.0
    %v1205 = vmax.f32 %v1013, 0.0
    %v1206 = vmax.f32 %v678, 0.0
    %v1207 = vmax.f32 %v847, 0.0
    %v1208 = vmax.f32 %v1016, 0.0
    %v1209 = vmax.f32 %v680, 0.0
    %v1210 = vmax.f32 %v849, 0.0
    %v1211 = vmax.f32 %v1018, 0.0
    %v1212 = vpack.c.bf16 %v1023, %v1020
    %v1213 = vpack.c.bf16 %v1024, %v1021
    %v1214 = vpack.c.bf16 %v1025, %v1022
    %v1215 = vpack.c.bf16 %v1029, %v1026
    %v1216 = vpack.c.bf16 %v1030, %v1027
    %v1217 = vpack.c.bf16 %v1031, %v1028
    %v1218 = vpack.c.bf16 %v1035, %v1032
    %v1219 = vpack.c.bf16 %v1036, %v1033
    %v1220 = vpack.c.bf16 %v1037, %v1034
    %v1221 = vpack.c.bf16 %v1041, %v1038
    %v1222 = vpack.c.bf16 %v1042, %v1039
    %v1223 = vpack.c.bf16 %v1043, %v1040
    %v1224 = vpack.c.bf16 %v1047, %v1044
    %v1225 = vpack.c.bf16 %v1048, %v1045
    %v1226 = vpack.c.bf16 %v1049, %v1046
    %v1227 = vpack.c.bf16 %v1053, %v1050
    %v1228 = vpack.c.bf16 %v1054, %v1051
    %v1229 = vpack.c.bf16 %v1055, %v1052
    %v1230 = vpack.c.bf16 %v1059, %v1056
    %v1231 = vpack.c.bf16 %v1060, %v1057
    %v1232 = vpack.c.bf16 %v1061, %v1058
    %v1233 = vpack.c.bf16 %v1065, %v1062
    %v1234 = vpack.c.bf16 %v1066, %v1063
    %v1235 = vpack.c.bf16 %v1067, %v1064
    %v1236 = vpack.c.bf16 %v1071, %v1068
    %v1237 = vpack.c.bf16 %v1072, %v1069
    %v1238 = vpack.c.bf16 %v1073, %v1070
    %v1239 = vpack.c.bf16 %v1077, %v1074
    %v1240 = vpack.c.bf16 %v1078, %v1075
    %v1241 = vpack.c.bf16 %v1079, %v1076
    %v1242 = vpack.c.bf16 %v1083, %v1080
    %v1243 = vpack.c.bf16 %v1084, %v1081
    %v1244 = vpack.c.bf16 %v1085, %v1082
    %v1245 = vpack.c.bf16 %v1089, %v1086
    %v1246 = vpack.c.bf16 %v1090, %v1087
    %v1247 = vpack.c.bf16 %v1091, %v1088
    %v1248 = vpack.c.bf16 %v1095, %v1092
    %v1249 = vpack.c.bf16 %v1096, %v1093
    %v1250 = vpack.c.bf16 %v1097, %v1094
    %v1251 = vpack.c.bf16 %v1101, %v1098
    %v1252 = vpack.c.bf16 %v1102, %v1099
    %v1253 = vpack.c.bf16 %v1103, %v1100
    %v1254 = vpack.c.bf16 %v1107, %v1104
    %v1255 = vpack.c.bf16 %v1108, %v1105
    %v1256 = vpack.c.bf16 %v1109, %v1106
    %v1257 = vpack.c.bf16 %v1113, %v1110
    %v1258 = vpack.c.bf16 %v1114, %v1111
    %v1259 = vpack.c.bf16 %v1115, %v1112
    %v1260 = vpack.c.bf16 %v1119, %v1116
    %v1261 = vpack.c.bf16 %v1120, %v1117
    %v1262 = vpack.c.bf16 %v1121, %v1118
    %v1263 = vpack.c.bf16 %v1125, %v1122
    %v1264 = vpack.c.bf16 %v1126, %v1123
    %v1265 = vpack.c.bf16 %v1127, %v1124
    %v1266 = vpack.c.bf16 %v1131, %v1128
    %v1267 = vpack.c.bf16 %v1132, %v1129
    %v1268 = vpack.c.bf16 %v1133, %v1130
    %v1269 = vpack.c.bf16 %v1137, %v1134
    %v1270 = vpack.c.bf16 %v1138, %v1135
    %v1271 = vpack.c.bf16 %v1139, %v1136
    %v1272 = vpack.c.bf16 %v1143, %v1140
    %v1273 = vpack.c.bf16 %v1144, %v1141
    %v1274 = vpack.c.bf16 %v1145, %v1142
    %v1275 = vpack.c.bf16 %v1149, %v1146
    %v1276 = vpack.c.bf16 %v1150, %v1147
    %v1277 = vpack.c.bf16 %v1151, %v1148
    %v1278 = vpack.c.bf16 %v1155, %v1152
    %v1279 = vpack.c.bf16 %v1156, %v1153
    %v1280 = vpack.c.bf16 %v1157, %v1154
    %v1281 = vpack.c.bf16 %v1161, %v1158
    %v1282 = vpack.c.bf16 %v1162, %v1159
    %v1283 = vpack.c.bf16 %v1163, %v1160
    %v1284 = vpack.c.bf16 %v1167, %v1164
    %v1285 = vpack.c.bf16 %v1168, %v1165
    %v1286 = vpack.c.bf16 %v1169, %v1166
    %v1287 = vpack.c.bf16 %v1173, %v1170
    %v1288 = vpack.c.bf16 %v1174, %v1171
    %v1289 = vpack.c.bf16 %v1175, %v1172
    %v1290 = vpack.c.bf16 %v1179, %v1176
    %v1291 = vpack.c.bf16 %v1180, %v1177
    %v1292 = vpack.c.bf16 %v1181, %v1178
    %v1293 = vpack.c.bf16 %v1185, %v1182
    %v1294 = vpack.c.bf16 %v1186, %v1183
    %v1295 = vpack.c.bf16 %v1187, %v1184
    %v1296 = vpack.c.bf16 %v1191, %v1188
    %v1297 = vpack.c.bf16 %v1192, %v1189
    %v1298 = vpack.c.bf16 %v1193, %v1190
    %v1299 = vpack.c.bf16 %v1197, %v1194
    %v1300 = vpack.c.bf16 %v1198, %v1195
    %v1301 = vpack.c.bf16 %v1199, %v1196
    %v1302 = vpack.c.bf16 %v1203, %v1200
    %v1303 = vpack.c.bf16 %v1204, %v1201
    %v1304 = vpack.c.bf16 %v1205, %v1202
    %v1305 = vpack.c.bf16 %v1209, %v1206
    %v1306 = vpack.c.bf16 %v1210, %v1207
    %v1307 = vpack.c.bf16 %v1211, %v1208
    %v1308 = vld [vmem:[#allocation3] sm:$0xff]
    %v1309 = vld [vmem:[#allocation3 + $0x8] sm:$0xff]
    %v1310 = vld [vmem:[#allocation3 + $0x10] sm:$0xff]
    %v1311 = vld [vmem:[#allocation3 + $0x18] sm:$0xff]
    %v1312 = vld [vmem:[#allocation3 + $0x20] sm:$0xff]
    %v1313 = vld [vmem:[#allocation3 + $0x28] sm:$0xff]
    %v1314 = vld [vmem:[#allocation3 + $0x30] sm:$0xff]
    %v1315 = vld [vmem:[#allocation3 + $0x38] sm:$0xff]
    %v1316 = vld [vmem:[#allocation3 + $0x40] sm:$0xff]
    %v1317 = vld [vmem:[#allocation3 + $0x48] sm:$0xff]
    %v1318 = vld [vmem:[#allocation3 + $0x50] sm:$0xff]
    %v1319 = vld [vmem:[#allocation3 + $0x58] sm:$0xff]
    %v1320 = vld [vmem:[#allocation3 + $0x60] sm:$0xff]
    %v1321 = vld [vmem:[#allocation3 + $0x68] sm:$0xff]
    %v1322 = vld [vmem:[#allocation3 + $0x70] sm:$0xff]
    %v1323 = vld [vmem:[#allocation3 + $0x78] sm:$0xff]
    %v1324 = vld [vmem:[#allocation3 + $0x80] sm:$0xff]
    %v1325 = vld [vmem:[#allocation3 + $0x88] sm:$0xff]
    %v1326 = vld [vmem:[#allocation3 + $0x90] sm:$0xff]
    %v1327 = vld [vmem:[#allocation3 + $0x98] sm:$0xff]
    %v1328 = vld [vmem:[#allocation3 + $0xa0] sm:$0xff]
    %v1329 = vld [vmem:[#allocation3 + $0xa8] sm:$0xff]
    %v1330 = vld [vmem:[#allocation3 + $0xb0] sm:$0xff]
    %v1331 = vld [vmem:[#allocation3 + $0xb8] sm:$0xff]
    %v1332 = vld [vmem:[#allocation3 + $0xc0] sm:$0xff]
    %v1333 = vld [vmem:[#allocation3 + $0xc8] sm:$0xff]
    %v1334 = vld [vmem:[#allocation3 + $0xd0] sm:$0xff]
    %v1335 = vld [vmem:[#allocation3 + $0xd8] sm:$0xff]
    %v1336 = vld [vmem:[#allocation3 + $0xe0] sm:$0xff]
    %v1337 = vld [vmem:[#allocation3 + $0xe8] sm:$0xff]
    %v1338 = vld [vmem:[#allocation3 + $0xf0] sm:$0xff]
    %v1339 = vld [vmem:[#allocation3 + $0xf8] sm:$0xff]
    %v1340 = vld [vmem:[#allocation3 + $0x100] sm:$0xff]
    %v1341 = vld [vmem:[#allocation3 + $0x108] sm:$0xff]
    %v1342 = vld [vmem:[#allocation3 + $0x110] sm:$0xff]
    %v1343 = vld [vmem:[#allocation3 + $0x118] sm:$0xff]
    %v1344 = vld [vmem:[#allocation3 + $0x120] sm:$0xff]
    %v1345 = vld [vmem:[#allocation3 + $0x128] sm:$0xff]
    %v1346 = vld [vmem:[#allocation3 + $0x130] sm:$0xff]
    %v1347 = vld [vmem:[#allocation3 + $0x138] sm:$0xff]
    %v1348 = vld [vmem:[#allocation3 + $0x140] sm:$0xff]
    %v1349 = vld [vmem:[#allocation3 + $0x148] sm:$0xff]
    %v1350 = vld [vmem:[#allocation3 + $0x150] sm:$0xff]
    %v1351 = vld [vmem:[#allocation3 + $0x158] sm:$0xff]
    %v1352 = vld [vmem:[#allocation3 + $0x160] sm:$0xff]
    %v1353 = vld [vmem:[#allocation3 + $0x168] sm:$0xff]
    %v1354 = vld [vmem:[#allocation3 + $0x170] sm:$0xff]
    %v1355 = vld [vmem:[#allocation3 + $0x178] sm:$0xff]
    %v1356 = vld [vmem:[#allocation3 + $0x180] sm:$0xff]
    %v1357 = vld [vmem:[#allocation3 + $0x188] sm:$0xff]
    %v1358 = vld [vmem:[#allocation3 + $0x190] sm:$0xff]
    %v1359 = vld [vmem:[#allocation3 + $0x198] sm:$0xff]
    %v1360 = vld [vmem:[#allocation3 + $0x1a0] sm:$0xff]
    %v1361 = vld [vmem:[#allocation3 + $0x1a8] sm:$0xff]
    %v1362 = vld [vmem:[#allocation3 + $0x1b0] sm:$0xff]
    %v1363 = vld [vmem:[#allocation3 + $0x1b8] sm:$0xff]
    %v1364 = vld [vmem:[#allocation3 + $0x1c0] sm:$0xff]
    %v1365 = vld [vmem:[#allocation3 + $0x1c8] sm:$0xff]
    %v1366 = vld [vmem:[#allocation3 + $0x1d0] sm:$0xff]
    %v1367 = vld [vmem:[#allocation3 + $0x1d8] sm:$0xff]
    %v1368 = vld [vmem:[#allocation3 + $0x1e0] sm:$0xff]
    %v1369 = vld [vmem:[#allocation3 + $0x1e8] sm:$0xff]
    %v1370 = vld [vmem:[#allocation3 + $0x1f0] sm:$0xff]
    %v1371 = vld [vmem:[#allocation3 + $0x1f8] sm:$0xff]
    %v1372 = vld [vmem:[#allocation3 + $0x200] sm:$0xff]
    %v1373 = vld [vmem:[#allocation3 + $0x208] sm:$0xff]
    %v1374 = vld [vmem:[#allocation3 + $0x210] sm:$0xff]
    %v1375 = vld [vmem:[#allocation3 + $0x218] sm:$0xff]
    %v1376 = vld [vmem:[#allocation3 + $0x220] sm:$0xff]
    %v1377 = vld [vmem:[#allocation3 + $0x228] sm:$0xff]
    %v1378 = vld [vmem:[#allocation3 + $0x230] sm:$0xff]
    %v1379 = vld [vmem:[#allocation3 + $0x238] sm:$0xff]
    %v1380 = vld [vmem:[#allocation3 + $0x240] sm:$0xff]
    %v1381 = vld [vmem:[#allocation3 + $0x248] sm:$0xff]
    %v1382 = vld [vmem:[#allocation3 + $0x250] sm:$0xff]
    %v1383 = vld [vmem:[#allocation3 + $0x258] sm:$0xff]
    %v1384 = vld [vmem:[#allocation3 + $0x260] sm:$0xff]
    %v1385 = vld [vmem:[#allocation3 + $0x268] sm:$0xff]
    %v1386 = vld [vmem:[#allocation3 + $0x270] sm:$0xff]
    %v1387 = vld [vmem:[#allocation3 + $0x278] sm:$0xff]
    %v1388 = vld [vmem:[#allocation3 + $0x280] sm:$0xff]
    %v1389 = vld [vmem:[#allocation3 + $0x288] sm:$0xff]
    %v1390 = vld [vmem:[#allocation3 + $0x290] sm:$0xff]
    %v1391 = vld [vmem:[#allocation3 + $0x298] sm:$0xff]
    %v1392 = vld [vmem:[#allocation3 + $0x2a0] sm:$0xff]
    %v1393 = vld [vmem:[#allocation3 + $0x2a8] sm:$0xff]
    %v1394 = vld [vmem:[#allocation3 + $0x2b0] sm:$0xff]
    %v1395 = vld [vmem:[#allocation3 + $0x2b8] sm:$0xff]
    %v1396 = vld [vmem:[#allocation3 + $0x2c0] sm:$0xff]
    %v1397 = vld [vmem:[#allocation3 + $0x2c8] sm:$0xff]
    %v1398 = vld [vmem:[#allocation3 + $0x2d0] sm:$0xff]
    %v1399 = vld [vmem:[#allocation3 + $0x2d8] sm:$0xff]
    %v1400 = vld [vmem:[#allocation3 + $0x2e0] sm:$0xff]
    %v1401 = vld [vmem:[#allocation3 + $0x2e8] sm:$0xff]
    %v1402 = vld [vmem:[#allocation3 + $0x2f0] sm:$0xff]
    %v1403 = vld [vmem:[#allocation3 + $0x2f8] sm:$0xff]
    %v1404 = vld [vmem:[%s6] sm:$0xf]
    %v1406 = vperm.slane %v1404, 0
    %v1407 = vperm.slane %v1404, 1
    %v1408 = vperm.slane %v1404, 2
    %v1409 = vperm.slane %v1404, 3
    %v1510 = vunpack.c.l.b16 %v1308
    %v1511 = vunpack.c.h.b16 %v1308
    %v1512 = vunpack.c.l.b16 %v1309
    %v1513 = vunpack.c.h.b16 %v1309
    %v1514 = vunpack.c.l.b16 %v1310
    %v1515 = vunpack.c.h.b16 %v1310
    %v1516 = vunpack.c.l.b16 %v1311
    %v1517 = vunpack.c.h.b16 %v1311
    %v1518 = vunpack.c.l.b16 %v1312
    %v1519 = vunpack.c.h.b16 %v1312
    %v1520 = vunpack.c.l.b16 %v1313
    %v1521 = vunpack.c.h.b16 %v1313
    %v1522 = vunpack.c.l.b16 %v1314
    %v1523 = vunpack.c.h.b16 %v1314
    %v1524 = vunpack.c.l.b16 %v1315
    %v1525 = vunpack.c.h.b16 %v1315
    %v1526 = vunpack.c.l.b16 %v1316
    %v1527 = vunpack.c.h.b16 %v1316
    %v1528 = vunpack.c.l.b16 %v1317
    %v1529 = vunpack.c.h.b16 %v1317
    %v1530 = vunpack.c.l.b16 %v1318
    %v1531 = vunpack.c.h.b16 %v1318
    %v1532 = vunpack.c.l.b16 %v1319
    %v1533 = vunpack.c.h.b16 %v1319
    %v1534 = vunpack.c.l.b16 %v1320
    %v1535 = vunpack.c.h.b16 %v1320
    %v1536 = vunpack.c.l.b16 %v1321
    %v1537 = vunpack.c.h.b16 %v1321
    %v1538 = vunpack.c.l.b16 %v1322
    %v1539 = vunpack.c.h.b16 %v1322
    %v1540 = vunpack.c.l.b16 %v1323
    %v1541 = vunpack.c.h.b16 %v1323
    %v1542 = vunpack.c.l.b16 %v1324
    %v1543 = vunpack.c.h.b16 %v1324
    %v1544 = vunpack.c.l.b16 %v1325
    %v1545 = vunpack.c.h.b16 %v1325
    %v1546 = vunpack.c.l.b16 %v1326
    %v1547 = vunpack.c.h.b16 %v1326
    %v1548 = vunpack.c.l.b16 %v1327
    %v1549 = vunpack.c.h.b16 %v1327
    %v1550 = vunpack.c.l.b16 %v1328
    %v1551 = vunpack.c.h.b16 %v1328
    %v1552 = vunpack.c.l.b16 %v1329
    %v1553 = vunpack.c.h.b16 %v1329
    %v1554 = vunpack.c.l.b16 %v1330
    %v1555 = vunpack.c.h.b16 %v1330
    %v1556 = vunpack.c.l.b16 %v1331
    %v1557 = vunpack.c.h.b16 %v1331
    %v1558 = vunpack.c.l.b16 %v1332
    %v1559 = vunpack.c.h.b16 %v1332
    %v1560 = vunpack.c.l.b16 %v1333
    %v1561 = vunpack.c.h.b16 %v1333
    %v1562 = vunpack.c.l.b16 %v1334
    %v1563 = vunpack.c.h.b16 %v1334
    %v1564 = vunpack.c.l.b16 %v1335
    %v1565 = vunpack.c.h.b16 %v1335
    %v1566 = vunpack.c.l.b16 %v1336
    %v1567 = vunpack.c.h.b16 %v1336
    %v1568 = vunpack.c.l.b16 %v1337
    %v1569 = vunpack.c.h.b16 %v1337
    %v1570 = vunpack.c.l.b16 %v1338
    %v1571 = vunpack.c.h.b16 %v1338
    %v1572 = vunpack.c.l.b16 %v1339
    %v1573 = vunpack.c.h.b16 %v1339
    %v1574 = vunpack.c.l.b16 %v1340
    %v1575 = vunpack.c.h.b16 %v1340
    %v1576 = vunpack.c.l.b16 %v1341
    %v1577 = vunpack.c.h.b16 %v1341
    %v1578 = vunpack.c.l.b16 %v1342
    %v1579 = vunpack.c.h.b16 %v1342
    %v1580 = vunpack.c.l.b16 %v1343
    %v1581 = vunpack.c.h.b16 %v1343
    %v1582 = vunpack.c.l.b16 %v1344
    %v1583 = vunpack.c.h.b16 %v1344
    %v1584 = vunpack.c.l.b16 %v1345
    %v1585 = vunpack.c.h.b16 %v1345
    %v1586 = vunpack.c.l.b16 %v1346
    %v1587 = vunpack.c.h.b16 %v1346
    %v1588 = vunpack.c.l.b16 %v1347
    %v1589 = vunpack.c.h.b16 %v1347
    %v1590 = vunpack.c.l.b16 %v1348
    %v1591 = vunpack.c.h.b16 %v1348
    %v1592 = vunpack.c.l.b16 %v1349
    %v1593 = vunpack.c.h.b16 %v1349
    %v1594 = vunpack.c.l.b16 %v1350
    %v1595 = vunpack.c.h.b16 %v1350
    %v1596 = vunpack.c.l.b16 %v1351
    %v1597 = vunpack.c.h.b16 %v1351
    %v1598 = vunpack.c.l.b16 %v1352
    %v1599 = vunpack.c.h.b16 %v1352
    %v1600 = vunpack.c.l.b16 %v1353
    %v1601 = vunpack.c.h.b16 %v1353
    %v1602 = vunpack.c.l.b16 %v1354
    %v1603 = vunpack.c.h.b16 %v1354
    %v1604 = vunpack.c.l.b16 %v1355
    %v1605 = vunpack.c.h.b16 %v1355
    %v1606 = vunpack.c.l.b16 %v1356
    %v1607 = vunpack.c.h.b16 %v1356
    %v1608 = vunpack.c.l.b16 %v1357
    %v1609 = vunpack.c.h.b16 %v1357
    %v1610 = vunpack.c.l.b16 %v1358
    %v1611 = vunpack.c.h.b16 %v1358
    %v1612 = vunpack.c.l.b16 %v1359
    %v1613 = vunpack.c.h.b16 %v1359
    %v1614 = vunpack.c.l.b16 %v1360
    %v1615 = vunpack.c.h.b16 %v1360
    %v1616 = vunpack.c.l.b16 %v1361
    %v1617 = vunpack.c.h.b16 %v1361
    %v1618 = vunpack.c.l.b16 %v1362
    %v1619 = vunpack.c.h.b16 %v1362
    %v1620 = vunpack.c.l.b16 %v1363
    %v1621 = vunpack.c.h.b16 %v1363
    %v1622 = vunpack.c.l.b16 %v1364
    %v1623 = vunpack.c.h.b16 %v1364
    %v1624 = vunpack.c.l.b16 %v1365
    %v1625 = vunpack.c.h.b16 %v1365
    %v1626 = vunpack.c.l.b16 %v1366
    %v1627 = vunpack.c.h.b16 %v1366
    %v1628 = vunpack.c.l.b16 %v1367
    %v1629 = vunpack.c.h.b16 %v1367
    %v1630 = vunpack.c.l.b16 %v1368
    %v1631 = vunpack.c.h.b16 %v1368
    %v1632 = vunpack.c.l.b16 %v1369
    %v1633 = vunpack.c.h.b16 %v1369
    %v1634 = vunpack.c.l.b16 %v1370
    %v1635 = vunpack.c.h.b16 %v1370
    %v1636 = vunpack.c.l.b16 %v1371
    %v1637 = vunpack.c.h.b16 %v1371
    %v1638 = vunpack.c.l.b16 %v1372
    %v1639 = vunpack.c.h.b16 %v1372
    %v1640 = vunpack.c.l.b16 %v1373
    %v1641 = vunpack.c.h.b16 %v1373
    %v1642 = vunpack.c.l.b16 %v1374
    %v1643 = vunpack.c.h.b16 %v1374
    %v1644 = vunpack.c.l.b16 %v1375
    %v1645 = vunpack.c.h.b16 %v1375
    %v1646 = vunpack.c.l.b16 %v1376
    %v1647 = vunpack.c.h.b16 %v1376
    %v1648 = vunpack.c.l.b16 %v1377
    %v1649 = vunpack.c.h.b16 %v1377
    %v1650 = vunpack.c.l.b16 %v1378
    %v1651 = vunpack.c.h.b16 %v1378
    %v1652 = vunpack.c.l.b16 %v1379
    %v1653 = vunpack.c.h.b16 %v1379
    %v1654 = vunpack.c.l.b16 %v1380
    %v1655 = vunpack.c.h.b16 %v1380
    %v1656 = vunpack.c.l.b16 %v1381
    %v1657 = vunpack.c.h.b16 %v1381
    %v1658 = vunpack.c.l.b16 %v1382
    %v1659 = vunpack.c.h.b16 %v1382
    %v1660 = vunpack.c.l.b16 %v1383
    %v1661 = vunpack.c.h.b16 %v1383
    %v1662 = vunpack.c.l.b16 %v1384
    %v1663 = vunpack.c.h.b16 %v1384
    %v1664 = vunpack.c.l.b16 %v1385
    %v1665 = vunpack.c.h.b16 %v1385
    %v1666 = vunpack.c.l.b16 %v1386
    %v1667 = vunpack.c.h.b16 %v1386
    %v1668 = vunpack.c.l.b16 %v1387
    %v1669 = vunpack.c.h.b16 %v1387
    %v1670 = vunpack.c.l.b16 %v1388
    %v1671 = vunpack.c.h.b16 %v1388
    %v1672 = vunpack.c.l.b16 %v1389
    %v1673 = vunpack.c.h.b16 %v1389
    %v1674 = vunpack.c.l.b16 %v1390
    %v1675 = vunpack.c.h.b16 %v1390
    %v1676 = vunpack.c.l.b16 %v1391
    %v1677 = vunpack.c.h.b16 %v1391
    %v1678 = vunpack.c.l.b16 %v1392
    %v1679 = vunpack.c.h.b16 %v1392
    %v1680 = vunpack.c.l.b16 %v1393
    %v1681 = vunpack.c.h.b16 %v1393
    %v1682 = vunpack.c.l.b16 %v1394
    %v1683 = vunpack.c.h.b16 %v1394
    %v1684 = vunpack.c.l.b16 %v1395
    %v1685 = vunpack.c.h.b16 %v1395
    %v1686 = vunpack.c.l.b16 %v1396
    %v1687 = vunpack.c.h.b16 %v1396
    %v1688 = vunpack.c.l.b16 %v1397
    %v1689 = vunpack.c.h.b16 %v1397
    %v1690 = vunpack.c.l.b16 %v1398
    %v1691 = vunpack.c.h.b16 %v1398
    %v1692 = vunpack.c.l.b16 %v1399
    %v1693 = vunpack.c.h.b16 %v1399
    %v1694 = vunpack.c.l.b16 %v1400
    %v1695 = vunpack.c.h.b16 %v1400
    %v1696 = vunpack.c.l.b16 %v1401
    %v1697 = vunpack.c.h.b16 %v1401
    %v1698 = vunpack.c.l.b16 %v1402
    %v1699 = vunpack.c.h.b16 %v1402
    %v1700 = vunpack.c.l.b16 %v1403
    %v1701 = vunpack.c.h.b16 %v1403
    %v1702 = vpack.c.b16 %v1514, %v1510
    %v1703 = vpack.c.b16 %v1515, %v1511
    %v1704 = vpack.c.b16 %v1516, %v1512
    %v1705 = vpack.c.b16 %v1517, %v1513
    %v1706 = vpack.c.b16 %v1522, %v1518
    %v1707 = vpack.c.b16 %v1523, %v1519
    %v1708 = vpack.c.b16 %v1524, %v1520
    %v1709 = vpack.c.b16 %v1525, %v1521
    %v1710 = vpack.c.b16 %v1530, %v1526
    %v1711 = vpack.c.b16 %v1531, %v1527
    %v1712 = vpack.c.b16 %v1532, %v1528
    %v1713 = vpack.c.b16 %v1533, %v1529
    %v1714 = vpack.c.b16 %v1538, %v1534
    %v1715 = vpack.c.b16 %v1539, %v1535
    %v1716 = vpack.c.b16 %v1540, %v1536
    %v1717 = vpack.c.b16 %v1541, %v1537
    %v1718 = vpack.c.b16 %v1546, %v1542
    %v1719 = vpack.c.b16 %v1547, %v1543
    %v1720 = vpack.c.b16 %v1548, %v1544
    %v1721 = vpack.c.b16 %v1549, %v1545
    %v1722 = vpack.c.b16 %v1554, %v1550
    %v1723 = vpack.c.b16 %v1555, %v1551
    %v1724 = vpack.c.b16 %v1556, %v1552
    %v1725 = vpack.c.b16 %v1557, %v1553
    %v1726 = vpack.c.b16 %v1562, %v1558
    %v1727 = vpack.c.b16 %v1563, %v1559
    %v1728 = vpack.c.b16 %v1564, %v1560
    %v1729 = vpack.c.b16 %v1565, %v1561
    %v1730 = vpack.c.b16 %v1570, %v1566
    %v1731 = vpack.c.b16 %v1571, %v1567
    %v1732 = vpack.c.b16 %v1572, %v1568
    %v1733 = vpack.c.b16 %v1573, %v1569
    %v1734 = vpack.c.b16 %v1578, %v1574
    %v1735 = vpack.c.b16 %v1579, %v1575
    %v1736 = vpack.c.b16 %v1580, %v1576
    %v1737 = vpack.c.b16 %v1581, %v1577
    %v1738 = vpack.c.b16 %v1586, %v1582
    %v1739 = vpack.c.b16 %v1587, %v1583
    %v1740 = vpack.c.b16 %v1588, %v1584
    %v1741 = vpack.c.b16 %v1589, %v1585
    %v1742 = vpack.c.b16 %v1594, %v1590
    %v1743 = vpack.c.b16 %v1595, %v1591
    %v1744 = vpack.c.b16 %v1596, %v1592
    %v1745 = vpack.c.b16 %v1597, %v1593
    %v1746 = vpack.c.b16 %v1602, %v1598
    %v1747 = vpack.c.b16 %v1603, %v1599
    %v1748 = vpack.c.b16 %v1604, %v1600
    %v1749 = vpack.c.b16 %v1605, %v1601
    %v1750 = vpack.c.b16 %v1610, %v1606
    %v1751 = vpack.c.b16 %v1611, %v1607
    %v1752 = vpack.c.b16 %v1612, %v1608
    %v1753 = vpack.c.b16 %v1613, %v1609
    %v1754 = vpack.c.b16 %v1618, %v1614
    %v1755 = vpack.c.b16 %v1619, %v1615
    %v1756 = vpack.c.b16 %v1620, %v1616
    %v1757 = vpack.c.b16 %v1621, %v1617
    %v1758 = vpack.c.b16 %v1626, %v1622
    %v1759 = vpack.c.b16 %v1627, %v1623
    %v1760 = vpack.c.b16 %v1628, %v1624
    %v1761 = vpack.c.b16 %v1629, %v1625
    %v1762 = vpack.c.b16 %v1634, %v1630
    %v1763 = vpack.c.b16 %v1635, %v1631
    %v1764 = vpack.c.b16 %v1636, %v1632
    %v1765 = vpack.c.b16 %v1637, %v1633
    %v1766 = vpack.c.b16 %v1642, %v1638
    %v1767 = vpack.c.b16 %v1643, %v1639
    %v1768 = vpack.c.b16 %v1644, %v1640
    %v1769 = vpack.c.b16 %v1645, %v1641
    %v1770 = vpack.c.b16 %v1650, %v1646
    %v1771 = vpack.c.b16 %v1651, %v1647
    %v1772 = vpack.c.b16 %v1652, %v1648
    %v1773 = vpack.c.b16 %v1653, %v1649
    %v1774 = vpack.c.b16 %v1658, %v1654
    %v1775 = vpack.c.b16 %v1659, %v1655
    %v1776 = vpack.c.b16 %v1660, %v1656
    %v1777 = vpack.c.b16 %v1661, %v1657
    %v1778 = vpack.c.b16 %v1666, %v1662
    %v1779 = vpack.c.b16 %v1667, %v1663
    %v1780 = vpack.c.b16 %v1668, %v1664
    %v1781 = vpack.c.b16 %v1669, %v1665
    %v1782 = vpack.c.b16 %v1674, %v1670
    %v1783 = vpack.c.b16 %v1675, %v1671
    %v1784 = vpack.c.b16 %v1676, %v1672
    %v1785 = vpack.c.b16 %v1677, %v1673
    %v1786 = vpack.c.b16 %v1682, %v1678
    %v1787 = vpack.c.b16 %v1683, %v1679
    %v1788 = vpack.c.b16 %v1684, %v1680
    %v1789 = vpack.c.b16 %v1685, %v1681
    %v1790 = vpack.c.b16 %v1690, %v1686
    %v1791 = vpack.c.b16 %v1691, %v1687
    %v1792 = vpack.c.b16 %v1692, %v1688
    %v1793 = vpack.c.b16 %v1693, %v1689
    %v1794 = vpack.c.b16 %v1698, %v1694
    %v1795 = vpack.c.b16 %v1699, %v1695
    %v1796 = vpack.c.b16 %v1700, %v1696
    %v1797 = vpack.c.b16 %v1701, %v1697
    %1894 = vmatpush.bf16.msra.mxu0 %v1730
    %1895 = vmatpush.bf16.msra.mxu0 %v1726
    %1896 = vmatpush.bf16.msra.mxu0 %v1722
    %1897 = vmatpush.bf16.msra.mxu0 %v1718
    %1898 = vmatpush.bf16.msra.mxu0 %v1714
    %1899 = vmatpush.bf16.msra.mxu0 %v1710
    %1900 = vmatpush.bf16.msra.mxu0 %v1706
    %1901 = vmatpush.bf16.msra.mxu0 %v1702
    %1902 = vmatmul.bf16.gmra.mxu0 %v1212
    %v1903 = vpop.f32.mrf.mxu0
    %v1904 = vadd.f32 %v1406, %v1903
    %v1905 = vpop.f32.mrf.mxu0
    %v1906 = vadd.f32 %v1406, %v1905
    %1907 = vmatmul.bf16.gmra.mxu0 %v1215
    %v1908 = vpop.f32.mrf.mxu0
    %v1909 = vadd.f32 %v1406, %v1908
    %v1910 = vpop.f32.mrf.mxu0
    %v1911 = vadd.f32 %v1406, %v1910
    %1912 = vmatmul.bf16.gmra.mxu0 %v1218
    %v1913 = vpop.f32.mrf.mxu0
    %v1914 = vadd.f32 %v1406, %v1913
    %v1915 = vpop.f32.mrf.mxu0
    %v1916 = vadd.f32 %v1406, %v1915
    %1917 = vmatmul.bf16.gmra.mxu0 %v1221
    %v1918 = vpop.f32.mrf.mxu0
    %v1919 = vadd.f32 %v1406, %v1918
    %v1920 = vpop.f32.mrf.mxu0
    %v1921 = vadd.f32 %v1406, %v1920
    %1922 = vmatmul.bf16.gmra.mxu0 %v1224
    %v1923 = vpop.f32.mrf.mxu0
    %v1924 = vadd.f32 %v1406, %v1923
    %v1925 = vpop.f32.mrf.mxu0
    %v1926 = vadd.f32 %v1406, %v1925
    %1927 = vmatmul.bf16.gmra.mxu0 %v1227
    %v1928 = vpop.f32.mrf.mxu0
    %v1929 = vadd.f32 %v1406, %v1928
    %v1930 = vpop.f32.mrf.mxu0
    %v1931 = vadd.f32 %v1406, %v1930
    %1932 = vmatmul.bf16.gmra.mxu0 %v1230
    %v1933 = vpop.f32.mrf.mxu0
    %v1934 = vadd.f32 %v1406, %v1933
    %v1935 = vpop.f32.mrf.mxu0
    %v1936 = vadd.f32 %v1406, %v1935
    %1937 = vmatmul.bf16.gmra.mxu0 %v1233
    %v1938 = vpop.f32.mrf.mxu0
    %v1939 = vadd.f32 %v1406, %v1938
    %v1940 = vpop.f32.mrf.mxu0
    %v1941 = vadd.f32 %v1406, %v1940
    %1942 = vmatmul.bf16.gmra.mxu0 %v1236
    %v1943 = vpop.f32.mrf.mxu0
    %v1944 = vadd.f32 %v1406, %v1943
    %v1945 = vpop.f32.mrf.mxu0
    %v1946 = vadd.f32 %v1406, %v1945
    %1947 = vmatmul.bf16.gmra.mxu0 %v1239
    %v1948 = vpop.f32.mrf.mxu0
    %v1949 = vadd.f32 %v1406, %v1948
    %v1950 = vpop.f32.mrf.mxu0
    %v1951 = vadd.f32 %v1406, %v1950
    %1952 = vmatmul.bf16.gmra.mxu0 %v1242
    %v1953 = vpop.f32.mrf.mxu0
    %v1954 = vadd.f32 %v1406, %v1953
    %v1955 = vpop.f32.mrf.mxu0
    %v1956 = vadd.f32 %v1406, %v1955
    %1957 = vmatmul.bf16.gmra.mxu0 %v1245
    %v1958 = vpop.f32.mrf.mxu0
    %v1959 = vadd.f32 %v1406, %v1958
    %v1960 = vpop.f32.mrf.mxu0
    %v1961 = vadd.f32 %v1406, %v1960
    %1962 = vmatmul.bf16.gmra.mxu0 %v1248
    %v1963 = vpop.f32.mrf.mxu0
    %v1964 = vadd.f32 %v1406, %v1963
    %v1965 = vpop.f32.mrf.mxu0
    %v1966 = vadd.f32 %v1406, %v1965
    %1967 = vmatmul.bf16.gmra.mxu0 %v1251
    %v1968 = vpop.f32.mrf.mxu0
    %v1969 = vadd.f32 %v1406, %v1968
    %v1970 = vpop.f32.mrf.mxu0
    %v1971 = vadd.f32 %v1406, %v1970
    %1972 = vmatmul.bf16.gmra.mxu0 %v1254
    %v1973 = vpop.f32.mrf.mxu0
    %v1974 = vadd.f32 %v1406, %v1973
    %v1975 = vpop.f32.mrf.mxu0
    %v1976 = vadd.f32 %v1406, %v1975
    %1977 = vmatmul.bf16.gmra.mxu0 %v1257
    %v1978 = vpop.f32.mrf.mxu0
    %v1979 = vadd.f32 %v1406, %v1978
    %v1980 = vpop.f32.mrf.mxu0
    %v1981 = vadd.f32 %v1406, %v1980
    %1982 = vmatmul.bf16.gmra.mxu0 %v1260
    %v1983 = vpop.f32.mrf.mxu0
    %v1984 = vadd.f32 %v1406, %v1983
    %v1985 = vpop.f32.mrf.mxu0
    %v1986 = vadd.f32 %v1406, %v1985
    %1987 = vmatmul.bf16.gmra.mxu0 %v1263
    %v1988 = vpop.f32.mrf.mxu0
    %v1989 = vadd.f32 %v1406, %v1988
    %v1990 = vpop.f32.mrf.mxu0
    %v1991 = vadd.f32 %v1406, %v1990
    %1992 = vmatmul.bf16.gmra.mxu0 %v1266
    %v1993 = vpop.f32.mrf.mxu0
    %v1994 = vadd.f32 %v1406, %v1993
    %v1995 = vpop.f32.mrf.mxu0
    %v1996 = vadd.f32 %v1406, %v1995
    %1997 = vmatmul.bf16.gmra.mxu0 %v1269
    %v1998 = vpop.f32.mrf.mxu0
    %v1999 = vadd.f32 %v1406, %v1998
    %v2000 = vpop.f32.mrf.mxu0
    %v2001 = vadd.f32 %v1406, %v2000
    %2002 = vmatmul.bf16.gmra.mxu0 %v1272
    %v2003 = vpop.f32.mrf.mxu0
    %v2004 = vadd.f32 %v1406, %v2003
    %v2005 = vpop.f32.mrf.mxu0
    %v2006 = vadd.f32 %v1406, %v2005
    %2007 = vmatmul.bf16.gmra.mxu0 %v1275
    %v2008 = vpop.f32.mrf.mxu0
    %v2009 = vadd.f32 %v1406, %v2008
    %v2010 = vpop.f32.mrf.mxu0
    %v2011 = vadd.f32 %v1406, %v2010
    %2012 = vmatmul.bf16.gmra.mxu0 %v1278
    %v2013 = vpop.f32.mrf.mxu0
    %v2014 = vadd.f32 %v1406, %v2013
    %v2015 = vpop.f32.mrf.mxu0
    %v2016 = vadd.f32 %v1406, %v2015
    %2017 = vmatmul.bf16.gmra.mxu0 %v1281
    %v2018 = vpop.f32.mrf.mxu0
    %v2019 = vadd.f32 %v1406, %v2018
    %v2020 = vpop.f32.mrf.mxu0
    %v2021 = vadd.f32 %v1406, %v2020
    %2022 = vmatmul.bf16.gmra.mxu0 %v1284
    %v2023 = vpop.f32.mrf.mxu0
    %v2024 = vadd.f32 %v1406, %v2023
    %v2025 = vpop.f32.mrf.mxu0
    %v2026 = vadd.f32 %v1406, %v2025
    %2027 = vmatmul.bf16.gmra.mxu0 %v1287
    %v2028 = vpop.f32.mrf.mxu0
    %v2029 = vadd.f32 %v1406, %v2028
    %v2030 = vpop.f32.mrf.mxu0
    %v2031 = vadd.f32 %v1406, %v2030
    %2032 = vmatmul.bf16.gmra.mxu0 %v1290
    %v2033 = vpop.f32.mrf.mxu0
    %v2034 = vadd.f32 %v1406, %v2033
    %v2035 = vpop.f32.mrf.mxu0
    %v2036 = vadd.f32 %v1406, %v2035
    %2037 = vmatmul.bf16.gmra.mxu0 %v1293
    %v2038 = vpop.f32.mrf.mxu0
    %v2039 = vadd.f32 %v1406, %v2038
    %v2040 = vpop.f32.mrf.mxu0
    %v2041 = vadd.f32 %v1406, %v2040
    %2042 = vmatmul.bf16.gmra.mxu0 %v1296
    %v2043 = vpop.f32.mrf.mxu0
    %v2044 = vadd.f32 %v1406, %v2043
    %v2045 = vpop.f32.mrf.mxu0
    %v2046 = vadd.f32 %v1406, %v2045
    %2047 = vmatmul.bf16.gmra.mxu0 %v1299
    %v2048 = vpop.f32.mrf.mxu0
    %v2049 = vadd.f32 %v1406, %v2048
    %v2050 = vpop.f32.mrf.mxu0
    %v2051 = vadd.f32 %v1406, %v2050
    %2052 = vmatmul.bf16.gmra.mxu0 %v1302
    %v2053 = vpop.f32.mrf.mxu0
    %v2054 = vadd.f32 %v1406, %v2053
    %v2055 = vpop.f32.mrf.mxu0
    %v2056 = vadd.f32 %v1406, %v2055
    %2057 = vmatmul.bf16.gmra.mxu0 %v1305
    %v2058 = vpop.f32.mrf.mxu0
    %v2059 = vadd.f32 %v1406, %v2058
    %v2060 = vpop.f32.mrf.mxu0
    %v2061 = vadd.f32 %v1406, %v2060
    %2062 = vdwg.mxu0
    %2063 = vmatpush.bf16.msra.mxu0 %v1762
    %2064 = vmatpush.bf16.msra.mxu0 %v1758
    %2065 = vmatpush.bf16.msra.mxu0 %v1754
    %2066 = vmatpush.bf16.msra.mxu0 %v1750
    %2067 = vmatpush.bf16.msra.mxu0 %v1746
    %2068 = vmatpush.bf16.msra.mxu0 %v1742
    %2069 = vmatpush.bf16.msra.mxu0 %v1738
    %2070 = vmatpush.bf16.msra.mxu0 %v1734
    %2071 = vmatmul.bf16.gmra.mxu0 %v1213
    %v2072 = vpop.f32.mrf.mxu0
    %v2073 = vadd.f32 %v1904, %v2072
    %v2074 = vpop.f32.mrf.mxu0
    %v2075 = vadd.f32 %v1906, %v2074
    %2076 = vmatmul.bf16.gmra.mxu0 %v1216
    %v2077 = vpop.f32.mrf.mxu0
    %v2078 = vadd.f32 %v1909, %v2077
    %v2079 = vpop.f32.mrf.mxu0
    %v2080 = vadd.f32 %v1911, %v2079
    %2081 = vmatmul.bf16.gmra.mxu0 %v1219
    %v2082 = vpop.f32.mrf.mxu0
    %v2083 = vadd.f32 %v1914, %v2082
    %v2084 = vpop.f32.mrf.mxu0
    %v2085 = vadd.f32 %v1916, %v2084
    %2086 = vmatmul.bf16.gmra.mxu0 %v1222
    %v2087 = vpop.f32.mrf.mxu0
    %v2088 = vadd.f32 %v1919, %v2087
    %v2089 = vpop.f32.mrf.mxu0
    %v2090 = vadd.f32 %v1921, %v2089
    %2091 = vmatmul.bf16.gmra.mxu0 %v1225
    %v2092 = vpop.f32.mrf.mxu0
    %v2093 = vadd.f32 %v1924, %v2092
    %v2094 = vpop.f32.mrf.mxu0
    %v2095 = vadd.f32 %v1926, %v2094
    %2096 = vmatmul.bf16.gmra.mxu0 %v1228
    %v2097 = vpop.f32.mrf.mxu0
    %v2098 = vadd.f32 %v1929, %v2097
    %v2099 = vpop.f32.mrf.mxu0
    %v2100 = vadd.f32 %v1931, %v2099
    %2101 = vmatmul.bf16.gmra.mxu0 %v1231
    %v2102 = vpop.f32.mrf.mxu0
    %v2103 = vadd.f32 %v1934, %v2102
    %v2104 = vpop.f32.mrf.mxu0
    %v2105 = vadd.f32 %v1936, %v2104
    %2106 = vmatmul.bf16.gmra.mxu0 %v1234
    %v2107 = vpop.f32.mrf.mxu0
    %v2108 = vadd.f32 %v1939, %v2107
    %v2109 = vpop.f32.mrf.mxu0
    %v2110 = vadd.f32 %v1941, %v2109
    %2111 = vmatmul.bf16.gmra.mxu0 %v1237
    %v2112 = vpop.f32.mrf.mxu0
    %v2113 = vadd.f32 %v1944, %v2112
    %v2114 = vpop.f32.mrf.mxu0
    %v2115 = vadd.f32 %v1946, %v2114
    %2116 = vmatmul.bf16.gmra.mxu0 %v1240
    %v2117 = vpop.f32.mrf.mxu0
    %v2118 = vadd.f32 %v1949, %v2117
    %v2119 = vpop.f32.mrf.mxu0
    %v2120 = vadd.f32 %v1951, %v2119
    %2121 = vmatmul.bf16.gmra.mxu0 %v1243
    %v2122 = vpop.f32.mrf.mxu0
    %v2123 = vadd.f32 %v1954, %v2122
    %v2124 = vpop.f32.mrf.mxu0
    %v2125 = vadd.f32 %v1956, %v2124
    %2126 = vmatmul.bf16.gmra.mxu0 %v1246
    %v2127 = vpop.f32.mrf.mxu0
    %v2128 = vadd.f32 %v1959, %v2127
    %v2129 = vpop.f32.mrf.mxu0
    %v2130 = vadd.f32 %v1961, %v2129
    %2131 = vmatmul.bf16.gmra.mxu0 %v1249
    %v2132 = vpop.f32.mrf.mxu0
    %v2133 = vadd.f32 %v1964, %v2132
    %v2134 = vpop.f32.mrf.mxu0
    %v2135 = vadd.f32 %v1966, %v2134
    %2136 = vmatmul.bf16.gmra.mxu0 %v1252
    %v2137 = vpop.f32.mrf.mxu0
    %v2138 = vadd.f32 %v1969, %v2137
    %v2139 = vpop.f32.mrf.mxu0
    %v2140 = vadd.f32 %v1971, %v2139
    %2141 = vmatmul.bf16.gmra.mxu0 %v1255
    %v2142 = vpop.f32.mrf.mxu0
    %v2143 = vadd.f32 %v1974, %v2142
    %v2144 = vpop.f32.mrf.mxu0
    %v2145 = vadd.f32 %v1976, %v2144
    %2146 = vmatmul.bf16.gmra.mxu0 %v1258
    %v2147 = vpop.f32.mrf.mxu0
    %v2148 = vadd.f32 %v1979, %v2147
    %v2149 = vpop.f32.mrf.mxu0
    %v2150 = vadd.f32 %v1981, %v2149
    %2151 = vmatmul.bf16.gmra.mxu0 %v1261
    %v2152 = vpop.f32.mrf.mxu0
    %v2153 = vadd.f32 %v1984, %v2152
    %v2154 = vpop.f32.mrf.mxu0
    %v2155 = vadd.f32 %v1986, %v2154
    %2156 = vmatmul.bf16.gmra.mxu0 %v1264
    %v2157 = vpop.f32.mrf.mxu0
    %v2158 = vadd.f32 %v1989, %v2157
    %v2159 = vpop.f32.mrf.mxu0
    %v2160 = vadd.f32 %v1991, %v2159
    %2161 = vmatmul.bf16.gmra.mxu0 %v1267
    %v2162 = vpop.f32.mrf.mxu0
    %v2163 = vadd.f32 %v1994, %v2162
    %v2164 = vpop.f32.mrf.mxu0
    %v2165 = vadd.f32 %v1996, %v2164
    %2166 = vmatmul.bf16.gmra.mxu0 %v1270
    %v2167 = vpop.f32.mrf.mxu0
    %v2168 = vadd.f32 %v1999, %v2167
    %v2169 = vpop.f32.mrf.mxu0
    %v2170 = vadd.f32 %v2001, %v2169
    %2171 = vmatmul.bf16.gmra.mxu0 %v1273
    %v2172 = vpop.f32.mrf.mxu0
    %v2173 = vadd.f32 %v2004, %v2172
    %v2174 = vpop.f32.mrf.mxu0
    %v2175 = vadd.f32 %v2006, %v2174
    %2176 = vmatmul.bf16.gmra.mxu0 %v1276
    %v2177 = vpop.f32.mrf.mxu0
    %v2178 = vadd.f32 %v2009, %v2177
    %v2179 = vpop.f32.mrf.mxu0
    %v2180 = vadd.f32 %v2011, %v2179
    %2181 = vmatmul.bf16.gmra.mxu0 %v1279
    %v2182 = vpop.f32.mrf.mxu0
    %v2183 = vadd.f32 %v2014, %v2182
    %v2184 = vpop.f32.mrf.mxu0
    %v2185 = vadd.f32 %v2016, %v2184
    %2186 = vmatmul.bf16.gmra.mxu0 %v1282
    %v2187 = vpop.f32.mrf.mxu0
    %v2188 = vadd.f32 %v2019, %v2187
    %v2189 = vpop.f32.mrf.mxu0
    %v2190 = vadd.f32 %v2021, %v2189
    %2191 = vmatmul.bf16.gmra.mxu0 %v1285
    %v2192 = vpop.f32.mrf.mxu0
    %v2193 = vadd.f32 %v2024, %v2192
    %v2194 = vpop.f32.mrf.mxu0
    %v2195 = vadd.f32 %v2026, %v2194
    %2196 = vmatmul.bf16.gmra.mxu0 %v1288
    %v2197 = vpop.f32.mrf.mxu0
    %v2198 = vadd.f32 %v2029, %v2197
    %v2199 = vpop.f32.mrf.mxu0
    %v2200 = vadd.f32 %v2031, %v2199
    %2201 = vmatmul.bf16.gmra.mxu0 %v1291
    %v2202 = vpop.f32.mrf.mxu0
    %v2203 = vadd.f32 %v2034, %v2202
    %v2204 = vpop.f32.mrf.mxu0
    %v2205 = vadd.f32 %v2036, %v2204
    %2206 = vmatmul.bf16.gmra.mxu0 %v1294
    %v2207 = vpop.f32.mrf.mxu0
    %v2208 = vadd.f32 %v2039, %v2207
    %v2209 = vpop.f32.mrf.mxu0
    %v2210 = vadd.f32 %v2041, %v2209
    %2211 = vmatmul.bf16.gmra.mxu0 %v1297
    %v2212 = vpop.f32.mrf.mxu0
    %v2213 = vadd.f32 %v2044, %v2212
    %v2214 = vpop.f32.mrf.mxu0
    %v2215 = vadd.f32 %v2046, %v2214
    %2216 = vmatmul.bf16.gmra.mxu0 %v1300
    %v2217 = vpop.f32.mrf.mxu0
    %v2218 = vadd.f32 %v2049, %v2217
    %v2219 = vpop.f32.mrf.mxu0
    %v2220 = vadd.f32 %v2051, %v2219
    %2221 = vmatmul.bf16.gmra.mxu0 %v1303
    %v2222 = vpop.f32.mrf.mxu0
    %v2223 = vadd.f32 %v2054, %v2222
    %v2224 = vpop.f32.mrf.mxu0
    %v2225 = vadd.f32 %v2056, %v2224
    %2226 = vmatmul.bf16.gmra.mxu0 %v1306
    %v2227 = vpop.f32.mrf.mxu0
    %v2228 = vadd.f32 %v2059, %v2227
    %v2229 = vpop.f32.mrf.mxu0
    %v2230 = vadd.f32 %v2061, %v2229
    %2231 = vdwg.mxu0
    %2232 = vmatpush.bf16.msra.mxu0 %v1794
    %2233 = vmatpush.bf16.msra.mxu0 %v1790
    %2234 = vmatpush.bf16.msra.mxu0 %v1786
    %2235 = vmatpush.bf16.msra.mxu0 %v1782
    %2236 = vmatpush.bf16.msra.mxu0 %v1778
    %2237 = vmatpush.bf16.msra.mxu0 %v1774
    %2238 = vmatpush.bf16.msra.mxu0 %v1770
    %2239 = vmatpush.bf16.msra.mxu0 %v1766
    %2240 = vmatmul.bf16.gmra.mxu0 %v1214
    %v2241 = vpop.f32.mrf.mxu0
    %v2242 = vadd.f32 %v2073, %v2241
    %v2243 = vpop.f32.mrf.mxu0
    %v2244 = vadd.f32 %v2075, %v2243
    %2245 = vmatmul.bf16.gmra.mxu0 %v1217
    %v2246 = vpop.f32.mrf.mxu0
    %v2247 = vadd.f32 %v2078, %v2246
    %v2248 = vpop.f32.mrf.mxu0
    %v2249 = vadd.f32 %v2080, %v2248
    %2250 = vmatmul.bf16.gmra.mxu0 %v1220
    %v2251 = vpop.f32.mrf.mxu0
    %v2252 = vadd.f32 %v2083, %v2251
    %v2253 = vpop.f32.mrf.mxu0
    %v2254 = vadd.f32 %v2085, %v2253
    %2255 = vmatmul.bf16.gmra.mxu0 %v1223
    %v2256 = vpop.f32.mrf.mxu0
    %v2257 = vadd.f32 %v2088, %v2256
    %v2258 = vpop.f32.mrf.mxu0
    %v2259 = vadd.f32 %v2090, %v2258
    %2260 = vmatmul.bf16.gmra.mxu0 %v1226
    %v2261 = vpop.f32.mrf.mxu0
    %v2262 = vadd.f32 %v2093, %v2261
    %v2263 = vpop.f32.mrf.mxu0
    %v2264 = vadd.f32 %v2095, %v2263
    %2265 = vmatmul.bf16.gmra.mxu0 %v1229
    %v2266 = vpop.f32.mrf.mxu0
    %v2267 = vadd.f32 %v2098, %v2266
    %v2268 = vpop.f32.mrf.mxu0
    %v2269 = vadd.f32 %v2100, %v2268
    %2270 = vmatmul.bf16.gmra.mxu0 %v1232
    %v2271 = vpop.f32.mrf.mxu0
    %v2272 = vadd.f32 %v2103, %v2271
    %v2273 = vpop.f32.mrf.mxu0
    %v2274 = vadd.f32 %v2105, %v2273
    %2275 = vmatmul.bf16.gmra.mxu0 %v1235
    %v2276 = vpop.f32.mrf.mxu0
    %v2277 = vadd.f32 %v2108, %v2276
    %v2278 = vpop.f32.mrf.mxu0
    %v2279 = vadd.f32 %v2110, %v2278
    %2280 = vmatmul.bf16.gmra.mxu0 %v1238
    %v2281 = vpop.f32.mrf.mxu0
    %v2282 = vadd.f32 %v2113, %v2281
    %v2283 = vpop.f32.mrf.mxu0
    %v2284 = vadd.f32 %v2115, %v2283
    %2285 = vmatmul.bf16.gmra.mxu0 %v1241
    %v2286 = vpop.f32.mrf.mxu0
    %v2287 = vadd.f32 %v2118, %v2286
    %v2288 = vpop.f32.mrf.mxu0
    %v2289 = vadd.f32 %v2120, %v2288
    %2290 = vmatmul.bf16.gmra.mxu0 %v1244
    %v2291 = vpop.f32.mrf.mxu0
    %v2292 = vadd.f32 %v2123, %v2291
    %v2293 = vpop.f32.mrf.mxu0
    %v2294 = vadd.f32 %v2125, %v2293
    %2295 = vmatmul.bf16.gmra.mxu0 %v1247
    %v2296 = vpop.f32.mrf.mxu0
    %v2297 = vadd.f32 %v2128, %v2296
    %v2298 = vpop.f32.mrf.mxu0
    %v2299 = vadd.f32 %v2130, %v2298
    %2300 = vmatmul.bf16.gmra.mxu0 %v1250
    %v2301 = vpop.f32.mrf.mxu0
    %v2302 = vadd.f32 %v2133, %v2301
    %v2303 = vpop.f32.mrf.mxu0
    %v2304 = vadd.f32 %v2135, %v2303
    %2305 = vmatmul.bf16.gmra.mxu0 %v1253
    %v2306 = vpop.f32.mrf.mxu0
    %v2307 = vadd.f32 %v2138, %v2306
    %v2308 = vpop.f32.mrf.mxu0
    %v2309 = vadd.f32 %v2140, %v2308
    %2310 = vmatmul.bf16.gmra.mxu0 %v1256
    %v2311 = vpop.f32.mrf.mxu0
    %v2312 = vadd.f32 %v2143, %v2311
    %v2313 = vpop.f32.mrf.mxu0
    %v2314 = vadd.f32 %v2145, %v2313
    %2315 = vmatmul.bf16.gmra.mxu0 %v1259
    %v2316 = vpop.f32.mrf.mxu0
    %v2317 = vadd.f32 %v2148, %v2316
    %v2318 = vpop.f32.mrf.mxu0
    %v2319 = vadd.f32 %v2150, %v2318
    %2320 = vmatmul.bf16.gmra.mxu0 %v1262
    %v2321 = vpop.f32.mrf.mxu0
    %v2322 = vadd.f32 %v2153, %v2321
    %v2323 = vpop.f32.mrf.mxu0
    %v2324 = vadd.f32 %v2155, %v2323
    %2325 = vmatmul.bf16.gmra.mxu0 %v1265
    %v2326 = vpop.f32.mrf.mxu0
    %v2327 = vadd.f32 %v2158, %v2326
    %v2328 = vpop.f32.mrf.mxu0
    %v2329 = vadd.f32 %v2160, %v2328
    %2330 = vmatmul.bf16.gmra.mxu0 %v1268
    %v2331 = vpop.f32.mrf.mxu0
    %v2332 = vadd.f32 %v2163, %v2331
    %v2333 = vpop.f32.mrf.mxu0
    %v2334 = vadd.f32 %v2165, %v2333
    %2335 = vmatmul.bf16.gmra.mxu0 %v1271
    %v2336 = vpop.f32.mrf.mxu0
    %v2337 = vadd.f32 %v2168, %v2336
    %v2338 = vpop.f32.mrf.mxu0
    %v2339 = vadd.f32 %v2170, %v2338
    %2340 = vmatmul.bf16.gmra.mxu0 %v1274
    %v2341 = vpop.f32.mrf.mxu0
    %v2342 = vadd.f32 %v2173, %v2341
    %v2343 = vpop.f32.mrf.mxu0
    %v2344 = vadd.f32 %v2175, %v2343
    %2345 = vmatmul.bf16.gmra.mxu0 %v1277
    %v2346 = vpop.f32.mrf.mxu0
    %v2347 = vadd.f32 %v2178, %v2346
    %v2348 = vpop.f32.mrf.mxu0
    %v2349 = vadd.f32 %v2180, %v2348
    %2350 = vmatmul.bf16.gmra.mxu0 %v1280
    %v2351 = vpop.f32.mrf.mxu0
    %v2352 = vadd.f32 %v2183, %v2351
    %v2353 = vpop.f32.mrf.mxu0
    %v2354 = vadd.f32 %v2185, %v2353
    %2355 = vmatmul.bf16.gmra.mxu0 %v1283
    %v2356 = vpop.f32.mrf.mxu0
    %v2357 = vadd.f32 %v2188, %v2356
    %v2358 = vpop.f32.mrf.mxu0
    %v2359 = vadd.f32 %v2190, %v2358
    %2360 = vmatmul.bf16.gmra.mxu0 %v1286
    %v2361 = vpop.f32.mrf.mxu0
    %v2362 = vadd.f32 %v2193, %v2361
    %v2363 = vpop.f32.mrf.mxu0
    %v2364 = vadd.f32 %v2195, %v2363
    %2365 = vmatmul.bf16.gmra.mxu0 %v1289
    %v2366 = vpop.f32.mrf.mxu0
    %v2367 = vadd.f32 %v2198, %v2366
    %v2368 = vpop.f32.mrf.mxu0
    %v2369 = vadd.f32 %v2200, %v2368
    %2370 = vmatmul.bf16.gmra.mxu0 %v1292
    %v2371 = vpop.f32.mrf.mxu0
    %v2372 = vadd.f32 %v2203, %v2371
    %v2373 = vpop.f32.mrf.mxu0
    %v2374 = vadd.f32 %v2205, %v2373
    %2375 = vmatmul.bf16.gmra.mxu0 %v1295
    %v2376 = vpop.f32.mrf.mxu0
    %v2377 = vadd.f32 %v2208, %v2376
    %v2378 = vpop.f32.mrf.mxu0
    %v2379 = vadd.f32 %v2210, %v2378
    %2380 = vmatmul.bf16.gmra.mxu0 %v1298
    %v2381 = vpop.f32.mrf.mxu0
    %v2382 = vadd.f32 %v2213, %v2381
    %v2383 = vpop.f32.mrf.mxu0
    %v2384 = vadd.f32 %v2215, %v2383
    %2385 = vmatmul.bf16.gmra.mxu0 %v1301
    %v2386 = vpop.f32.mrf.mxu0
    %v2387 = vadd.f32 %v2218, %v2386
    %v2388 = vpop.f32.mrf.mxu0
    %v2389 = vadd.f32 %v2220, %v2388
    %2390 = vmatmul.bf16.gmra.mxu0 %v1304
    %v2391 = vpop.f32.mrf.mxu0
    %v2392 = vadd.f32 %v2223, %v2391
    %v2393 = vpop.f32.mrf.mxu0
    %v2394 = vadd.f32 %v2225, %v2393
    %2395 = vmatmul.bf16.gmra.mxu0 %v1307
    %v2396 = vpop.f32.mrf.mxu0
    %v2397 = vadd.f32 %v2228, %v2396
    %v2398 = vpop.f32.mrf.mxu0
    %v2399 = vadd.f32 %v2230, %v2398
    %2400 = vdwg.mxu0
    %2401 = vmatpush.bf16.msra.mxu0 %v1731
    %2402 = vmatpush.bf16.msra.mxu0 %v1727
    %2403 = vmatpush.bf16.msra.mxu0 %v1723
    %2404 = vmatpush.bf16.msra.mxu0 %v1719
    %2405 = vmatpush.bf16.msra.mxu0 %v1715
    %2406 = vmatpush.bf16.msra.mxu0 %v1711
    %2407 = vmatpush.bf16.msra.mxu0 %v1707
    %2408 = vmatpush.bf16.msra.mxu0 %v1703
    %2409 = vmatmul.bf16.gmra.mxu0 %v1212
    %v2410 = vpop.f32.mrf.mxu0
    %v2411 = vadd.f32 %v1407, %v2410
    %v2412 = vpop.f32.mrf.mxu0
    %v2413 = vadd.f32 %v1407, %v2412
    %2414 = vmatmul.bf16.gmra.mxu0 %v1215
    %v2415 = vpop.f32.mrf.mxu0
    %v2416 = vadd.f32 %v1407, %v2415
    %v2417 = vpop.f32.mrf.mxu0
    %v2418 = vadd.f32 %v1407, %v2417
    %2419 = vmatmul.bf16.gmra.mxu0 %v1218
    %v2420 = vpop.f32.mrf.mxu0
    %v2421 = vadd.f32 %v1407, %v2420
    %v2422 = vpop.f32.mrf.mxu0
    %v2423 = vadd.f32 %v1407, %v2422
    %2424 = vmatmul.bf16.gmra.mxu0 %v1221
    %v2425 = vpop.f32.mrf.mxu0
    %v2426 = vadd.f32 %v1407, %v2425
    %v2427 = vpop.f32.mrf.mxu0
    %v2428 = vadd.f32 %v1407, %v2427
    %2429 = vmatmul.bf16.gmra.mxu0 %v1224
    %v2430 = vpop.f32.mrf.mxu0
    %v2431 = vadd.f32 %v1407, %v2430
    %v2432 = vpop.f32.mrf.mxu0
    %v2433 = vadd.f32 %v1407, %v2432
    %2434 = vmatmul.bf16.gmra.mxu0 %v1227
    %v2435 = vpop.f32.mrf.mxu0
    %v2436 = vadd.f32 %v1407, %v2435
    %v2437 = vpop.f32.mrf.mxu0
    %v2438 = vadd.f32 %v1407, %v2437
    %2439 = vmatmul.bf16.gmra.mxu0 %v1230
    %v2440 = vpop.f32.mrf.mxu0
    %v2441 = vadd.f32 %v1407, %v2440
    %v2442 = vpop.f32.mrf.mxu0
    %v2443 = vadd.f32 %v1407, %v2442
    %2444 = vmatmul.bf16.gmra.mxu0 %v1233
    %v2445 = vpop.f32.mrf.mxu0
    %v2446 = vadd.f32 %v1407, %v2445
    %v2447 = vpop.f32.mrf.mxu0
    %v2448 = vadd.f32 %v1407, %v2447
    %2449 = vmatmul.bf16.gmra.mxu0 %v1236
    %v2450 = vpop.f32.mrf.mxu0
    %v2451 = vadd.f32 %v1407, %v2450
    %v2452 = vpop.f32.mrf.mxu0
    %v2453 = vadd.f32 %v1407, %v2452
    %2454 = vmatmul.bf16.gmra.mxu0 %v1239
    %v2455 = vpop.f32.mrf.mxu0
    %v2456 = vadd.f32 %v1407, %v2455
    %v2457 = vpop.f32.mrf.mxu0
    %v2458 = vadd.f32 %v1407, %v2457
    %2459 = vmatmul.bf16.gmra.mxu0 %v1242
    %v2460 = vpop.f32.mrf.mxu0
    %v2461 = vadd.f32 %v1407, %v2460
    %v2462 = vpop.f32.mrf.mxu0
    %v2463 = vadd.f32 %v1407, %v2462
    %2464 = vmatmul.bf16.gmra.mxu0 %v1245
    %v2465 = vpop.f32.mrf.mxu0
    %v2466 = vadd.f32 %v1407, %v2465
    %v2467 = vpop.f32.mrf.mxu0
    %v2468 = vadd.f32 %v1407, %v2467
    %2469 = vmatmul.bf16.gmra.mxu0 %v1248
    %v2470 = vpop.f32.mrf.mxu0
    %v2471 = vadd.f32 %v1407, %v2470
    %v2472 = vpop.f32.mrf.mxu0
    %v2473 = vadd.f32 %v1407, %v2472
    %2474 = vmatmul.bf16.gmra.mxu0 %v1251
    %v2475 = vpop.f32.mrf.mxu0
    %v2476 = vadd.f32 %v1407, %v2475
    %v2477 = vpop.f32.mrf.mxu0
    %v2478 = vadd.f32 %v1407, %v2477
    %2479 = vmatmul.bf16.gmra.mxu0 %v1254
    %v2480 = vpop.f32.mrf.mxu0
    %v2481 = vadd.f32 %v1407, %v2480
    %v2482 = vpop.f32.mrf.mxu0
    %v2483 = vadd.f32 %v1407, %v2482
    %2484 = vmatmul.bf16.gmra.mxu0 %v1257
    %v2485 = vpop.f32.mrf.mxu0
    %v2486 = vadd.f32 %v1407, %v2485
    %v2487 = vpop.f32.mrf.mxu0
    %v2488 = vadd.f32 %v1407, %v2487
    %2489 = vmatmul.bf16.gmra.mxu0 %v1260
    %v2490 = vpop.f32.mrf.mxu0
    %v2491 = vadd.f32 %v1407, %v2490
    %v2492 = vpop.f32.mrf.mxu0
    %v2493 = vadd.f32 %v1407, %v2492
    %2494 = vmatmul.bf16.gmra.mxu0 %v1263
    %v2495 = vpop.f32.mrf.mxu0
    %v2496 = vadd.f32 %v1407, %v2495
    %v2497 = vpop.f32.mrf.mxu0
    %v2498 = vadd.f32 %v1407, %v2497
    %2499 = vmatmul.bf16.gmra.mxu0 %v1266
    %v2500 = vpop.f32.mrf.mxu0
    %v2501 = vadd.f32 %v1407, %v2500
    %v2502 = vpop.f32.mrf.mxu0
    %v2503 = vadd.f32 %v1407, %v2502
    %2504 = vmatmul.bf16.gmra.mxu0 %v1269
    %v2505 = vpop.f32.mrf.mxu0
    %v2506 = vadd.f32 %v1407, %v2505
    %v2507 = vpop.f32.mrf.mxu0
    %v2508 = vadd.f32 %v1407, %v2507
    %2509 = vmatmul.bf16.gmra.mxu0 %v1272
    %v2510 = vpop.f32.mrf.mxu0
    %v2511 = vadd.f32 %v1407, %v2510
    %v2512 = vpop.f32.mrf.mxu0
    %v2513 = vadd.f32 %v1407, %v2512
    %2514 = vmatmul.bf16.gmra.mxu0 %v1275
    %v2515 = vpop.f32.mrf.mxu0
    %v2516 = vadd.f32 %v1407, %v2515
    %v2517 = vpop.f32.mrf.mxu0
    %v2518 = vadd.f32 %v1407, %v2517
    %2519 = vmatmul.bf16.gmra.mxu0 %v1278
    %v2520 = vpop.f32.mrf.mxu0
    %v2521 = vadd.f32 %v1407, %v2520
    %v2522 = vpop.f32.mrf.mxu0
    %v2523 = vadd.f32 %v1407, %v2522
    %2524 = vmatmul.bf16.gmra.mxu0 %v1281
    %v2525 = vpop.f32.mrf.mxu0
    %v2526 = vadd.f32 %v1407, %v2525
    %v2527 = vpop.f32.mrf.mxu0
    %v2528 = vadd.f32 %v1407, %v2527
    %2529 = vmatmul.bf16.gmra.mxu0 %v1284
    %v2530 = vpop.f32.mrf.mxu0
    %v2531 = vadd.f32 %v1407, %v2530
    %v2532 = vpop.f32.mrf.mxu0
    %v2533 = vadd.f32 %v1407, %v2532
    %2534 = vmatmul.bf16.gmra.mxu0 %v1287
    %v2535 = vpop.f32.mrf.mxu0
    %v2536 = vadd.f32 %v1407, %v2535
    %v2537 = vpop.f32.mrf.mxu0
    %v2538 = vadd.f32 %v1407, %v2537
    %2539 = vmatmul.bf16.gmra.mxu0 %v1290
    %v2540 = vpop.f32.mrf.mxu0
    %v2541 = vadd.f32 %v1407, %v2540
    %v2542 = vpop.f32.mrf.mxu0
    %v2543 = vadd.f32 %v1407, %v2542
    %2544 = vmatmul.bf16.gmra.mxu0 %v1293
    %v2545 = vpop.f32.mrf.mxu0
    %v2546 = vadd.f32 %v1407, %v2545
    %v2547 = vpop.f32.mrf.mxu0
    %v2548 = vadd.f32 %v1407, %v2547
    %2549 = vmatmul.bf16.gmra.mxu0 %v1296
    %v2550 = vpop.f32.mrf.mxu0
    %v2551 = vadd.f32 %v1407, %v2550
    %v2552 = vpop.f32.mrf.mxu0
    %v2553 = vadd.f32 %v1407, %v2552
    %2554 = vmatmul.bf16.gmra.mxu0 %v1299
    %v2555 = vpop.f32.mrf.mxu0
    %v2556 = vadd.f32 %v1407, %v2555
    %v2557 = vpop.f32.mrf.mxu0
    %v2558 = vadd.f32 %v1407, %v2557
    %2559 = vmatmul.bf16.gmra.mxu0 %v1302
    %v2560 = vpop.f32.mrf.mxu0
    %v2561 = vadd.f32 %v1407, %v2560
    %v2562 = vpop.f32.mrf.mxu0
    %v2563 = vadd.f32 %v1407, %v2562
    %2564 = vmatmul.bf16.gmra.mxu0 %v1305
    %v2565 = vpop.f32.mrf.mxu0
    %v2566 = vadd.f32 %v1407, %v2565
    %v2567 = vpop.f32.mrf.mxu0
    %v2568 = vadd.f32 %v1407, %v2567
    %2569 = vdwg.mxu0
    %2570 = vmatpush.bf16.msra.mxu0 %v1763
    %2571 = vmatpush.bf16.msra.mxu0 %v1759
    %2572 = vmatpush.bf16.msra.mxu0 %v1755
    %2573 = vmatpush.bf16.msra.mxu0 %v1751
    %2574 = vmatpush.bf16.msra.mxu0 %v1747
    %2575 = vmatpush.bf16.msra.mxu0 %v1743
    %2576 = vmatpush.bf16.msra.mxu0 %v1739
    %2577 = vmatpush.bf16.msra.mxu0 %v1735
    %2578 = vmatmul.bf16.gmra.mxu0 %v1213
    %v2579 = vpop.f32.mrf.mxu0
    %v2580 = vadd.f32 %v2411, %v2579
    %v2581 = vpop.f32.mrf.mxu0
    %v2582 = vadd.f32 %v2413, %v2581
    %2583 = vmatmul.bf16.gmra.mxu0 %v1216
    %v2584 = vpop.f32.mrf.mxu0
    %v2585 = vadd.f32 %v2416, %v2584
    %v2586 = vpop.f32.mrf.mxu0
    %v2587 = vadd.f32 %v2418, %v2586
    %2588 = vmatmul.bf16.gmra.mxu0 %v1219
    %v2589 = vpop.f32.mrf.mxu0
    %v2590 = vadd.f32 %v2421, %v2589
    %v2591 = vpop.f32.mrf.mxu0
    %v2592 = vadd.f32 %v2423, %v2591
    %2593 = vmatmul.bf16.gmra.mxu0 %v1222
    %v2594 = vpop.f32.mrf.mxu0
    %v2595 = vadd.f32 %v2426, %v2594
    %v2596 = vpop.f32.mrf.mxu0
    %v2597 = vadd.f32 %v2428, %v2596
    %2598 = vmatmul.bf16.gmra.mxu0 %v1225
    %v2599 = vpop.f32.mrf.mxu0
    %v2600 = vadd.f32 %v2431, %v2599
    %v2601 = vpop.f32.mrf.mxu0
    %v2602 = vadd.f32 %v2433, %v2601
    %2603 = vmatmul.bf16.gmra.mxu0 %v1228
    %v2604 = vpop.f32.mrf.mxu0
    %v2605 = vadd.f32 %v2436, %v2604
    %v2606 = vpop.f32.mrf.mxu0
    %v2607 = vadd.f32 %v2438, %v2606
    %2608 = vmatmul.bf16.gmra.mxu0 %v1231
    %v2609 = vpop.f32.mrf.mxu0
    %v2610 = vadd.f32 %v2441, %v2609
    %v2611 = vpop.f32.mrf.mxu0
    %v2612 = vadd.f32 %v2443, %v2611
    %2613 = vmatmul.bf16.gmra.mxu0 %v1234
    %v2614 = vpop.f32.mrf.mxu0
    %v2615 = vadd.f32 %v2446, %v2614
    %v2616 = vpop.f32.mrf.mxu0
    %v2617 = vadd.f32 %v2448, %v2616
    %2618 = vmatmul.bf16.gmra.mxu0 %v1237
    %v2619 = vpop.f32.mrf.mxu0
    %v2620 = vadd.f32 %v2451, %v2619
    %v2621 = vpop.f32.mrf.mxu0
    %v2622 = vadd.f32 %v2453, %v2621
    %2623 = vmatmul.bf16.gmra.mxu0 %v1240
    %v2624 = vpop.f32.mrf.mxu0
    %v2625 = vadd.f32 %v2456, %v2624
    %v2626 = vpop.f32.mrf.mxu0
    %v2627 = vadd.f32 %v2458, %v2626
    %2628 = vmatmul.bf16.gmra.mxu0 %v1243
    %v2629 = vpop.f32.mrf.mxu0
    %v2630 = vadd.f32 %v2461, %v2629
    %v2631 = vpop.f32.mrf.mxu0
    %v2632 = vadd.f32 %v2463, %v2631
    %2633 = vmatmul.bf16.gmra.mxu0 %v1246
    %v2634 = vpop.f32.mrf.mxu0
    %v2635 = vadd.f32 %v2466, %v2634
    %v2636 = vpop.f32.mrf.mxu0
    %v2637 = vadd.f32 %v2468, %v2636
    %2638 = vmatmul.bf16.gmra.mxu0 %v1249
    %v2639 = vpop.f32.mrf.mxu0
    %v2640 = vadd.f32 %v2471, %v2639
    %v2641 = vpop.f32.mrf.mxu0
    %v2642 = vadd.f32 %v2473, %v2641
    %2643 = vmatmul.bf16.gmra.mxu0 %v1252
    %v2644 = vpop.f32.mrf.mxu0
    %v2645 = vadd.f32 %v2476, %v2644
    %v2646 = vpop.f32.mrf.mxu0
    %v2647 = vadd.f32 %v2478, %v2646
    %2648 = vmatmul.bf16.gmra.mxu0 %v1255
    %v2649 = vpop.f32.mrf.mxu0
    %v2650 = vadd.f32 %v2481, %v2649
    %v2651 = vpop.f32.mrf.mxu0
    %v2652 = vadd.f32 %v2483, %v2651
    %2653 = vmatmul.bf16.gmra.mxu0 %v1258
    %v2654 = vpop.f32.mrf.mxu0
    %v2655 = vadd.f32 %v2486, %v2654
    %v2656 = vpop.f32.mrf.mxu0
    %v2657 = vadd.f32 %v2488, %v2656
    %2658 = vmatmul.bf16.gmra.mxu0 %v1261
    %v2659 = vpop.f32.mrf.mxu0
    %v2660 = vadd.f32 %v2491, %v2659
    %v2661 = vpop.f32.mrf.mxu0
    %v2662 = vadd.f32 %v2493, %v2661
    %2663 = vmatmul.bf16.gmra.mxu0 %v1264
    %v2664 = vpop.f32.mrf.mxu0
    %v2665 = vadd.f32 %v2496, %v2664
    %v2666 = vpop.f32.mrf.mxu0
    %v2667 = vadd.f32 %v2498, %v2666
    %2668 = vmatmul.bf16.gmra.mxu0 %v1267
    %v2669 = vpop.f32.mrf.mxu0
    %v2670 = vadd.f32 %v2501, %v2669
    %v2671 = vpop.f32.mrf.mxu0
    %v2672 = vadd.f32 %v2503, %v2671
    %2673 = vmatmul.bf16.gmra.mxu0 %v1270
    %v2674 = vpop.f32.mrf.mxu0
    %v2675 = vadd.f32 %v2506, %v2674
    %v2676 = vpop.f32.mrf.mxu0
    %v2677 = vadd.f32 %v2508, %v2676
    %2678 = vmatmul.bf16.gmra.mxu0 %v1273
    %v2679 = vpop.f32.mrf.mxu0
    %v2680 = vadd.f32 %v2511, %v2679
    %v2681 = vpop.f32.mrf.mxu0
    %v2682 = vadd.f32 %v2513, %v2681
    %2683 = vmatmul.bf16.gmra.mxu0 %v1276
    %v2684 = vpop.f32.mrf.mxu0
    %v2685 = vadd.f32 %v2516, %v2684
    %v2686 = vpop.f32.mrf.mxu0
    %v2687 = vadd.f32 %v2518, %v2686
    %2688 = vmatmul.bf16.gmra.mxu0 %v1279
    %v2689 = vpop.f32.mrf.mxu0
    %v2690 = vadd.f32 %v2521, %v2689
    %v2691 = vpop.f32.mrf.mxu0
    %v2692 = vadd.f32 %v2523, %v2691
    %2693 = vmatmul.bf16.gmra.mxu0 %v1282
    %v2694 = vpop.f32.mrf.mxu0
    %v2695 = vadd.f32 %v2526, %v2694
    %v2696 = vpop.f32.mrf.mxu0
    %v2697 = vadd.f32 %v2528, %v2696
    %2698 = vmatmul.bf16.gmra.mxu0 %v1285
    %v2699 = vpop.f32.mrf.mxu0
    %v2700 = vadd.f32 %v2531, %v2699
    %v2701 = vpop.f32.mrf.mxu0
    %v2702 = vadd.f32 %v2533, %v2701
    %2703 = vmatmul.bf16.gmra.mxu0 %v1288
    %v2704 = vpop.f32.mrf.mxu0
    %v2705 = vadd.f32 %v2536, %v2704
    %v2706 = vpop.f32.mrf.mxu0
    %v2707 = vadd.f32 %v2538, %v2706
    %2708 = vmatmul.bf16.gmra.mxu0 %v1291
    %v2709 = vpop.f32.mrf.mxu0
    %v2710 = vadd.f32 %v2541, %v2709
    %v2711 = vpop.f32.mrf.mxu0
    %v2712 = vadd.f32 %v2543, %v2711
    %2713 = vmatmul.bf16.gmra.mxu0 %v1294
    %v2714 = vpop.f32.mrf.mxu0
    %v2715 = vadd.f32 %v2546, %v2714
    %v2716 = vpop.f32.mrf.mxu0
    %v2717 = vadd.f32 %v2548, %v2716
    %2718 = vmatmul.bf16.gmra.mxu0 %v1297
    %v2719 = vpop.f32.mrf.mxu0
    %v2720 = vadd.f32 %v2551, %v2719
    %v2721 = vpop.f32.mrf.mxu0
    %v2722 = vadd.f32 %v2553, %v2721
    %2723 = vmatmul.bf16.gmra.mxu0 %v1300
    %v2724 = vpop.f32.mrf.mxu0
    %v2725 = vadd.f32 %v2556, %v2724
    %v2726 = vpop.f32.mrf.mxu0
    %v2727 = vadd.f32 %v2558, %v2726
    %2728 = vmatmul.bf16.gmra.mxu0 %v1303
    %v2729 = vpop.f32.mrf.mxu0
    %v2730 = vadd.f32 %v2561, %v2729
    %v2731 = vpop.f32.mrf.mxu0
    %v2732 = vadd.f32 %v2563, %v2731
    %2733 = vmatmul.bf16.gmra.mxu0 %v1306
    %v2734 = vpop.f32.mrf.mxu0
    %v2735 = vadd.f32 %v2566, %v2734
    %v2736 = vpop.f32.mrf.mxu0
    %v2737 = vadd.f32 %v2568, %v2736
    %2738 = vdwg.mxu0
    %2739 = vmatpush.bf16.msra.mxu0 %v1795
    %2740 = vmatpush.bf16.msra.mxu0 %v1791
    %2741 = vmatpush.bf16.msra.mxu0 %v1787
    %2742 = vmatpush.bf16.msra.mxu0 %v1783
    %2743 = vmatpush.bf16.msra.mxu0 %v1779
    %2744 = vmatpush.bf16.msra.mxu0 %v1775
    %2745 = vmatpush.bf16.msra.mxu0 %v1771
    %2746 = vmatpush.bf16.msra.mxu0 %v1767
    %2747 = vmatmul.bf16.gmra.mxu0 %v1214
    %v2748 = vpop.f32.mrf.mxu0
    %v2749 = vadd.f32 %v2580, %v2748
    %v2750 = vpop.f32.mrf.mxu0
    %v2751 = vadd.f32 %v2582, %v2750
    %2752 = vmatmul.bf16.gmra.mxu0 %v1217
    %v2753 = vpop.f32.mrf.mxu0
    %v2754 = vadd.f32 %v2585, %v2753
    %v2755 = vpop.f32.mrf.mxu0
    %v2756 = vadd.f32 %v2587, %v2755
    %2757 = vmatmul.bf16.gmra.mxu0 %v1220
    %v2758 = vpop.f32.mrf.mxu0
    %v2759 = vadd.f32 %v2590, %v2758
    %v2760 = vpop.f32.mrf.mxu0
    %v2761 = vadd.f32 %v2592, %v2760
    %2762 = vmatmul.bf16.gmra.mxu0 %v1223
    %v2763 = vpop.f32.mrf.mxu0
    %v2764 = vadd.f32 %v2595, %v2763
    %v2765 = vpop.f32.mrf.mxu0
    %v2766 = vadd.f32 %v2597, %v2765
    %2767 = vmatmul.bf16.gmra.mxu0 %v1226
    %v2768 = vpop.f32.mrf.mxu0
    %v2769 = vadd.f32 %v2600, %v2768
    %v2770 = vpop.f32.mrf.mxu0
    %v2771 = vadd.f32 %v2602, %v2770
    %2772 = vmatmul.bf16.gmra.mxu0 %v1229
    %v2773 = vpop.f32.mrf.mxu0
    %v2774 = vadd.f32 %v2605, %v2773
    %v2775 = vpop.f32.mrf.mxu0
    %v2776 = vadd.f32 %v2607, %v2775
    %2777 = vmatmul.bf16.gmra.mxu0 %v1232
    %v2778 = vpop.f32.mrf.mxu0
    %v2779 = vadd.f32 %v2610, %v2778
    %v2780 = vpop.f32.mrf.mxu0
    %v2781 = vadd.f32 %v2612, %v2780
    %2782 = vmatmul.bf16.gmra.mxu0 %v1235
    %v2783 = vpop.f32.mrf.mxu0
    %v2784 = vadd.f32 %v2615, %v2783
    %v2785 = vpop.f32.mrf.mxu0
    %v2786 = vadd.f32 %v2617, %v2785
    %2787 = vmatmul.bf16.gmra.mxu0 %v1238
    %v2788 = vpop.f32.mrf.mxu0
    %v2789 = vadd.f32 %v2620, %v2788
    %v2790 = vpop.f32.mrf.mxu0
    %v2791 = vadd.f32 %v2622, %v2790
    %2792 = vmatmul.bf16.gmra.mxu0 %v1241
    %v2793 = vpop.f32.mrf.mxu0
    %v2794 = vadd.f32 %v2625, %v2793
    %v2795 = vpop.f32.mrf.mxu0
    %v2796 = vadd.f32 %v2627, %v2795
    %2797 = vmatmul.bf16.gmra.mxu0 %v1244
    %v2798 = vpop.f32.mrf.mxu0
    %v2799 = vadd.f32 %v2630, %v2798
    %v2800 = vpop.f32.mrf.mxu0
    %v2801 = vadd.f32 %v2632, %v2800
    %2802 = vmatmul.bf16.gmra.mxu0 %v1247
    %v2803 = vpop.f32.mrf.mxu0
    %v2804 = vadd.f32 %v2635, %v2803
    %v2805 = vpop.f32.mrf.mxu0
    %v2806 = vadd.f32 %v2637, %v2805
    %2807 = vmatmul.bf16.gmra.mxu0 %v1250
    %v2808 = vpop.f32.mrf.mxu0
    %v2809 = vadd.f32 %v2640, %v2808
    %v2810 = vpop.f32.mrf.mxu0
    %v2811 = vadd.f32 %v2642, %v2810
    %2812 = vmatmul.bf16.gmra.mxu0 %v1253
    %v2813 = vpop.f32.mrf.mxu0
    %v2814 = vadd.f32 %v2645, %v2813
    %v2815 = vpop.f32.mrf.mxu0
    %v2816 = vadd.f32 %v2647, %v2815
    %2817 = vmatmul.bf16.gmra.mxu0 %v1256
    %v2818 = vpop.f32.mrf.mxu0
    %v2819 = vadd.f32 %v2650, %v2818
    %v2820 = vpop.f32.mrf.mxu0
    %v2821 = vadd.f32 %v2652, %v2820
    %2822 = vmatmul.bf16.gmra.mxu0 %v1259
    %v2823 = vpop.f32.mrf.mxu0
    %v2824 = vadd.f32 %v2655, %v2823
    %v2825 = vpop.f32.mrf.mxu0
    %v2826 = vadd.f32 %v2657, %v2825
    %2827 = vmatmul.bf16.gmra.mxu0 %v1262
    %v2828 = vpop.f32.mrf.mxu0
    %v2829 = vadd.f32 %v2660, %v2828
    %v2830 = vpop.f32.mrf.mxu0
    %v2831 = vadd.f32 %v2662, %v2830
    %2832 = vmatmul.bf16.gmra.mxu0 %v1265
    %v2833 = vpop.f32.mrf.mxu0
    %v2834 = vadd.f32 %v2665, %v2833
    %v2835 = vpop.f32.mrf.mxu0
    %v2836 = vadd.f32 %v2667, %v2835
    %2837 = vmatmul.bf16.gmra.mxu0 %v1268
    %v2838 = vpop.f32.mrf.mxu0
    %v2839 = vadd.f32 %v2670, %v2838
    %v2840 = vpop.f32.mrf.mxu0
    %v2841 = vadd.f32 %v2672, %v2840
    %2842 = vmatmul.bf16.gmra.mxu0 %v1271
    %v2843 = vpop.f32.mrf.mxu0
    %v2844 = vadd.f32 %v2675, %v2843
    %v2845 = vpop.f32.mrf.mxu0
    %v2846 = vadd.f32 %v2677, %v2845
    %2847 = vmatmul.bf16.gmra.mxu0 %v1274
    %v2848 = vpop.f32.mrf.mxu0
    %v2849 = vadd.f32 %v2680, %v2848
    %v2850 = vpop.f32.mrf.mxu0
    %v2851 = vadd.f32 %v2682, %v2850
    %2852 = vmatmul.bf16.gmra.mxu0 %v1277
    %v2853 = vpop.f32.mrf.mxu0
    %v2854 = vadd.f32 %v2685, %v2853
    %v2855 = vpop.f32.mrf.mxu0
    %v2856 = vadd.f32 %v2687, %v2855
    %2857 = vmatmul.bf16.gmra.mxu0 %v1280
    %v2858 = vpop.f32.mrf.mxu0
    %v2859 = vadd.f32 %v2690, %v2858
    %v2860 = vpop.f32.mrf.mxu0
    %v2861 = vadd.f32 %v2692, %v2860
    %2862 = vmatmul.bf16.gmra.mxu0 %v1283
    %v2863 = vpop.f32.mrf.mxu0
    %v2864 = vadd.f32 %v2695, %v2863
    %v2865 = vpop.f32.mrf.mxu0
    %v2866 = vadd.f32 %v2697, %v2865
    %2867 = vmatmul.bf16.gmra.mxu0 %v1286
    %v2868 = vpop.f32.mrf.mxu0
    %v2869 = vadd.f32 %v2700, %v2868
    %v2870 = vpop.f32.mrf.mxu0
    %v2871 = vadd.f32 %v2702, %v2870
    %2872 = vmatmul.bf16.gmra.mxu0 %v1289
    %v2873 = vpop.f32.mrf.mxu0
    %v2874 = vadd.f32 %v2705, %v2873
    %v2875 = vpop.f32.mrf.mxu0
    %v2876 = vadd.f32 %v2707, %v2875
    %2877 = vmatmul.bf16.gmra.mxu0 %v1292
    %v2878 = vpop.f32.mrf.mxu0
    %v2879 = vadd.f32 %v2710, %v2878
    %v2880 = vpop.f32.mrf.mxu0
    %v2881 = vadd.f32 %v2712, %v2880
    %2882 = vmatmul.bf16.gmra.mxu0 %v1295
    %v2883 = vpop.f32.mrf.mxu0
    %v2884 = vadd.f32 %v2715, %v2883
    %v2885 = vpop.f32.mrf.mxu0
    %v2886 = vadd.f32 %v2717, %v2885
    %2887 = vmatmul.bf16.gmra.mxu0 %v1298
    %v2888 = vpop.f32.mrf.mxu0
    %v2889 = vadd.f32 %v2720, %v2888
    %v2890 = vpop.f32.mrf.mxu0
    %v2891 = vadd.f32 %v2722, %v2890
    %2892 = vmatmul.bf16.gmra.mxu0 %v1301
    %v2893 = vpop.f32.mrf.mxu0
    %v2894 = vadd.f32 %v2725, %v2893
    %v2895 = vpop.f32.mrf.mxu0
    %v2896 = vadd.f32 %v2727, %v2895
    %2897 = vmatmul.bf16.gmra.mxu0 %v1304
    %v2898 = vpop.f32.mrf.mxu0
    %v2899 = vadd.f32 %v2730, %v2898
    %v2900 = vpop.f32.mrf.mxu0
    %v2901 = vadd.f32 %v2732, %v2900
    %2902 = vmatmul.bf16.gmra.mxu0 %v1307
    %v2903 = vpop.f32.mrf.mxu0
    %v2904 = vadd.f32 %v2735, %v2903
    %v2905 = vpop.f32.mrf.mxu0
    %v2906 = vadd.f32 %v2737, %v2905
    %2907 = vdwg.mxu0
    %2908 = vmatpush.bf16.msra.mxu0 %v1732
    %2909 = vmatpush.bf16.msra.mxu0 %v1728
    %2910 = vmatpush.bf16.msra.mxu0 %v1724
    %2911 = vmatpush.bf16.msra.mxu0 %v1720
    %2912 = vmatpush.bf16.msra.mxu0 %v1716
    %2913 = vmatpush.bf16.msra.mxu0 %v1712
    %2914 = vmatpush.bf16.msra.mxu0 %v1708
    %2915 = vmatpush.bf16.msra.mxu0 %v1704
    %2916 = vmatmul.bf16.gmra.mxu0 %v1212
    %v2917 = vpop.f32.mrf.mxu0
    %v2918 = vadd.f32 %v1408, %v2917
    %v2919 = vpop.f32.mrf.mxu0
    %v2920 = vadd.f32 %v1408, %v2919
    %2921 = vmatmul.bf16.gmra.mxu0 %v1215
    %v2922 = vpop.f32.mrf.mxu0
    %v2923 = vadd.f32 %v1408, %v2922
    %v2924 = vpop.f32.mrf.mxu0
    %v2925 = vadd.f32 %v1408, %v2924
    %2926 = vmatmul.bf16.gmra.mxu0 %v1218
    %v2927 = vpop.f32.mrf.mxu0
    %v2928 = vadd.f32 %v1408, %v2927
    %v2929 = vpop.f32.mrf.mxu0
    %v2930 = vadd.f32 %v1408, %v2929
    %2931 = vmatmul.bf16.gmra.mxu0 %v1221
    %v2932 = vpop.f32.mrf.mxu0
    %v2933 = vadd.f32 %v1408, %v2932
    %v2934 = vpop.f32.mrf.mxu0
    %v2935 = vadd.f32 %v1408, %v2934
    %2936 = vmatmul.bf16.gmra.mxu0 %v1224
    %v2937 = vpop.f32.mrf.mxu0
    %v2938 = vadd.f32 %v1408, %v2937
    %v2939 = vpop.f32.mrf.mxu0
    %v2940 = vadd.f32 %v1408, %v2939
    %2941 = vmatmul.bf16.gmra.mxu0 %v1227
    %v2942 = vpop.f32.mrf.mxu0
    %v2943 = vadd.f32 %v1408, %v2942
    %v2944 = vpop.f32.mrf.mxu0
    %v2945 = vadd.f32 %v1408, %v2944
    %2946 = vmatmul.bf16.gmra.mxu0 %v1230
    %v2947 = vpop.f32.mrf.mxu0
    %v2948 = vadd.f32 %v1408, %v2947
    %v2949 = vpop.f32.mrf.mxu0
    %v2950 = vadd.f32 %v1408, %v2949
    %2951 = vmatmul.bf16.gmra.mxu0 %v1233
    %v2952 = vpop.f32.mrf.mxu0
    %v2953 = vadd.f32 %v1408, %v2952
    %v2954 = vpop.f32.mrf.mxu0
    %v2955 = vadd.f32 %v1408, %v2954
    %2956 = vmatmul.bf16.gmra.mxu0 %v1236
    %v2957 = vpop.f32.mrf.mxu0
    %v2958 = vadd.f32 %v1408, %v2957
    %v2959 = vpop.f32.mrf.mxu0
    %v2960 = vadd.f32 %v1408, %v2959
    %2961 = vmatmul.bf16.gmra.mxu0 %v1239
    %v2962 = vpop.f32.mrf.mxu0
    %v2963 = vadd.f32 %v1408, %v2962
    %v2964 = vpop.f32.mrf.mxu0
    %v2965 = vadd.f32 %v1408, %v2964
    %2966 = vmatmul.bf16.gmra.mxu0 %v1242
    %v2967 = vpop.f32.mrf.mxu0
    %v2968 = vadd.f32 %v1408, %v2967
    %v2969 = vpop.f32.mrf.mxu0
    %v2970 = vadd.f32 %v1408, %v2969
    %2971 = vmatmul.bf16.gmra.mxu0 %v1245
    %v2972 = vpop.f32.mrf.mxu0
    %v2973 = vadd.f32 %v1408, %v2972
    %v2974 = vpop.f32.mrf.mxu0
    %v2975 = vadd.f32 %v1408, %v2974
    %2976 = vmatmul.bf16.gmra.mxu0 %v1248
    %v2977 = vpop.f32.mrf.mxu0
    %v2978 = vadd.f32 %v1408, %v2977
    %v2979 = vpop.f32.mrf.mxu0
    %v2980 = vadd.f32 %v1408, %v2979
    %2981 = vmatmul.bf16.gmra.mxu0 %v1251
    %v2982 = vpop.f32.mrf.mxu0
    %v2983 = vadd.f32 %v1408, %v2982
    %v2984 = vpop.f32.mrf.mxu0
    %v2985 = vadd.f32 %v1408, %v2984
    %2986 = vmatmul.bf16.gmra.mxu0 %v1254
    %v2987 = vpop.f32.mrf.mxu0
    %v2988 = vadd.f32 %v1408, %v2987
    %v2989 = vpop.f32.mrf.mxu0
    %v2990 = vadd.f32 %v1408, %v2989
    %2991 = vmatmul.bf16.gmra.mxu0 %v1257
    %v2992 = vpop.f32.mrf.mxu0
    %v2993 = vadd.f32 %v1408, %v2992
    %v2994 = vpop.f32.mrf.mxu0
    %v2995 = vadd.f32 %v1408, %v2994
    %2996 = vmatmul.bf16.gmra.mxu0 %v1260
    %v2997 = vpop.f32.mrf.mxu0
    %v2998 = vadd.f32 %v1408, %v2997
    %v2999 = vpop.f32.mrf.mxu0
    %v3000 = vadd.f32 %v1408, %v2999
    %3001 = vmatmul.bf16.gmra.mxu0 %v1263
    %v3002 = vpop.f32.mrf.mxu0
    %v3003 = vadd.f32 %v1408, %v3002
    %v3004 = vpop.f32.mrf.mxu0
    %v3005 = vadd.f32 %v1408, %v3004
    %3006 = vmatmul.bf16.gmra.mxu0 %v1266
    %v3007 = vpop.f32.mrf.mxu0
    %v3008 = vadd.f32 %v1408, %v3007
    %v3009 = vpop.f32.mrf.mxu0
    %v3010 = vadd.f32 %v1408, %v3009
    %3011 = vmatmul.bf16.gmra.mxu0 %v1269
    %v3012 = vpop.f32.mrf.mxu0
    %v3013 = vadd.f32 %v1408, %v3012
    %v3014 = vpop.f32.mrf.mxu0
    %v3015 = vadd.f32 %v1408, %v3014
    %3016 = vmatmul.bf16.gmra.mxu0 %v1272
    %v3017 = vpop.f32.mrf.mxu0
    %v3018 = vadd.f32 %v1408, %v3017
    %v3019 = vpop.f32.mrf.mxu0
    %v3020 = vadd.f32 %v1408, %v3019
    %3021 = vmatmul.bf16.gmra.mxu0 %v1275
    %v3022 = vpop.f32.mrf.mxu0
    %v3023 = vadd.f32 %v1408, %v3022
    %v3024 = vpop.f32.mrf.mxu0
    %v3025 = vadd.f32 %v1408, %v3024
    %3026 = vmatmul.bf16.gmra.mxu0 %v1278
    %v3027 = vpop.f32.mrf.mxu0
    %v3028 = vadd.f32 %v1408, %v3027
    %v3029 = vpop.f32.mrf.mxu0
    %v3030 = vadd.f32 %v1408, %v3029
    %3031 = vmatmul.bf16.gmra.mxu0 %v1281
    %v3032 = vpop.f32.mrf.mxu0
    %v3033 = vadd.f32 %v1408, %v3032
    %v3034 = vpop.f32.mrf.mxu0
    %v3035 = vadd.f32 %v1408, %v3034
    %3036 = vmatmul.bf16.gmra.mxu0 %v1284
    %v3037 = vpop.f32.mrf.mxu0
    %v3038 = vadd.f32 %v1408, %v3037
    %v3039 = vpop.f32.mrf.mxu0
    %v3040 = vadd.f32 %v1408, %v3039
    %3041 = vmatmul.bf16.gmra.mxu0 %v1287
    %v3042 = vpop.f32.mrf.mxu0
    %v3043 = vadd.f32 %v1408, %v3042
    %v3044 = vpop.f32.mrf.mxu0
    %v3045 = vadd.f32 %v1408, %v3044
    %3046 = vmatmul.bf16.gmra.mxu0 %v1290
    %v3047 = vpop.f32.mrf.mxu0
    %v3048 = vadd.f32 %v1408, %v3047
    %v3049 = vpop.f32.mrf.mxu0
    %v3050 = vadd.f32 %v1408, %v3049
    %3051 = vmatmul.bf16.gmra.mxu0 %v1293
    %v3052 = vpop.f32.mrf.mxu0
    %v3053 = vadd.f32 %v1408, %v3052
    %v3054 = vpop.f32.mrf.mxu0
    %v3055 = vadd.f32 %v1408, %v3054
    %3056 = vmatmul.bf16.gmra.mxu0 %v1296
    %v3057 = vpop.f32.mrf.mxu0
    %v3058 = vadd.f32 %v1408, %v3057
    %v3059 = vpop.f32.mrf.mxu0
    %v3060 = vadd.f32 %v1408, %v3059
    %3061 = vmatmul.bf16.gmra.mxu0 %v1299
    %v3062 = vpop.f32.mrf.mxu0
    %v3063 = vadd.f32 %v1408, %v3062
    %v3064 = vpop.f32.mrf.mxu0
    %v3065 = vadd.f32 %v1408, %v3064
    %3066 = vmatmul.bf16.gmra.mxu0 %v1302
    %v3067 = vpop.f32.mrf.mxu0
    %v3068 = vadd.f32 %v1408, %v3067
    %v3069 = vpop.f32.mrf.mxu0
    %v3070 = vadd.f32 %v1408, %v3069
    %3071 = vmatmul.bf16.gmra.mxu0 %v1305
    %v3072 = vpop.f32.mrf.mxu0
    %v3073 = vadd.f32 %v1408, %v3072
    %v3074 = vpop.f32.mrf.mxu0
    %v3075 = vadd.f32 %v1408, %v3074
    %3076 = vdwg.mxu0
    %3077 = vmatpush.bf16.msra.mxu0 %v1764
    %3078 = vmatpush.bf16.msra.mxu0 %v1760
    %3079 = vmatpush.bf16.msra.mxu0 %v1756
    %3080 = vmatpush.bf16.msra.mxu0 %v1752
    %3081 = vmatpush.bf16.msra.mxu0 %v1748
    %3082 = vmatpush.bf16.msra.mxu0 %v1744
    %3083 = vmatpush.bf16.msra.mxu0 %v1740
    %3084 = vmatpush.bf16.msra.mxu0 %v1736
    %3085 = vmatmul.bf16.gmra.mxu0 %v1213
    %v3086 = vpop.f32.mrf.mxu0
    %v3087 = vadd.f32 %v2918, %v3086
    %v3088 = vpop.f32.mrf.mxu0
    %v3089 = vadd.f32 %v2920, %v3088
    %3090 = vmatmul.bf16.gmra.mxu0 %v1216
    %v3091 = vpop.f32.mrf.mxu0
    %v3092 = vadd.f32 %v2923, %v3091
    %v3093 = vpop.f32.mrf.mxu0
    %v3094 = vadd.f32 %v2925, %v3093
    %3095 = vmatmul.bf16.gmra.mxu0 %v1219
    %v3096 = vpop.f32.mrf.mxu0
    %v3097 = vadd.f32 %v2928, %v3096
    %v3098 = vpop.f32.mrf.mxu0
    %v3099 = vadd.f32 %v2930, %v3098
    %3100 = vmatmul.bf16.gmra.mxu0 %v1222
    %v3101 = vpop.f32.mrf.mxu0
    %v3102 = vadd.f32 %v2933, %v3101
    %v3103 = vpop.f32.mrf.mxu0
    %v3104 = vadd.f32 %v2935, %v3103
    %3105 = vmatmul.bf16.gmra.mxu0 %v1225
    %v3106 = vpop.f32.mrf.mxu0
    %v3107 = vadd.f32 %v2938, %v3106
    %v3108 = vpop.f32.mrf.mxu0
    %v3109 = vadd.f32 %v2940, %v3108
    %3110 = vmatmul.bf16.gmra.mxu0 %v1228
    %v3111 = vpop.f32.mrf.mxu0
    %v3112 = vadd.f32 %v2943, %v3111
    %v3113 = vpop.f32.mrf.mxu0
    %v3114 = vadd.f32 %v2945, %v3113
    %3115 = vmatmul.bf16.gmra.mxu0 %v1231
    %v3116 = vpop.f32.mrf.mxu0
    %v3117 = vadd.f32 %v2948, %v3116
    %v3118 = vpop.f32.mrf.mxu0
    %v3119 = vadd.f32 %v2950, %v3118
    %3120 = vmatmul.bf16.gmra.mxu0 %v1234
    %v3121 = vpop.f32.mrf.mxu0
    %v3122 = vadd.f32 %v2953, %v3121
    %v3123 = vpop.f32.mrf.mxu0
    %v3124 = vadd.f32 %v2955, %v3123
    %3125 = vmatmul.bf16.gmra.mxu0 %v1237
    %v3126 = vpop.f32.mrf.mxu0
    %v3127 = vadd.f32 %v2958, %v3126
    %v3128 = vpop.f32.mrf.mxu0
    %v3129 = vadd.f32 %v2960, %v3128
    %3130 = vmatmul.bf16.gmra.mxu0 %v1240
    %v3131 = vpop.f32.mrf.mxu0
    %v3132 = vadd.f32 %v2963, %v3131
    %v3133 = vpop.f32.mrf.mxu0
    %v3134 = vadd.f32 %v2965, %v3133
    %3135 = vmatmul.bf16.gmra.mxu0 %v1243
    %v3136 = vpop.f32.mrf.mxu0
    %v3137 = vadd.f32 %v2968, %v3136
    %v3138 = vpop.f32.mrf.mxu0
    %v3139 = vadd.f32 %v2970, %v3138
    %3140 = vmatmul.bf16.gmra.mxu0 %v1246
    %v3141 = vpop.f32.mrf.mxu0
    %v3142 = vadd.f32 %v2973, %v3141
    %v3143 = vpop.f32.mrf.mxu0
    %v3144 = vadd.f32 %v2975, %v3143
    %3145 = vmatmul.bf16.gmra.mxu0 %v1249
    %v3146 = vpop.f32.mrf.mxu0
    %v3147 = vadd.f32 %v2978, %v3146
    %v3148 = vpop.f32.mrf.mxu0
    %v3149 = vadd.f32 %v2980, %v3148
    %3150 = vmatmul.bf16.gmra.mxu0 %v1252
    %v3151 = vpop.f32.mrf.mxu0
    %v3152 = vadd.f32 %v2983, %v3151
    %v3153 = vpop.f32.mrf.mxu0
    %v3154 = vadd.f32 %v2985, %v3153
    %3155 = vmatmul.bf16.gmra.mxu0 %v1255
    %v3156 = vpop.f32.mrf.mxu0
    %v3157 = vadd.f32 %v2988, %v3156
    %v3158 = vpop.f32.mrf.mxu0
    %v3159 = vadd.f32 %v2990, %v3158
    %3160 = vmatmul.bf16.gmra.mxu0 %v1258
    %v3161 = vpop.f32.mrf.mxu0
    %v3162 = vadd.f32 %v2993, %v3161
    %v3163 = vpop.f32.mrf.mxu0
    %v3164 = vadd.f32 %v2995, %v3163
    %3165 = vmatmul.bf16.gmra.mxu0 %v1261
    %v3166 = vpop.f32.mrf.mxu0
    %v3167 = vadd.f32 %v2998, %v3166
    %v3168 = vpop.f32.mrf.mxu0
    %v3169 = vadd.f32 %v3000, %v3168
    %3170 = vmatmul.bf16.gmra.mxu0 %v1264
    %v3171 = vpop.f32.mrf.mxu0
    %v3172 = vadd.f32 %v3003, %v3171
    %v3173 = vpop.f32.mrf.mxu0
    %v3174 = vadd.f32 %v3005, %v3173
    %3175 = vmatmul.bf16.gmra.mxu0 %v1267
    %v3176 = vpop.f32.mrf.mxu0
    %v3177 = vadd.f32 %v3008, %v3176
    %v3178 = vpop.f32.mrf.mxu0
    %v3179 = vadd.f32 %v3010, %v3178
    %3180 = vmatmul.bf16.gmra.mxu0 %v1270
    %v3181 = vpop.f32.mrf.mxu0
    %v3182 = vadd.f32 %v3013, %v3181
    %v3183 = vpop.f32.mrf.mxu0
    %v3184 = vadd.f32 %v3015, %v3183
    %3185 = vmatmul.bf16.gmra.mxu0 %v1273
    %v3186 = vpop.f32.mrf.mxu0
    %v3187 = vadd.f32 %v3018, %v3186
    %v3188 = vpop.f32.mrf.mxu0
    %v3189 = vadd.f32 %v3020, %v3188
    %3190 = vmatmul.bf16.gmra.mxu0 %v1276
    %v3191 = vpop.f32.mrf.mxu0
    %v3192 = vadd.f32 %v3023, %v3191
    %v3193 = vpop.f32.mrf.mxu0
    %v3194 = vadd.f32 %v3025, %v3193
    %3195 = vmatmul.bf16.gmra.mxu0 %v1279
    %v3196 = vpop.f32.mrf.mxu0
    %v3197 = vadd.f32 %v3028, %v3196
    %v3198 = vpop.f32.mrf.mxu0
    %v3199 = vadd.f32 %v3030, %v3198
    %3200 = vmatmul.bf16.gmra.mxu0 %v1282
    %v3201 = vpop.f32.mrf.mxu0
    %v3202 = vadd.f32 %v3033, %v3201
    %v3203 = vpop.f32.mrf.mxu0
    %v3204 = vadd.f32 %v3035, %v3203
    %3205 = vmatmul.bf16.gmra.mxu0 %v1285
    %v3206 = vpop.f32.mrf.mxu0
    %v3207 = vadd.f32 %v3038, %v3206
    %v3208 = vpop.f32.mrf.mxu0
    %v3209 = vadd.f32 %v3040, %v3208
    %3210 = vmatmul.bf16.gmra.mxu0 %v1288
    %v3211 = vpop.f32.mrf.mxu0
    %v3212 = vadd.f32 %v3043, %v3211
    %v3213 = vpop.f32.mrf.mxu0
    %v3214 = vadd.f32 %v3045, %v3213
    %3215 = vmatmul.bf16.gmra.mxu0 %v1291
    %v3216 = vpop.f32.mrf.mxu0
    %v3217 = vadd.f32 %v3048, %v3216
    %v3218 = vpop.f32.mrf.mxu0
    %v3219 = vadd.f32 %v3050, %v3218
    %3220 = vmatmul.bf16.gmra.mxu0 %v1294
    %v3221 = vpop.f32.mrf.mxu0
    %v3222 = vadd.f32 %v3053, %v3221
    %v3223 = vpop.f32.mrf.mxu0
    %v3224 = vadd.f32 %v3055, %v3223
    %3225 = vmatmul.bf16.gmra.mxu0 %v1297
    %v3226 = vpop.f32.mrf.mxu0
    %v3227 = vadd.f32 %v3058, %v3226
    %v3228 = vpop.f32.mrf.mxu0
    %v3229 = vadd.f32 %v3060, %v3228
    %3230 = vmatmul.bf16.gmra.mxu0 %v1300
    %v3231 = vpop.f32.mrf.mxu0
    %v3232 = vadd.f32 %v3063, %v3231
    %v3233 = vpop.f32.mrf.mxu0
    %v3234 = vadd.f32 %v3065, %v3233
    %3235 = vmatmul.bf16.gmra.mxu0 %v1303
    %v3236 = vpop.f32.mrf.mxu0
    %v3237 = vadd.f32 %v3068, %v3236
    %v3238 = vpop.f32.mrf.mxu0
    %v3239 = vadd.f32 %v3070, %v3238
    %3240 = vmatmul.bf16.gmra.mxu0 %v1306
    %v3241 = vpop.f32.mrf.mxu0
    %v3242 = vadd.f32 %v3073, %v3241
    %v3243 = vpop.f32.mrf.mxu0
    %v3244 = vadd.f32 %v3075, %v3243
    %3245 = vdwg.mxu0
    %3246 = vmatpush.bf16.msra.mxu0 %v1796
    %3247 = vmatpush.bf16.msra.mxu0 %v1792
    %3248 = vmatpush.bf16.msra.mxu0 %v1788
    %3249 = vmatpush.bf16.msra.mxu0 %v1784
    %3250 = vmatpush.bf16.msra.mxu0 %v1780
    %3251 = vmatpush.bf16.msra.mxu0 %v1776
    %3252 = vmatpush.bf16.msra.mxu0 %v1772
    %3253 = vmatpush.bf16.msra.mxu0 %v1768
    %3254 = vmatmul.bf16.gmra.mxu0 %v1214
    %v3255 = vpop.f32.mrf.mxu0
    %v3256 = vadd.f32 %v3087, %v3255
    %v3257 = vpop.f32.mrf.mxu0
    %v3258 = vadd.f32 %v3089, %v3257
    %3259 = vmatmul.bf16.gmra.mxu0 %v1217
    %v3260 = vpop.f32.mrf.mxu0
    %v3261 = vadd.f32 %v3092, %v3260
    %v3262 = vpop.f32.mrf.mxu0
    %v3263 = vadd.f32 %v3094, %v3262
    %3264 = vmatmul.bf16.gmra.mxu0 %v1220
    %v3265 = vpop.f32.mrf.mxu0
    %v3266 = vadd.f32 %v3097, %v3265
    %v3267 = vpop.f32.mrf.mxu0
    %v3268 = vadd.f32 %v3099, %v3267
    %3269 = vmatmul.bf16.gmra.mxu0 %v1223
    %v3270 = vpop.f32.mrf.mxu0
    %v3271 = vadd.f32 %v3102, %v3270
    %v3272 = vpop.f32.mrf.mxu0
    %v3273 = vadd.f32 %v3104, %v3272
    %3274 = vmatmul.bf16.gmra.mxu0 %v1226
    %v3275 = vpop.f32.mrf.mxu0
    %v3276 = vadd.f32 %v3107, %v3275
    %v3277 = vpop.f32.mrf.mxu0
    %v3278 = vadd.f32 %v3109, %v3277
    %3279 = vmatmul.bf16.gmra.mxu0 %v1229
    %v3280 = vpop.f32.mrf.mxu0
    %v3281 = vadd.f32 %v3112, %v3280
    %v3282 = vpop.f32.mrf.mxu0
    %v3283 = vadd.f32 %v3114, %v3282
    %3284 = vmatmul.bf16.gmra.mxu0 %v1232
    %v3285 = vpop.f32.mrf.mxu0
    %v3286 = vadd.f32 %v3117, %v3285
    %v3287 = vpop.f32.mrf.mxu0
    %v3288 = vadd.f32 %v3119, %v3287
    %3289 = vmatmul.bf16.gmra.mxu0 %v1235
    %v3290 = vpop.f32.mrf.mxu0
    %v3291 = vadd.f32 %v3122, %v3290
    %v3292 = vpop.f32.mrf.mxu0
    %v3293 = vadd.f32 %v3124, %v3292
    %3294 = vmatmul.bf16.gmra.mxu0 %v1238
    %v3295 = vpop.f32.mrf.mxu0
    %v3296 = vadd.f32 %v3127, %v3295
    %v3297 = vpop.f32.mrf.mxu0
    %v3298 = vadd.f32 %v3129, %v3297
    %3299 = vmatmul.bf16.gmra.mxu0 %v1241
    %v3300 = vpop.f32.mrf.mxu0
    %v3301 = vadd.f32 %v3132, %v3300
    %v3302 = vpop.f32.mrf.mxu0
    %v3303 = vadd.f32 %v3134, %v3302
    %3304 = vmatmul.bf16.gmra.mxu0 %v1244
    %v3305 = vpop.f32.mrf.mxu0
    %v3306 = vadd.f32 %v3137, %v3305
    %v3307 = vpop.f32.mrf.mxu0
    %v3308 = vadd.f32 %v3139, %v3307
    %3309 = vmatmul.bf16.gmra.mxu0 %v1247
    %v3310 = vpop.f32.mrf.mxu0
    %v3311 = vadd.f32 %v3142, %v3310
    %v3312 = vpop.f32.mrf.mxu0
    %v3313 = vadd.f32 %v3144, %v3312
    %3314 = vmatmul.bf16.gmra.mxu0 %v1250
    %v3315 = vpop.f32.mrf.mxu0
    %v3316 = vadd.f32 %v3147, %v3315
    %v3317 = vpop.f32.mrf.mxu0
    %v3318 = vadd.f32 %v3149, %v3317
    %3319 = vmatmul.bf16.gmra.mxu0 %v1253
    %v3320 = vpop.f32.mrf.mxu0
    %v3321 = vadd.f32 %v3152, %v3320
    %v3322 = vpop.f32.mrf.mxu0
    %v3323 = vadd.f32 %v3154, %v3322
    %3324 = vmatmul.bf16.gmra.mxu0 %v1256
    %v3325 = vpop.f32.mrf.mxu0
    %v3326 = vadd.f32 %v3157, %v3325
    %v3327 = vpop.f32.mrf.mxu0
    %v3328 = vadd.f32 %v3159, %v3327
    %3329 = vmatmul.bf16.gmra.mxu0 %v1259
    %v3330 = vpop.f32.mrf.mxu0
    %v3331 = vadd.f32 %v3162, %v3330
    %v3332 = vpop.f32.mrf.mxu0
    %v3333 = vadd.f32 %v3164, %v3332
    %3334 = vmatmul.bf16.gmra.mxu0 %v1262
    %v3335 = vpop.f32.mrf.mxu0
    %v3336 = vadd.f32 %v3167, %v3335
    %v3337 = vpop.f32.mrf.mxu0
    %v3338 = vadd.f32 %v3169, %v3337
    %3339 = vmatmul.bf16.gmra.mxu0 %v1265
    %v3340 = vpop.f32.mrf.mxu0
    %v3341 = vadd.f32 %v3172, %v3340
    %v3342 = vpop.f32.mrf.mxu0
    %v3343 = vadd.f32 %v3174, %v3342
    %3344 = vmatmul.bf16.gmra.mxu0 %v1268
    %v3345 = vpop.f32.mrf.mxu0
    %v3346 = vadd.f32 %v3177, %v3345
    %v3347 = vpop.f32.mrf.mxu0
    %v3348 = vadd.f32 %v3179, %v3347
    %3349 = vmatmul.bf16.gmra.mxu0 %v1271
    %v3350 = vpop.f32.mrf.mxu0
    %v3351 = vadd.f32 %v3182, %v3350
    %v3352 = vpop.f32.mrf.mxu0
    %v3353 = vadd.f32 %v3184, %v3352
    %3354 = vmatmul.bf16.gmra.mxu0 %v1274
    %v3355 = vpop.f32.mrf.mxu0
    %v3356 = vadd.f32 %v3187, %v3355
    %v3357 = vpop.f32.mrf.mxu0
    %v3358 = vadd.f32 %v3189, %v3357
    %3359 = vmatmul.bf16.gmra.mxu0 %v1277
    %v3360 = vpop.f32.mrf.mxu0
    %v3361 = vadd.f32 %v3192, %v3360
    %v3362 = vpop.f32.mrf.mxu0
    %v3363 = vadd.f32 %v3194, %v3362
    %3364 = vmatmul.bf16.gmra.mxu0 %v1280
    %v3365 = vpop.f32.mrf.mxu0
    %v3366 = vadd.f32 %v3197, %v3365
    %v3367 = vpop.f32.mrf.mxu0
    %v3368 = vadd.f32 %v3199, %v3367
    %3369 = vmatmul.bf16.gmra.mxu0 %v1283
    %v3370 = vpop.f32.mrf.mxu0
    %v3371 = vadd.f32 %v3202, %v3370
    %v3372 = vpop.f32.mrf.mxu0
    %v3373 = vadd.f32 %v3204, %v3372
    %3374 = vmatmul.bf16.gmra.mxu0 %v1286
    %v3375 = vpop.f32.mrf.mxu0
    %v3376 = vadd.f32 %v3207, %v3375
    %v3377 = vpop.f32.mrf.mxu0
    %v3378 = vadd.f32 %v3209, %v3377
    %3379 = vmatmul.bf16.gmra.mxu0 %v1289
    %v3380 = vpop.f32.mrf.mxu0
    %v3381 = vadd.f32 %v3212, %v3380
    %v3382 = vpop.f32.mrf.mxu0
    %v3383 = vadd.f32 %v3214, %v3382
    %3384 = vmatmul.bf16.gmra.mxu0 %v1292
    %v3385 = vpop.f32.mrf.mxu0
    %v3386 = vadd.f32 %v3217, %v3385
    %v3387 = vpop.f32.mrf.mxu0
    %v3388 = vadd.f32 %v3219, %v3387
    %3389 = vmatmul.bf16.gmra.mxu0 %v1295
    %v3390 = vpop.f32.mrf.mxu0
    %v3391 = vadd.f32 %v3222, %v3390
    %v3392 = vpop.f32.mrf.mxu0
    %v3393 = vadd.f32 %v3224, %v3392
    %3394 = vmatmul.bf16.gmra.mxu0 %v1298
    %v3395 = vpop.f32.mrf.mxu0
    %v3396 = vadd.f32 %v3227, %v3395
    %v3397 = vpop.f32.mrf.mxu0
    %v3398 = vadd.f32 %v3229, %v3397
    %3399 = vmatmul.bf16.gmra.mxu0 %v1301
    %v3400 = vpop.f32.mrf.mxu0
    %v3401 = vadd.f32 %v3232, %v3400
    %v3402 = vpop.f32.mrf.mxu0
    %v3403 = vadd.f32 %v3234, %v3402
    %3404 = vmatmul.bf16.gmra.mxu0 %v1304
    %v3405 = vpop.f32.mrf.mxu0
    %v3406 = vadd.f32 %v3237, %v3405
    %v3407 = vpop.f32.mrf.mxu0
    %v3408 = vadd.f32 %v3239, %v3407
    %3409 = vmatmul.bf16.gmra.mxu0 %v1307
    %v3410 = vpop.f32.mrf.mxu0
    %v3411 = vadd.f32 %v3242, %v3410
    %v3412 = vpop.f32.mrf.mxu0
    %v3413 = vadd.f32 %v3244, %v3412
    %3414 = vdwg.mxu0
    %3415 = vmatpush.bf16.msra.mxu0 %v1733
    %3416 = vmatpush.bf16.msra.mxu0 %v1729
    %3417 = vmatpush.bf16.msra.mxu0 %v1725
    %3418 = vmatpush.bf16.msra.mxu0 %v1721
    %3419 = vmatpush.bf16.msra.mxu0 %v1717
    %3420 = vmatpush.bf16.msra.mxu0 %v1713
    %3421 = vmatpush.bf16.msra.mxu0 %v1709
    %3422 = vmatpush.bf16.msra.mxu0 %v1705
    %3423 = vmatmul.bf16.gmra.mxu0 %v1212
    %v3424 = vpop.f32.mrf.mxu0
    %v3425 = vadd.f32 %v1409, %v3424
    %v3426 = vpop.f32.mrf.mxu0
    %v3427 = vadd.f32 %v1409, %v3426
    %3428 = vmatmul.bf16.gmra.mxu0 %v1215
    %v3429 = vpop.f32.mrf.mxu0
    %v3430 = vadd.f32 %v1409, %v3429
    %v3431 = vpop.f32.mrf.mxu0
    %v3432 = vadd.f32 %v1409, %v3431
    %3433 = vmatmul.bf16.gmra.mxu0 %v1218
    %v3434 = vpop.f32.mrf.mxu0
    %v3435 = vadd.f32 %v1409, %v3434
    %v3436 = vpop.f32.mrf.mxu0
    %v3437 = vadd.f32 %v1409, %v3436
    %3438 = vmatmul.bf16.gmra.mxu0 %v1221
    %v3439 = vpop.f32.mrf.mxu0
    %v3440 = vadd.f32 %v1409, %v3439
    %v3441 = vpop.f32.mrf.mxu0
    %v3442 = vadd.f32 %v1409, %v3441
    %3443 = vmatmul.bf16.gmra.mxu0 %v1224
    %v3444 = vpop.f32.mrf.mxu0
    %v3445 = vadd.f32 %v1409, %v3444
    %v3446 = vpop.f32.mrf.mxu0
    %v3447 = vadd.f32 %v1409, %v3446
    %3448 = vmatmul.bf16.gmra.mxu0 %v1227
    %v3449 = vpop.f32.mrf.mxu0
    %v3450 = vadd.f32 %v1409, %v3449
    %v3451 = vpop.f32.mrf.mxu0
    %v3452 = vadd.f32 %v1409, %v3451
    %3453 = vmatmul.bf16.gmra.mxu0 %v1230
    %v3454 = vpop.f32.mrf.mxu0
    %v3455 = vadd.f32 %v1409, %v3454
    %v3456 = vpop.f32.mrf.mxu0
    %v3457 = vadd.f32 %v1409, %v3456
    %3458 = vmatmul.bf16.gmra.mxu0 %v1233
    %v3459 = vpop.f32.mrf.mxu0
    %v3460 = vadd.f32 %v1409, %v3459
    %v3461 = vpop.f32.mrf.mxu0
    %v3462 = vadd.f32 %v1409, %v3461
    %3463 = vmatmul.bf16.gmra.mxu0 %v1236
    %v3464 = vpop.f32.mrf.mxu0
    %v3465 = vadd.f32 %v1409, %v3464
    %v3466 = vpop.f32.mrf.mxu0
    %v3467 = vadd.f32 %v1409, %v3466
    %3468 = vmatmul.bf16.gmra.mxu0 %v1239
    %v3469 = vpop.f32.mrf.mxu0
    %v3470 = vadd.f32 %v1409, %v3469
    %v3471 = vpop.f32.mrf.mxu0
    %v3472 = vadd.f32 %v1409, %v3471
    %3473 = vmatmul.bf16.gmra.mxu0 %v1242
    %v3474 = vpop.f32.mrf.mxu0
    %v3475 = vadd.f32 %v1409, %v3474
    %v3476 = vpop.f32.mrf.mxu0
    %v3477 = vadd.f32 %v1409, %v3476
    %3478 = vmatmul.bf16.gmra.mxu0 %v1245
    %v3479 = vpop.f32.mrf.mxu0
    %v3480 = vadd.f32 %v1409, %v3479
    %v3481 = vpop.f32.mrf.mxu0
    %v3482 = vadd.f32 %v1409, %v3481
    %3483 = vmatmul.bf16.gmra.mxu0 %v1248
    %v3484 = vpop.f32.mrf.mxu0
    %v3485 = vadd.f32 %v1409, %v3484
    %v3486 = vpop.f32.mrf.mxu0
    %v3487 = vadd.f32 %v1409, %v3486
    %3488 = vmatmul.bf16.gmra.mxu0 %v1251
    %v3489 = vpop.f32.mrf.mxu0
    %v3490 = vadd.f32 %v1409, %v3489
    %v3491 = vpop.f32.mrf.mxu0
    %v3492 = vadd.f32 %v1409, %v3491
    %3493 = vmatmul.bf16.gmra.mxu0 %v1254
    %v3494 = vpop.f32.mrf.mxu0
    %v3495 = vadd.f32 %v1409, %v3494
    %v3496 = vpop.f32.mrf.mxu0
    %v3497 = vadd.f32 %v1409, %v3496
    %3498 = vmatmul.bf16.gmra.mxu0 %v1257
    %v3499 = vpop.f32.mrf.mxu0
    %v3500 = vadd.f32 %v1409, %v3499
    %v3501 = vpop.f32.mrf.mxu0
    %v3502 = vadd.f32 %v1409, %v3501
    %3503 = vmatmul.bf16.gmra.mxu0 %v1260
    %v3504 = vpop.f32.mrf.mxu0
    %v3505 = vadd.f32 %v1409, %v3504
    %v3506 = vpop.f32.mrf.mxu0
    %v3507 = vadd.f32 %v1409, %v3506
    %3508 = vmatmul.bf16.gmra.mxu0 %v1263
    %v3509 = vpop.f32.mrf.mxu0
    %v3510 = vadd.f32 %v1409, %v3509
    %v3511 = vpop.f32.mrf.mxu0
    %v3512 = vadd.f32 %v1409, %v3511
    %3513 = vmatmul.bf16.gmra.mxu0 %v1266
    %v3514 = vpop.f32.mrf.mxu0
    %v3515 = vadd.f32 %v1409, %v3514
    %v3516 = vpop.f32.mrf.mxu0
    %v3517 = vadd.f32 %v1409, %v3516
    %3518 = vmatmul.bf16.gmra.mxu0 %v1269
    %v3519 = vpop.f32.mrf.mxu0
    %v3520 = vadd.f32 %v1409, %v3519
    %v3521 = vpop.f32.mrf.mxu0
    %v3522 = vadd.f32 %v1409, %v3521
    %3523 = vmatmul.bf16.gmra.mxu0 %v1272
    %v3524 = vpop.f32.mrf.mxu0
    %v3525 = vadd.f32 %v1409, %v3524
    %v3526 = vpop.f32.mrf.mxu0
    %v3527 = vadd.f32 %v1409, %v3526
    %3528 = vmatmul.bf16.gmra.mxu0 %v1275
    %v3529 = vpop.f32.mrf.mxu0
    %v3530 = vadd.f32 %v1409, %v3529
    %v3531 = vpop.f32.mrf.mxu0
    %v3532 = vadd.f32 %v1409, %v3531
    %3533 = vmatmul.bf16.gmra.mxu0 %v1278
    %v3534 = vpop.f32.mrf.mxu0
    %v3535 = vadd.f32 %v1409, %v3534
    %v3536 = vpop.f32.mrf.mxu0
    %v3537 = vadd.f32 %v1409, %v3536
    %3538 = vmatmul.bf16.gmra.mxu0 %v1281
    %v3539 = vpop.f32.mrf.mxu0
    %v3540 = vadd.f32 %v1409, %v3539
    %v3541 = vpop.f32.mrf.mxu0
    %v3542 = vadd.f32 %v1409, %v3541
    %3543 = vmatmul.bf16.gmra.mxu0 %v1284
    %v3544 = vpop.f32.mrf.mxu0
    %v3545 = vadd.f32 %v1409, %v3544
    %v3546 = vpop.f32.mrf.mxu0
    %v3547 = vadd.f32 %v1409, %v3546
    %3548 = vmatmul.bf16.gmra.mxu0 %v1287
    %v3549 = vpop.f32.mrf.mxu0
    %v3550 = vadd.f32 %v1409, %v3549
    %v3551 = vpop.f32.mrf.mxu0
    %v3552 = vadd.f32 %v1409, %v3551
    %3553 = vmatmul.bf16.gmra.mxu0 %v1290
    %v3554 = vpop.f32.mrf.mxu0
    %v3555 = vadd.f32 %v1409, %v3554
    %v3556 = vpop.f32.mrf.mxu0
    %v3557 = vadd.f32 %v1409, %v3556
    %3558 = vmatmul.bf16.gmra.mxu0 %v1293
    %v3559 = vpop.f32.mrf.mxu0
    %v3560 = vadd.f32 %v1409, %v3559
    %v3561 = vpop.f32.mrf.mxu0
    %v3562 = vadd.f32 %v1409, %v3561
    %3563 = vmatmul.bf16.gmra.mxu0 %v1296
    %v3564 = vpop.f32.mrf.mxu0
    %v3565 = vadd.f32 %v1409, %v3564
    %v3566 = vpop.f32.mrf.mxu0
    %v3567 = vadd.f32 %v1409, %v3566
    %3568 = vmatmul.bf16.gmra.mxu0 %v1299
    %v3569 = vpop.f32.mrf.mxu0
    %v3570 = vadd.f32 %v1409, %v3569
    %v3571 = vpop.f32.mrf.mxu0
    %v3572 = vadd.f32 %v1409, %v3571
    %3573 = vmatmul.bf16.gmra.mxu0 %v1302
    %v3574 = vpop.f32.mrf.mxu0
    %v3575 = vadd.f32 %v1409, %v3574
    %v3576 = vpop.f32.mrf.mxu0
    %v3577 = vadd.f32 %v1409, %v3576
    %3578 = vmatmul.bf16.gmra.mxu0 %v1305
    %v3579 = vpop.f32.mrf.mxu0
    %v3580 = vadd.f32 %v1409, %v3579
    %v3581 = vpop.f32.mrf.mxu0
    %v3582 = vadd.f32 %v1409, %v3581
    %3583 = vdwg.mxu0
    %3584 = vmatpush.bf16.msra.mxu0 %v1765
    %3585 = vmatpush.bf16.msra.mxu0 %v1761
    %3586 = vmatpush.bf16.msra.mxu0 %v1757
    %3587 = vmatpush.bf16.msra.mxu0 %v1753
    %3588 = vmatpush.bf16.msra.mxu0 %v1749
    %3589 = vmatpush.bf16.msra.mxu0 %v1745
    %3590 = vmatpush.bf16.msra.mxu0 %v1741
    %3591 = vmatpush.bf16.msra.mxu0 %v1737
    %3592 = vmatmul.bf16.gmra.mxu0 %v1213
    %v3593 = vpop.f32.mrf.mxu0
    %v3594 = vadd.f32 %v3425, %v3593
    %v3595 = vpop.f32.mrf.mxu0
    %v3596 = vadd.f32 %v3427, %v3595
    %3597 = vmatmul.bf16.gmra.mxu0 %v1216
    %v3598 = vpop.f32.mrf.mxu0
    %v3599 = vadd.f32 %v3430, %v3598
    %v3600 = vpop.f32.mrf.mxu0
    %v3601 = vadd.f32 %v3432, %v3600
    %3602 = vmatmul.bf16.gmra.mxu0 %v1219
    %v3603 = vpop.f32.mrf.mxu0
    %v3604 = vadd.f32 %v3435, %v3603
    %v3605 = vpop.f32.mrf.mxu0
    %v3606 = vadd.f32 %v3437, %v3605
    %3607 = vmatmul.bf16.gmra.mxu0 %v1222
    %v3608 = vpop.f32.mrf.mxu0
    %v3609 = vadd.f32 %v3440, %v3608
    %v3610 = vpop.f32.mrf.mxu0
    %v3611 = vadd.f32 %v3442, %v3610
    %3612 = vmatmul.bf16.gmra.mxu0 %v1225
    %v3613 = vpop.f32.mrf.mxu0
    %v3614 = vadd.f32 %v3445, %v3613
    %v3615 = vpop.f32.mrf.mxu0
    %v3616 = vadd.f32 %v3447, %v3615
    %3617 = vmatmul.bf16.gmra.mxu0 %v1228
    %v3618 = vpop.f32.mrf.mxu0
    %v3619 = vadd.f32 %v3450, %v3618
    %v3620 = vpop.f32.mrf.mxu0
    %v3621 = vadd.f32 %v3452, %v3620
    %3622 = vmatmul.bf16.gmra.mxu0 %v1231
    %v3623 = vpop.f32.mrf.mxu0
    %v3624 = vadd.f32 %v3455, %v3623
    %v3625 = vpop.f32.mrf.mxu0
    %v3626 = vadd.f32 %v3457, %v3625
    %3627 = vmatmul.bf16.gmra.mxu0 %v1234
    %v3628 = vpop.f32.mrf.mxu0
    %v3629 = vadd.f32 %v3460, %v3628
    %v3630 = vpop.f32.mrf.mxu0
    %v3631 = vadd.f32 %v3462, %v3630
    %3632 = vmatmul.bf16.gmra.mxu0 %v1237
    %v3633 = vpop.f32.mrf.mxu0
    %v3634 = vadd.f32 %v3465, %v3633
    %v3635 = vpop.f32.mrf.mxu0
    %v3636 = vadd.f32 %v3467, %v3635
    %3637 = vmatmul.bf16.gmra.mxu0 %v1240
    %v3638 = vpop.f32.mrf.mxu0
    %v3639 = vadd.f32 %v3470, %v3638
    %v3640 = vpop.f32.mrf.mxu0
    %v3641 = vadd.f32 %v3472, %v3640
    %3642 = vmatmul.bf16.gmra.mxu0 %v1243
    %v3643 = vpop.f32.mrf.mxu0
    %v3644 = vadd.f32 %v3475, %v3643
    %v3645 = vpop.f32.mrf.mxu0
    %v3646 = vadd.f32 %v3477, %v3645
    %3647 = vmatmul.bf16.gmra.mxu0 %v1246
    %v3648 = vpop.f32.mrf.mxu0
    %v3649 = vadd.f32 %v3480, %v3648
    %v3650 = vpop.f32.mrf.mxu0
    %v3651 = vadd.f32 %v3482, %v3650
    %3652 = vmatmul.bf16.gmra.mxu0 %v1249
    %v3653 = vpop.f32.mrf.mxu0
    %v3654 = vadd.f32 %v3485, %v3653
    %v3655 = vpop.f32.mrf.mxu0
    %v3656 = vadd.f32 %v3487, %v3655
    %3657 = vmatmul.bf16.gmra.mxu0 %v1252
    %v3658 = vpop.f32.mrf.mxu0
    %v3659 = vadd.f32 %v3490, %v3658
    %v3660 = vpop.f32.mrf.mxu0
    %v3661 = vadd.f32 %v3492, %v3660
    %3662 = vmatmul.bf16.gmra.mxu0 %v1255
    %v3663 = vpop.f32.mrf.mxu0
    %v3664 = vadd.f32 %v3495, %v3663
    %v3665 = vpop.f32.mrf.mxu0
    %v3666 = vadd.f32 %v3497, %v3665
    %3667 = vmatmul.bf16.gmra.mxu0 %v1258
    %v3668 = vpop.f32.mrf.mxu0
    %v3669 = vadd.f32 %v3500, %v3668
    %v3670 = vpop.f32.mrf.mxu0
    %v3671 = vadd.f32 %v3502, %v3670
    %3672 = vmatmul.bf16.gmra.mxu0 %v1261
    %v3673 = vpop.f32.mrf.mxu0
    %v3674 = vadd.f32 %v3505, %v3673
    %v3675 = vpop.f32.mrf.mxu0
    %v3676 = vadd.f32 %v3507, %v3675
    %3677 = vmatmul.bf16.gmra.mxu0 %v1264
    %v3678 = vpop.f32.mrf.mxu0
    %v3679 = vadd.f32 %v3510, %v3678
    %v3680 = vpop.f32.mrf.mxu0
    %v3681 = vadd.f32 %v3512, %v3680
    %3682 = vmatmul.bf16.gmra.mxu0 %v1267
    %v3683 = vpop.f32.mrf.mxu0
    %v3684 = vadd.f32 %v3515, %v3683
    %v3685 = vpop.f32.mrf.mxu0
    %v3686 = vadd.f32 %v3517, %v3685
    %3687 = vmatmul.bf16.gmra.mxu0 %v1270
    %v3688 = vpop.f32.mrf.mxu0
    %v3689 = vadd.f32 %v3520, %v3688
    %v3690 = vpop.f32.mrf.mxu0
    %v3691 = vadd.f32 %v3522, %v3690
    %3692 = vmatmul.bf16.gmra.mxu0 %v1273
    %v3693 = vpop.f32.mrf.mxu0
    %v3694 = vadd.f32 %v3525, %v3693
    %v3695 = vpop.f32.mrf.mxu0
    %v3696 = vadd.f32 %v3527, %v3695
    %3697 = vmatmul.bf16.gmra.mxu0 %v1276
    %v3698 = vpop.f32.mrf.mxu0
    %v3699 = vadd.f32 %v3530, %v3698
    %v3700 = vpop.f32.mrf.mxu0
    %v3701 = vadd.f32 %v3532, %v3700
    %3702 = vmatmul.bf16.gmra.mxu0 %v1279
    %v3703 = vpop.f32.mrf.mxu0
    %v3704 = vadd.f32 %v3535, %v3703
    %v3705 = vpop.f32.mrf.mxu0
    %v3706 = vadd.f32 %v3537, %v3705
    %3707 = vmatmul.bf16.gmra.mxu0 %v1282
    %v3708 = vpop.f32.mrf.mxu0
    %v3709 = vadd.f32 %v3540, %v3708
    %v3710 = vpop.f32.mrf.mxu0
    %v3711 = vadd.f32 %v3542, %v3710
    %3712 = vmatmul.bf16.gmra.mxu0 %v1285
    %v3713 = vpop.f32.mrf.mxu0
    %v3714 = vadd.f32 %v3545, %v3713
    %v3715 = vpop.f32.mrf.mxu0
    %v3716 = vadd.f32 %v3547, %v3715
    %3717 = vmatmul.bf16.gmra.mxu0 %v1288
    %v3718 = vpop.f32.mrf.mxu0
    %v3719 = vadd.f32 %v3550, %v3718
    %v3720 = vpop.f32.mrf.mxu0
    %v3721 = vadd.f32 %v3552, %v3720
    %3722 = vmatmul.bf16.gmra.mxu0 %v1291
    %v3723 = vpop.f32.mrf.mxu0
    %v3724 = vadd.f32 %v3555, %v3723
    %v3725 = vpop.f32.mrf.mxu0
    %v3726 = vadd.f32 %v3557, %v3725
    %3727 = vmatmul.bf16.gmra.mxu0 %v1294
    %v3728 = vpop.f32.mrf.mxu0
    %v3729 = vadd.f32 %v3560, %v3728
    %v3730 = vpop.f32.mrf.mxu0
    %v3731 = vadd.f32 %v3562, %v3730
    %3732 = vmatmul.bf16.gmra.mxu0 %v1297
    %v3733 = vpop.f32.mrf.mxu0
    %v3734 = vadd.f32 %v3565, %v3733
    %v3735 = vpop.f32.mrf.mxu0
    %v3736 = vadd.f32 %v3567, %v3735
    %3737 = vmatmul.bf16.gmra.mxu0 %v1300
    %v3738 = vpop.f32.mrf.mxu0
    %v3739 = vadd.f32 %v3570, %v3738
    %v3740 = vpop.f32.mrf.mxu0
    %v3741 = vadd.f32 %v3572, %v3740
    %3742 = vmatmul.bf16.gmra.mxu0 %v1303
    %v3743 = vpop.f32.mrf.mxu0
    %v3744 = vadd.f32 %v3575, %v3743
    %v3745 = vpop.f32.mrf.mxu0
    %v3746 = vadd.f32 %v3577, %v3745
    %3747 = vmatmul.bf16.gmra.mxu0 %v1306
    %v3748 = vpop.f32.mrf.mxu0
    %v3749 = vadd.f32 %v3580, %v3748
    %v3750 = vpop.f32.mrf.mxu0
    %v3751 = vadd.f32 %v3582, %v3750
    %3752 = vdwg.mxu0
    %3753 = vmatpush.bf16.msra.mxu0 %v1797
    %3754 = vmatpush.bf16.msra.mxu0 %v1793
    %3755 = vmatpush.bf16.msra.mxu0 %v1789
    %3756 = vmatpush.bf16.msra.mxu0 %v1785
    %3757 = vmatpush.bf16.msra.mxu0 %v1781
    %3758 = vmatpush.bf16.msra.mxu0 %v1777
    %3759 = vmatpush.bf16.msra.mxu0 %v1773
    %3760 = vmatpush.bf16.msra.mxu0 %v1769
    %3761 = vmatmul.bf16.gmra.mxu0 %v1214
    %v3762 = vpop.f32.mrf.mxu0
    %v3763 = vadd.f32 %v3594, %v3762
    %v3764 = vpop.f32.mrf.mxu0
    %v3765 = vadd.f32 %v3596, %v3764
    %3766 = vmatmul.bf16.gmra.mxu0 %v1217
    %v3767 = vpop.f32.mrf.mxu0
    %v3768 = vadd.f32 %v3599, %v3767
    %v3769 = vpop.f32.mrf.mxu0
    %v3770 = vadd.f32 %v3601, %v3769
    %3771 = vmatmul.bf16.gmra.mxu0 %v1220
    %v3772 = vpop.f32.mrf.mxu0
    %v3773 = vadd.f32 %v3604, %v3772
    %v3774 = vpop.f32.mrf.mxu0
    %v3775 = vadd.f32 %v3606, %v3774
    %3776 = vmatmul.bf16.gmra.mxu0 %v1223
    %v3777 = vpop.f32.mrf.mxu0
    %v3778 = vadd.f32 %v3609, %v3777
    %v3779 = vpop.f32.mrf.mxu0
    %v3780 = vadd.f32 %v3611, %v3779
    %3781 = vmatmul.bf16.gmra.mxu0 %v1226
    %v3782 = vpop.f32.mrf.mxu0
    %v3783 = vadd.f32 %v3614, %v3782
    %v3784 = vpop.f32.mrf.mxu0
    %v3785 = vadd.f32 %v3616, %v3784
    %3786 = vmatmul.bf16.gmra.mxu0 %v1229
    %v3787 = vpop.f32.mrf.mxu0
    %v3788 = vadd.f32 %v3619, %v3787
    %v3789 = vpop.f32.mrf.mxu0
    %v3790 = vadd.f32 %v3621, %v3789
    %3791 = vmatmul.bf16.gmra.mxu0 %v1232
    %v3792 = vpop.f32.mrf.mxu0
    %v3793 = vadd.f32 %v3624, %v3792
    %v3794 = vpop.f32.mrf.mxu0
    %v3795 = vadd.f32 %v3626, %v3794
    %3796 = vmatmul.bf16.gmra.mxu0 %v1235
    %v3797 = vpop.f32.mrf.mxu0
    %v3798 = vadd.f32 %v3629, %v3797
    %v3799 = vpop.f32.mrf.mxu0
    %v3800 = vadd.f32 %v3631, %v3799
    %3801 = vmatmul.bf16.gmra.mxu0 %v1238
    %v3802 = vpop.f32.mrf.mxu0
    %v3803 = vadd.f32 %v3634, %v3802
    %v3804 = vpop.f32.mrf.mxu0
    %v3805 = vadd.f32 %v3636, %v3804
    %3806 = vmatmul.bf16.gmra.mxu0 %v1241
    %v3807 = vpop.f32.mrf.mxu0
    %v3808 = vadd.f32 %v3639, %v3807
    %v3809 = vpop.f32.mrf.mxu0
    %v3810 = vadd.f32 %v3641, %v3809
    %3811 = vmatmul.bf16.gmra.mxu0 %v1244
    %v3812 = vpop.f32.mrf.mxu0
    %v3813 = vadd.f32 %v3644, %v3812
    %v3814 = vpop.f32.mrf.mxu0
    %v3815 = vadd.f32 %v3646, %v3814
    %3816 = vmatmul.bf16.gmra.mxu0 %v1247
    %v3817 = vpop.f32.mrf.mxu0
    %v3818 = vadd.f32 %v3649, %v3817
    %v3819 = vpop.f32.mrf.mxu0
    %v3820 = vadd.f32 %v3651, %v3819
    %3821 = vmatmul.bf16.gmra.mxu0 %v1250
    %v3822 = vpop.f32.mrf.mxu0
    %v3823 = vadd.f32 %v3654, %v3822
    %v3824 = vpop.f32.mrf.mxu0
    %v3825 = vadd.f32 %v3656, %v3824
    %3826 = vmatmul.bf16.gmra.mxu0 %v1253
    %v3827 = vpop.f32.mrf.mxu0
    %v3828 = vadd.f32 %v3659, %v3827
    %v3829 = vpop.f32.mrf.mxu0
    %v3830 = vadd.f32 %v3661, %v3829
    %3831 = vmatmul.bf16.gmra.mxu0 %v1256
    %v3832 = vpop.f32.mrf.mxu0
    %v3833 = vadd.f32 %v3664, %v3832
    %v3834 = vpop.f32.mrf.mxu0
    %v3835 = vadd.f32 %v3666, %v3834
    %3836 = vmatmul.bf16.gmra.mxu0 %v1259
    %v3837 = vpop.f32.mrf.mxu0
    %v3838 = vadd.f32 %v3669, %v3837
    %v3839 = vpop.f32.mrf.mxu0
    %v3840 = vadd.f32 %v3671, %v3839
    %3841 = vmatmul.bf16.gmra.mxu0 %v1262
    %v3842 = vpop.f32.mrf.mxu0
    %v3843 = vadd.f32 %v3674, %v3842
    %v3844 = vpop.f32.mrf.mxu0
    %v3845 = vadd.f32 %v3676, %v3844
    %3846 = vmatmul.bf16.gmra.mxu0 %v1265
    %v3847 = vpop.f32.mrf.mxu0
    %v3848 = vadd.f32 %v3679, %v3847
    %v3849 = vpop.f32.mrf.mxu0
    %v3850 = vadd.f32 %v3681, %v3849
    %3851 = vmatmul.bf16.gmra.mxu0 %v1268
    %v3852 = vpop.f32.mrf.mxu0
    %v3853 = vadd.f32 %v3684, %v3852
    %v3854 = vpop.f32.mrf.mxu0
    %v3855 = vadd.f32 %v3686, %v3854
    %3856 = vmatmul.bf16.gmra.mxu0 %v1271
    %v3857 = vpop.f32.mrf.mxu0
    %v3858 = vadd.f32 %v3689, %v3857
    %v3859 = vpop.f32.mrf.mxu0
    %v3860 = vadd.f32 %v3691, %v3859
    %3861 = vmatmul.bf16.gmra.mxu0 %v1274
    %v3862 = vpop.f32.mrf.mxu0
    %v3863 = vadd.f32 %v3694, %v3862
    %v3864 = vpop.f32.mrf.mxu0
    %v3865 = vadd.f32 %v3696, %v3864
    %3866 = vmatmul.bf16.gmra.mxu0 %v1277
    %v3867 = vpop.f32.mrf.mxu0
    %v3868 = vadd.f32 %v3699, %v3867
    %v3869 = vpop.f32.mrf.mxu0
    %v3870 = vadd.f32 %v3701, %v3869
    %3871 = vmatmul.bf16.gmra.mxu0 %v1280
    %v3872 = vpop.f32.mrf.mxu0
    %v3873 = vadd.f32 %v3704, %v3872
    %v3874 = vpop.f32.mrf.mxu0
    %v3875 = vadd.f32 %v3706, %v3874
    %3876 = vmatmul.bf16.gmra.mxu0 %v1283
    %v3877 = vpop.f32.mrf.mxu0
    %v3878 = vadd.f32 %v3709, %v3877
    %v3879 = vpop.f32.mrf.mxu0
    %v3880 = vadd.f32 %v3711, %v3879
    %3881 = vmatmul.bf16.gmra.mxu0 %v1286
    %v3882 = vpop.f32.mrf.mxu0
    %v3883 = vadd.f32 %v3714, %v3882
    %v3884 = vpop.f32.mrf.mxu0
    %v3885 = vadd.f32 %v3716, %v3884
    %3886 = vmatmul.bf16.gmra.mxu0 %v1289
    %v3887 = vpop.f32.mrf.mxu0
    %v3888 = vadd.f32 %v3719, %v3887
    %v3889 = vpop.f32.mrf.mxu0
    %v3890 = vadd.f32 %v3721, %v3889
    %3891 = vmatmul.bf16.gmra.mxu0 %v1292
    %v3892 = vpop.f32.mrf.mxu0
    %v3893 = vadd.f32 %v3724, %v3892
    %v3894 = vpop.f32.mrf.mxu0
    %v3895 = vadd.f32 %v3726, %v3894
    %3896 = vmatmul.bf16.gmra.mxu0 %v1295
    %v3897 = vpop.f32.mrf.mxu0
    %v3898 = vadd.f32 %v3729, %v3897
    %v3899 = vpop.f32.mrf.mxu0
    %v3900 = vadd.f32 %v3731, %v3899
    %3901 = vmatmul.bf16.gmra.mxu0 %v1298
    %v3902 = vpop.f32.mrf.mxu0
    %v3903 = vadd.f32 %v3734, %v3902
    %v3904 = vpop.f32.mrf.mxu0
    %v3905 = vadd.f32 %v3736, %v3904
    %3906 = vmatmul.bf16.gmra.mxu0 %v1301
    %v3907 = vpop.f32.mrf.mxu0
    %v3908 = vadd.f32 %v3739, %v3907
    %v3909 = vpop.f32.mrf.mxu0
    %v3910 = vadd.f32 %v3741, %v3909
    %3911 = vmatmul.bf16.gmra.mxu0 %v1304
    %v3912 = vpop.f32.mrf.mxu0
    %v3913 = vadd.f32 %v3744, %v3912
    %v3914 = vpop.f32.mrf.mxu0
    %v3915 = vadd.f32 %v3746, %v3914
    %3916 = vmatmul.bf16.gmra.mxu0 %v1307
    %v3917 = vpop.f32.mrf.mxu0
    %v3918 = vadd.f32 %v3749, %v3917
    %v3919 = vpop.f32.mrf.mxu0
    %v3920 = vadd.f32 %v3751, %v3919
    %3921 = vdwg.mxu0
    %v3922 = vmax.f32 %v2242, 0.0
    %v3923 = vmax.f32 %v2749, 0.0
    %v3924 = vmax.f32 %v3256, 0.0
    %v3925 = vmax.f32 %v3763, 0.0
    %v3926 = vmax.f32 %v2244, 0.0
    %v3927 = vmax.f32 %v2751, 0.0
    %v3928 = vmax.f32 %v3258, 0.0
    %v3929 = vmax.f32 %v3765, 0.0
    %v3930 = vmax.f32 %v2247, 0.0
    %v3931 = vmax.f32 %v2754, 0.0
    %v3932 = vmax.f32 %v3261, 0.0
    %v3933 = vmax.f32 %v3768, 0.0
    %v3934 = vmax.f32 %v2249, 0.0
    %v3935 = vmax.f32 %v2756, 0.0
    %v3936 = vmax.f32 %v3263, 0.0
    %v3937 = vmax.f32 %v3770, 0.0
    %v3938 = vmax.f32 %v2252, 0.0
    %v3939 = vmax.f32 %v2759, 0.0
    %v3940 = vmax.f32 %v3266, 0.0
    %v3941 = vmax.f32 %v3773, 0.0
    %v3942 = vmax.f32 %v2254, 0.0
    %v3943 = vmax.f32 %v2761, 0.0
    %v3944 = vmax.f32 %v3268, 0.0
    %v3945 = vmax.f32 %v3775, 0.0
    %v3946 = vmax.f32 %v2257, 0.0
    %v3947 = vmax.f32 %v2764, 0.0
    %v3948 = vmax.f32 %v3271, 0.0
    %v3949 = vmax.f32 %v3778, 0.0
    %v3950 = vmax.f32 %v2259, 0.0
    %v3951 = vmax.f32 %v2766, 0.0
    %v3952 = vmax.f32 %v3273, 0.0
    %v3953 = vmax.f32 %v3780, 0.0
    %v3954 = vmax.f32 %v2262, 0.0
    %v3955 = vmax.f32 %v2769, 0.0
    %v3956 = vmax.f32 %v3276, 0.0
    %v3957 = vmax.f32 %v3783, 0.0
    %v3958 = vmax.f32 %v2264, 0.0
    %v3959 = vmax.f32 %v2771, 0.0
    %v3960 = vmax.f32 %v3278, 0.0
    %v3961 = vmax.f32 %v3785, 0.0
    %v3962 = vmax.f32 %v2267, 0.0
    %v3963 = vmax.f32 %v2774, 0.0
    %v3964 = vmax.f32 %v3281, 0.0
    %v3965 = vmax.f32 %v3788, 0.0
    %v3966 = vmax.f32 %v2269, 0.0
    %v3967 = vmax.f32 %v2776, 0.0
    %v3968 = vmax.f32 %v3283, 0.0
    %v3969 = vmax.f32 %v3790, 0.0
    %v3970 = vmax.f32 %v2272, 0.0
    %v3971 = vmax.f32 %v2779, 0.0
    %v3972 = vmax.f32 %v3286, 0.0
    %v3973 = vmax.f32 %v3793, 0.0
    %v3974 = vmax.f32 %v2274, 0.0
    %v3975 = vmax.f32 %v2781, 0.0
    %v3976 = vmax.f32 %v3288, 0.0
    %v3977 = vmax.f32 %v3795, 0.0
    %v3978 = vmax.f32 %v2277, 0.0
    %v3979 = vmax.f32 %v2784, 0.0
    %v3980 = vmax.f32 %v3291, 0.0
    %v3981 = vmax.f32 %v3798, 0.0
    %v3982 = vmax.f32 %v2279, 0.0
    %v3983 = vmax.f32 %v2786, 0.0
    %v3984 = vmax.f32 %v3293, 0.0
    %v3985 = vmax.f32 %v3800, 0.0
    %v3986 = vmax.f32 %v2282, 0.0
    %v3987 = vmax.f32 %v2789, 0.0
    %v3988 = vmax.f32 %v3296, 0.0
    %v3989 = vmax.f32 %v3803, 0.0
    %v3990 = vmax.f32 %v2284, 0.0
    %v3991 = vmax.f32 %v2791, 0.0
    %v3992 = vmax.f32 %v3298, 0.0
    %v3993 = vmax.f32 %v3805, 0.0
    %v3994 = vmax.f32 %v2287, 0.0
    %v3995 = vmax.f32 %v2794, 0.0
    %v3996 = vmax.f32 %v3301, 0.0
    %v3997 = vmax.f32 %v3808, 0.0
    %v3998 = vmax.f32 %v2289, 0.0
    %v3999 = vmax.f32 %v2796, 0.0
    %v4000 = vmax.f32 %v3303, 0.0
    %v4001 = vmax.f32 %v3810, 0.0
    %v4002 = vmax.f32 %v2292, 0.0
    %v4003 = vmax.f32 %v2799, 0.0
    %v4004 = vmax.f32 %v3306, 0.0
    %v4005 = vmax.f32 %v3813, 0.0
    %v4006 = vmax.f32 %v2294, 0.0
    %v4007 = vmax.f32 %v2801, 0.0
    %v4008 = vmax.f32 %v3308, 0.0
    %v4009 = vmax.f32 %v3815, 0.0
    %v4010 = vmax.f32 %v2297, 0.0
    %v4011 = vmax.f32 %v2804, 0.0
    %v4012 = vmax.f32 %v3311, 0.0
    %v4013 = vmax.f32 %v3818, 0.0
    %v4014 = vmax.f32 %v2299, 0.0
    %v4015 = vmax.f32 %v2806, 0.0
    %v4016 = vmax.f32 %v3313, 0.0
    %v4017 = vmax.f32 %v3820, 0.0
    %v4018 = vmax.f32 %v2302, 0.0
    %v4019 = vmax.f32 %v2809, 0.0
    %v4020 = vmax.f32 %v3316, 0.0
    %v4021 = vmax.f32 %v3823, 0.0
    %v4022 = vmax.f32 %v2304, 0.0
    %v4023 = vmax.f32 %v2811, 0.0
    %v4024 = vmax.f32 %v3318, 0.0
    %v4025 = vmax.f32 %v3825, 0.0
    %v4026 = vmax.f32 %v2307, 0.0
    %v4027 = vmax.f32 %v2814, 0.0
    %v4028 = vmax.f32 %v3321, 0.0
    %v4029 = vmax.f32 %v3828, 0.0
    %v4030 = vmax.f32 %v2309, 0.0
    %v4031 = vmax.f32 %v2816, 0.0
    %v4032 = vmax.f32 %v3323, 0.0
    %v4033 = vmax.f32 %v3830, 0.0
    %v4034 = vmax.f32 %v2312, 0.0
    %v4035 = vmax.f32 %v2819, 0.0
    %v4036 = vmax.f32 %v3326, 0.0
    %v4037 = vmax.f32 %v3833, 0.0
    %v4038 = vmax.f32 %v2314, 0.0
    %v4039 = vmax.f32 %v2821, 0.0
    %v4040 = vmax.f32 %v3328, 0.0
    %v4041 = vmax.f32 %v3835, 0.0
    %v4042 = vmax.f32 %v2317, 0.0
    %v4043 = vmax.f32 %v2824, 0.0
    %v4044 = vmax.f32 %v3331, 0.0
    %v4045 = vmax.f32 %v3838, 0.0
    %v4046 = vmax.f32 %v2319, 0.0
    %v4047 = vmax.f32 %v2826, 0.0
    %v4048 = vmax.f32 %v3333, 0.0
    %v4049 = vmax.f32 %v3840, 0.0
    %v4050 = vmax.f32 %v2322, 0.0
    %v4051 = vmax.f32 %v2829, 0.0
    %v4052 = vmax.f32 %v3336, 0.0
    %v4053 = vmax.f32 %v3843, 0.0
    %v4054 = vmax.f32 %v2324, 0.0
    %v4055 = vmax.f32 %v2831, 0.0
    %v4056 = vmax.f32 %v3338, 0.0
    %v4057 = vmax.f32 %v3845, 0.0
    %v4058 = vmax.f32 %v2327, 0.0
    %v4059 = vmax.f32 %v2834, 0.0
    %v4060 = vmax.f32 %v3341, 0.0
    %v4061 = vmax.f32 %v3848, 0.0
    %v4062 = vmax.f32 %v2329, 0.0
    %v4063 = vmax.f32 %v2836, 0.0
    %v4064 = vmax.f32 %v3343, 0.0
    %v4065 = vmax.f32 %v3850, 0.0
    %v4066 = vmax.f32 %v2332, 0.0
    %v4067 = vmax.f32 %v2839, 0.0
    %v4068 = vmax.f32 %v3346, 0.0
    %v4069 = vmax.f32 %v3853, 0.0
    %v4070 = vmax.f32 %v2334, 0.0
    %v4071 = vmax.f32 %v2841, 0.0
    %v4072 = vmax.f32 %v3348, 0.0
    %v4073 = vmax.f32 %v3855, 0.0
    %v4074 = vmax.f32 %v2337, 0.0
    %v4075 = vmax.f32 %v2844, 0.0
    %v4076 = vmax.f32 %v3351, 0.0
    %v4077 = vmax.f32 %v3858, 0.0
    %v4078 = vmax.f32 %v2339, 0.0
    %v4079 = vmax.f32 %v2846, 0.0
    %v4080 = vmax.f32 %v3353, 0.0
    %v4081 = vmax.f32 %v3860, 0.0
    %v4082 = vmax.f32 %v2342, 0.0
    %v4083 = vmax.f32 %v2849, 0.0
    %v4084 = vmax.f32 %v3356, 0.0
    %v4085 = vmax.f32 %v3863, 0.0
    %v4086 = vmax.f32 %v2344, 0.0
    %v4087 = vmax.f32 %v2851, 0.0
    %v4088 = vmax.f32 %v3358, 0.0
    %v4089 = vmax.f32 %v3865, 0.0
    %v4090 = vmax.f32 %v2347, 0.0
    %v4091 = vmax.f32 %v2854, 0.0
    %v4092 = vmax.f32 %v3361, 0.0
    %v4093 = vmax.f32 %v3868, 0.0
    %v4094 = vmax.f32 %v2349, 0.0
    %v4095 = vmax.f32 %v2856, 0.0
    %v4096 = vmax.f32 %v3363, 0.0
    %v4097 = vmax.f32 %v3870, 0.0
    %v4098 = vmax.f32 %v2352, 0.0
    %v4099 = vmax.f32 %v2859, 0.0
    %v4100 = vmax.f32 %v3366, 0.0
    %v4101 = vmax.f32 %v3873, 0.0
    %v4102 = vmax.f32 %v2354, 0.0
    %v4103 = vmax.f32 %v2861, 0.0
    %v4104 = vmax.f32 %v3368, 0.0
    %v4105 = vmax.f32 %v3875, 0.0
    %v4106 = vmax.f32 %v2357, 0.0
    %v4107 = vmax.f32 %v2864, 0.0
    %v4108 = vmax.f32 %v3371, 0.0
    %v4109 = vmax.f32 %v3878, 0.0
    %v4110 = vmax.f32 %v2359, 0.0
    %v4111 = vmax.f32 %v2866, 0.0
    %v4112 = vmax.f32 %v3373, 0.0
    %v4113 = vmax.f32 %v3880, 0.0
    %v4114 = vmax.f32 %v2362, 0.0
    %v4115 = vmax.f32 %v2869, 0.0
    %v4116 = vmax.f32 %v3376, 0.0
    %v4117 = vmax.f32 %v3883, 0.0
    %v4118 = vmax.f32 %v2364, 0.0
    %v4119 = vmax.f32 %v2871, 0.0
    %v4120 = vmax.f32 %v3378, 0.0
    %v4121 = vmax.f32 %v3885, 0.0
    %v4122 = vmax.f32 %v2367, 0.0
    %v4123 = vmax.f32 %v2874, 0.0
    %v4124 = vmax.f32 %v3381, 0.0
    %v4125 = vmax.f32 %v3888, 0.0
    %v4126 = vmax.f32 %v2369, 0.0
    %v4127 = vmax.f32 %v2876, 0.0
    %v4128 = vmax.f32 %v3383, 0.0
    %v4129 = vmax.f32 %v3890, 0.0
    %v4130 = vmax.f32 %v2372, 0.0
    %v4131 = vmax.f32 %v2879, 0.0
    %v4132 = vmax.f32 %v3386, 0.0
    %v4133 = vmax.f32 %v3893, 0.0
    %v4134 = vmax.f32 %v2374, 0.0
    %v4135 = vmax.f32 %v2881, 0.0
    %v4136 = vmax.f32 %v3388, 0.0
    %v4137 = vmax.f32 %v3895, 0.0
    %v4138 = vmax.f32 %v2377, 0.0
    %v4139 = vmax.f32 %v2884, 0.0
    %v4140 = vmax.f32 %v3391, 0.0
    %v4141 = vmax.f32 %v3898, 0.0
    %v4142 = vmax.f32 %v2379, 0.0
    %v4143 = vmax.f32 %v2886, 0.0
    %v4144 = vmax.f32 %v3393, 0.0
    %v4145 = vmax.f32 %v3900, 0.0
    %v4146 = vmax.f32 %v2382, 0.0
    %v4147 = vmax.f32 %v2889, 0.0
    %v4148 = vmax.f32 %v3396, 0.0
    %v4149 = vmax.f32 %v3903, 0.0
    %v4150 = vmax.f32 %v2384, 0.0
    %v4151 = vmax.f32 %v2891, 0.0
    %v4152 = vmax.f32 %v3398, 0.0
    %v4153 = vmax.f32 %v3905, 0.0
    %v4154 = vmax.f32 %v2387, 0.0
    %v4155 = vmax.f32 %v2894, 0.0
    %v4156 = vmax.f32 %v3401, 0.0
    %v4157 = vmax.f32 %v3908, 0.0
    %v4158 = vmax.f32 %v2389, 0.0
    %v4159 = vmax.f32 %v2896, 0.0
    %v4160 = vmax.f32 %v3403, 0.0
    %v4161 = vmax.f32 %v3910, 0.0
    %v4162 = vmax.f32 %v2392, 0.0
    %v4163 = vmax.f32 %v2899, 0.0
    %v4164 = vmax.f32 %v3406, 0.0
    %v4165 = vmax.f32 %v3913, 0.0
    %v4166 = vmax.f32 %v2394, 0.0
    %v4167 = vmax.f32 %v2901, 0.0
    %v4168 = vmax.f32 %v3408, 0.0
    %v4169 = vmax.f32 %v3915, 0.0
    %v4170 = vmax.f32 %v2397, 0.0
    %v4171 = vmax.f32 %v2904, 0.0
    %v4172 = vmax.f32 %v3411, 0.0
    %v4173 = vmax.f32 %v3918, 0.0
    %v4174 = vmax.f32 %v2399, 0.0
    %v4175 = vmax.f32 %v2906, 0.0
    %v4176 = vmax.f32 %v3413, 0.0
    %v4177 = vmax.f32 %v3920, 0.0
    %v4178 = vpack.c.bf16 %v3926, %v3922
    %v4179 = vpack.c.bf16 %v3927, %v3923
    %v4180 = vpack.c.bf16 %v3928, %v3924
    %v4181 = vpack.c.bf16 %v3929, %v3925
    %v4182 = vpack.c.bf16 %v3934, %v3930
    %v4183 = vpack.c.bf16 %v3935, %v3931
    %v4184 = vpack.c.bf16 %v3936, %v3932
    %v4185 = vpack.c.bf16 %v3937, %v3933
    %v4186 = vpack.c.bf16 %v3942, %v3938
    %v4187 = vpack.c.bf16 %v3943, %v3939
    %v4188 = vpack.c.bf16 %v3944, %v3940
    %v4189 = vpack.c.bf16 %v3945, %v3941
    %v4190 = vpack.c.bf16 %v3950, %v3946
    %v4191 = vpack.c.bf16 %v3951, %v3947
    %v4192 = vpack.c.bf16 %v3952, %v3948
    %v4193 = vpack.c.bf16 %v3953, %v3949
    %v4194 = vpack.c.bf16 %v3958, %v3954
    %v4195 = vpack.c.bf16 %v3959, %v3955
    %v4196 = vpack.c.bf16 %v3960, %v3956
    %v4197 = vpack.c.bf16 %v3961, %v3957
    %v4198 = vpack.c.bf16 %v3966, %v3962
    %v4199 = vpack.c.bf16 %v3967, %v3963
    %v4200 = vpack.c.bf16 %v3968, %v3964
    %v4201 = vpack.c.bf16 %v3969, %v3965
    %v4202 = vpack.c.bf16 %v3974, %v3970
    %v4203 = vpack.c.bf16 %v3975, %v3971
    %v4204 = vpack.c.bf16 %v3976, %v3972
    %v4205 = vpack.c.bf16 %v3977, %v3973
    %v4206 = vpack.c.bf16 %v3982, %v3978
    %v4207 = vpack.c.bf16 %v3983, %v3979
    %v4208 = vpack.c.bf16 %v3984, %v3980
    %v4209 = vpack.c.bf16 %v3985, %v3981
    %v4210 = vpack.c.bf16 %v3990, %v3986
    %v4211 = vpack.c.bf16 %v3991, %v3987
    %v4212 = vpack.c.bf16 %v3992, %v3988
    %v4213 = vpack.c.bf16 %v3993, %v3989
    %v4214 = vpack.c.bf16 %v3998, %v3994
    %v4215 = vpack.c.bf16 %v3999, %v3995
    %v4216 = vpack.c.bf16 %v4000, %v3996
    %v4217 = vpack.c.bf16 %v4001, %v3997
    %v4218 = vpack.c.bf16 %v4006, %v4002
    %v4219 = vpack.c.bf16 %v4007, %v4003
    %v4220 = vpack.c.bf16 %v4008, %v4004
    %v4221 = vpack.c.bf16 %v4009, %v4005
    %v4222 = vpack.c.bf16 %v4014, %v4010
    %v4223 = vpack.c.bf16 %v4015, %v4011
    %v4224 = vpack.c.bf16 %v4016, %v4012
    %v4225 = vpack.c.bf16 %v4017, %v4013
    %v4226 = vpack.c.bf16 %v4022, %v4018
    %v4227 = vpack.c.bf16 %v4023, %v4019
    %v4228 = vpack.c.bf16 %v4024, %v4020
    %v4229 = vpack.c.bf16 %v4025, %v4021
    %v4230 = vpack.c.bf16 %v4030, %v4026
    %v4231 = vpack.c.bf16 %v4031, %v4027
    %v4232 = vpack.c.bf16 %v4032, %v4028
    %v4233 = vpack.c.bf16 %v4033, %v4029
    %v4234 = vpack.c.bf16 %v4038, %v4034
    %v4235 = vpack.c.bf16 %v4039, %v4035
    %v4236 = vpack.c.bf16 %v4040, %v4036
    %v4237 = vpack.c.bf16 %v4041, %v4037
    %v4238 = vpack.c.bf16 %v4046, %v4042
    %v4239 = vpack.c.bf16 %v4047, %v4043
    %v4240 = vpack.c.bf16 %v4048, %v4044
    %v4241 = vpack.c.bf16 %v4049, %v4045
    %v4242 = vpack.c.bf16 %v4054, %v4050
    %v4243 = vpack.c.bf16 %v4055, %v4051
    %v4244 = vpack.c.bf16 %v4056, %v4052
    %v4245 = vpack.c.bf16 %v4057, %v4053
    %v4246 = vpack.c.bf16 %v4062, %v4058
    %v4247 = vpack.c.bf16 %v4063, %v4059
    %v4248 = vpack.c.bf16 %v4064, %v4060
    %v4249 = vpack.c.bf16 %v4065, %v4061
    %v4250 = vpack.c.bf16 %v4070, %v4066
    %v4251 = vpack.c.bf16 %v4071, %v4067
    %v4252 = vpack.c.bf16 %v4072, %v4068
    %v4253 = vpack.c.bf16 %v4073, %v4069
    %v4254 = vpack.c.bf16 %v4078, %v4074
    %v4255 = vpack.c.bf16 %v4079, %v4075
    %v4256 = vpack.c.bf16 %v4080, %v4076
    %v4257 = vpack.c.bf16 %v4081, %v4077
    %v4258 = vpack.c.bf16 %v4086, %v4082
    %v4259 = vpack.c.bf16 %v4087, %v4083
    %v4260 = vpack.c.bf16 %v4088, %v4084
    %v4261 = vpack.c.bf16 %v4089, %v4085
    %v4262 = vpack.c.bf16 %v4094, %v4090
    %v4263 = vpack.c.bf16 %v4095, %v4091
    %v4264 = vpack.c.bf16 %v4096, %v4092
    %v4265 = vpack.c.bf16 %v4097, %v4093
    %v4266 = vpack.c.bf16 %v4102, %v4098
    %v4267 = vpack.c.bf16 %v4103, %v4099
    %v4268 = vpack.c.bf16 %v4104, %v4100
    %v4269 = vpack.c.bf16 %v4105, %v4101
    %v4270 = vpack.c.bf16 %v4110, %v4106
    %v4271 = vpack.c.bf16 %v4111, %v4107
    %v4272 = vpack.c.bf16 %v4112, %v4108
    %v4273 = vpack.c.bf16 %v4113, %v4109
    %v4274 = vpack.c.bf16 %v4118, %v4114
    %v4275 = vpack.c.bf16 %v4119, %v4115
    %v4276 = vpack.c.bf16 %v4120, %v4116
    %v4277 = vpack.c.bf16 %v4121, %v4117
    %v4278 = vpack.c.bf16 %v4126, %v4122
    %v4279 = vpack.c.bf16 %v4127, %v4123
    %v4280 = vpack.c.bf16 %v4128, %v4124
    %v4281 = vpack.c.bf16 %v4129, %v4125
    %v4282 = vpack.c.bf16 %v4134, %v4130
    %v4283 = vpack.c.bf16 %v4135, %v4131
    %v4284 = vpack.c.bf16 %v4136, %v4132
    %v4285 = vpack.c.bf16 %v4137, %v4133
    %v4286 = vpack.c.bf16 %v4142, %v4138
    %v4287 = vpack.c.bf16 %v4143, %v4139
    %v4288 = vpack.c.bf16 %v4144, %v4140
    %v4289 = vpack.c.bf16 %v4145, %v4141
    %v4290 = vpack.c.bf16 %v4150, %v4146
    %v4291 = vpack.c.bf16 %v4151, %v4147
    %v4292 = vpack.c.bf16 %v4152, %v4148
    %v4293 = vpack.c.bf16 %v4153, %v4149
    %v4294 = vpack.c.bf16 %v4158, %v4154
    %v4295 = vpack.c.bf16 %v4159, %v4155
    %v4296 = vpack.c.bf16 %v4160, %v4156
    %v4297 = vpack.c.bf16 %v4161, %v4157
    %v4298 = vpack.c.bf16 %v4166, %v4162
    %v4299 = vpack.c.bf16 %v4167, %v4163
    %v4300 = vpack.c.bf16 %v4168, %v4164
    %v4301 = vpack.c.bf16 %v4169, %v4165
    %v4302 = vpack.c.bf16 %v4174, %v4170
    %v4303 = vpack.c.bf16 %v4175, %v4171
    %v4304 = vpack.c.bf16 %v4176, %v4172
    %v4305 = vpack.c.bf16 %v4177, %v4173
    %v4306 = vld [vmem:[%s7] sm:$0xff]
    %v4307 = vld [vmem:[%s7 + $0x8] sm:$0xff]
    %v4308 = vld [vmem:[%s7 + $0x10] sm:$0xff]
    %v4309 = vld [vmem:[%s7 + $0x18] sm:$0xff]
    %v4310 = vld [vmem:[%s7 + $0x20] sm:$0xff]
    %v4311 = vld [vmem:[%s7 + $0x28] sm:$0xff]
    %v4312 = vld [vmem:[%s7 + $0x30] sm:$0xff]
    %v4313 = vld [vmem:[%s7 + $0x38] sm:$0xff]
    %v4314 = vld [vmem:[%s7 + $0x40] sm:$0xff]
    %v4315 = vld [vmem:[%s7 + $0x48] sm:$0xff]
    %v4316 = vld [vmem:[%s7 + $0x50] sm:$0xff]
    %v4317 = vld [vmem:[%s7 + $0x58] sm:$0xff]
    %v4318 = vld [vmem:[%s7 + $0x60] sm:$0xff]
    %v4319 = vld [vmem:[%s7 + $0x68] sm:$0xff]
    %v4320 = vld [vmem:[%s7 + $0x70] sm:$0xff]
    %v4321 = vld [vmem:[%s7 + $0x78] sm:$0xff]
    %v4322 = vld [vmem:[%s7 + $0x80] sm:$0xff]
    %v4323 = vld [vmem:[%s7 + $0x88] sm:$0xff]
    %v4324 = vld [vmem:[%s7 + $0x90] sm:$0xff]
    %v4325 = vld [vmem:[%s7 + $0x98] sm:$0xff]
    %v4326 = vld [vmem:[%s7 + $0xa0] sm:$0xff]
    %v4327 = vld [vmem:[%s7 + $0xa8] sm:$0xff]
    %v4328 = vld [vmem:[%s7 + $0xb0] sm:$0xff]
    %v4329 = vld [vmem:[%s7 + $0xb8] sm:$0xff]
    %v4330 = vld [vmem:[%s7 + $0xc0] sm:$0xff]
    %v4331 = vld [vmem:[%s7 + $0xc8] sm:$0xff]
    %v4332 = vld [vmem:[%s7 + $0xd0] sm:$0xff]
    %v4333 = vld [vmem:[%s7 + $0xd8] sm:$0xff]
    %v4334 = vld [vmem:[%s7 + $0xe0] sm:$0xff]
    %v4335 = vld [vmem:[%s7 + $0xe8] sm:$0xff]
    %v4336 = vld [vmem:[%s7 + $0xf0] sm:$0xff]
    %v4337 = vld [vmem:[%s7 + $0xf8] sm:$0xff]
    %v4338 = vld [vmem:[%s7 + $0x100] sm:$0xff]
    %v4339 = vld [vmem:[%s7 + $0x108] sm:$0xff]
    %v4340 = vld [vmem:[%s7 + $0x110] sm:$0xff]
    %v4341 = vld [vmem:[%s7 + $0x118] sm:$0xff]
    %v4342 = vld [vmem:[%s7 + $0x120] sm:$0xff]
    %v4343 = vld [vmem:[%s7 + $0x128] sm:$0xff]
    %v4344 = vld [vmem:[%s7 + $0x130] sm:$0xff]
    %v4345 = vld [vmem:[%s7 + $0x138] sm:$0xff]
    %v4346 = vld [vmem:[%s7 + $0x140] sm:$0xff]
    %v4347 = vld [vmem:[%s7 + $0x148] sm:$0xff]
    %v4348 = vld [vmem:[%s7 + $0x150] sm:$0xff]
    %v4349 = vld [vmem:[%s7 + $0x158] sm:$0xff]
    %v4350 = vld [vmem:[%s7 + $0x160] sm:$0xff]
    %v4351 = vld [vmem:[%s7 + $0x168] sm:$0xff]
    %v4352 = vld [vmem:[%s7 + $0x170] sm:$0xff]
    %v4353 = vld [vmem:[%s7 + $0x178] sm:$0xff]
    %v4354 = vld [vmem:[%s7 + $0x180] sm:$0xff]
    %v4355 = vld [vmem:[%s7 + $0x188] sm:$0xff]
    %v4356 = vld [vmem:[%s7 + $0x190] sm:$0xff]
    %v4357 = vld [vmem:[%s7 + $0x198] sm:$0xff]
    %v4358 = vld [vmem:[%s7 + $0x1a0] sm:$0xff]
    %v4359 = vld [vmem:[%s7 + $0x1a8] sm:$0xff]
    %v4360 = vld [vmem:[%s7 + $0x1b0] sm:$0xff]
    %v4361 = vld [vmem:[%s7 + $0x1b8] sm:$0xff]
    %v4362 = vld [vmem:[%s7 + $0x1c0] sm:$0xff]
    %v4363 = vld [vmem:[%s7 + $0x1c8] sm:$0xff]
    %v4364 = vld [vmem:[%s7 + $0x1d0] sm:$0xff]
    %v4365 = vld [vmem:[%s7 + $0x1d8] sm:$0xff]
    %v4366 = vld [vmem:[%s7 + $0x1e0] sm:$0xff]
    %v4367 = vld [vmem:[%s7 + $0x1e8] sm:$0xff]
    %v4368 = vld [vmem:[%s7 + $0x1f0] sm:$0xff]
    %v4369 = vld [vmem:[%s7 + $0x1f8] sm:$0xff]
    %v4370 = vld [vmem:[%s8] sm:$0x3]
    %v4372 = vperm.slane %v4370, 0
    %v4373 = vperm.slane %v4370, 1
    %v4440 = vunpack.c.l.b16 %v4306
    %v4441 = vunpack.c.h.b16 %v4306
    %v4442 = vunpack.c.l.b16 %v4307
    %v4443 = vunpack.c.h.b16 %v4307
    %v4444 = vunpack.c.l.b16 %v4308
    %v4445 = vunpack.c.h.b16 %v4308
    %v4446 = vunpack.c.l.b16 %v4309
    %v4447 = vunpack.c.h.b16 %v4309
    %v4448 = vunpack.c.l.b16 %v4310
    %v4449 = vunpack.c.h.b16 %v4310
    %v4450 = vunpack.c.l.b16 %v4311
    %v4451 = vunpack.c.h.b16 %v4311
    %v4452 = vunpack.c.l.b16 %v4312
    %v4453 = vunpack.c.h.b16 %v4312
    %v4454 = vunpack.c.l.b16 %v4313
    %v4455 = vunpack.c.h.b16 %v4313
    %v4456 = vunpack.c.l.b16 %v4314
    %v4457 = vunpack.c.h.b16 %v4314
    %v4458 = vunpack.c.l.b16 %v4315
    %v4459 = vunpack.c.h.b16 %v4315
    %v4460 = vunpack.c.l.b16 %v4316
    %v4461 = vunpack.c.h.b16 %v4316
    %v4462 = vunpack.c.l.b16 %v4317
    %v4463 = vunpack.c.h.b16 %v4317
    %v4464 = vunpack.c.l.b16 %v4318
    %v4465 = vunpack.c.h.b16 %v4318
    %v4466 = vunpack.c.l.b16 %v4319
    %v4467 = vunpack.c.h.b16 %v4319
    %v4468 = vunpack.c.l.b16 %v4320
    %v4469 = vunpack.c.h.b16 %v4320
    %v4470 = vunpack.c.l.b16 %v4321
    %v4471 = vunpack.c.h.b16 %v4321
    %v4472 = vunpack.c.l.b16 %v4322
    %v4473 = vunpack.c.h.b16 %v4322
    %v4474 = vunpack.c.l.b16 %v4323
    %v4475 = vunpack.c.h.b16 %v4323
    %v4476 = vunpack.c.l.b16 %v4324
    %v4477 = vunpack.c.h.b16 %v4324
    %v4478 = vunpack.c.l.b16 %v4325
    %v4479 = vunpack.c.h.b16 %v4325
    %v4480 = vunpack.c.l.b16 %v4326
    %v4481 = vunpack.c.h.b16 %v4326
    %v4482 = vunpack.c.l.b16 %v4327
    %v4483 = vunpack.c.h.b16 %v4327
    %v4484 = vunpack.c.l.b16 %v4328
    %v4485 = vunpack.c.h.b16 %v4328
    %v4486 = vunpack.c.l.b16 %v4329
    %v4487 = vunpack.c.h.b16 %v4329
    %v4488 = vunpack.c.l.b16 %v4330
    %v4489 = vunpack.c.h.b16 %v4330
    %v4490 = vunpack.c.l.b16 %v4331
    %v4491 = vunpack.c.h.b16 %v4331
    %v4492 = vunpack.c.l.b16 %v4332
    %v4493 = vunpack.c.h.b16 %v4332
    %v4494 = vunpack.c.l.b16 %v4333
    %v4495 = vunpack.c.h.b16 %v4333
    %v4496 = vunpack.c.l.b16 %v4334
    %v4497 = vunpack.c.h.b16 %v4334
    %v4498 = vunpack.c.l.b16 %v4335
    %v4499 = vunpack.c.h.b16 %v4335
    %v4500 = vunpack.c.l.b16 %v4336
    %v4501 = vunpack.c.h.b16 %v4336
    %v4502 = vunpack.c.l.b16 %v4337
    %v4503 = vunpack.c.h.b16 %v4337
    %v4504 = vunpack.c.l.b16 %v4338
    %v4505 = vunpack.c.h.b16 %v4338
    %v4506 = vunpack.c.l.b16 %v4339
    %v4507 = vunpack.c.h.b16 %v4339
    %v4508 = vunpack.c.l.b16 %v4340
    %v4509 = vunpack.c.h.b16 %v4340
    %v4510 = vunpack.c.l.b16 %v4341
    %v4511 = vunpack.c.h.b16 %v4341
    %v4512 = vunpack.c.l.b16 %v4342
    %v4513 = vunpack.c.h.b16 %v4342
    %v4514 = vunpack.c.l.b16 %v4343
    %v4515 = vunpack.c.h.b16 %v4343
    %v4516 = vunpack.c.l.b16 %v4344
    %v4517 = vunpack.c.h.b16 %v4344
    %v4518 = vunpack.c.l.b16 %v4345
    %v4519 = vunpack.c.h.b16 %v4345
    %v4520 = vunpack.c.l.b16 %v4346
    %v4521 = vunpack.c.h.b16 %v4346
    %v4522 = vunpack.c.l.b16 %v4347
    %v4523 = vunpack.c.h.b16 %v4347
    %v4524 = vunpack.c.l.b16 %v4348
    %v4525 = vunpack.c.h.b16 %v4348
    %v4526 = vunpack.c.l.b16 %v4349
    %v4527 = vunpack.c.h.b16 %v4349
    %v4528 = vunpack.c.l.b16 %v4350
    %v4529 = vunpack.c.h.b16 %v4350
    %v4530 = vunpack.c.l.b16 %v4351
    %v4531 = vunpack.c.h.b16 %v4351
    %v4532 = vunpack.c.l.b16 %v4352
    %v4533 = vunpack.c.h.b16 %v4352
    %v4534 = vunpack.c.l.b16 %v4353
    %v4535 = vunpack.c.h.b16 %v4353
    %v4536 = vunpack.c.l.b16 %v4354
    %v4537 = vunpack.c.h.b16 %v4354
    %v4538 = vunpack.c.l.b16 %v4355
    %v4539 = vunpack.c.h.b16 %v4355
    %v4540 = vunpack.c.l.b16 %v4356
    %v4541 = vunpack.c.h.b16 %v4356
    %v4542 = vunpack.c.l.b16 %v4357
    %v4543 = vunpack.c.h.b16 %v4357
    %v4544 = vunpack.c.l.b16 %v4358
    %v4545 = vunpack.c.h.b16 %v4358
    %v4546 = vunpack.c.l.b16 %v4359
    %v4547 = vunpack.c.h.b16 %v4359
    %v4548 = vunpack.c.l.b16 %v4360
    %v4549 = vunpack.c.h.b16 %v4360
    %v4550 = vunpack.c.l.b16 %v4361
    %v4551 = vunpack.c.h.b16 %v4361
    %v4552 = vunpack.c.l.b16 %v4362
    %v4553 = vunpack.c.h.b16 %v4362
    %v4554 = vunpack.c.l.b16 %v4363
    %v4555 = vunpack.c.h.b16 %v4363
    %v4556 = vunpack.c.l.b16 %v4364
    %v4557 = vunpack.c.h.b16 %v4364
    %v4558 = vunpack.c.l.b16 %v4365
    %v4559 = vunpack.c.h.b16 %v4365
    %v4560 = vunpack.c.l.b16 %v4366
    %v4561 = vunpack.c.h.b16 %v4366
    %v4562 = vunpack.c.l.b16 %v4367
    %v4563 = vunpack.c.h.b16 %v4367
    %v4564 = vunpack.c.l.b16 %v4368
    %v4565 = vunpack.c.h.b16 %v4368
    %v4566 = vunpack.c.l.b16 %v4369
    %v4567 = vunpack.c.h.b16 %v4369
    %v4568 = vpack.c.b16 %v4442, %v4440
    %v4569 = vpack.c.b16 %v4443, %v4441
    %v4570 = vpack.c.b16 %v4446, %v4444
    %v4571 = vpack.c.b16 %v4447, %v4445
    %v4572 = vpack.c.b16 %v4450, %v4448
    %v4573 = vpack.c.b16 %v4451, %v4449
    %v4574 = vpack.c.b16 %v4454, %v4452
    %v4575 = vpack.c.b16 %v4455, %v4453
    %v4576 = vpack.c.b16 %v4458, %v4456
    %v4577 = vpack.c.b16 %v4459, %v4457
    %v4578 = vpack.c.b16 %v4462, %v4460
    %v4579 = vpack.c.b16 %v4463, %v4461
    %v4580 = vpack.c.b16 %v4466, %v4464
    %v4581 = vpack.c.b16 %v4467, %v4465
    %v4582 = vpack.c.b16 %v4470, %v4468
    %v4583 = vpack.c.b16 %v4471, %v4469
    %v4584 = vpack.c.b16 %v4474, %v4472
    %v4585 = vpack.c.b16 %v4475, %v4473
    %v4586 = vpack.c.b16 %v4478, %v4476
    %v4587 = vpack.c.b16 %v4479, %v4477
    %v4588 = vpack.c.b16 %v4482, %v4480
    %v4589 = vpack.c.b16 %v4483, %v4481
    %v4590 = vpack.c.b16 %v4486, %v4484
    %v4591 = vpack.c.b16 %v4487, %v4485
    %v4592 = vpack.c.b16 %v4490, %v4488
    %v4593 = vpack.c.b16 %v4491, %v4489
    %v4594 = vpack.c.b16 %v4494, %v4492
    %v4595 = vpack.c.b16 %v4495, %v4493
    %v4596 = vpack.c.b16 %v4498, %v4496
    %v4597 = vpack.c.b16 %v4499, %v4497
    %v4598 = vpack.c.b16 %v4502, %v4500
    %v4599 = vpack.c.b16 %v4503, %v4501
    %v4600 = vpack.c.b16 %v4506, %v4504
    %v4601 = vpack.c.b16 %v4507, %v4505
    %v4602 = vpack.c.b16 %v4510, %v4508
    %v4603 = vpack.c.b16 %v4511, %v4509
    %v4604 = vpack.c.b16 %v4514, %v4512
    %v4605 = vpack.c.b16 %v4515, %v4513
    %v4606 = vpack.c.b16 %v4518, %v4516
    %v4607 = vpack.c.b16 %v4519, %v4517
    %v4608 = vpack.c.b16 %v4522, %v4520
    %v4609 = vpack.c.b16 %v4523, %v4521
    %v4610 = vpack.c.b16 %v4526, %v4524
    %v4611 = vpack.c.b16 %v4527, %v4525
    %v4612 = vpack.c.b16 %v4530, %v4528
    %v4613 = vpack.c.b16 %v4531, %v4529
    %v4614 = vpack.c.b16 %v4534, %v4532
    %v4615 = vpack.c.b16 %v4535, %v4533
    %v4616 = vpack.c.b16 %v4538, %v4536
    %v4617 = vpack.c.b16 %v4539, %v4537
    %v4618 = vpack.c.b16 %v4542, %v4540
    %v4619 = vpack.c.b16 %v4543, %v4541
    %v4620 = vpack.c.b16 %v4546, %v4544
    %v4621 = vpack.c.b16 %v4547, %v4545
    %v4622 = vpack.c.b16 %v4550, %v4548
    %v4623 = vpack.c.b16 %v4551, %v4549
    %v4624 = vpack.c.b16 %v4554, %v4552
    %v4625 = vpack.c.b16 %v4555, %v4553
    %v4626 = vpack.c.b16 %v4558, %v4556
    %v4627 = vpack.c.b16 %v4559, %v4557
    %v4628 = vpack.c.b16 %v4562, %v4560
    %v4629 = vpack.c.b16 %v4563, %v4561
    %v4630 = vpack.c.b16 %v4566, %v4564
    %v4631 = vpack.c.b16 %v4567, %v4565
    %4696 = vmatpush.bf16.msra.mxu0 %v4582
    %4697 = vmatpush.bf16.msra.mxu0 %v4580
    %4698 = vmatpush.bf16.msra.mxu0 %v4578
    %4699 = vmatpush.bf16.msra.mxu0 %v4576
    %4700 = vmatpush.bf16.msra.mxu0 %v4574
    %4701 = vmatpush.bf16.msra.mxu0 %v4572
    %4702 = vmatpush.bf16.msra.mxu0 %v4570
    %4703 = vmatpush.bf16.msra.mxu0 %v4568
    %4704 = vmatmul.bf16.gmra.mxu0 %v4178
    %v4705 = vpop.f32.mrf.mxu0
    %v4706 = vadd.f32 %v4372, %v4705
    %v4707 = vpop.f32.mrf.mxu0
    %v4708 = vadd.f32 %v4372, %v4707
    %4709 = vmatmul.bf16.gmra.mxu0 %v4182
    %v4710 = vpop.f32.mrf.mxu0
    %v4711 = vadd.f32 %v4372, %v4710
    %v4712 = vpop.f32.mrf.mxu0
    %v4713 = vadd.f32 %v4372, %v4712
    %4714 = vmatmul.bf16.gmra.mxu0 %v4186
    %v4715 = vpop.f32.mrf.mxu0
    %v4716 = vadd.f32 %v4372, %v4715
    %v4717 = vpop.f32.mrf.mxu0
    %v4718 = vadd.f32 %v4372, %v4717
    %4719 = vmatmul.bf16.gmra.mxu0 %v4190
    %v4720 = vpop.f32.mrf.mxu0
    %v4721 = vadd.f32 %v4372, %v4720
    %v4722 = vpop.f32.mrf.mxu0
    %v4723 = vadd.f32 %v4372, %v4722
    %4724 = vmatmul.bf16.gmra.mxu0 %v4194
    %v4725 = vpop.f32.mrf.mxu0
    %v4726 = vadd.f32 %v4372, %v4725
    %v4727 = vpop.f32.mrf.mxu0
    %v4728 = vadd.f32 %v4372, %v4727
    %4729 = vmatmul.bf16.gmra.mxu0 %v4198
    %v4730 = vpop.f32.mrf.mxu0
    %v4731 = vadd.f32 %v4372, %v4730
    %v4732 = vpop.f32.mrf.mxu0
    %v4733 = vadd.f32 %v4372, %v4732
    %4734 = vmatmul.bf16.gmra.mxu0 %v4202
    %v4735 = vpop.f32.mrf.mxu0
    %v4736 = vadd.f32 %v4372, %v4735
    %v4737 = vpop.f32.mrf.mxu0
    %v4738 = vadd.f32 %v4372, %v4737
    %4739 = vmatmul.bf16.gmra.mxu0 %v4206
    %v4740 = vpop.f32.mrf.mxu0
    %v4741 = vadd.f32 %v4372, %v4740
    %v4742 = vpop.f32.mrf.mxu0
    %v4743 = vadd.f32 %v4372, %v4742
    %4744 = vmatmul.bf16.gmra.mxu0 %v4210
    %v4745 = vpop.f32.mrf.mxu0
    %v4746 = vadd.f32 %v4372, %v4745
    %v4747 = vpop.f32.mrf.mxu0
    %v4748 = vadd.f32 %v4372, %v4747
    %4749 = vmatmul.bf16.gmra.mxu0 %v4214
    %v4750 = vpop.f32.mrf.mxu0
    %v4751 = vadd.f32 %v4372, %v4750
    %v4752 = vpop.f32.mrf.mxu0
    %v4753 = vadd.f32 %v4372, %v4752
    %4754 = vmatmul.bf16.gmra.mxu0 %v4218
    %v4755 = vpop.f32.mrf.mxu0
    %v4756 = vadd.f32 %v4372, %v4755
    %v4757 = vpop.f32.mrf.mxu0
    %v4758 = vadd.f32 %v4372, %v4757
    %4759 = vmatmul.bf16.gmra.mxu0 %v4222
    %v4760 = vpop.f32.mrf.mxu0
    %v4761 = vadd.f32 %v4372, %v4760
    %v4762 = vpop.f32.mrf.mxu0
    %v4763 = vadd.f32 %v4372, %v4762
    %4764 = vmatmul.bf16.gmra.mxu0 %v4226
    %v4765 = vpop.f32.mrf.mxu0
    %v4766 = vadd.f32 %v4372, %v4765
    %v4767 = vpop.f32.mrf.mxu0
    %v4768 = vadd.f32 %v4372, %v4767
    %4769 = vmatmul.bf16.gmra.mxu0 %v4230
    %v4770 = vpop.f32.mrf.mxu0
    %v4771 = vadd.f32 %v4372, %v4770
    %v4772 = vpop.f32.mrf.mxu0
    %v4773 = vadd.f32 %v4372, %v4772
    %4774 = vmatmul.bf16.gmra.mxu0 %v4234
    %v4775 = vpop.f32.mrf.mxu0
    %v4776 = vadd.f32 %v4372, %v4775
    %v4777 = vpop.f32.mrf.mxu0
    %v4778 = vadd.f32 %v4372, %v4777
    %4779 = vmatmul.bf16.gmra.mxu0 %v4238
    %v4780 = vpop.f32.mrf.mxu0
    %v4781 = vadd.f32 %v4372, %v4780
    %v4782 = vpop.f32.mrf.mxu0
    %v4783 = vadd.f32 %v4372, %v4782
    %4784 = vmatmul.bf16.gmra.mxu0 %v4242
    %v4785 = vpop.f32.mrf.mxu0
    %v4786 = vadd.f32 %v4372, %v4785
    %v4787 = vpop.f32.mrf.mxu0
    %v4788 = vadd.f32 %v4372, %v4787
    %4789 = vmatmul.bf16.gmra.mxu0 %v4246
    %v4790 = vpop.f32.mrf.mxu0
    %v4791 = vadd.f32 %v4372, %v4790
    %v4792 = vpop.f32.mrf.mxu0
    %v4793 = vadd.f32 %v4372, %v4792
    %4794 = vmatmul.bf16.gmra.mxu0 %v4250
    %v4795 = vpop.f32.mrf.mxu0
    %v4796 = vadd.f32 %v4372, %v4795
    %v4797 = vpop.f32.mrf.mxu0
    %v4798 = vadd.f32 %v4372, %v4797
    %4799 = vmatmul.bf16.gmra.mxu0 %v4254
    %v4800 = vpop.f32.mrf.mxu0
    %v4801 = vadd.f32 %v4372, %v4800
    %v4802 = vpop.f32.mrf.mxu0
    %v4803 = vadd.f32 %v4372, %v4802
    %4804 = vmatmul.bf16.gmra.mxu0 %v4258
    %v4805 = vpop.f32.mrf.mxu0
    %v4806 = vadd.f32 %v4372, %v4805
    %v4807 = vpop.f32.mrf.mxu0
    %v4808 = vadd.f32 %v4372, %v4807
    %4809 = vmatmul.bf16.gmra.mxu0 %v4262
    %v4810 = vpop.f32.mrf.mxu0
    %v4811 = vadd.f32 %v4372, %v4810
    %v4812 = vpop.f32.mrf.mxu0
    %v4813 = vadd.f32 %v4372, %v4812
    %4814 = vmatmul.bf16.gmra.mxu0 %v4266
    %v4815 = vpop.f32.mrf.mxu0
    %v4816 = vadd.f32 %v4372, %v4815
    %v4817 = vpop.f32.mrf.mxu0
    %v4818 = vadd.f32 %v4372, %v4817
    %4819 = vmatmul.bf16.gmra.mxu0 %v4270
    %v4820 = vpop.f32.mrf.mxu0
    %v4821 = vadd.f32 %v4372, %v4820
    %v4822 = vpop.f32.mrf.mxu0
    %v4823 = vadd.f32 %v4372, %v4822
    %4824 = vmatmul.bf16.gmra.mxu0 %v4274
    %v4825 = vpop.f32.mrf.mxu0
    %v4826 = vadd.f32 %v4372, %v4825
    %v4827 = vpop.f32.mrf.mxu0
    %v4828 = vadd.f32 %v4372, %v4827
    %4829 = vmatmul.bf16.gmra.mxu0 %v4278
    %v4830 = vpop.f32.mrf.mxu0
    %v4831 = vadd.f32 %v4372, %v4830
    %v4832 = vpop.f32.mrf.mxu0
    %v4833 = vadd.f32 %v4372, %v4832
    %4834 = vmatmul.bf16.gmra.mxu0 %v4282
    %v4835 = vpop.f32.mrf.mxu0
    %v4836 = vadd.f32 %v4372, %v4835
    %v4837 = vpop.f32.mrf.mxu0
    %v4838 = vadd.f32 %v4372, %v4837
    %4839 = vmatmul.bf16.gmra.mxu0 %v4286
    %v4840 = vpop.f32.mrf.mxu0
    %v4841 = vadd.f32 %v4372, %v4840
    %v4842 = vpop.f32.mrf.mxu0
    %v4843 = vadd.f32 %v4372, %v4842
    %4844 = vmatmul.bf16.gmra.mxu0 %v4290
    %v4845 = vpop.f32.mrf.mxu0
    %v4846 = vadd.f32 %v4372, %v4845
    %v4847 = vpop.f32.mrf.mxu0
    %v4848 = vadd.f32 %v4372, %v4847
    %4849 = vmatmul.bf16.gmra.mxu0 %v4294
    %v4850 = vpop.f32.mrf.mxu0
    %v4851 = vadd.f32 %v4372, %v4850
    %v4852 = vpop.f32.mrf.mxu0
    %v4853 = vadd.f32 %v4372, %v4852
    %4854 = vmatmul.bf16.gmra.mxu0 %v4298
    %v4855 = vpop.f32.mrf.mxu0
    %v4856 = vadd.f32 %v4372, %v4855
    %v4857 = vpop.f32.mrf.mxu0
    %v4858 = vadd.f32 %v4372, %v4857
    %4859 = vmatmul.bf16.gmra.mxu0 %v4302
    %v4860 = vpop.f32.mrf.mxu0
    %v4861 = vadd.f32 %v4372, %v4860
    %v4862 = vpop.f32.mrf.mxu0
    %v4863 = vadd.f32 %v4372, %v4862
    %4864 = vdwg.mxu0
    %4865 = vmatpush.bf16.msra.mxu0 %v4598
    %4866 = vmatpush.bf16.msra.mxu0 %v4596
    %4867 = vmatpush.bf16.msra.mxu0 %v4594
    %4868 = vmatpush.bf16.msra.mxu0 %v4592
    %4869 = vmatpush.bf16.msra.mxu0 %v4590
    %4870 = vmatpush.bf16.msra.mxu0 %v4588
    %4871 = vmatpush.bf16.msra.mxu0 %v4586
    %4872 = vmatpush.bf16.msra.mxu0 %v4584
    %4873 = vmatmul.bf16.gmra.mxu0 %v4179
    %v4874 = vpop.f32.mrf.mxu0
    %v4875 = vadd.f32 %v4706, %v4874
    %v4876 = vpop.f32.mrf.mxu0
    %v4877 = vadd.f32 %v4708, %v4876
    %4878 = vmatmul.bf16.gmra.mxu0 %v4183
    %v4879 = vpop.f32.mrf.mxu0
    %v4880 = vadd.f32 %v4711, %v4879
    %v4881 = vpop.f32.mrf.mxu0
    %v4882 = vadd.f32 %v4713, %v4881
    %4883 = vmatmul.bf16.gmra.mxu0 %v4187
    %v4884 = vpop.f32.mrf.mxu0
    %v4885 = vadd.f32 %v4716, %v4884
    %v4886 = vpop.f32.mrf.mxu0
    %v4887 = vadd.f32 %v4718, %v4886
    %4888 = vmatmul.bf16.gmra.mxu0 %v4191
    %v4889 = vpop.f32.mrf.mxu0
    %v4890 = vadd.f32 %v4721, %v4889
    %v4891 = vpop.f32.mrf.mxu0
    %v4892 = vadd.f32 %v4723, %v4891
    %4893 = vmatmul.bf16.gmra.mxu0 %v4195
    %v4894 = vpop.f32.mrf.mxu0
    %v4895 = vadd.f32 %v4726, %v4894
    %v4896 = vpop.f32.mrf.mxu0
    %v4897 = vadd.f32 %v4728, %v4896
    %4898 = vmatmul.bf16.gmra.mxu0 %v4199
    %v4899 = vpop.f32.mrf.mxu0
    %v4900 = vadd.f32 %v4731, %v4899
    %v4901 = vpop.f32.mrf.mxu0
    %v4902 = vadd.f32 %v4733, %v4901
    %4903 = vmatmul.bf16.gmra.mxu0 %v4203
    %v4904 = vpop.f32.mrf.mxu0
    %v4905 = vadd.f32 %v4736, %v4904
    %v4906 = vpop.f32.mrf.mxu0
    %v4907 = vadd.f32 %v4738, %v4906
    %4908 = vmatmul.bf16.gmra.mxu0 %v4207
    %v4909 = vpop.f32.mrf.mxu0
    %v4910 = vadd.f32 %v4741, %v4909
    %v4911 = vpop.f32.mrf.mxu0
    %v4912 = vadd.f32 %v4743, %v4911
    %4913 = vmatmul.bf16.gmra.mxu0 %v4211
    %v4914 = vpop.f32.mrf.mxu0
    %v4915 = vadd.f32 %v4746, %v4914
    %v4916 = vpop.f32.mrf.mxu0
    %v4917 = vadd.f32 %v4748, %v4916
    %4918 = vmatmul.bf16.gmra.mxu0 %v4215
    %v4919 = vpop.f32.mrf.mxu0
    %v4920 = vadd.f32 %v4751, %v4919
    %v4921 = vpop.f32.mrf.mxu0
    %v4922 = vadd.f32 %v4753, %v4921
    %4923 = vmatmul.bf16.gmra.mxu0 %v4219
    %v4924 = vpop.f32.mrf.mxu0
    %v4925 = vadd.f32 %v4756, %v4924
    %v4926 = vpop.f32.mrf.mxu0
    %v4927 = vadd.f32 %v4758, %v4926
    %4928 = vmatmul.bf16.gmra.mxu0 %v4223
    %v4929 = vpop.f32.mrf.mxu0
    %v4930 = vadd.f32 %v4761, %v4929
    %v4931 = vpop.f32.mrf.mxu0
    %v4932 = vadd.f32 %v4763, %v4931
    %4933 = vmatmul.bf16.gmra.mxu0 %v4227
    %v4934 = vpop.f32.mrf.mxu0
    %v4935 = vadd.f32 %v4766, %v4934
    %v4936 = vpop.f32.mrf.mxu0
    %v4937 = vadd.f32 %v4768, %v4936
    %4938 = vmatmul.bf16.gmra.mxu0 %v4231
    %v4939 = vpop.f32.mrf.mxu0
    %v4940 = vadd.f32 %v4771, %v4939
    %v4941 = vpop.f32.mrf.mxu0
    %v4942 = vadd.f32 %v4773, %v4941
    %4943 = vmatmul.bf16.gmra.mxu0 %v4235
    %v4944 = vpop.f32.mrf.mxu0
    %v4945 = vadd.f32 %v4776, %v4944
    %v4946 = vpop.f32.mrf.mxu0
    %v4947 = vadd.f32 %v4778, %v4946
    %4948 = vmatmul.bf16.gmra.mxu0 %v4239
    %v4949 = vpop.f32.mrf.mxu0
    %v4950 = vadd.f32 %v4781, %v4949
    %v4951 = vpop.f32.mrf.mxu0
    %v4952 = vadd.f32 %v4783, %v4951
    %4953 = vmatmul.bf16.gmra.mxu0 %v4243
    %v4954 = vpop.f32.mrf.mxu0
    %v4955 = vadd.f32 %v4786, %v4954
    %v4956 = vpop.f32.mrf.mxu0
    %v4957 = vadd.f32 %v4788, %v4956
    %4958 = vmatmul.bf16.gmra.mxu0 %v4247
    %v4959 = vpop.f32.mrf.mxu0
    %v4960 = vadd.f32 %v4791, %v4959
    %v4961 = vpop.f32.mrf.mxu0
    %v4962 = vadd.f32 %v4793, %v4961
    %4963 = vmatmul.bf16.gmra.mxu0 %v4251
    %v4964 = vpop.f32.mrf.mxu0
    %v4965 = vadd.f32 %v4796, %v4964
    %v4966 = vpop.f32.mrf.mxu0
    %v4967 = vadd.f32 %v4798, %v4966
    %4968 = vmatmul.bf16.gmra.mxu0 %v4255
    %v4969 = vpop.f32.mrf.mxu0
    %v4970 = vadd.f32 %v4801, %v4969
    %v4971 = vpop.f32.mrf.mxu0
    %v4972 = vadd.f32 %v4803, %v4971
    %4973 = vmatmul.bf16.gmra.mxu0 %v4259
    %v4974 = vpop.f32.mrf.mxu0
    %v4975 = vadd.f32 %v4806, %v4974
    %v4976 = vpop.f32.mrf.mxu0
    %v4977 = vadd.f32 %v4808, %v4976
    %4978 = vmatmul.bf16.gmra.mxu0 %v4263
    %v4979 = vpop.f32.mrf.mxu0
    %v4980 = vadd.f32 %v4811, %v4979
    %v4981 = vpop.f32.mrf.mxu0
    %v4982 = vadd.f32 %v4813, %v4981
    %4983 = vmatmul.bf16.gmra.mxu0 %v4267
    %v4984 = vpop.f32.mrf.mxu0
    %v4985 = vadd.f32 %v4816, %v4984
    %v4986 = vpop.f32.mrf.mxu0
    %v4987 = vadd.f32 %v4818, %v4986
    %4988 = vmatmul.bf16.gmra.mxu0 %v4271
    %v4989 = vpop.f32.mrf.mxu0
    %v4990 = vadd.f32 %v4821, %v4989
    %v4991 = vpop.f32.mrf.mxu0
    %v4992 = vadd.f32 %v4823, %v4991
    %4993 = vmatmul.bf16.gmra.mxu0 %v4275
    %v4994 = vpop.f32.mrf.mxu0
    %v4995 = vadd.f32 %v4826, %v4994
    %v4996 = vpop.f32.mrf.mxu0
    %v4997 = vadd.f32 %v4828, %v4996
    %4998 = vmatmul.bf16.gmra.mxu0 %v4279
    %v4999 = vpop.f32.mrf.mxu0
    %v5000 = vadd.f32 %v4831, %v4999
    %v5001 = vpop.f32.mrf.mxu0
    %v5002 = vadd.f32 %v4833, %v5001
    %5003 = vmatmul.bf16.gmra.mxu0 %v4283
    %v5004 = vpop.f32.mrf.mxu0
    %v5005 = vadd.f32 %v4836, %v5004
    %v5006 = vpop.f32.mrf.mxu0
    %v5007 = vadd.f32 %v4838, %v5006
    %5008 = vmatmul.bf16.gmra.mxu0 %v4287
    %v5009 = vpop.f32.mrf.mxu0
    %v5010 = vadd.f32 %v4841, %v5009
    %v5011 = vpop.f32.mrf.mxu0
    %v5012 = vadd.f32 %v4843, %v5011
    %5013 = vmatmul.bf16.gmra.mxu0 %v4291
    %v5014 = vpop.f32.mrf.mxu0
    %v5015 = vadd.f32 %v4846, %v5014
    %v5016 = vpop.f32.mrf.mxu0
    %v5017 = vadd.f32 %v4848, %v5016
    %5018 = vmatmul.bf16.gmra.mxu0 %v4295
    %v5019 = vpop.f32.mrf.mxu0
    %v5020 = vadd.f32 %v4851, %v5019
    %v5021 = vpop.f32.mrf.mxu0
    %v5022 = vadd.f32 %v4853, %v5021
    %5023 = vmatmul.bf16.gmra.mxu0 %v4299
    %v5024 = vpop.f32.mrf.mxu0
    %v5025 = vadd.f32 %v4856, %v5024
    %v5026 = vpop.f32.mrf.mxu0
    %v5027 = vadd.f32 %v4858, %v5026
    %5028 = vmatmul.bf16.gmra.mxu0 %v4303
    %v5029 = vpop.f32.mrf.mxu0
    %v5030 = vadd.f32 %v4861, %v5029
    %v5031 = vpop.f32.mrf.mxu0
    %v5032 = vadd.f32 %v4863, %v5031
    %5033 = vdwg.mxu0
    %5034 = vmatpush.bf16.msra.mxu0 %v4614
    %5035 = vmatpush.bf16.msra.mxu0 %v4612
    %5036 = vmatpush.bf16.msra.mxu0 %v4610
    %5037 = vmatpush.bf16.msra.mxu0 %v4608
    %5038 = vmatpush.bf16.msra.mxu0 %v4606
    %5039 = vmatpush.bf16.msra.mxu0 %v4604
    %5040 = vmatpush.bf16.msra.mxu0 %v4602
    %5041 = vmatpush.bf16.msra.mxu0 %v4600
    %5042 = vmatmul.bf16.gmra.mxu0 %v4180
    %v5043 = vpop.f32.mrf.mxu0
    %v5044 = vadd.f32 %v4875, %v5043
    %v5045 = vpop.f32.mrf.mxu0
    %v5046 = vadd.f32 %v4877, %v5045
    %5047 = vmatmul.bf16.gmra.mxu0 %v4184
    %v5048 = vpop.f32.mrf.mxu0
    %v5049 = vadd.f32 %v4880, %v5048
    %v5050 = vpop.f32.mrf.mxu0
    %v5051 = vadd.f32 %v4882, %v5050
    %5052 = vmatmul.bf16.gmra.mxu0 %v4188
    %v5053 = vpop.f32.mrf.mxu0
    %v5054 = vadd.f32 %v4885, %v5053
    %v5055 = vpop.f32.mrf.mxu0
    %v5056 = vadd.f32 %v4887, %v5055
    %5057 = vmatmul.bf16.gmra.mxu0 %v4192
    %v5058 = vpop.f32.mrf.mxu0
    %v5059 = vadd.f32 %v4890, %v5058
    %v5060 = vpop.f32.mrf.mxu0
    %v5061 = vadd.f32 %v4892, %v5060
    %5062 = vmatmul.bf16.gmra.mxu0 %v4196
    %v5063 = vpop.f32.mrf.mxu0
    %v5064 = vadd.f32 %v4895, %v5063
    %v5065 = vpop.f32.mrf.mxu0
    %v5066 = vadd.f32 %v4897, %v5065
    %5067 = vmatmul.bf16.gmra.mxu0 %v4200
    %v5068 = vpop.f32.mrf.mxu0
    %v5069 = vadd.f32 %v4900, %v5068
    %v5070 = vpop.f32.mrf.mxu0
    %v5071 = vadd.f32 %v4902, %v5070
    %5072 = vmatmul.bf16.gmra.mxu0 %v4204
    %v5073 = vpop.f32.mrf.mxu0
    %v5074 = vadd.f32 %v4905, %v5073
    %v5075 = vpop.f32.mrf.mxu0
    %v5076 = vadd.f32 %v4907, %v5075
    %5077 = vmatmul.bf16.gmra.mxu0 %v4208
    %v5078 = vpop.f32.mrf.mxu0
    %v5079 = vadd.f32 %v4910, %v5078
    %v5080 = vpop.f32.mrf.mxu0
    %v5081 = vadd.f32 %v4912, %v5080
    %5082 = vmatmul.bf16.gmra.mxu0 %v4212
    %v5083 = vpop.f32.mrf.mxu0
    %v5084 = vadd.f32 %v4915, %v5083
    %v5085 = vpop.f32.mrf.mxu0
    %v5086 = vadd.f32 %v4917, %v5085
    %5087 = vmatmul.bf16.gmra.mxu0 %v4216
    %v5088 = vpop.f32.mrf.mxu0
    %v5089 = vadd.f32 %v4920, %v5088
    %v5090 = vpop.f32.mrf.mxu0
    %v5091 = vadd.f32 %v4922, %v5090
    %5092 = vmatmul.bf16.gmra.mxu0 %v4220
    %v5093 = vpop.f32.mrf.mxu0
    %v5094 = vadd.f32 %v4925, %v5093
    %v5095 = vpop.f32.mrf.mxu0
    %v5096 = vadd.f32 %v4927, %v5095
    %5097 = vmatmul.bf16.gmra.mxu0 %v4224
    %v5098 = vpop.f32.mrf.mxu0
    %v5099 = vadd.f32 %v4930, %v5098
    %v5100 = vpop.f32.mrf.mxu0
    %v5101 = vadd.f32 %v4932, %v5100
    %5102 = vmatmul.bf16.gmra.mxu0 %v4228
    %v5103 = vpop.f32.mrf.mxu0
    %v5104 = vadd.f32 %v4935, %v5103
    %v5105 = vpop.f32.mrf.mxu0
    %v5106 = vadd.f32 %v4937, %v5105
    %5107 = vmatmul.bf16.gmra.mxu0 %v4232
    %v5108 = vpop.f32.mrf.mxu0
    %v5109 = vadd.f32 %v4940, %v5108
    %v5110 = vpop.f32.mrf.mxu0
    %v5111 = vadd.f32 %v4942, %v5110
    %5112 = vmatmul.bf16.gmra.mxu0 %v4236
    %v5113 = vpop.f32.mrf.mxu0
    %v5114 = vadd.f32 %v4945, %v5113
    %v5115 = vpop.f32.mrf.mxu0
    %v5116 = vadd.f32 %v4947, %v5115
    %5117 = vmatmul.bf16.gmra.mxu0 %v4240
    %v5118 = vpop.f32.mrf.mxu0
    %v5119 = vadd.f32 %v4950, %v5118
    %v5120 = vpop.f32.mrf.mxu0
    %v5121 = vadd.f32 %v4952, %v5120
    %5122 = vmatmul.bf16.gmra.mxu0 %v4244
    %v5123 = vpop.f32.mrf.mxu0
    %v5124 = vadd.f32 %v4955, %v5123
    %v5125 = vpop.f32.mrf.mxu0
    %v5126 = vadd.f32 %v4957, %v5125
    %5127 = vmatmul.bf16.gmra.mxu0 %v4248
    %v5128 = vpop.f32.mrf.mxu0
    %v5129 = vadd.f32 %v4960, %v5128
    %v5130 = vpop.f32.mrf.mxu0
    %v5131 = vadd.f32 %v4962, %v5130
    %5132 = vmatmul.bf16.gmra.mxu0 %v4252
    %v5133 = vpop.f32.mrf.mxu0
    %v5134 = vadd.f32 %v4965, %v5133
    %v5135 = vpop.f32.mrf.mxu0
    %v5136 = vadd.f32 %v4967, %v5135
    %5137 = vmatmul.bf16.gmra.mxu0 %v4256
    %v5138 = vpop.f32.mrf.mxu0
    %v5139 = vadd.f32 %v4970, %v5138
    %v5140 = vpop.f32.mrf.mxu0
    %v5141 = vadd.f32 %v4972, %v5140
    %5142 = vmatmul.bf16.gmra.mxu0 %v4260
    %v5143 = vpop.f32.mrf.mxu0
    %v5144 = vadd.f32 %v4975, %v5143
    %v5145 = vpop.f32.mrf.mxu0
    %v5146 = vadd.f32 %v4977, %v5145
    %5147 = vmatmul.bf16.gmra.mxu0 %v4264
    %v5148 = vpop.f32.mrf.mxu0
    %v5149 = vadd.f32 %v4980, %v5148
    %v5150 = vpop.f32.mrf.mxu0
    %v5151 = vadd.f32 %v4982, %v5150
    %5152 = vmatmul.bf16.gmra.mxu0 %v4268
    %v5153 = vpop.f32.mrf.mxu0
    %v5154 = vadd.f32 %v4985, %v5153
    %v5155 = vpop.f32.mrf.mxu0
    %v5156 = vadd.f32 %v4987, %v5155
    %5157 = vmatmul.bf16.gmra.mxu0 %v4272
    %v5158 = vpop.f32.mrf.mxu0
    %v5159 = vadd.f32 %v4990, %v5158
    %v5160 = vpop.f32.mrf.mxu0
    %v5161 = vadd.f32 %v4992, %v5160
    %5162 = vmatmul.bf16.gmra.mxu0 %v4276
    %v5163 = vpop.f32.mrf.mxu0
    %v5164 = vadd.f32 %v4995, %v5163
    %v5165 = vpop.f32.mrf.mxu0
    %v5166 = vadd.f32 %v4997, %v5165
    %5167 = vmatmul.bf16.gmra.mxu0 %v4280
    %v5168 = vpop.f32.mrf.mxu0
    %v5169 = vadd.f32 %v5000, %v5168
    %v5170 = vpop.f32.mrf.mxu0
    %v5171 = vadd.f32 %v5002, %v5170
    %5172 = vmatmul.bf16.gmra.mxu0 %v4284
    %v5173 = vpop.f32.mrf.mxu0
    %v5174 = vadd.f32 %v5005, %v5173
    %v5175 = vpop.f32.mrf.mxu0
    %v5176 = vadd.f32 %v5007, %v5175
    %5177 = vmatmul.bf16.gmra.mxu0 %v4288
    %v5178 = vpop.f32.mrf.mxu0
    %v5179 = vadd.f32 %v5010, %v5178
    %v5180 = vpop.f32.mrf.mxu0
    %v5181 = vadd.f32 %v5012, %v5180
    %5182 = vmatmul.bf16.gmra.mxu0 %v4292
    %v5183 = vpop.f32.mrf.mxu0
    %v5184 = vadd.f32 %v5015, %v5183
    %v5185 = vpop.f32.mrf.mxu0
    %v5186 = vadd.f32 %v5017, %v5185
    %5187 = vmatmul.bf16.gmra.mxu0 %v4296
    %v5188 = vpop.f32.mrf.mxu0
    %v5189 = vadd.f32 %v5020, %v5188
    %v5190 = vpop.f32.mrf.mxu0
    %v5191 = vadd.f32 %v5022, %v5190
    %5192 = vmatmul.bf16.gmra.mxu0 %v4300
    %v5193 = vpop.f32.mrf.mxu0
    %v5194 = vadd.f32 %v5025, %v5193
    %v5195 = vpop.f32.mrf.mxu0
    %v5196 = vadd.f32 %v5027, %v5195
    %5197 = vmatmul.bf16.gmra.mxu0 %v4304
    %v5198 = vpop.f32.mrf.mxu0
    %v5199 = vadd.f32 %v5030, %v5198
    %v5200 = vpop.f32.mrf.mxu0
    %v5201 = vadd.f32 %v5032, %v5200
    %5202 = vdwg.mxu0
    %5203 = vmatpush.bf16.msra.mxu0 %v4630
    %5204 = vmatpush.bf16.msra.mxu0 %v4628
    %5205 = vmatpush.bf16.msra.mxu0 %v4626
    %5206 = vmatpush.bf16.msra.mxu0 %v4624
    %5207 = vmatpush.bf16.msra.mxu0 %v4622
    %5208 = vmatpush.bf16.msra.mxu0 %v4620
    %5209 = vmatpush.bf16.msra.mxu0 %v4618
    %5210 = vmatpush.bf16.msra.mxu0 %v4616
    %5211 = vmatmul.bf16.gmra.mxu0 %v4181
    %v5212 = vpop.f32.mrf.mxu0
    %v5213 = vadd.f32 %v5044, %v5212
    %v5214 = vpop.f32.mrf.mxu0
    %v5215 = vadd.f32 %v5046, %v5214
    %5216 = vmatmul.bf16.gmra.mxu0 %v4185
    %v5217 = vpop.f32.mrf.mxu0
    %v5218 = vadd.f32 %v5049, %v5217
    %v5219 = vpop.f32.mrf.mxu0
    %v5220 = vadd.f32 %v5051, %v5219
    %5221 = vmatmul.bf16.gmra.mxu0 %v4189
    %v5222 = vpop.f32.mrf.mxu0
    %v5223 = vadd.f32 %v5054, %v5222
    %v5224 = vpop.f32.mrf.mxu0
    %v5225 = vadd.f32 %v5056, %v5224
    %5226 = vmatmul.bf16.gmra.mxu0 %v4193
    %v5227 = vpop.f32.mrf.mxu0
    %v5228 = vadd.f32 %v5059, %v5227
    %v5229 = vpop.f32.mrf.mxu0
    %v5230 = vadd.f32 %v5061, %v5229
    %5231 = vmatmul.bf16.gmra.mxu0 %v4197
    %v5232 = vpop.f32.mrf.mxu0
    %v5233 = vadd.f32 %v5064, %v5232
    %v5234 = vpop.f32.mrf.mxu0
    %v5235 = vadd.f32 %v5066, %v5234
    %5236 = vmatmul.bf16.gmra.mxu0 %v4201
    %v5237 = vpop.f32.mrf.mxu0
    %v5238 = vadd.f32 %v5069, %v5237
    %v5239 = vpop.f32.mrf.mxu0
    %v5240 = vadd.f32 %v5071, %v5239
    %5241 = vmatmul.bf16.gmra.mxu0 %v4205
    %v5242 = vpop.f32.mrf.mxu0
    %v5243 = vadd.f32 %v5074, %v5242
    %v5244 = vpop.f32.mrf.mxu0
    %v5245 = vadd.f32 %v5076, %v5244
    %5246 = vmatmul.bf16.gmra.mxu0 %v4209
    %v5247 = vpop.f32.mrf.mxu0
    %v5248 = vadd.f32 %v5079, %v5247
    %v5249 = vpop.f32.mrf.mxu0
    %v5250 = vadd.f32 %v5081, %v5249
    %5251 = vmatmul.bf16.gmra.mxu0 %v4213
    %v5252 = vpop.f32.mrf.mxu0
    %v5253 = vadd.f32 %v5084, %v5252
    %v5254 = vpop.f32.mrf.mxu0
    %v5255 = vadd.f32 %v5086, %v5254
    %5256 = vmatmul.bf16.gmra.mxu0 %v4217
    %v5257 = vpop.f32.mrf.mxu0
    %v5258 = vadd.f32 %v5089, %v5257
    %v5259 = vpop.f32.mrf.mxu0
    %v5260 = vadd.f32 %v5091, %v5259
    %5261 = vmatmul.bf16.gmra.mxu0 %v4221
    %v5262 = vpop.f32.mrf.mxu0
    %v5263 = vadd.f32 %v5094, %v5262
    %v5264 = vpop.f32.mrf.mxu0
    %v5265 = vadd.f32 %v5096, %v5264
    %5266 = vmatmul.bf16.gmra.mxu0 %v4225
    %v5267 = vpop.f32.mrf.mxu0
    %v5268 = vadd.f32 %v5099, %v5267
    %v5269 = vpop.f32.mrf.mxu0
    %v5270 = vadd.f32 %v5101, %v5269
    %5271 = vmatmul.bf16.gmra.mxu0 %v4229
    %v5272 = vpop.f32.mrf.mxu0
    %v5273 = vadd.f32 %v5104, %v5272
    %v5274 = vpop.f32.mrf.mxu0
    %v5275 = vadd.f32 %v5106, %v5274
    %5276 = vmatmul.bf16.gmra.mxu0 %v4233
    %v5277 = vpop.f32.mrf.mxu0
    %v5278 = vadd.f32 %v5109, %v5277
    %v5279 = vpop.f32.mrf.mxu0
    %v5280 = vadd.f32 %v5111, %v5279
    %5281 = vmatmul.bf16.gmra.mxu0 %v4237
    %v5282 = vpop.f32.mrf.mxu0
    %v5283 = vadd.f32 %v5114, %v5282
    %v5284 = vpop.f32.mrf.mxu0
    %v5285 = vadd.f32 %v5116, %v5284
    %5286 = vmatmul.bf16.gmra.mxu0 %v4241
    %v5287 = vpop.f32.mrf.mxu0
    %v5288 = vadd.f32 %v5119, %v5287
    %v5289 = vpop.f32.mrf.mxu0
    %v5290 = vadd.f32 %v5121, %v5289
    %5291 = vmatmul.bf16.gmra.mxu0 %v4245
    %v5292 = vpop.f32.mrf.mxu0
    %v5293 = vadd.f32 %v5124, %v5292
    %v5294 = vpop.f32.mrf.mxu0
    %v5295 = vadd.f32 %v5126, %v5294
    %5296 = vmatmul.bf16.gmra.mxu0 %v4249
    %v5297 = vpop.f32.mrf.mxu0
    %v5298 = vadd.f32 %v5129, %v5297
    %v5299 = vpop.f32.mrf.mxu0
    %v5300 = vadd.f32 %v5131, %v5299
    %5301 = vmatmul.bf16.gmra.mxu0 %v4253
    %v5302 = vpop.f32.mrf.mxu0
    %v5303 = vadd.f32 %v5134, %v5302
    %v5304 = vpop.f32.mrf.mxu0
    %v5305 = vadd.f32 %v5136, %v5304
    %5306 = vmatmul.bf16.gmra.mxu0 %v4257
    %v5307 = vpop.f32.mrf.mxu0
    %v5308 = vadd.f32 %v5139, %v5307
    %v5309 = vpop.f32.mrf.mxu0
    %v5310 = vadd.f32 %v5141, %v5309
    %5311 = vmatmul.bf16.gmra.mxu0 %v4261
    %v5312 = vpop.f32.mrf.mxu0
    %v5313 = vadd.f32 %v5144, %v5312
    %v5314 = vpop.f32.mrf.mxu0
    %v5315 = vadd.f32 %v5146, %v5314
    %5316 = vmatmul.bf16.gmra.mxu0 %v4265
    %v5317 = vpop.f32.mrf.mxu0
    %v5318 = vadd.f32 %v5149, %v5317
    %v5319 = vpop.f32.mrf.mxu0
    %v5320 = vadd.f32 %v5151, %v5319
    %5321 = vmatmul.bf16.gmra.mxu0 %v4269
    %v5322 = vpop.f32.mrf.mxu0
    %v5323 = vadd.f32 %v5154, %v5322
    %v5324 = vpop.f32.mrf.mxu0
    %v5325 = vadd.f32 %v5156, %v5324
    %5326 = vmatmul.bf16.gmra.mxu0 %v4273
    %v5327 = vpop.f32.mrf.mxu0
    %v5328 = vadd.f32 %v5159, %v5327
    %v5329 = vpop.f32.mrf.mxu0
    %v5330 = vadd.f32 %v5161, %v5329
    %5331 = vmatmul.bf16.gmra.mxu0 %v4277
    %v5332 = vpop.f32.mrf.mxu0
    %v5333 = vadd.f32 %v5164, %v5332
    %v5334 = vpop.f32.mrf.mxu0
    %v5335 = vadd.f32 %v5166, %v5334
    %5336 = vmatmul.bf16.gmra.mxu0 %v4281
    %v5337 = vpop.f32.mrf.mxu0
    %v5338 = vadd.f32 %v5169, %v5337
    %v5339 = vpop.f32.mrf.mxu0
    %v5340 = vadd.f32 %v5171, %v5339
    %5341 = vmatmul.bf16.gmra.mxu0 %v4285
    %v5342 = vpop.f32.mrf.mxu0
    %v5343 = vadd.f32 %v5174, %v5342
    %v5344 = vpop.f32.mrf.mxu0
    %v5345 = vadd.f32 %v5176, %v5344
    %5346 = vmatmul.bf16.gmra.mxu0 %v4289
    %v5347 = vpop.f32.mrf.mxu0
    %v5348 = vadd.f32 %v5179, %v5347
    %v5349 = vpop.f32.mrf.mxu0
    %v5350 = vadd.f32 %v5181, %v5349
    %5351 = vmatmul.bf16.gmra.mxu0 %v4293
    %v5352 = vpop.f32.mrf.mxu0
    %v5353 = vadd.f32 %v5184, %v5352
    %v5354 = vpop.f32.mrf.mxu0
    %v5355 = vadd.f32 %v5186, %v5354
    %5356 = vmatmul.bf16.gmra.mxu0 %v4297
    %v5357 = vpop.f32.mrf.mxu0
    %v5358 = vadd.f32 %v5189, %v5357
    %v5359 = vpop.f32.mrf.mxu0
    %v5360 = vadd.f32 %v5191, %v5359
    %5361 = vmatmul.bf16.gmra.mxu0 %v4301
    %v5362 = vpop.f32.mrf.mxu0
    %v5363 = vadd.f32 %v5194, %v5362
    %v5364 = vpop.f32.mrf.mxu0
    %v5365 = vadd.f32 %v5196, %v5364
    %5366 = vmatmul.bf16.gmra.mxu0 %v4305
    %v5367 = vpop.f32.mrf.mxu0
    %v5368 = vadd.f32 %v5199, %v5367
    %v5369 = vpop.f32.mrf.mxu0
    %v5370 = vadd.f32 %v5201, %v5369
    %5371 = vdwg.mxu0
    %5372 = vmatpush.bf16.msra.mxu0 %v4583
    %5373 = vmatpush.bf16.msra.mxu0 %v4581
    %5374 = vmatpush.bf16.msra.mxu0 %v4579
    %5375 = vmatpush.bf16.msra.mxu0 %v4577
    %5376 = vmatpush.bf16.msra.mxu0 %v4575
    %5377 = vmatpush.bf16.msra.mxu0 %v4573
    %5378 = vmatpush.bf16.msra.mxu0 %v4571
    %5379 = vmatpush.bf16.msra.mxu0 %v4569
    %5380 = vmatmul.bf16.gmra.mxu0 %v4178
    %v5381 = vpop.f32.mrf.mxu0
    %v5382 = vadd.f32 %v4373, %v5381
    %v5383 = vpop.f32.mrf.mxu0
    %v5384 = vadd.f32 %v4373, %v5383
    %5385 = vmatmul.bf16.gmra.mxu0 %v4182
    %v5386 = vpop.f32.mrf.mxu0
    %v5387 = vadd.f32 %v4373, %v5386
    %v5388 = vpop.f32.mrf.mxu0
    %v5389 = vadd.f32 %v4373, %v5388
    %5390 = vmatmul.bf16.gmra.mxu0 %v4186
    %v5391 = vpop.f32.mrf.mxu0
    %v5392 = vadd.f32 %v4373, %v5391
    %v5393 = vpop.f32.mrf.mxu0
    %v5394 = vadd.f32 %v4373, %v5393
    %5395 = vmatmul.bf16.gmra.mxu0 %v4190
    %v5396 = vpop.f32.mrf.mxu0
    %v5397 = vadd.f32 %v4373, %v5396
    %v5398 = vpop.f32.mrf.mxu0
    %v5399 = vadd.f32 %v4373, %v5398
    %5400 = vmatmul.bf16.gmra.mxu0 %v4194
    %v5401 = vpop.f32.mrf.mxu0
    %v5402 = vadd.f32 %v4373, %v5401
    %v5403 = vpop.f32.mrf.mxu0
    %v5404 = vadd.f32 %v4373, %v5403
    %5405 = vmatmul.bf16.gmra.mxu0 %v4198
    %v5406 = vpop.f32.mrf.mxu0
    %v5407 = vadd.f32 %v4373, %v5406
    %v5408 = vpop.f32.mrf.mxu0
    %v5409 = vadd.f32 %v4373, %v5408
    %5410 = vmatmul.bf16.gmra.mxu0 %v4202
    %v5411 = vpop.f32.mrf.mxu0
    %v5412 = vadd.f32 %v4373, %v5411
    %v5413 = vpop.f32.mrf.mxu0
    %v5414 = vadd.f32 %v4373, %v5413
    %5415 = vmatmul.bf16.gmra.mxu0 %v4206
    %v5416 = vpop.f32.mrf.mxu0
    %v5417 = vadd.f32 %v4373, %v5416
    %v5418 = vpop.f32.mrf.mxu0
    %v5419 = vadd.f32 %v4373, %v5418
    %5420 = vmatmul.bf16.gmra.mxu0 %v4210
    %v5421 = vpop.f32.mrf.mxu0
    %v5422 = vadd.f32 %v4373, %v5421
    %v5423 = vpop.f32.mrf.mxu0
    %v5424 = vadd.f32 %v4373, %v5423
    %5425 = vmatmul.bf16.gmra.mxu0 %v4214
    %v5426 = vpop.f32.mrf.mxu0
    %v5427 = vadd.f32 %v4373, %v5426
    %v5428 = vpop.f32.mrf.mxu0
    %v5429 = vadd.f32 %v4373, %v5428
    %5430 = vmatmul.bf16.gmra.mxu0 %v4218
    %v5431 = vpop.f32.mrf.mxu0
    %v5432 = vadd.f32 %v4373, %v5431
    %v5433 = vpop.f32.mrf.mxu0
    %v5434 = vadd.f32 %v4373, %v5433
    %5435 = vmatmul.bf16.gmra.mxu0 %v4222
    %v5436 = vpop.f32.mrf.mxu0
    %v5437 = vadd.f32 %v4373, %v5436
    %v5438 = vpop.f32.mrf.mxu0
    %v5439 = vadd.f32 %v4373, %v5438
    %5440 = vmatmul.bf16.gmra.mxu0 %v4226
    %v5441 = vpop.f32.mrf.mxu0
    %v5442 = vadd.f32 %v4373, %v5441
    %v5443 = vpop.f32.mrf.mxu0
    %v5444 = vadd.f32 %v4373, %v5443
    %5445 = vmatmul.bf16.gmra.mxu0 %v4230
    %v5446 = vpop.f32.mrf.mxu0
    %v5447 = vadd.f32 %v4373, %v5446
    %v5448 = vpop.f32.mrf.mxu0
    %v5449 = vadd.f32 %v4373, %v5448
    %5450 = vmatmul.bf16.gmra.mxu0 %v4234
    %v5451 = vpop.f32.mrf.mxu0
    %v5452 = vadd.f32 %v4373, %v5451
    %v5453 = vpop.f32.mrf.mxu0
    %v5454 = vadd.f32 %v4373, %v5453
    %5455 = vmatmul.bf16.gmra.mxu0 %v4238
    %v5456 = vpop.f32.mrf.mxu0
    %v5457 = vadd.f32 %v4373, %v5456
    %v5458 = vpop.f32.mrf.mxu0
    %v5459 = vadd.f32 %v4373, %v5458
    %5460 = vmatmul.bf16.gmra.mxu0 %v4242
    %v5461 = vpop.f32.mrf.mxu0
    %v5462 = vadd.f32 %v4373, %v5461
    %v5463 = vpop.f32.mrf.mxu0
    %v5464 = vadd.f32 %v4373, %v5463
    %5465 = vmatmul.bf16.gmra.mxu0 %v4246
    %v5466 = vpop.f32.mrf.mxu0
    %v5467 = vadd.f32 %v4373, %v5466
    %v5468 = vpop.f32.mrf.mxu0
    %v5469 = vadd.f32 %v4373, %v5468
    %5470 = vmatmul.bf16.gmra.mxu0 %v4250
    %v5471 = vpop.f32.mrf.mxu0
    %v5472 = vadd.f32 %v4373, %v5471
    %v5473 = vpop.f32.mrf.mxu0
    %v5474 = vadd.f32 %v4373, %v5473
    %5475 = vmatmul.bf16.gmra.mxu0 %v4254
    %v5476 = vpop.f32.mrf.mxu0
    %v5477 = vadd.f32 %v4373, %v5476
    %v5478 = vpop.f32.mrf.mxu0
    %v5479 = vadd.f32 %v4373, %v5478
    %5480 = vmatmul.bf16.gmra.mxu0 %v4258
    %v5481 = vpop.f32.mrf.mxu0
    %v5482 = vadd.f32 %v4373, %v5481
    %v5483 = vpop.f32.mrf.mxu0
    %v5484 = vadd.f32 %v4373, %v5483
    %5485 = vmatmul.bf16.gmra.mxu0 %v4262
    %v5486 = vpop.f32.mrf.mxu0
    %v5487 = vadd.f32 %v4373, %v5486
    %v5488 = vpop.f32.mrf.mxu0
    %v5489 = vadd.f32 %v4373, %v5488
    %5490 = vmatmul.bf16.gmra.mxu0 %v4266
    %v5491 = vpop.f32.mrf.mxu0
    %v5492 = vadd.f32 %v4373, %v5491
    %v5493 = vpop.f32.mrf.mxu0
    %v5494 = vadd.f32 %v4373, %v5493
    %5495 = vmatmul.bf16.gmra.mxu0 %v4270
    %v5496 = vpop.f32.mrf.mxu0
    %v5497 = vadd.f32 %v4373, %v5496
    %v5498 = vpop.f32.mrf.mxu0
    %v5499 = vadd.f32 %v4373, %v5498
    %5500 = vmatmul.bf16.gmra.mxu0 %v4274
    %v5501 = vpop.f32.mrf.mxu0
    %v5502 = vadd.f32 %v4373, %v5501
    %v5503 = vpop.f32.mrf.mxu0
    %v5504 = vadd.f32 %v4373, %v5503
    %5505 = vmatmul.bf16.gmra.mxu0 %v4278
    %v5506 = vpop.f32.mrf.mxu0
    %v5507 = vadd.f32 %v4373, %v5506
    %v5508 = vpop.f32.mrf.mxu0
    %v5509 = vadd.f32 %v4373, %v5508
    %5510 = vmatmul.bf16.gmra.mxu0 %v4282
    %v5511 = vpop.f32.mrf.mxu0
    %v5512 = vadd.f32 %v4373, %v5511
    %v5513 = vpop.f32.mrf.mxu0
    %v5514 = vadd.f32 %v4373, %v5513
    %5515 = vmatmul.bf16.gmra.mxu0 %v4286
    %v5516 = vpop.f32.mrf.mxu0
    %v5517 = vadd.f32 %v4373, %v5516
    %v5518 = vpop.f32.mrf.mxu0
    %v5519 = vadd.f32 %v4373, %v5518
    %5520 = vmatmul.bf16.gmra.mxu0 %v4290
    %v5521 = vpop.f32.mrf.mxu0
    %v5522 = vadd.f32 %v4373, %v5521
    %v5523 = vpop.f32.mrf.mxu0
    %v5524 = vadd.f32 %v4373, %v5523
    %5525 = vmatmul.bf16.gmra.mxu0 %v4294
    %v5526 = vpop.f32.mrf.mxu0
    %v5527 = vadd.f32 %v4373, %v5526
    %v5528 = vpop.f32.mrf.mxu0
    %v5529 = vadd.f32 %v4373, %v5528
    %5530 = vmatmul.bf16.gmra.mxu0 %v4298
    %v5531 = vpop.f32.mrf.mxu0
    %v5532 = vadd.f32 %v4373, %v5531
    %v5533 = vpop.f32.mrf.mxu0
    %v5534 = vadd.f32 %v4373, %v5533
    %5535 = vmatmul.bf16.gmra.mxu0 %v4302
    %v5536 = vpop.f32.mrf.mxu0
    %v5537 = vadd.f32 %v4373, %v5536
    %v5538 = vpop.f32.mrf.mxu0
    %v5539 = vadd.f32 %v4373, %v5538
    %5540 = vdwg.mxu0
    %5541 = vmatpush.bf16.msra.mxu0 %v4599
    %5542 = vmatpush.bf16.msra.mxu0 %v4597
    %5543 = vmatpush.bf16.msra.mxu0 %v4595
    %5544 = vmatpush.bf16.msra.mxu0 %v4593
    %5545 = vmatpush.bf16.msra.mxu0 %v4591
    %5546 = vmatpush.bf16.msra.mxu0 %v4589
    %5547 = vmatpush.bf16.msra.mxu0 %v4587
    %5548 = vmatpush.bf16.msra.mxu0 %v4585
    %5549 = vmatmul.bf16.gmra.mxu0 %v4179
    %v5550 = vpop.f32.mrf.mxu0
    %v5551 = vadd.f32 %v5382, %v5550
    %v5552 = vpop.f32.mrf.mxu0
    %v5553 = vadd.f32 %v5384, %v5552
    %5554 = vmatmul.bf16.gmra.mxu0 %v4183
    %v5555 = vpop.f32.mrf.mxu0
    %v5556 = vadd.f32 %v5387, %v5555
    %v5557 = vpop.f32.mrf.mxu0
    %v5558 = vadd.f32 %v5389, %v5557
    %5559 = vmatmul.bf16.gmra.mxu0 %v4187
    %v5560 = vpop.f32.mrf.mxu0
    %v5561 = vadd.f32 %v5392, %v5560
    %v5562 = vpop.f32.mrf.mxu0
    %v5563 = vadd.f32 %v5394, %v5562
    %5564 = vmatmul.bf16.gmra.mxu0 %v4191
    %v5565 = vpop.f32.mrf.mxu0
    %v5566 = vadd.f32 %v5397, %v5565
    %v5567 = vpop.f32.mrf.mxu0
    %v5568 = vadd.f32 %v5399, %v5567
    %5569 = vmatmul.bf16.gmra.mxu0 %v4195
    %v5570 = vpop.f32.mrf.mxu0
    %v5571 = vadd.f32 %v5402, %v5570
    %v5572 = vpop.f32.mrf.mxu0
    %v5573 = vadd.f32 %v5404, %v5572
    %5574 = vmatmul.bf16.gmra.mxu0 %v4199
    %v5575 = vpop.f32.mrf.mxu0
    %v5576 = vadd.f32 %v5407, %v5575
    %v5577 = vpop.f32.mrf.mxu0
    %v5578 = vadd.f32 %v5409, %v5577
    %5579 = vmatmul.bf16.gmra.mxu0 %v4203
    %v5580 = vpop.f32.mrf.mxu0
    %v5581 = vadd.f32 %v5412, %v5580
    %v5582 = vpop.f32.mrf.mxu0
    %v5583 = vadd.f32 %v5414, %v5582
    %5584 = vmatmul.bf16.gmra.mxu0 %v4207
    %v5585 = vpop.f32.mrf.mxu0
    %v5586 = vadd.f32 %v5417, %v5585
    %v5587 = vpop.f32.mrf.mxu0
    %v5588 = vadd.f32 %v5419, %v5587
    %5589 = vmatmul.bf16.gmra.mxu0 %v4211
    %v5590 = vpop.f32.mrf.mxu0
    %v5591 = vadd.f32 %v5422, %v5590
    %v5592 = vpop.f32.mrf.mxu0
    %v5593 = vadd.f32 %v5424, %v5592
    %5594 = vmatmul.bf16.gmra.mxu0 %v4215
    %v5595 = vpop.f32.mrf.mxu0
    %v5596 = vadd.f32 %v5427, %v5595
    %v5597 = vpop.f32.mrf.mxu0
    %v5598 = vadd.f32 %v5429, %v5597
    %5599 = vmatmul.bf16.gmra.mxu0 %v4219
    %v5600 = vpop.f32.mrf.mxu0
    %v5601 = vadd.f32 %v5432, %v5600
    %v5602 = vpop.f32.mrf.mxu0
    %v5603 = vadd.f32 %v5434, %v5602
    %5604 = vmatmul.bf16.gmra.mxu0 %v4223
    %v5605 = vpop.f32.mrf.mxu0
    %v5606 = vadd.f32 %v5437, %v5605
    %v5607 = vpop.f32.mrf.mxu0
    %v5608 = vadd.f32 %v5439, %v5607
    %5609 = vmatmul.bf16.gmra.mxu0 %v4227
    %v5610 = vpop.f32.mrf.mxu0
    %v5611 = vadd.f32 %v5442, %v5610
    %v5612 = vpop.f32.mrf.mxu0
    %v5613 = vadd.f32 %v5444, %v5612
    %5614 = vmatmul.bf16.gmra.mxu0 %v4231
    %v5615 = vpop.f32.mrf.mxu0
    %v5616 = vadd.f32 %v5447, %v5615
    %v5617 = vpop.f32.mrf.mxu0
    %v5618 = vadd.f32 %v5449, %v5617
    %5619 = vmatmul.bf16.gmra.mxu0 %v4235
    %v5620 = vpop.f32.mrf.mxu0
    %v5621 = vadd.f32 %v5452, %v5620
    %v5622 = vpop.f32.mrf.mxu0
    %v5623 = vadd.f32 %v5454, %v5622
    %5624 = vmatmul.bf16.gmra.mxu0 %v4239
    %v5625 = vpop.f32.mrf.mxu0
    %v5626 = vadd.f32 %v5457, %v5625
    %v5627 = vpop.f32.mrf.mxu0
    %v5628 = vadd.f32 %v5459, %v5627
    %5629 = vmatmul.bf16.gmra.mxu0 %v4243
    %v5630 = vpop.f32.mrf.mxu0
    %v5631 = vadd.f32 %v5462, %v5630
    %v5632 = vpop.f32.mrf.mxu0
    %v5633 = vadd.f32 %v5464, %v5632
    %5634 = vmatmul.bf16.gmra.mxu0 %v4247
    %v5635 = vpop.f32.mrf.mxu0
    %v5636 = vadd.f32 %v5467, %v5635
    %v5637 = vpop.f32.mrf.mxu0
    %v5638 = vadd.f32 %v5469, %v5637
    %5639 = vmatmul.bf16.gmra.mxu0 %v4251
    %v5640 = vpop.f32.mrf.mxu0
    %v5641 = vadd.f32 %v5472, %v5640
    %v5642 = vpop.f32.mrf.mxu0
    %v5643 = vadd.f32 %v5474, %v5642
    %5644 = vmatmul.bf16.gmra.mxu0 %v4255
    %v5645 = vpop.f32.mrf.mxu0
    %v5646 = vadd.f32 %v5477, %v5645
    %v5647 = vpop.f32.mrf.mxu0
    %v5648 = vadd.f32 %v5479, %v5647
    %5649 = vmatmul.bf16.gmra.mxu0 %v4259
    %v5650 = vpop.f32.mrf.mxu0
    %v5651 = vadd.f32 %v5482, %v5650
    %v5652 = vpop.f32.mrf.mxu0
    %v5653 = vadd.f32 %v5484, %v5652
    %5654 = vmatmul.bf16.gmra.mxu0 %v4263
    %v5655 = vpop.f32.mrf.mxu0
    %v5656 = vadd.f32 %v5487, %v5655
    %v5657 = vpop.f32.mrf.mxu0
    %v5658 = vadd.f32 %v5489, %v5657
    %5659 = vmatmul.bf16.gmra.mxu0 %v4267
    %v5660 = vpop.f32.mrf.mxu0
    %v5661 = vadd.f32 %v5492, %v5660
    %v5662 = vpop.f32.mrf.mxu0
    %v5663 = vadd.f32 %v5494, %v5662
    %5664 = vmatmul.bf16.gmra.mxu0 %v4271
    %v5665 = vpop.f32.mrf.mxu0
    %v5666 = vadd.f32 %v5497, %v5665
    %v5667 = vpop.f32.mrf.mxu0
    %v5668 = vadd.f32 %v5499, %v5667
    %5669 = vmatmul.bf16.gmra.mxu0 %v4275
    %v5670 = vpop.f32.mrf.mxu0
    %v5671 = vadd.f32 %v5502, %v5670
    %v5672 = vpop.f32.mrf.mxu0
    %v5673 = vadd.f32 %v5504, %v5672
    %5674 = vmatmul.bf16.gmra.mxu0 %v4279
    %v5675 = vpop.f32.mrf.mxu0
    %v5676 = vadd.f32 %v5507, %v5675
    %v5677 = vpop.f32.mrf.mxu0
    %v5678 = vadd.f32 %v5509, %v5677
    %5679 = vmatmul.bf16.gmra.mxu0 %v4283
    %v5680 = vpop.f32.mrf.mxu0
    %v5681 = vadd.f32 %v5512, %v5680
    %v5682 = vpop.f32.mrf.mxu0
    %v5683 = vadd.f32 %v5514, %v5682
    %5684 = vmatmul.bf16.gmra.mxu0 %v4287
    %v5685 = vpop.f32.mrf.mxu0
    %v5686 = vadd.f32 %v5517, %v5685
    %v5687 = vpop.f32.mrf.mxu0
    %v5688 = vadd.f32 %v5519, %v5687
    %5689 = vmatmul.bf16.gmra.mxu0 %v4291
    %v5690 = vpop.f32.mrf.mxu0
    %v5691 = vadd.f32 %v5522, %v5690
    %v5692 = vpop.f32.mrf.mxu0
    %v5693 = vadd.f32 %v5524, %v5692
    %5694 = vmatmul.bf16.gmra.mxu0 %v4295
    %v5695 = vpop.f32.mrf.mxu0
    %v5696 = vadd.f32 %v5527, %v5695
    %v5697 = vpop.f32.mrf.mxu0
    %v5698 = vadd.f32 %v5529, %v5697
    %5699 = vmatmul.bf16.gmra.mxu0 %v4299
    %v5700 = vpop.f32.mrf.mxu0
    %v5701 = vadd.f32 %v5532, %v5700
    %v5702 = vpop.f32.mrf.mxu0
    %v5703 = vadd.f32 %v5534, %v5702
    %5704 = vmatmul.bf16.gmra.mxu0 %v4303
    %v5705 = vpop.f32.mrf.mxu0
    %v5706 = vadd.f32 %v5537, %v5705
    %v5707 = vpop.f32.mrf.mxu0
    %v5708 = vadd.f32 %v5539, %v5707
    %5709 = vdwg.mxu0
    %5710 = vmatpush.bf16.msra.mxu0 %v4615
    %5711 = vmatpush.bf16.msra.mxu0 %v4613
    %5712 = vmatpush.bf16.msra.mxu0 %v4611
    %5713 = vmatpush.bf16.msra.mxu0 %v4609
    %5714 = vmatpush.bf16.msra.mxu0 %v4607
    %5715 = vmatpush.bf16.msra.mxu0 %v4605
    %5716 = vmatpush.bf16.msra.mxu0 %v4603
    %5717 = vmatpush.bf16.msra.mxu0 %v4601
    %5718 = vmatmul.bf16.gmra.mxu0 %v4180
    %v5719 = vpop.f32.mrf.mxu0
    %v5720 = vadd.f32 %v5551, %v5719
    %v5721 = vpop.f32.mrf.mxu0
    %v5722 = vadd.f32 %v5553, %v5721
    %5723 = vmatmul.bf16.gmra.mxu0 %v4184
    %v5724 = vpop.f32.mrf.mxu0
    %v5725 = vadd.f32 %v5556, %v5724
    %v5726 = vpop.f32.mrf.mxu0
    %v5727 = vadd.f32 %v5558, %v5726
    %5728 = vmatmul.bf16.gmra.mxu0 %v4188
    %v5729 = vpop.f32.mrf.mxu0
    %v5730 = vadd.f32 %v5561, %v5729
    %v5731 = vpop.f32.mrf.mxu0
    %v5732 = vadd.f32 %v5563, %v5731
    %5733 = vmatmul.bf16.gmra.mxu0 %v4192
    %v5734 = vpop.f32.mrf.mxu0
    %v5735 = vadd.f32 %v5566, %v5734
    %v5736 = vpop.f32.mrf.mxu0
    %v5737 = vadd.f32 %v5568, %v5736
    %5738 = vmatmul.bf16.gmra.mxu0 %v4196
    %v5739 = vpop.f32.mrf.mxu0
    %v5740 = vadd.f32 %v5571, %v5739
    %v5741 = vpop.f32.mrf.mxu0
    %v5742 = vadd.f32 %v5573, %v5741
    %5743 = vmatmul.bf16.gmra.mxu0 %v4200
    %v5744 = vpop.f32.mrf.mxu0
    %v5745 = vadd.f32 %v5576, %v5744
    %v5746 = vpop.f32.mrf.mxu0
    %v5747 = vadd.f32 %v5578, %v5746
    %5748 = vmatmul.bf16.gmra.mxu0 %v4204
    %v5749 = vpop.f32.mrf.mxu0
    %v5750 = vadd.f32 %v5581, %v5749
    %v5751 = vpop.f32.mrf.mxu0
    %v5752 = vadd.f32 %v5583, %v5751
    %5753 = vmatmul.bf16.gmra.mxu0 %v4208
    %v5754 = vpop.f32.mrf.mxu0
    %v5755 = vadd.f32 %v5586, %v5754
    %v5756 = vpop.f32.mrf.mxu0
    %v5757 = vadd.f32 %v5588, %v5756
    %5758 = vmatmul.bf16.gmra.mxu0 %v4212
    %v5759 = vpop.f32.mrf.mxu0
    %v5760 = vadd.f32 %v5591, %v5759
    %v5761 = vpop.f32.mrf.mxu0
    %v5762 = vadd.f32 %v5593, %v5761
    %5763 = vmatmul.bf16.gmra.mxu0 %v4216
    %v5764 = vpop.f32.mrf.mxu0
    %v5765 = vadd.f32 %v5596, %v5764
    %v5766 = vpop.f32.mrf.mxu0
    %v5767 = vadd.f32 %v5598, %v5766
    %5768 = vmatmul.bf16.gmra.mxu0 %v4220
    %v5769 = vpop.f32.mrf.mxu0
    %v5770 = vadd.f32 %v5601, %v5769
    %v5771 = vpop.f32.mrf.mxu0
    %v5772 = vadd.f32 %v5603, %v5771
    %5773 = vmatmul.bf16.gmra.mxu0 %v4224
    %v5774 = vpop.f32.mrf.mxu0
    %v5775 = vadd.f32 %v5606, %v5774
    %v5776 = vpop.f32.mrf.mxu0
    %v5777 = vadd.f32 %v5608, %v5776
    %5778 = vmatmul.bf16.gmra.mxu0 %v4228
    %v5779 = vpop.f32.mrf.mxu0
    %v5780 = vadd.f32 %v5611, %v5779
    %v5781 = vpop.f32.mrf.mxu0
    %v5782 = vadd.f32 %v5613, %v5781
    %5783 = vmatmul.bf16.gmra.mxu0 %v4232
    %v5784 = vpop.f32.mrf.mxu0
    %v5785 = vadd.f32 %v5616, %v5784
    %v5786 = vpop.f32.mrf.mxu0
    %v5787 = vadd.f32 %v5618, %v5786
    %5788 = vmatmul.bf16.gmra.mxu0 %v4236
    %v5789 = vpop.f32.mrf.mxu0
    %v5790 = vadd.f32 %v5621, %v5789
    %v5791 = vpop.f32.mrf.mxu0
    %v5792 = vadd.f32 %v5623, %v5791
    %5793 = vmatmul.bf16.gmra.mxu0 %v4240
    %v5794 = vpop.f32.mrf.mxu0
    %v5795 = vadd.f32 %v5626, %v5794
    %v5796 = vpop.f32.mrf.mxu0
    %v5797 = vadd.f32 %v5628, %v5796
    %5798 = vmatmul.bf16.gmra.mxu0 %v4244
    %v5799 = vpop.f32.mrf.mxu0
    %v5800 = vadd.f32 %v5631, %v5799
    %v5801 = vpop.f32.mrf.mxu0
    %v5802 = vadd.f32 %v5633, %v5801
    %5803 = vmatmul.bf16.gmra.mxu0 %v4248
    %v5804 = vpop.f32.mrf.mxu0
    %v5805 = vadd.f32 %v5636, %v5804
    %v5806 = vpop.f32.mrf.mxu0
    %v5807 = vadd.f32 %v5638, %v5806
    %5808 = vmatmul.bf16.gmra.mxu0 %v4252
    %v5809 = vpop.f32.mrf.mxu0
    %v5810 = vadd.f32 %v5641, %v5809
    %v5811 = vpop.f32.mrf.mxu0
    %v5812 = vadd.f32 %v5643, %v5811
    %5813 = vmatmul.bf16.gmra.mxu0 %v4256
    %v5814 = vpop.f32.mrf.mxu0
    %v5815 = vadd.f32 %v5646, %v5814
    %v5816 = vpop.f32.mrf.mxu0
    %v5817 = vadd.f32 %v5648, %v5816
    %5818 = vmatmul.bf16.gmra.mxu0 %v4260
    %v5819 = vpop.f32.mrf.mxu0
    %v5820 = vadd.f32 %v5651, %v5819
    %v5821 = vpop.f32.mrf.mxu0
    %v5822 = vadd.f32 %v5653, %v5821
    %5823 = vmatmul.bf16.gmra.mxu0 %v4264
    %v5824 = vpop.f32.mrf.mxu0
    %v5825 = vadd.f32 %v5656, %v5824
    %v5826 = vpop.f32.mrf.mxu0
    %v5827 = vadd.f32 %v5658, %v5826
    %5828 = vmatmul.bf16.gmra.mxu0 %v4268
    %v5829 = vpop.f32.mrf.mxu0
    %v5830 = vadd.f32 %v5661, %v5829
    %v5831 = vpop.f32.mrf.mxu0
    %v5832 = vadd.f32 %v5663, %v5831
    %5833 = vmatmul.bf16.gmra.mxu0 %v4272
    %v5834 = vpop.f32.mrf.mxu0
    %v5835 = vadd.f32 %v5666, %v5834
    %v5836 = vpop.f32.mrf.mxu0
    %v5837 = vadd.f32 %v5668, %v5836
    %5838 = vmatmul.bf16.gmra.mxu0 %v4276
    %v5839 = vpop.f32.mrf.mxu0
    %v5840 = vadd.f32 %v5671, %v5839
    %v5841 = vpop.f32.mrf.mxu0
    %v5842 = vadd.f32 %v5673, %v5841
    %5843 = vmatmul.bf16.gmra.mxu0 %v4280
    %v5844 = vpop.f32.mrf.mxu0
    %v5845 = vadd.f32 %v5676, %v5844
    %v5846 = vpop.f32.mrf.mxu0
    %v5847 = vadd.f32 %v5678, %v5846
    %5848 = vmatmul.bf16.gmra.mxu0 %v4284
    %v5849 = vpop.f32.mrf.mxu0
    %v5850 = vadd.f32 %v5681, %v5849
    %v5851 = vpop.f32.mrf.mxu0
    %v5852 = vadd.f32 %v5683, %v5851
    %5853 = vmatmul.bf16.gmra.mxu0 %v4288
    %v5854 = vpop.f32.mrf.mxu0
    %v5855 = vadd.f32 %v5686, %v5854
    %v5856 = vpop.f32.mrf.mxu0
    %v5857 = vadd.f32 %v5688, %v5856
    %5858 = vmatmul.bf16.gmra.mxu0 %v4292
    %v5859 = vpop.f32.mrf.mxu0
    %v5860 = vadd.f32 %v5691, %v5859
    %v5861 = vpop.f32.mrf.mxu0
    %v5862 = vadd.f32 %v5693, %v5861
    %5863 = vmatmul.bf16.gmra.mxu0 %v4296
    %v5864 = vpop.f32.mrf.mxu0
    %v5865 = vadd.f32 %v5696, %v5864
    %v5866 = vpop.f32.mrf.mxu0
    %v5867 = vadd.f32 %v5698, %v5866
    %5868 = vmatmul.bf16.gmra.mxu0 %v4300
    %v5869 = vpop.f32.mrf.mxu0
    %v5870 = vadd.f32 %v5701, %v5869
    %v5871 = vpop.f32.mrf.mxu0
    %v5872 = vadd.f32 %v5703, %v5871
    %5873 = vmatmul.bf16.gmra.mxu0 %v4304
    %v5874 = vpop.f32.mrf.mxu0
    %v5875 = vadd.f32 %v5706, %v5874
    %v5876 = vpop.f32.mrf.mxu0
    %v5877 = vadd.f32 %v5708, %v5876
    %5878 = vdwg.mxu0
    %5879 = vmatpush.bf16.msra.mxu0 %v4631
    %5880 = vmatpush.bf16.msra.mxu0 %v4629
    %5881 = vmatpush.bf16.msra.mxu0 %v4627
    %5882 = vmatpush.bf16.msra.mxu0 %v4625
    %5883 = vmatpush.bf16.msra.mxu0 %v4623
    %5884 = vmatpush.bf16.msra.mxu0 %v4621
    %5885 = vmatpush.bf16.msra.mxu0 %v4619
    %5886 = vmatpush.bf16.msra.mxu0 %v4617
    %5887 = vmatmul.bf16.gmra.mxu0 %v4181
    %v5888 = vpop.f32.mrf.mxu0
    %v5889 = vadd.f32 %v5720, %v5888
    %v5890 = vpop.f32.mrf.mxu0
    %v5891 = vadd.f32 %v5722, %v5890
    %5892 = vmatmul.bf16.gmra.mxu0 %v4185
    %v5893 = vpop.f32.mrf.mxu0
    %v5894 = vadd.f32 %v5725, %v5893
    %v5895 = vpop.f32.mrf.mxu0
    %v5896 = vadd.f32 %v5727, %v5895
    %5897 = vmatmul.bf16.gmra.mxu0 %v4189
    %v5898 = vpop.f32.mrf.mxu0
    %v5899 = vadd.f32 %v5730, %v5898
    %v5900 = vpop.f32.mrf.mxu0
    %v5901 = vadd.f32 %v5732, %v5900
    %5902 = vmatmul.bf16.gmra.mxu0 %v4193
    %v5903 = vpop.f32.mrf.mxu0
    %v5904 = vadd.f32 %v5735, %v5903
    %v5905 = vpop.f32.mrf.mxu0
    %v5906 = vadd.f32 %v5737, %v5905
    %5907 = vmatmul.bf16.gmra.mxu0 %v4197
    %v5908 = vpop.f32.mrf.mxu0
    %v5909 = vadd.f32 %v5740, %v5908
    %v5910 = vpop.f32.mrf.mxu0
    %v5911 = vadd.f32 %v5742, %v5910
    %5912 = vmatmul.bf16.gmra.mxu0 %v4201
    %v5913 = vpop.f32.mrf.mxu0
    %v5914 = vadd.f32 %v5745, %v5913
    %v5915 = vpop.f32.mrf.mxu0
    %v5916 = vadd.f32 %v5747, %v5915
    %5917 = vmatmul.bf16.gmra.mxu0 %v4205
    %v5918 = vpop.f32.mrf.mxu0
    %v5919 = vadd.f32 %v5750, %v5918
    %v5920 = vpop.f32.mrf.mxu0
    %v5921 = vadd.f32 %v5752, %v5920
    %5922 = vmatmul.bf16.gmra.mxu0 %v4209
    %v5923 = vpop.f32.mrf.mxu0
    %v5924 = vadd.f32 %v5755, %v5923
    %v5925 = vpop.f32.mrf.mxu0
    %v5926 = vadd.f32 %v5757, %v5925
    %5927 = vmatmul.bf16.gmra.mxu0 %v4213
    %v5928 = vpop.f32.mrf.mxu0
    %v5929 = vadd.f32 %v5760, %v5928
    %v5930 = vpop.f32.mrf.mxu0
    %v5931 = vadd.f32 %v5762, %v5930
    %5932 = vmatmul.bf16.gmra.mxu0 %v4217
    %v5933 = vpop.f32.mrf.mxu0
    %v5934 = vadd.f32 %v5765, %v5933
    %v5935 = vpop.f32.mrf.mxu0
    %v5936 = vadd.f32 %v5767, %v5935
    %5937 = vmatmul.bf16.gmra.mxu0 %v4221
    %v5938 = vpop.f32.mrf.mxu0
    %v5939 = vadd.f32 %v5770, %v5938
    %v5940 = vpop.f32.mrf.mxu0
    %v5941 = vadd.f32 %v5772, %v5940
    %5942 = vmatmul.bf16.gmra.mxu0 %v4225
    %v5943 = vpop.f32.mrf.mxu0
    %v5944 = vadd.f32 %v5775, %v5943
    %v5945 = vpop.f32.mrf.mxu0
    %v5946 = vadd.f32 %v5777, %v5945
    %5947 = vmatmul.bf16.gmra.mxu0 %v4229
    %v5948 = vpop.f32.mrf.mxu0
    %v5949 = vadd.f32 %v5780, %v5948
    %v5950 = vpop.f32.mrf.mxu0
    %v5951 = vadd.f32 %v5782, %v5950
    %5952 = vmatmul.bf16.gmra.mxu0 %v4233
    %v5953 = vpop.f32.mrf.mxu0
    %v5954 = vadd.f32 %v5785, %v5953
    %v5955 = vpop.f32.mrf.mxu0
    %v5956 = vadd.f32 %v5787, %v5955
    %5957 = vmatmul.bf16.gmra.mxu0 %v4237
    %v5958 = vpop.f32.mrf.mxu0
    %v5959 = vadd.f32 %v5790, %v5958
    %v5960 = vpop.f32.mrf.mxu0
    %v5961 = vadd.f32 %v5792, %v5960
    %5962 = vmatmul.bf16.gmra.mxu0 %v4241
    %v5963 = vpop.f32.mrf.mxu0
    %v5964 = vadd.f32 %v5795, %v5963
    %v5965 = vpop.f32.mrf.mxu0
    %v5966 = vadd.f32 %v5797, %v5965
    %5967 = vmatmul.bf16.gmra.mxu0 %v4245
    %v5968 = vpop.f32.mrf.mxu0
    %v5969 = vadd.f32 %v5800, %v5968
    %v5970 = vpop.f32.mrf.mxu0
    %v5971 = vadd.f32 %v5802, %v5970
    %5972 = vmatmul.bf16.gmra.mxu0 %v4249
    %v5973 = vpop.f32.mrf.mxu0
    %v5974 = vadd.f32 %v5805, %v5973
    %v5975 = vpop.f32.mrf.mxu0
    %v5976 = vadd.f32 %v5807, %v5975
    %5977 = vmatmul.bf16.gmra.mxu0 %v4253
    %v5978 = vpop.f32.mrf.mxu0
    %v5979 = vadd.f32 %v5810, %v5978
    %v5980 = vpop.f32.mrf.mxu0
    %v5981 = vadd.f32 %v5812, %v5980
    %5982 = vmatmul.bf16.gmra.mxu0 %v4257
    %v5983 = vpop.f32.mrf.mxu0
    %v5984 = vadd.f32 %v5815, %v5983
    %v5985 = vpop.f32.mrf.mxu0
    %v5986 = vadd.f32 %v5817, %v5985
    %5987 = vmatmul.bf16.gmra.mxu0 %v4261
    %v5988 = vpop.f32.mrf.mxu0
    %v5989 = vadd.f32 %v5820, %v5988
    %v5990 = vpop.f32.mrf.mxu0
    %v5991 = vadd.f32 %v5822, %v5990
    %5992 = vmatmul.bf16.gmra.mxu0 %v4265
    %v5993 = vpop.f32.mrf.mxu0
    %v5994 = vadd.f32 %v5825, %v5993
    %v5995 = vpop.f32.mrf.mxu0
    %v5996 = vadd.f32 %v5827, %v5995
    %5997 = vmatmul.bf16.gmra.mxu0 %v4269
    %v5998 = vpop.f32.mrf.mxu0
    %v5999 = vadd.f32 %v5830, %v5998
    %v6000 = vpop.f32.mrf.mxu0
    %v6001 = vadd.f32 %v5832, %v6000
    %6002 = vmatmul.bf16.gmra.mxu0 %v4273
    %v6003 = vpop.f32.mrf.mxu0
    %v6004 = vadd.f32 %v5835, %v6003
    %v6005 = vpop.f32.mrf.mxu0
    %v6006 = vadd.f32 %v5837, %v6005
    %6007 = vmatmul.bf16.gmra.mxu0 %v4277
    %v6008 = vpop.f32.mrf.mxu0
    %v6009 = vadd.f32 %v5840, %v6008
    %v6010 = vpop.f32.mrf.mxu0
    %v6011 = vadd.f32 %v5842, %v6010
    %6012 = vmatmul.bf16.gmra.mxu0 %v4281
    %v6013 = vpop.f32.mrf.mxu0
    %v6014 = vadd.f32 %v5845, %v6013
    %v6015 = vpop.f32.mrf.mxu0
    %v6016 = vadd.f32 %v5847, %v6015
    %6017 = vmatmul.bf16.gmra.mxu0 %v4285
    %v6018 = vpop.f32.mrf.mxu0
    %v6019 = vadd.f32 %v5850, %v6018
    %v6020 = vpop.f32.mrf.mxu0
    %v6021 = vadd.f32 %v5852, %v6020
    %6022 = vmatmul.bf16.gmra.mxu0 %v4289
    %v6023 = vpop.f32.mrf.mxu0
    %v6024 = vadd.f32 %v5855, %v6023
    %v6025 = vpop.f32.mrf.mxu0
    %v6026 = vadd.f32 %v5857, %v6025
    %6027 = vmatmul.bf16.gmra.mxu0 %v4293
    %v6028 = vpop.f32.mrf.mxu0
    %v6029 = vadd.f32 %v5860, %v6028
    %v6030 = vpop.f32.mrf.mxu0
    %v6031 = vadd.f32 %v5862, %v6030
    %6032 = vmatmul.bf16.gmra.mxu0 %v4297
    %v6033 = vpop.f32.mrf.mxu0
    %v6034 = vadd.f32 %v5865, %v6033
    %v6035 = vpop.f32.mrf.mxu0
    %v6036 = vadd.f32 %v5867, %v6035
    %6037 = vmatmul.bf16.gmra.mxu0 %v4301
    %v6038 = vpop.f32.mrf.mxu0
    %v6039 = vadd.f32 %v5870, %v6038
    %v6040 = vpop.f32.mrf.mxu0
    %v6041 = vadd.f32 %v5872, %v6040
    %6042 = vmatmul.bf16.gmra.mxu0 %v4305
    %v6043 = vpop.f32.mrf.mxu0
    %v6044 = vadd.f32 %v5875, %v6043
    %v6045 = vpop.f32.mrf.mxu0
    %v6046 = vadd.f32 %v5877, %v6045
    %6047 = vdwg.mxu0
    %v6048 = vmax.f32 %v5213, 0.0
    %v6049 = vmax.f32 %v5889, 0.0
    %v6050 = vmax.f32 %v5215, 0.0
    %v6051 = vmax.f32 %v5891, 0.0
    %v6052 = vmax.f32 %v5218, 0.0
    %v6053 = vmax.f32 %v5894, 0.0
    %v6054 = vmax.f32 %v5220, 0.0
    %v6055 = vmax.f32 %v5896, 0.0
    %v6056 = vmax.f32 %v5223, 0.0
    %v6057 = vmax.f32 %v5899, 0.0
    %v6058 = vmax.f32 %v5225, 0.0
    %v6059 = vmax.f32 %v5901, 0.0
    %v6060 = vmax.f32 %v5228, 0.0
    %v6061 = vmax.f32 %v5904, 0.0
    %v6062 = vmax.f32 %v5230, 0.0
    %v6063 = vmax.f32 %v5906, 0.0
    %v6064 = vmax.f32 %v5233, 0.0
    %v6065 = vmax.f32 %v5909, 0.0
    %v6066 = vmax.f32 %v5235, 0.0
    %v6067 = vmax.f32 %v5911, 0.0
    %v6068 = vmax.f32 %v5238, 0.0
    %v6069 = vmax.f32 %v5914, 0.0
    %v6070 = vmax.f32 %v5240, 0.0
    %v6071 = vmax.f32 %v5916, 0.0
    %v6072 = vmax.f32 %v5243, 0.0
    %v6073 = vmax.f32 %v5919, 0.0
    %v6074 = vmax.f32 %v5245, 0.0
    %v6075 = vmax.f32 %v5921, 0.0
    %v6076 = vmax.f32 %v5248, 0.0
    %v6077 = vmax.f32 %v5924, 0.0
    %v6078 = vmax.f32 %v5250, 0.0
    %v6079 = vmax.f32 %v5926, 0.0
    %v6080 = vmax.f32 %v5253, 0.0
    %v6081 = vmax.f32 %v5929, 0.0
    %v6082 = vmax.f32 %v5255, 0.0
    %v6083 = vmax.f32 %v5931, 0.0
    %v6084 = vmax.f32 %v5258, 0.0
    %v6085 = vmax.f32 %v5934, 0.0
    %v6086 = vmax.f32 %v5260, 0.0
    %v6087 = vmax.f32 %v5936, 0.0
    %v6088 = vmax.f32 %v5263, 0.0
    %v6089 = vmax.f32 %v5939, 0.0
    %v6090 = vmax.f32 %v5265, 0.0
    %v6091 = vmax.f32 %v5941, 0.0
    %v6092 = vmax.f32 %v5268, 0.0
    %v6093 = vmax.f32 %v5944, 0.0
    %v6094 = vmax.f32 %v5270, 0.0
    %v6095 = vmax.f32 %v5946, 0.0
    %v6096 = vmax.f32 %v5273, 0.0
    %v6097 = vmax.f32 %v5949, 0.0
    %v6098 = vmax.f32 %v5275, 0.0
    %v6099 = vmax.f32 %v5951, 0.0
    %v6100 = vmax.f32 %v5278, 0.0
    %v6101 = vmax.f32 %v5954, 0.0
    %v6102 = vmax.f32 %v5280, 0.0
    %v6103 = vmax.f32 %v5956, 0.0
    %v6104 = vmax.f32 %v5283, 0.0
    %v6105 = vmax.f32 %v5959, 0.0
    %v6106 = vmax.f32 %v5285, 0.0
    %v6107 = vmax.f32 %v5961, 0.0
    %v6108 = vmax.f32 %v5288, 0.0
    %v6109 = vmax.f32 %v5964, 0.0
    %v6110 = vmax.f32 %v5290, 0.0
    %v6111 = vmax.f32 %v5966, 0.0
    %v6112 = vmax.f32 %v5293, 0.0
    %v6113 = vmax.f32 %v5969, 0.0
    %v6114 = vmax.f32 %v5295, 0.0
    %v6115 = vmax.f32 %v5971, 0.0
    %v6116 = vmax.f32 %v5298, 0.0
    %v6117 = vmax.f32 %v5974, 0.0
    %v6118 = vmax.f32 %v5300, 0.0
    %v6119 = vmax.f32 %v5976, 0.0
    %v6120 = vmax.f32 %v5303, 0.0
    %v6121 = vmax.f32 %v5979, 0.0
    %v6122 = vmax.f32 %v5305, 0.0
    %v6123 = vmax.f32 %v5981, 0.0
    %v6124 = vmax.f32 %v5308, 0.0
    %v6125 = vmax.f32 %v5984, 0.0
    %v6126 = vmax.f32 %v5310, 0.0
    %v6127 = vmax.f32 %v5986, 0.0
    %v6128 = vmax.f32 %v5313, 0.0
    %v6129 = vmax.f32 %v5989, 0.0
    %v6130 = vmax.f32 %v5315, 0.0
    %v6131 = vmax.f32 %v5991, 0.0
    %v6132 = vmax.f32 %v5318, 0.0
    %v6133 = vmax.f32 %v5994, 0.0
    %v6134 = vmax.f32 %v5320, 0.0
    %v6135 = vmax.f32 %v5996, 0.0
    %v6136 = vmax.f32 %v5323, 0.0
    %v6137 = vmax.f32 %v5999, 0.0
    %v6138 = vmax.f32 %v5325, 0.0
    %v6139 = vmax.f32 %v6001, 0.0
    %v6140 = vmax.f32 %v5328, 0.0
    %v6141 = vmax.f32 %v6004, 0.0
    %v6142 = vmax.f32 %v5330, 0.0
    %v6143 = vmax.f32 %v6006, 0.0
    %v6144 = vmax.f32 %v5333, 0.0
    %v6145 = vmax.f32 %v6009, 0.0
    %v6146 = vmax.f32 %v5335, 0.0
    %v6147 = vmax.f32 %v6011, 0.0
    %v6148 = vmax.f32 %v5338, 0.0
    %v6149 = vmax.f32 %v6014, 0.0
    %v6150 = vmax.f32 %v5340, 0.0
    %v6151 = vmax.f32 %v6016, 0.0
    %v6152 = vmax.f32 %v5343, 0.0
    %v6153 = vmax.f32 %v6019, 0.0
    %v6154 = vmax.f32 %v5345, 0.0
    %v6155 = vmax.f32 %v6021, 0.0
    %v6156 = vmax.f32 %v5348, 0.0
    %v6157 = vmax.f32 %v6024, 0.0
    %v6158 = vmax.f32 %v5350, 0.0
    %v6159 = vmax.f32 %v6026, 0.0
    %v6160 = vmax.f32 %v5353, 0.0
    %v6161 = vmax.f32 %v6029, 0.0
    %v6162 = vmax.f32 %v5355, 0.0
    %v6163 = vmax.f32 %v6031, 0.0
    %v6164 = vmax.f32 %v5358, 0.0
    %v6165 = vmax.f32 %v6034, 0.0
    %v6166 = vmax.f32 %v5360, 0.0
    %v6167 = vmax.f32 %v6036, 0.0
    %v6168 = vmax.f32 %v5363, 0.0
    %v6169 = vmax.f32 %v6039, 0.0
    %v6170 = vmax.f32 %v5365, 0.0
    %v6171 = vmax.f32 %v6041, 0.0
    %v6172 = vmax.f32 %v5368, 0.0
    %v6173 = vmax.f32 %v6044, 0.0
    %v6174 = vmax.f32 %v5370, 0.0
    %v6175 = vmax.f32 %v6046, 0.0
    %v6176 = vpack.c.bf16 %v6050, %v6048
    %v6177 = vpack.c.bf16 %v6051, %v6049
    %v6178 = vpack.c.bf16 %v6054, %v6052
    %v6179 = vpack.c.bf16 %v6055, %v6053
    %v6180 = vpack.c.bf16 %v6058, %v6056
    %v6181 = vpack.c.bf16 %v6059, %v6057
    %v6182 = vpack.c.bf16 %v6062, %v6060
    %v6183 = vpack.c.bf16 %v6063, %v6061
    %v6184 = vpack.c.bf16 %v6066, %v6064
    %v6185 = vpack.c.bf16 %v6067, %v6065
    %v6186 = vpack.c.bf16 %v6070, %v6068
    %v6187 = vpack.c.bf16 %v6071, %v6069
    %v6188 = vpack.c.bf16 %v6074, %v6072
    %v6189 = vpack.c.bf16 %v6075, %v6073
    %v6190 = vpack.c.bf16 %v6078, %v6076
    %v6191 = vpack.c.bf16 %v6079, %v6077
    %v6192 = vpack.c.bf16 %v6082, %v6080
    %v6193 = vpack.c.bf16 %v6083, %v6081
    %v6194 = vpack.c.bf16 %v6086, %v6084
    %v6195 = vpack.c.bf16 %v6087, %v6085
    %v6196 = vpack.c.bf16 %v6090, %v6088
    %v6197 = vpack.c.bf16 %v6091, %v6089
    %v6198 = vpack.c.bf16 %v6094, %v6092
    %v6199 = vpack.c.bf16 %v6095, %v6093
    %v6200 = vpack.c.bf16 %v6098, %v6096
    %v6201 = vpack.c.bf16 %v6099, %v6097
    %v6202 = vpack.c.bf16 %v6102, %v6100
    %v6203 = vpack.c.bf16 %v6103, %v6101
    %v6204 = vpack.c.bf16 %v6106, %v6104
    %v6205 = vpack.c.bf16 %v6107, %v6105
    %v6206 = vpack.c.bf16 %v6110, %v6108
    %v6207 = vpack.c.bf16 %v6111, %v6109
    %v6208 = vpack.c.bf16 %v6114, %v6112
    %v6209 = vpack.c.bf16 %v6115, %v6113
    %v6210 = vpack.c.bf16 %v6118, %v6116
    %v6211 = vpack.c.bf16 %v6119, %v6117
    %v6212 = vpack.c.bf16 %v6122, %v6120
    %v6213 = vpack.c.bf16 %v6123, %v6121
    %v6214 = vpack.c.bf16 %v6126, %v6124
    %v6215 = vpack.c.bf16 %v6127, %v6125
    %v6216 = vpack.c.bf16 %v6130, %v6128
    %v6217 = vpack.c.bf16 %v6131, %v6129
    %v6218 = vpack.c.bf16 %v6134, %v6132
    %v6219 = vpack.c.bf16 %v6135, %v6133
    %v6220 = vpack.c.bf16 %v6138, %v6136
    %v6221 = vpack.c.bf16 %v6139, %v6137
    %v6222 = vpack.c.bf16 %v6142, %v6140
    %v6223 = vpack.c.bf16 %v6143, %v6141
    %v6224 = vpack.c.bf16 %v6146, %v6144
    %v6225 = vpack.c.bf16 %v6147, %v6145
    %v6226 = vpack.c.bf16 %v6150, %v6148
    %v6227 = vpack.c.bf16 %v6151, %v6149
    %v6228 = vpack.c.bf16 %v6154, %v6152
    %v6229 = vpack.c.bf16 %v6155, %v6153
    %v6230 = vpack.c.bf16 %v6158, %v6156
    %v6231 = vpack.c.bf16 %v6159, %v6157
    %v6232 = vpack.c.bf16 %v6162, %v6160
    %v6233 = vpack.c.bf16 %v6163, %v6161
    %v6234 = vpack.c.bf16 %v6166, %v6164
    %v6235 = vpack.c.bf16 %v6167, %v6165
    %v6236 = vpack.c.bf16 %v6170, %v6168
    %v6237 = vpack.c.bf16 %v6171, %v6169
    %v6238 = vpack.c.bf16 %v6174, %v6172
    %v6239 = vpack.c.bf16 %v6175, %v6173
    %v6240 = vld [vmem:[#allocation5] sm:$0xff]
    %v6241 = vld [vmem:[#allocation5 + $0x8] sm:$0xff]
    %v6242 = vld [vmem:[#allocation5 + $0x10] sm:$0xff]
    %v6243 = vld [vmem:[#allocation5 + $0x18] sm:$0xff]
    %v6244 = vld [vmem:[#allocation5 + $0x20] sm:$0xff]
    %v6245 = vld [vmem:[#allocation5 + $0x28] sm:$0xff]
    %v6246 = vld [vmem:[#allocation5 + $0x30] sm:$0xff]
    %v6247 = vld [vmem:[#allocation5 + $0x38] sm:$0xff]
    %v6248 = vld [vmem:[#allocation5 + $0x40] sm:$0xff]
    %v6249 = vld [vmem:[#allocation5 + $0x48] sm:$0xff]
    %v6250 = vld [vmem:[#allocation5 + $0x50] sm:$0xff]
    %v6251 = vld [vmem:[#allocation5 + $0x58] sm:$0xff]
    %v6252 = vld [vmem:[#allocation5 + $0x60] sm:$0xff]
    %v6253 = vld [vmem:[#allocation5 + $0x68] sm:$0xff]
    %v6254 = vld [vmem:[#allocation5 + $0x70] sm:$0xff]
    %v6255 = vld [vmem:[#allocation5 + $0x78] sm:$0xff]
    %v6256 = vld [vmem:[#allocation5 + $0x80] sm:$0xff]
    %v6257 = vld [vmem:[#allocation5 + $0x88] sm:$0xff]
    %v6258 = vld [vmem:[#allocation5 + $0x90] sm:$0xff]
    %v6259 = vld [vmem:[#allocation5 + $0x98] sm:$0xff]
    %v6260 = vld [vmem:[#allocation5 + $0xa0] sm:$0xff]
    %v6261 = vld [vmem:[#allocation5 + $0xa8] sm:$0xff]
    %v6262 = vld [vmem:[#allocation5 + $0xb0] sm:$0xff]
    %v6263 = vld [vmem:[#allocation5 + $0xb8] sm:$0xff]
    %v6264 = vld [vmem:[#allocation5 + $0xc0] sm:$0xff]
    %v6265 = vld [vmem:[#allocation5 + $0xc8] sm:$0xff]
    %v6266 = vld [vmem:[#allocation5 + $0xd0] sm:$0xff]
    %v6267 = vld [vmem:[#allocation5 + $0xd8] sm:$0xff]
    %v6268 = vld [vmem:[#allocation5 + $0xe0] sm:$0xff]
    %v6269 = vld [vmem:[#allocation5 + $0xe8] sm:$0xff]
    %v6270 = vld [vmem:[#allocation5 + $0xf0] sm:$0xff]
    %v6271 = vld [vmem:[#allocation5 + $0xf8] sm:$0xff]
    %v6272 = vld [vmem:[#allocation5 + $0x100] sm:$0xff]
    %v6273 = vld [vmem:[#allocation5 + $0x108] sm:$0xff]
    %v6274 = vld [vmem:[#allocation5 + $0x110] sm:$0xff]
    %v6275 = vld [vmem:[#allocation5 + $0x118] sm:$0xff]
    %v6276 = vld [vmem:[#allocation5 + $0x120] sm:$0xff]
    %v6277 = vld [vmem:[#allocation5 + $0x128] sm:$0xff]
    %v6278 = vld [vmem:[#allocation5 + $0x130] sm:$0xff]
    %v6279 = vld [vmem:[#allocation5 + $0x138] sm:$0xff]
    %v6280 = vld [vmem:[#allocation5 + $0x140] sm:$0xff]
    %v6281 = vld [vmem:[#allocation5 + $0x148] sm:$0xff]
    %v6282 = vld [vmem:[#allocation5 + $0x150] sm:$0xff]
    %v6283 = vld [vmem:[#allocation5 + $0x158] sm:$0xff]
    %v6284 = vld [vmem:[#allocation5 + $0x160] sm:$0xff]
    %v6285 = vld [vmem:[#allocation5 + $0x168] sm:$0xff]
    %v6286 = vld [vmem:[#allocation5 + $0x170] sm:$0xff]
    %v6287 = vld [vmem:[#allocation5 + $0x178] sm:$0xff]
    %v6288 = vld [vmem:[#allocation5 + $0x180] sm:$0xff]
    %v6289 = vld [vmem:[#allocation5 + $0x188] sm:$0xff]
    %v6290 = vld [vmem:[#allocation5 + $0x190] sm:$0xff]
    %v6291 = vld [vmem:[#allocation5 + $0x198] sm:$0xff]
    %v6292 = vld [vmem:[#allocation5 + $0x1a0] sm:$0xff]
    %v6293 = vld [vmem:[#allocation5 + $0x1a8] sm:$0xff]
    %v6294 = vld [vmem:[#allocation5 + $0x1b0] sm:$0xff]
    %v6295 = vld [vmem:[#allocation5 + $0x1b8] sm:$0xff]
    %v6296 = vld [vmem:[#allocation5 + $0x1c0] sm:$0xff]
    %v6297 = vld [vmem:[#allocation5 + $0x1c8] sm:$0xff]
    %v6298 = vld [vmem:[#allocation5 + $0x1d0] sm:$0xff]
    %v6299 = vld [vmem:[#allocation5 + $0x1d8] sm:$0xff]
    %v6300 = vld [vmem:[#allocation5 + $0x1e0] sm:$0xff]
    %v6301 = vld [vmem:[#allocation5 + $0x1e8] sm:$0xff]
    %v6302 = vld [vmem:[#allocation5 + $0x1f0] sm:$0xff]
    %v6303 = vld [vmem:[#allocation5 + $0x1f8] sm:$0xff]
    %v6304 = vld [vmem:[#allocation5 + $0x200] sm:$0xff]
    %v6305 = vld [vmem:[#allocation5 + $0x208] sm:$0xff]
    %v6306 = vld [vmem:[#allocation5 + $0x210] sm:$0xff]
    %v6307 = vld [vmem:[#allocation5 + $0x218] sm:$0xff]
    %v6308 = vld [vmem:[#allocation5 + $0x220] sm:$0xff]
    %v6309 = vld [vmem:[#allocation5 + $0x228] sm:$0xff]
    %v6310 = vld [vmem:[#allocation5 + $0x230] sm:$0xff]
    %v6311 = vld [vmem:[#allocation5 + $0x238] sm:$0xff]
    %v6312 = vld [vmem:[#allocation5 + $0x240] sm:$0xff]
    %v6313 = vld [vmem:[#allocation5 + $0x248] sm:$0xff]
    %v6314 = vld [vmem:[#allocation5 + $0x250] sm:$0xff]
    %v6315 = vld [vmem:[#allocation5 + $0x258] sm:$0xff]
    %v6316 = vld [vmem:[#allocation5 + $0x260] sm:$0xff]
    %v6317 = vld [vmem:[#allocation5 + $0x268] sm:$0xff]
    %v6318 = vld [vmem:[#allocation5 + $0x270] sm:$0xff]
    %v6319 = vld [vmem:[#allocation5 + $0x278] sm:$0xff]
    %v6320 = vld [vmem:[#allocation5 + $0x280] sm:$0xff]
    %v6321 = vld [vmem:[#allocation5 + $0x288] sm:$0xff]
    %v6322 = vld [vmem:[#allocation5 + $0x290] sm:$0xff]
    %v6323 = vld [vmem:[#allocation5 + $0x298] sm:$0xff]
    %v6324 = vld [vmem:[#allocation5 + $0x2a0] sm:$0xff]
    %v6325 = vld [vmem:[#allocation5 + $0x2a8] sm:$0xff]
    %v6326 = vld [vmem:[#allocation5 + $0x2b0] sm:$0xff]
    %v6327 = vld [vmem:[#allocation5 + $0x2b8] sm:$0xff]
    %v6328 = vld [vmem:[#allocation5 + $0x2c0] sm:$0xff]
    %v6329 = vld [vmem:[#allocation5 + $0x2c8] sm:$0xff]
    %v6330 = vld [vmem:[#allocation5 + $0x2d0] sm:$0xff]
    %v6331 = vld [vmem:[#allocation5 + $0x2d8] sm:$0xff]
    %v6332 = vld [vmem:[#allocation5 + $0x2e0] sm:$0xff]
    %v6333 = vld [vmem:[#allocation5 + $0x2e8] sm:$0xff]
    %v6334 = vld [vmem:[#allocation5 + $0x2f0] sm:$0xff]
    %v6335 = vld [vmem:[#allocation5 + $0x2f8] sm:$0xff]
    %v6336 = vld [vmem:[#allocation5 + $0x300] sm:$0xff]
    %v6337 = vld [vmem:[#allocation5 + $0x308] sm:$0xff]
    %v6338 = vld [vmem:[#allocation5 + $0x310] sm:$0xff]
    %v6339 = vld [vmem:[#allocation5 + $0x318] sm:$0xff]
    %v6340 = vld [vmem:[#allocation5 + $0x320] sm:$0xff]
    %v6341 = vld [vmem:[#allocation5 + $0x328] sm:$0xff]
    %v6342 = vld [vmem:[#allocation5 + $0x330] sm:$0xff]
    %v6343 = vld [vmem:[#allocation5 + $0x338] sm:$0xff]
    %v6344 = vld [vmem:[#allocation5 + $0x340] sm:$0xff]
    %v6345 = vld [vmem:[#allocation5 + $0x348] sm:$0xff]
    %v6346 = vld [vmem:[#allocation5 + $0x350] sm:$0xff]
    %v6347 = vld [vmem:[#allocation5 + $0x358] sm:$0xff]
    %v6348 = vld [vmem:[#allocation5 + $0x360] sm:$0xff]
    %v6349 = vld [vmem:[#allocation5 + $0x368] sm:$0xff]
    %v6350 = vld [vmem:[#allocation5 + $0x370] sm:$0xff]
    %v6351 = vld [vmem:[#allocation5 + $0x378] sm:$0xff]
    %v6352 = vld [vmem:[#allocation5 + $0x380] sm:$0xff]
    %v6353 = vld [vmem:[#allocation5 + $0x388] sm:$0xff]
    %v6354 = vld [vmem:[#allocation5 + $0x390] sm:$0xff]
    %v6355 = vld [vmem:[#allocation5 + $0x398] sm:$0xff]
    %v6356 = vld [vmem:[#allocation5 + $0x3a0] sm:$0xff]
    %v6357 = vld [vmem:[#allocation5 + $0x3a8] sm:$0xff]
    %v6358 = vld [vmem:[#allocation5 + $0x3b0] sm:$0xff]
    %v6359 = vld [vmem:[#allocation5 + $0x3b8] sm:$0xff]
    %v6360 = vld [vmem:[#allocation5 + $0x3c0] sm:$0xff]
    %v6361 = vld [vmem:[#allocation5 + $0x3c8] sm:$0xff]
    %v6362 = vld [vmem:[#allocation5 + $0x3d0] sm:$0xff]
    %v6363 = vld [vmem:[#allocation5 + $0x3d8] sm:$0xff]
    %v6364 = vld [vmem:[#allocation5 + $0x3e0] sm:$0xff]
    %v6365 = vld [vmem:[#allocation5 + $0x3e8] sm:$0xff]
    %v6366 = vld [vmem:[#allocation5 + $0x3f0] sm:$0xff]
    %v6367 = vld [vmem:[#allocation5 + $0x3f8] sm:$0xff]
    %v6368 = vld [vmem:[%s10] sm:$0xff]
    %v6370 = vperm.slane %v6368, 0
    %v6371 = vperm.slane %v6368, 1
    %v6372 = vperm.slane %v6368, 2
    %v6373 = vperm.slane %v6368, 3
    %v6374 = vperm.slane %v6368, 4
    %v6375 = vperm.slane %v6368, 5
    %v6376 = vperm.slane %v6368, 6
    %v6377 = vperm.slane %v6368, 7
    %v6514 = vunpack.c.l.b16 %v6240
    %v6515 = vunpack.c.h.b16 %v6240
    %v6516 = vunpack.c.l.b16 %v6241
    %v6517 = vunpack.c.h.b16 %v6241
    %v6518 = vunpack.c.l.b16 %v6242
    %v6519 = vunpack.c.h.b16 %v6242
    %v6520 = vunpack.c.l.b16 %v6243
    %v6521 = vunpack.c.h.b16 %v6243
    %v6522 = vunpack.c.l.b16 %v6244
    %v6523 = vunpack.c.h.b16 %v6244
    %v6524 = vunpack.c.l.b16 %v6245
    %v6525 = vunpack.c.h.b16 %v6245
    %v6526 = vunpack.c.l.b16 %v6246
    %v6527 = vunpack.c.h.b16 %v6246
    %v6528 = vunpack.c.l.b16 %v6247
    %v6529 = vunpack.c.h.b16 %v6247
    %v6530 = vunpack.c.l.b16 %v6248
    %v6531 = vunpack.c.h.b16 %v6248
    %v6532 = vunpack.c.l.b16 %v6249
    %v6533 = vunpack.c.h.b16 %v6249
    %v6534 = vunpack.c.l.b16 %v6250
    %v6535 = vunpack.c.h.b16 %v6250
    %v6536 = vunpack.c.l.b16 %v6251
    %v6537 = vunpack.c.h.b16 %v6251
    %v6538 = vunpack.c.l.b16 %v6252
    %v6539 = vunpack.c.h.b16 %v6252
    %v6540 = vunpack.c.l.b16 %v6253
    %v6541 = vunpack.c.h.b16 %v6253
    %v6542 = vunpack.c.l.b16 %v6254
    %v6543 = vunpack.c.h.b16 %v6254
    %v6544 = vunpack.c.l.b16 %v6255
    %v6545 = vunpack.c.h.b16 %v6255
    %v6546 = vunpack.c.l.b16 %v6256
    %v6547 = vunpack.c.h.b16 %v6256
    %v6548 = vunpack.c.l.b16 %v6257
    %v6549 = vunpack.c.h.b16 %v6257
    %v6550 = vunpack.c.l.b16 %v6258
    %v6551 = vunpack.c.h.b16 %v6258
    %v6552 = vunpack.c.l.b16 %v6259
    %v6553 = vunpack.c.h.b16 %v6259
    %v6554 = vunpack.c.l.b16 %v6260
    %v6555 = vunpack.c.h.b16 %v6260
    %v6556 = vunpack.c.l.b16 %v6261
    %v6557 = vunpack.c.h.b16 %v6261
    %v6558 = vunpack.c.l.b16 %v6262
    %v6559 = vunpack.c.h.b16 %v6262
    %v6560 = vunpack.c.l.b16 %v6263
    %v6561 = vunpack.c.h.b16 %v6263
    %v6562 = vunpack.c.l.b16 %v6264
    %v6563 = vunpack.c.h.b16 %v6264
    %v6564 = vunpack.c.l.b16 %v6265
    %v6565 = vunpack.c.h.b16 %v6265
    %v6566 = vunpack.c.l.b16 %v6266
    %v6567 = vunpack.c.h.b16 %v6266
    %v6568 = vunpack.c.l.b16 %v6267
    %v6569 = vunpack.c.h.b16 %v6267
    %v6570 = vunpack.c.l.b16 %v6268
    %v6571 = vunpack.c.h.b16 %v6268
    %v6572 = vunpack.c.l.b16 %v6269
    %v6573 = vunpack.c.h.b16 %v6269
    %v6574 = vunpack.c.l.b16 %v6270
    %v6575 = vunpack.c.h.b16 %v6270
    %v6576 = vunpack.c.l.b16 %v6271
    %v6577 = vunpack.c.h.b16 %v6271
    %v6578 = vunpack.c.l.b16 %v6272
    %v6579 = vunpack.c.h.b16 %v6272
    %v6580 = vunpack.c.l.b16 %v6273
    %v6581 = vunpack.c.h.b16 %v6273
    %v6582 = vunpack.c.l.b16 %v6274
    %v6583 = vunpack.c.h.b16 %v6274
    %v6584 = vunpack.c.l.b16 %v6275
    %v6585 = vunpack.c.h.b16 %v6275
    %v6586 = vunpack.c.l.b16 %v6276
    %v6587 = vunpack.c.h.b16 %v6276
    %v6588 = vunpack.c.l.b16 %v6277
    %v6589 = vunpack.c.h.b16 %v6277
    %v6590 = vunpack.c.l.b16 %v6278
    %v6591 = vunpack.c.h.b16 %v6278
    %v6592 = vunpack.c.l.b16 %v6279
    %v6593 = vunpack.c.h.b16 %v6279
    %v6594 = vunpack.c.l.b16 %v6280
    %v6595 = vunpack.c.h.b16 %v6280
    %v6596 = vunpack.c.l.b16 %v6281
    %v6597 = vunpack.c.h.b16 %v6281
    %v6598 = vunpack.c.l.b16 %v6282
    %v6599 = vunpack.c.h.b16 %v6282
    %v6600 = vunpack.c.l.b16 %v6283
    %v6601 = vunpack.c.h.b16 %v6283
    %v6602 = vunpack.c.l.b16 %v6284
    %v6603 = vunpack.c.h.b16 %v6284
    %v6604 = vunpack.c.l.b16 %v6285
    %v6605 = vunpack.c.h.b16 %v6285
    %v6606 = vunpack.c.l.b16 %v6286
    %v6607 = vunpack.c.h.b16 %v6286
    %v6608 = vunpack.c.l.b16 %v6287
    %v6609 = vunpack.c.h.b16 %v6287
    %v6610 = vunpack.c.l.b16 %v6288
    %v6611 = vunpack.c.h.b16 %v6288
    %v6612 = vunpack.c.l.b16 %v6289
    %v6613 = vunpack.c.h.b16 %v6289
    %v6614 = vunpack.c.l.b16 %v6290
    %v6615 = vunpack.c.h.b16 %v6290
    %v6616 = vunpack.c.l.b16 %v6291
    %v6617 = vunpack.c.h.b16 %v6291
    %v6618 = vunpack.c.l.b16 %v6292
    %v6619 = vunpack.c.h.b16 %v6292
    %v6620 = vunpack.c.l.b16 %v6293
    %v6621 = vunpack.c.h.b16 %v6293
    %v6622 = vunpack.c.l.b16 %v6294
    %v6623 = vunpack.c.h.b16 %v6294
    %v6624 = vunpack.c.l.b16 %v6295
    %v6625 = vunpack.c.h.b16 %v6295
    %v6626 = vunpack.c.l.b16 %v6296
    %v6627 = vunpack.c.h.b16 %v6296
    %v6628 = vunpack.c.l.b16 %v6297
    %v6629 = vunpack.c.h.b16 %v6297
    %v6630 = vunpack.c.l.b16 %v6298
    %v6631 = vunpack.c.h.b16 %v6298
    %v6632 = vunpack.c.l.b16 %v6299
    %v6633 = vunpack.c.h.b16 %v6299
    %v6634 = vunpack.c.l.b16 %v6300
    %v6635 = vunpack.c.h.b16 %v6300
    %v6636 = vunpack.c.l.b16 %v6301
    %v6637 = vunpack.c.h.b16 %v6301
    %v6638 = vunpack.c.l.b16 %v6302
    %v6639 = vunpack.c.h.b16 %v6302
    %v6640 = vunpack.c.l.b16 %v6303
    %v6641 = vunpack.c.h.b16 %v6303
    %v6642 = vunpack.c.l.b16 %v6304
    %v6643 = vunpack.c.h.b16 %v6304
    %v6644 = vunpack.c.l.b16 %v6305
    %v6645 = vunpack.c.h.b16 %v6305
    %v6646 = vunpack.c.l.b16 %v6306
    %v6647 = vunpack.c.h.b16 %v6306
    %v6648 = vunpack.c.l.b16 %v6307
    %v6649 = vunpack.c.h.b16 %v6307
    %v6650 = vunpack.c.l.b16 %v6308
    %v6651 = vunpack.c.h.b16 %v6308
    %v6652 = vunpack.c.l.b16 %v6309
    %v6653 = vunpack.c.h.b16 %v6309
    %v6654 = vunpack.c.l.b16 %v6310
    %v6655 = vunpack.c.h.b16 %v6310
    %v6656 = vunpack.c.l.b16 %v6311
    %v6657 = vunpack.c.h.b16 %v6311
    %v6658 = vunpack.c.l.b16 %v6312
    %v6659 = vunpack.c.h.b16 %v6312
    %v6660 = vunpack.c.l.b16 %v6313
    %v6661 = vunpack.c.h.b16 %v6313
    %v6662 = vunpack.c.l.b16 %v6314
    %v6663 = vunpack.c.h.b16 %v6314
    %v6664 = vunpack.c.l.b16 %v6315
    %v6665 = vunpack.c.h.b16 %v6315
    %v6666 = vunpack.c.l.b16 %v6316
    %v6667 = vunpack.c.h.b16 %v6316
    %v6668 = vunpack.c.l.b16 %v6317
    %v6669 = vunpack.c.h.b16 %v6317
    %v6670 = vunpack.c.l.b16 %v6318
    %v6671 = vunpack.c.h.b16 %v6318
    %v6672 = vunpack.c.l.b16 %v6319
    %v6673 = vunpack.c.h.b16 %v6319
    %v6674 = vunpack.c.l.b16 %v6320
    %v6675 = vunpack.c.h.b16 %v6320
    %v6676 = vunpack.c.l.b16 %v6321
    %v6677 = vunpack.c.h.b16 %v6321
    %v6678 = vunpack.c.l.b16 %v6322
    %v6679 = vunpack.c.h.b16 %v6322
    %v6680 = vunpack.c.l.b16 %v6323
    %v6681 = vunpack.c.h.b16 %v6323
    %v6682 = vunpack.c.l.b16 %v6324
    %v6683 = vunpack.c.h.b16 %v6324
    %v6684 = vunpack.c.l.b16 %v6325
    %v6685 = vunpack.c.h.b16 %v6325
    %v6686 = vunpack.c.l.b16 %v6326
    %v6687 = vunpack.c.h.b16 %v6326
    %v6688 = vunpack.c.l.b16 %v6327
    %v6689 = vunpack.c.h.b16 %v6327
    %v6690 = vunpack.c.l.b16 %v6328
    %v6691 = vunpack.c.h.b16 %v6328
    %v6692 = vunpack.c.l.b16 %v6329
    %v6693 = vunpack.c.h.b16 %v6329
    %v6694 = vunpack.c.l.b16 %v6330
    %v6695 = vunpack.c.h.b16 %v6330
    %v6696 = vunpack.c.l.b16 %v6331
    %v6697 = vunpack.c.h.b16 %v6331
    %v6698 = vunpack.c.l.b16 %v6332
    %v6699 = vunpack.c.h.b16 %v6332
    %v6700 = vunpack.c.l.b16 %v6333
    %v6701 = vunpack.c.h.b16 %v6333
    %v6702 = vunpack.c.l.b16 %v6334
    %v6703 = vunpack.c.h.b16 %v6334
    %v6704 = vunpack.c.l.b16 %v6335
    %v6705 = vunpack.c.h.b16 %v6335
    %v6706 = vunpack.c.l.b16 %v6336
    %v6707 = vunpack.c.h.b16 %v6336
    %v6708 = vunpack.c.l.b16 %v6337
    %v6709 = vunpack.c.h.b16 %v6337
    %v6710 = vunpack.c.l.b16 %v6338
    %v6711 = vunpack.c.h.b16 %v6338
    %v6712 = vunpack.c.l.b16 %v6339
    %v6713 = vunpack.c.h.b16 %v6339
    %v6714 = vunpack.c.l.b16 %v6340
    %v6715 = vunpack.c.h.b16 %v6340
    %v6716 = vunpack.c.l.b16 %v6341
    %v6717 = vunpack.c.h.b16 %v6341
    %v6718 = vunpack.c.l.b16 %v6342
    %v6719 = vunpack.c.h.b16 %v6342
    %v6720 = vunpack.c.l.b16 %v6343
    %v6721 = vunpack.c.h.b16 %v6343
    %v6722 = vunpack.c.l.b16 %v6344
    %v6723 = vunpack.c.h.b16 %v6344
    %v6724 = vunpack.c.l.b16 %v6345
    %v6725 = vunpack.c.h.b16 %v6345
    %v6726 = vunpack.c.l.b16 %v6346
    %v6727 = vunpack.c.h.b16 %v6346
    %v6728 = vunpack.c.l.b16 %v6347
    %v6729 = vunpack.c.h.b16 %v6347
    %v6730 = vunpack.c.l.b16 %v6348
    %v6731 = vunpack.c.h.b16 %v6348
    %v6732 = vunpack.c.l.b16 %v6349
    %v6733 = vunpack.c.h.b16 %v6349
    %v6734 = vunpack.c.l.b16 %v6350
    %v6735 = vunpack.c.h.b16 %v6350
    %v6736 = vunpack.c.l.b16 %v6351
    %v6737 = vunpack.c.h.b16 %v6351
    %v6738 = vunpack.c.l.b16 %v6352
    %v6739 = vunpack.c.h.b16 %v6352
    %v6740 = vunpack.c.l.b16 %v6353
    %v6741 = vunpack.c.h.b16 %v6353
    %v6742 = vunpack.c.l.b16 %v6354
    %v6743 = vunpack.c.h.b16 %v6354
    %v6744 = vunpack.c.l.b16 %v6355
    %v6745 = vunpack.c.h.b16 %v6355
    %v6746 = vunpack.c.l.b16 %v6356
    %v6747 = vunpack.c.h.b16 %v6356
    %v6748 = vunpack.c.l.b16 %v6357
    %v6749 = vunpack.c.h.b16 %v6357
    %v6750 = vunpack.c.l.b16 %v6358
    %v6751 = vunpack.c.h.b16 %v6358
    %v6752 = vunpack.c.l.b16 %v6359
    %v6753 = vunpack.c.h.b16 %v6359
    %v6754 = vunpack.c.l.b16 %v6360
    %v6755 = vunpack.c.h.b16 %v6360
    %v6756 = vunpack.c.l.b16 %v6361
    %v6757 = vunpack.c.h.b16 %v6361
    %v6758 = vunpack.c.l.b16 %v6362
    %v6759 = vunpack.c.h.b16 %v6362
    %v6760 = vunpack.c.l.b16 %v6363
    %v6761 = vunpack.c.h.b16 %v6363
    %v6762 = vunpack.c.l.b16 %v6364
    %v6763 = vunpack.c.h.b16 %v6364
    %v6764 = vunpack.c.l.b16 %v6365
    %v6765 = vunpack.c.h.b16 %v6365
    %v6766 = vunpack.c.l.b16 %v6366
    %v6767 = vunpack.c.h.b16 %v6366
    %v6768 = vunpack.c.l.b16 %v6367
    %v6769 = vunpack.c.h.b16 %v6367
    %v6770 = vpack.c.b16 %v6522, %v6514
    %v6771 = vpack.c.b16 %v6523, %v6515
    %v6772 = vpack.c.b16 %v6524, %v6516
    %v6773 = vpack.c.b16 %v6525, %v6517
    %v6774 = vpack.c.b16 %v6526, %v6518
    %v6775 = vpack.c.b16 %v6527, %v6519
    %v6776 = vpack.c.b16 %v6528, %v6520
    %v6777 = vpack.c.b16 %v6529, %v6521
    %v6778 = vpack.c.b16 %v6538, %v6530
    %v6779 = vpack.c.b16 %v6539, %v6531
    %v6780 = vpack.c.b16 %v6540, %v6532
    %v6781 = vpack.c.b16 %v6541, %v6533
    %v6782 = vpack.c.b16 %v6542, %v6534
    %v6783 = vpack.c.b16 %v6543, %v6535
    %v6784 = vpack.c.b16 %v6544, %v6536
    %v6785 = vpack.c.b16 %v6545, %v6537
    %v6786 = vpack.c.b16 %v6554, %v6546
    %v6787 = vpack.c.b16 %v6555, %v6547
    %v6788 = vpack.c.b16 %v6556, %v6548
    %v6789 = vpack.c.b16 %v6557, %v6549
    %v6790 = vpack.c.b16 %v6558, %v6550
    %v6791 = vpack.c.b16 %v6559, %v6551
    %v6792 = vpack.c.b16 %v6560, %v6552
    %v6793 = vpack.c.b16 %v6561, %v6553
    %v6794 = vpack.c.b16 %v6570, %v6562
    %v6795 = vpack.c.b16 %v6571, %v6563
    %v6796 = vpack.c.b16 %v6572, %v6564
    %v6797 = vpack.c.b16 %v6573, %v6565
    %v6798 = vpack.c.b16 %v6574, %v6566
    %v6799 = vpack.c.b16 %v6575, %v6567
    %v6800 = vpack.c.b16 %v6576, %v6568
    %v6801 = vpack.c.b16 %v6577, %v6569
    %v6802 = vpack.c.b16 %v6586, %v6578
    %v6803 = vpack.c.b16 %v6587, %v6579
    %v6804 = vpack.c.b16 %v6588, %v6580
    %v6805 = vpack.c.b16 %v6589, %v6581
    %v6806 = vpack.c.b16 %v6590, %v6582
    %v6807 = vpack.c.b16 %v6591, %v6583
    %v6808 = vpack.c.b16 %v6592, %v6584
    %v6809 = vpack.c.b16 %v6593, %v6585
    %v6810 = vpack.c.b16 %v6602, %v6594
    %v6811 = vpack.c.b16 %v6603, %v6595
    %v6812 = vpack.c.b16 %v6604, %v6596
    %v6813 = vpack.c.b16 %v6605, %v6597
    %v6814 = vpack.c.b16 %v6606, %v6598
    %v6815 = vpack.c.b16 %v6607, %v6599
    %v6816 = vpack.c.b16 %v6608, %v6600
    %v6817 = vpack.c.b16 %v6609, %v6601
    %v6818 = vpack.c.b16 %v6618, %v6610
    %v6819 = vpack.c.b16 %v6619, %v6611
    %v6820 = vpack.c.b16 %v6620, %v6612
    %v6821 = vpack.c.b16 %v6621, %v6613
    %v6822 = vpack.c.b16 %v6622, %v6614
    %v6823 = vpack.c.b16 %v6623, %v6615
    %v6824 = vpack.c.b16 %v6624, %v6616
    %v6825 = vpack.c.b16 %v6625, %v6617
    %v6826 = vpack.c.b16 %v6634, %v6626
    %v6827 = vpack.c.b16 %v6635, %v6627
    %v6828 = vpack.c.b16 %v6636, %v6628
    %v6829 = vpack.c.b16 %v6637, %v6629
    %v6830 = vpack.c.b16 %v6638, %v6630
    %v6831 = vpack.c.b16 %v6639, %v6631
    %v6832 = vpack.c.b16 %v6640, %v6632
    %v6833 = vpack.c.b16 %v6641, %v6633
    %v6834 = vpack.c.b16 %v6650, %v6642
    %v6835 = vpack.c.b16 %v6651, %v6643
    %v6836 = vpack.c.b16 %v6652, %v6644
    %v6837 = vpack.c.b16 %v6653, %v6645
    %v6838 = vpack.c.b16 %v6654, %v6646
    %v6839 = vpack.c.b16 %v6655, %v6647
    %v6840 = vpack.c.b16 %v6656, %v6648
    %v6841 = vpack.c.b16 %v6657, %v6649
    %v6842 = vpack.c.b16 %v6666, %v6658
    %v6843 = vpack.c.b16 %v6667, %v6659
    %v6844 = vpack.c.b16 %v6668, %v6660
    %v6845 = vpack.c.b16 %v6669, %v6661
    %v6846 = vpack.c.b16 %v6670, %v6662
    %v6847 = vpack.c.b16 %v6671, %v6663
    %v6848 = vpack.c.b16 %v6672, %v6664
    %v6849 = vpack.c.b16 %v6673, %v6665
    %v6850 = vpack.c.b16 %v6682, %v6674
    %v6851 = vpack.c.b16 %v6683, %v6675
    %v6852 = vpack.c.b16 %v6684, %v6676
    %v6853 = vpack.c.b16 %v6685, %v6677
    %v6854 = vpack.c.b16 %v6686, %v6678
    %v6855 = vpack.c.b16 %v6687, %v6679
    %v6856 = vpack.c.b16 %v6688, %v6680
    %v6857 = vpack.c.b16 %v6689, %v6681
    %v6858 = vpack.c.b16 %v6698, %v6690
    %v6859 = vpack.c.b16 %v6699, %v6691
    %v6860 = vpack.c.b16 %v6700, %v6692
    %v6861 = vpack.c.b16 %v6701, %v6693
    %v6862 = vpack.c.b16 %v6702, %v6694
    %v6863 = vpack.c.b16 %v6703, %v6695
    %v6864 = vpack.c.b16 %v6704, %v6696
    %v6865 = vpack.c.b16 %v6705, %v6697
    %v6866 = vpack.c.b16 %v6714, %v6706
    %v6867 = vpack.c.b16 %v6715, %v6707
    %v6868 = vpack.c.b16 %v6716, %v6708
    %v6869 = vpack.c.b16 %v6717, %v6709
    %v6870 = vpack.c.b16 %v6718, %v6710
    %v6871 = vpack.c.b16 %v6719, %v6711
    %v6872 = vpack.c.b16 %v6720, %v6712
    %v6873 = vpack.c.b16 %v6721, %v6713
    %v6874 = vpack.c.b16 %v6730, %v6722
    %v6875 = vpack.c.b16 %v6731, %v6723
    %v6876 = vpack.c.b16 %v6732, %v6724
    %v6877 = vpack.c.b16 %v6733, %v6725
    %v6878 = vpack.c.b16 %v6734, %v6726
    %v6879 = vpack.c.b16 %v6735, %v6727
    %v6880 = vpack.c.b16 %v6736, %v6728
    %v6881 = vpack.c.b16 %v6737, %v6729
    %v6882 = vpack.c.b16 %v6746, %v6738
    %v6883 = vpack.c.b16 %v6747, %v6739
    %v6884 = vpack.c.b16 %v6748, %v6740
    %v6885 = vpack.c.b16 %v6749, %v6741
    %v6886 = vpack.c.b16 %v6750, %v6742
    %v6887 = vpack.c.b16 %v6751, %v6743
    %v6888 = vpack.c.b16 %v6752, %v6744
    %v6889 = vpack.c.b16 %v6753, %v6745
    %v6890 = vpack.c.b16 %v6762, %v6754
    %v6891 = vpack.c.b16 %v6763, %v6755
    %v6892 = vpack.c.b16 %v6764, %v6756
    %v6893 = vpack.c.b16 %v6765, %v6757
    %v6894 = vpack.c.b16 %v6766, %v6758
    %v6895 = vpack.c.b16 %v6767, %v6759
    %v6896 = vpack.c.b16 %v6768, %v6760
    %v6897 = vpack.c.b16 %v6769, %v6761
    %7026 = vmatpush.bf16.msra.mxu0 %v6826
    %7027 = vmatpush.bf16.msra.mxu0 %v6818
    %7028 = vmatpush.bf16.msra.mxu0 %v6810
    %7029 = vmatpush.bf16.msra.mxu0 %v6802
    %7030 = vmatpush.bf16.msra.mxu0 %v6794
    %7031 = vmatpush.bf16.msra.mxu0 %v6786
    %7032 = vmatpush.bf16.msra.mxu0 %v6778
    %7033 = vmatpush.bf16.msra.mxu0 %v6770
    %7034 = vmatmul.bf16.gmra.mxu0 %v6176
    %v7035 = vpop.f32.mrf.mxu0
    %v7036 = vadd.f32 %v6370, %v7035
    %v7037 = vpop.f32.mrf.mxu0
    %v7038 = vadd.f32 %v6370, %v7037
    %7039 = vmatmul.bf16.gmra.mxu0 %v6178
    %v7040 = vpop.f32.mrf.mxu0
    %v7041 = vadd.f32 %v6370, %v7040
    %v7042 = vpop.f32.mrf.mxu0
    %v7043 = vadd.f32 %v6370, %v7042
    %7044 = vmatmul.bf16.gmra.mxu0 %v6180
    %v7045 = vpop.f32.mrf.mxu0
    %v7046 = vadd.f32 %v6370, %v7045
    %v7047 = vpop.f32.mrf.mxu0
    %v7048 = vadd.f32 %v6370, %v7047
    %7049 = vmatmul.bf16.gmra.mxu0 %v6182
    %v7050 = vpop.f32.mrf.mxu0
    %v7051 = vadd.f32 %v6370, %v7050
    %v7052 = vpop.f32.mrf.mxu0
    %v7053 = vadd.f32 %v6370, %v7052
    %7054 = vmatmul.bf16.gmra.mxu0 %v6184
    %v7055 = vpop.f32.mrf.mxu0
    %v7056 = vadd.f32 %v6370, %v7055
    %v7057 = vpop.f32.mrf.mxu0
    %v7058 = vadd.f32 %v6370, %v7057
    %7059 = vmatmul.bf16.gmra.mxu0 %v6186
    %v7060 = vpop.f32.mrf.mxu0
    %v7061 = vadd.f32 %v6370, %v7060
    %v7062 = vpop.f32.mrf.mxu0
    %v7063 = vadd.f32 %v6370, %v7062
    %7064 = vmatmul.bf16.gmra.mxu0 %v6188
    %v7065 = vpop.f32.mrf.mxu0
    %v7066 = vadd.f32 %v6370, %v7065
    %v7067 = vpop.f32.mrf.mxu0
    %v7068 = vadd.f32 %v6370, %v7067
    %7069 = vmatmul.bf16.gmra.mxu0 %v6190
    %v7070 = vpop.f32.mrf.mxu0
    %v7071 = vadd.f32 %v6370, %v7070
    %v7072 = vpop.f32.mrf.mxu0
    %v7073 = vadd.f32 %v6370, %v7072
    %7074 = vmatmul.bf16.gmra.mxu0 %v6192
    %v7075 = vpop.f32.mrf.mxu0
    %v7076 = vadd.f32 %v6370, %v7075
    %v7077 = vpop.f32.mrf.mxu0
    %v7078 = vadd.f32 %v6370, %v7077
    %7079 = vmatmul.bf16.gmra.mxu0 %v6194
    %v7080 = vpop.f32.mrf.mxu0
    %v7081 = vadd.f32 %v6370, %v7080
    %v7082 = vpop.f32.mrf.mxu0
    %v7083 = vadd.f32 %v6370, %v7082
    %7084 = vmatmul.bf16.gmra.mxu0 %v6196
    %v7085 = vpop.f32.mrf.mxu0
    %v7086 = vadd.f32 %v6370, %v7085
    %v7087 = vpop.f32.mrf.mxu0
    %v7088 = vadd.f32 %v6370, %v7087
    %7089 = vmatmul.bf16.gmra.mxu0 %v6198
    %v7090 = vpop.f32.mrf.mxu0
    %v7091 = vadd.f32 %v6370, %v7090
    %v7092 = vpop.f32.mrf.mxu0
    %v7093 = vadd.f32 %v6370, %v7092
    %7094 = vmatmul.bf16.gmra.mxu0 %v6200
    %v7095 = vpop.f32.mrf.mxu0
    %v7096 = vadd.f32 %v6370, %v7095
    %v7097 = vpop.f32.mrf.mxu0
    %v7098 = vadd.f32 %v6370, %v7097
    %7099 = vmatmul.bf16.gmra.mxu0 %v6202
    %v7100 = vpop.f32.mrf.mxu0
    %v7101 = vadd.f32 %v6370, %v7100
    %v7102 = vpop.f32.mrf.mxu0
    %v7103 = vadd.f32 %v6370, %v7102
    %7104 = vmatmul.bf16.gmra.mxu0 %v6204
    %v7105 = vpop.f32.mrf.mxu0
    %v7106 = vadd.f32 %v6370, %v7105
    %v7107 = vpop.f32.mrf.mxu0
    %v7108 = vadd.f32 %v6370, %v7107
    %7109 = vmatmul.bf16.gmra.mxu0 %v6206
    %v7110 = vpop.f32.mrf.mxu0
    %v7111 = vadd.f32 %v6370, %v7110
    %v7112 = vpop.f32.mrf.mxu0
    %v7113 = vadd.f32 %v6370, %v7112
    %7114 = vmatmul.bf16.gmra.mxu0 %v6208
    %v7115 = vpop.f32.mrf.mxu0
    %v7116 = vadd.f32 %v6370, %v7115
    %v7117 = vpop.f32.mrf.mxu0
    %v7118 = vadd.f32 %v6370, %v7117
    %7119 = vmatmul.bf16.gmra.mxu0 %v6210
    %v7120 = vpop.f32.mrf.mxu0
    %v7121 = vadd.f32 %v6370, %v7120
    %v7122 = vpop.f32.mrf.mxu0
    %v7123 = vadd.f32 %v6370, %v7122
    %7124 = vmatmul.bf16.gmra.mxu0 %v6212
    %v7125 = vpop.f32.mrf.mxu0
    %v7126 = vadd.f32 %v6370, %v7125
    %v7127 = vpop.f32.mrf.mxu0
    %v7128 = vadd.f32 %v6370, %v7127
    %7129 = vmatmul.bf16.gmra.mxu0 %v6214
    %v7130 = vpop.f32.mrf.mxu0
    %v7131 = vadd.f32 %v6370, %v7130
    %v7132 = vpop.f32.mrf.mxu0
    %v7133 = vadd.f32 %v6370, %v7132
    %7134 = vmatmul.bf16.gmra.mxu0 %v6216
    %v7135 = vpop.f32.mrf.mxu0
    %v7136 = vadd.f32 %v6370, %v7135
    %v7137 = vpop.f32.mrf.mxu0
    %v7138 = vadd.f32 %v6370, %v7137
    %7139 = vmatmul.bf16.gmra.mxu0 %v6218
    %v7140 = vpop.f32.mrf.mxu0
    %v7141 = vadd.f32 %v6370, %v7140
    %v7142 = vpop.f32.mrf.mxu0
    %v7143 = vadd.f32 %v6370, %v7142
    %7144 = vmatmul.bf16.gmra.mxu0 %v6220
    %v7145 = vpop.f32.mrf.mxu0
    %v7146 = vadd.f32 %v6370, %v7145
    %v7147 = vpop.f32.mrf.mxu0
    %v7148 = vadd.f32 %v6370, %v7147
    %7149 = vmatmul.bf16.gmra.mxu0 %v6222
    %v7150 = vpop.f32.mrf.mxu0
    %v7151 = vadd.f32 %v6370, %v7150
    %v7152 = vpop.f32.mrf.mxu0
    %v7153 = vadd.f32 %v6370, %v7152
    %7154 = vmatmul.bf16.gmra.mxu0 %v6224
    %v7155 = vpop.f32.mrf.mxu0
    %v7156 = vadd.f32 %v6370, %v7155
    %v7157 = vpop.f32.mrf.mxu0
    %v7158 = vadd.f32 %v6370, %v7157
    %7159 = vmatmul.bf16.gmra.mxu0 %v6226
    %v7160 = vpop.f32.mrf.mxu0
    %v7161 = vadd.f32 %v6370, %v7160
    %v7162 = vpop.f32.mrf.mxu0
    %v7163 = vadd.f32 %v6370, %v7162
    %7164 = vmatmul.bf16.gmra.mxu0 %v6228
    %v7165 = vpop.f32.mrf.mxu0
    %v7166 = vadd.f32 %v6370, %v7165
    %v7167 = vpop.f32.mrf.mxu0
    %v7168 = vadd.f32 %v6370, %v7167
    %7169 = vmatmul.bf16.gmra.mxu0 %v6230
    %v7170 = vpop.f32.mrf.mxu0
    %v7171 = vadd.f32 %v6370, %v7170
    %v7172 = vpop.f32.mrf.mxu0
    %v7173 = vadd.f32 %v6370, %v7172
    %7174 = vmatmul.bf16.gmra.mxu0 %v6232
    %v7175 = vpop.f32.mrf.mxu0
    %v7176 = vadd.f32 %v6370, %v7175
    %v7177 = vpop.f32.mrf.mxu0
    %v7178 = vadd.f32 %v6370, %v7177
    %7179 = vmatmul.bf16.gmra.mxu0 %v6234
    %v7180 = vpop.f32.mrf.mxu0
    %v7181 = vadd.f32 %v6370, %v7180
    %v7182 = vpop.f32.mrf.mxu0
    %v7183 = vadd.f32 %v6370, %v7182
    %7184 = vmatmul.bf16.gmra.mxu0 %v6236
    %v7185 = vpop.f32.mrf.mxu0
    %v7186 = vadd.f32 %v6370, %v7185
    %v7187 = vpop.f32.mrf.mxu0
    %v7188 = vadd.f32 %v6370, %v7187
    %7189 = vmatmul.bf16.gmra.mxu0 %v6238
    %v7190 = vpop.f32.mrf.mxu0
    %v7191 = vadd.f32 %v6370, %v7190
    %v7192 = vpop.f32.mrf.mxu0
    %v7193 = vadd.f32 %v6370, %v7192
    %7194 = vdwg.mxu0
    %7195 = vmatpush.bf16.msra.mxu0 %v6890
    %7196 = vmatpush.bf16.msra.mxu0 %v6882
    %7197 = vmatpush.bf16.msra.mxu0 %v6874
    %7198 = vmatpush.bf16.msra.mxu0 %v6866
    %7199 = vmatpush.bf16.msra.mxu0 %v6858
    %7200 = vmatpush.bf16.msra.mxu0 %v6850
    %7201 = vmatpush.bf16.msra.mxu0 %v6842
    %7202 = vmatpush.bf16.msra.mxu0 %v6834
    %7203 = vmatmul.bf16.gmra.mxu0 %v6177
    %v7204 = vpop.f32.mrf.mxu0
    %v7205 = vadd.f32 %v7036, %v7204
    %v7206 = vpop.f32.mrf.mxu0
    %v7207 = vadd.f32 %v7038, %v7206
    %7208 = vmatmul.bf16.gmra.mxu0 %v6179
    %v7209 = vpop.f32.mrf.mxu0
    %v7210 = vadd.f32 %v7041, %v7209
    %v7211 = vpop.f32.mrf.mxu0
    %v7212 = vadd.f32 %v7043, %v7211
    %7213 = vmatmul.bf16.gmra.mxu0 %v6181
    %v7214 = vpop.f32.mrf.mxu0
    %v7215 = vadd.f32 %v7046, %v7214
    %v7216 = vpop.f32.mrf.mxu0
    %v7217 = vadd.f32 %v7048, %v7216
    %7218 = vmatmul.bf16.gmra.mxu0 %v6183
    %v7219 = vpop.f32.mrf.mxu0
    %v7220 = vadd.f32 %v7051, %v7219
    %v7221 = vpop.f32.mrf.mxu0
    %v7222 = vadd.f32 %v7053, %v7221
    %7223 = vmatmul.bf16.gmra.mxu0 %v6185
    %v7224 = vpop.f32.mrf.mxu0
    %v7225 = vadd.f32 %v7056, %v7224
    %v7226 = vpop.f32.mrf.mxu0
    %v7227 = vadd.f32 %v7058, %v7226
    %7228 = vmatmul.bf16.gmra.mxu0 %v6187
    %v7229 = vpop.f32.mrf.mxu0
    %v7230 = vadd.f32 %v7061, %v7229
    %v7231 = vpop.f32.mrf.mxu0
    %v7232 = vadd.f32 %v7063, %v7231
    %7233 = vmatmul.bf16.gmra.mxu0 %v6189
    %v7234 = vpop.f32.mrf.mxu0
    %v7235 = vadd.f32 %v7066, %v7234
    %v7236 = vpop.f32.mrf.mxu0
    %v7237 = vadd.f32 %v7068, %v7236
    %7238 = vmatmul.bf16.gmra.mxu0 %v6191
    %v7239 = vpop.f32.mrf.mxu0
    %v7240 = vadd.f32 %v7071, %v7239
    %v7241 = vpop.f32.mrf.mxu0
    %v7242 = vadd.f32 %v7073, %v7241
    %7243 = vmatmul.bf16.gmra.mxu0 %v6193
    %v7244 = vpop.f32.mrf.mxu0
    %v7245 = vadd.f32 %v7076, %v7244
    %v7246 = vpop.f32.mrf.mxu0
    %v7247 = vadd.f32 %v7078, %v7246
    %7248 = vmatmul.bf16.gmra.mxu0 %v6195
    %v7249 = vpop.f32.mrf.mxu0
    %v7250 = vadd.f32 %v7081, %v7249
    %v7251 = vpop.f32.mrf.mxu0
    %v7252 = vadd.f32 %v7083, %v7251
    %7253 = vmatmul.bf16.gmra.mxu0 %v6197
    %v7254 = vpop.f32.mrf.mxu0
    %v7255 = vadd.f32 %v7086, %v7254
    %v7256 = vpop.f32.mrf.mxu0
    %v7257 = vadd.f32 %v7088, %v7256
    %7258 = vmatmul.bf16.gmra.mxu0 %v6199
    %v7259 = vpop.f32.mrf.mxu0
    %v7260 = vadd.f32 %v7091, %v7259
    %v7261 = vpop.f32.mrf.mxu0
    %v7262 = vadd.f32 %v7093, %v7261
    %7263 = vmatmul.bf16.gmra.mxu0 %v6201
    %v7264 = vpop.f32.mrf.mxu0
    %v7265 = vadd.f32 %v7096, %v7264
    %v7266 = vpop.f32.mrf.mxu0
    %v7267 = vadd.f32 %v7098, %v7266
    %7268 = vmatmul.bf16.gmra.mxu0 %v6203
    %v7269 = vpop.f32.mrf.mxu0
    %v7270 = vadd.f32 %v7101, %v7269
    %v7271 = vpop.f32.mrf.mxu0
    %v7272 = vadd.f32 %v7103, %v7271
    %7273 = vmatmul.bf16.gmra.mxu0 %v6205
    %v7274 = vpop.f32.mrf.mxu0
    %v7275 = vadd.f32 %v7106, %v7274
    %v7276 = vpop.f32.mrf.mxu0
    %v7277 = vadd.f32 %v7108, %v7276
    %7278 = vmatmul.bf16.gmra.mxu0 %v6207
    %v7279 = vpop.f32.mrf.mxu0
    %v7280 = vadd.f32 %v7111, %v7279
    %v7281 = vpop.f32.mrf.mxu0
    %v7282 = vadd.f32 %v7113, %v7281
    %7283 = vmatmul.bf16.gmra.mxu0 %v6209
    %v7284 = vpop.f32.mrf.mxu0
    %v7285 = vadd.f32 %v7116, %v7284
    %v7286 = vpop.f32.mrf.mxu0
    %v7287 = vadd.f32 %v7118, %v7286
    %7288 = vmatmul.bf16.gmra.mxu0 %v6211
    %v7289 = vpop.f32.mrf.mxu0
    %v7290 = vadd.f32 %v7121, %v7289
    %v7291 = vpop.f32.mrf.mxu0
    %v7292 = vadd.f32 %v7123, %v7291
    %7293 = vmatmul.bf16.gmra.mxu0 %v6213
    %v7294 = vpop.f32.mrf.mxu0
    %v7295 = vadd.f32 %v7126, %v7294
    %v7296 = vpop.f32.mrf.mxu0
    %v7297 = vadd.f32 %v7128, %v7296
    %7298 = vmatmul.bf16.gmra.mxu0 %v6215
    %v7299 = vpop.f32.mrf.mxu0
    %v7300 = vadd.f32 %v7131, %v7299
    %v7301 = vpop.f32.mrf.mxu0
    %v7302 = vadd.f32 %v7133, %v7301
    %7303 = vmatmul.bf16.gmra.mxu0 %v6217
    %v7304 = vpop.f32.mrf.mxu0
    %v7305 = vadd.f32 %v7136, %v7304
    %v7306 = vpop.f32.mrf.mxu0
    %v7307 = vadd.f32 %v7138, %v7306
    %7308 = vmatmul.bf16.gmra.mxu0 %v6219
    %v7309 = vpop.f32.mrf.mxu0
    %v7310 = vadd.f32 %v7141, %v7309
    %v7311 = vpop.f32.mrf.mxu0
    %v7312 = vadd.f32 %v7143, %v7311
    %7313 = vmatmul.bf16.gmra.mxu0 %v6221
    %v7314 = vpop.f32.mrf.mxu0
    %v7315 = vadd.f32 %v7146, %v7314
    %v7316 = vpop.f32.mrf.mxu0
    %v7317 = vadd.f32 %v7148, %v7316
    %7318 = vmatmul.bf16.gmra.mxu0 %v6223
    %v7319 = vpop.f32.mrf.mxu0
    %v7320 = vadd.f32 %v7151, %v7319
    %v7321 = vpop.f32.mrf.mxu0
    %v7322 = vadd.f32 %v7153, %v7321
    %7323 = vmatmul.bf16.gmra.mxu0 %v6225
    %v7324 = vpop.f32.mrf.mxu0
    %v7325 = vadd.f32 %v7156, %v7324
    %v7326 = vpop.f32.mrf.mxu0
    %v7327 = vadd.f32 %v7158, %v7326
    %7328 = vmatmul.bf16.gmra.mxu0 %v6227
    %v7329 = vpop.f32.mrf.mxu0
    %v7330 = vadd.f32 %v7161, %v7329
    %v7331 = vpop.f32.mrf.mxu0
    %v7332 = vadd.f32 %v7163, %v7331
    %7333 = vmatmul.bf16.gmra.mxu0 %v6229
    %v7334 = vpop.f32.mrf.mxu0
    %v7335 = vadd.f32 %v7166, %v7334
    %v7336 = vpop.f32.mrf.mxu0
    %v7337 = vadd.f32 %v7168, %v7336
    %7338 = vmatmul.bf16.gmra.mxu0 %v6231
    %v7339 = vpop.f32.mrf.mxu0
    %v7340 = vadd.f32 %v7171, %v7339
    %v7341 = vpop.f32.mrf.mxu0
    %v7342 = vadd.f32 %v7173, %v7341
    %7343 = vmatmul.bf16.gmra.mxu0 %v6233
    %v7344 = vpop.f32.mrf.mxu0
    %v7345 = vadd.f32 %v7176, %v7344
    %v7346 = vpop.f32.mrf.mxu0
    %v7347 = vadd.f32 %v7178, %v7346
    %7348 = vmatmul.bf16.gmra.mxu0 %v6235
    %v7349 = vpop.f32.mrf.mxu0
    %v7350 = vadd.f32 %v7181, %v7349
    %v7351 = vpop.f32.mrf.mxu0
    %v7352 = vadd.f32 %v7183, %v7351
    %7353 = vmatmul.bf16.gmra.mxu0 %v6237
    %v7354 = vpop.f32.mrf.mxu0
    %v7355 = vadd.f32 %v7186, %v7354
    %v7356 = vpop.f32.mrf.mxu0
    %v7357 = vadd.f32 %v7188, %v7356
    %7358 = vmatmul.bf16.gmra.mxu0 %v6239
    %v7359 = vpop.f32.mrf.mxu0
    %v7360 = vadd.f32 %v7191, %v7359
    %v7361 = vpop.f32.mrf.mxu0
    %v7362 = vadd.f32 %v7193, %v7361
    %7363 = vdwg.mxu0
    %7364 = vmatpush.bf16.msra.mxu0 %v6827
    %7365 = vmatpush.bf16.msra.mxu0 %v6819
    %7366 = vmatpush.bf16.msra.mxu0 %v6811
    %7367 = vmatpush.bf16.msra.mxu0 %v6803
    %7368 = vmatpush.bf16.msra.mxu0 %v6795
    %7369 = vmatpush.bf16.msra.mxu0 %v6787
    %7370 = vmatpush.bf16.msra.mxu0 %v6779
    %7371 = vmatpush.bf16.msra.mxu0 %v6771
    %7372 = vmatmul.bf16.gmra.mxu0 %v6176
    %v7373 = vpop.f32.mrf.mxu0
    %v7374 = vadd.f32 %v6371, %v7373
    %v7375 = vpop.f32.mrf.mxu0
    %v7376 = vadd.f32 %v6371, %v7375
    %7377 = vmatmul.bf16.gmra.mxu0 %v6178
    %v7378 = vpop.f32.mrf.mxu0
    %v7379 = vadd.f32 %v6371, %v7378
    %v7380 = vpop.f32.mrf.mxu0
    %v7381 = vadd.f32 %v6371, %v7380
    %7382 = vmatmul.bf16.gmra.mxu0 %v6180
    %v7383 = vpop.f32.mrf.mxu0
    %v7384 = vadd.f32 %v6371, %v7383
    %v7385 = vpop.f32.mrf.mxu0
    %v7386 = vadd.f32 %v6371, %v7385
    %7387 = vmatmul.bf16.gmra.mxu0 %v6182
    %v7388 = vpop.f32.mrf.mxu0
    %v7389 = vadd.f32 %v6371, %v7388
    %v7390 = vpop.f32.mrf.mxu0
    %v7391 = vadd.f32 %v6371, %v7390
    %7392 = vmatmul.bf16.gmra.mxu0 %v6184
    %v7393 = vpop.f32.mrf.mxu0
    %v7394 = vadd.f32 %v6371, %v7393
    %v7395 = vpop.f32.mrf.mxu0
    %v7396 = vadd.f32 %v6371, %v7395
    %7397 = vmatmul.bf16.gmra.mxu0 %v6186
    %v7398 = vpop.f32.mrf.mxu0
    %v7399 = vadd.f32 %v6371, %v7398
    %v7400 = vpop.f32.mrf.mxu0
    %v7401 = vadd.f32 %v6371, %v7400
    %7402 = vmatmul.bf16.gmra.mxu0 %v6188
    %v7403 = vpop.f32.mrf.mxu0
    %v7404 = vadd.f32 %v6371, %v7403
    %v7405 = vpop.f32.mrf.mxu0
    %v7406 = vadd.f32 %v6371, %v7405
    %7407 = vmatmul.bf16.gmra.mxu0 %v6190
    %v7408 = vpop.f32.mrf.mxu0
    %v7409 = vadd.f32 %v6371, %v7408
    %v7410 = vpop.f32.mrf.mxu0
    %v7411 = vadd.f32 %v6371, %v7410
    %7412 = vmatmul.bf16.gmra.mxu0 %v6192
    %v7413 = vpop.f32.mrf.mxu0
    %v7414 = vadd.f32 %v6371, %v7413
    %v7415 = vpop.f32.mrf.mxu0
    %v7416 = vadd.f32 %v6371, %v7415
    %7417 = vmatmul.bf16.gmra.mxu0 %v6194
    %v7418 = vpop.f32.mrf.mxu0
    %v7419 = vadd.f32 %v6371, %v7418
    %v7420 = vpop.f32.mrf.mxu0
    %v7421 = vadd.f32 %v6371, %v7420
    %7422 = vmatmul.bf16.gmra.mxu0 %v6196
    %v7423 = vpop.f32.mrf.mxu0
    %v7424 = vadd.f32 %v6371, %v7423
    %v7425 = vpop.f32.mrf.mxu0
    %v7426 = vadd.f32 %v6371, %v7425
    %7427 = vmatmul.bf16.gmra.mxu0 %v6198
    %v7428 = vpop.f32.mrf.mxu0
    %v7429 = vadd.f32 %v6371, %v7428
    %v7430 = vpop.f32.mrf.mxu0
    %v7431 = vadd.f32 %v6371, %v7430
    %7432 = vmatmul.bf16.gmra.mxu0 %v6200
    %v7433 = vpop.f32.mrf.mxu0
    %v7434 = vadd.f32 %v6371, %v7433
    %v7435 = vpop.f32.mrf.mxu0
    %v7436 = vadd.f32 %v6371, %v7435
    %7437 = vmatmul.bf16.gmra.mxu0 %v6202
    %v7438 = vpop.f32.mrf.mxu0
    %v7439 = vadd.f32 %v6371, %v7438
    %v7440 = vpop.f32.mrf.mxu0
    %v7441 = vadd.f32 %v6371, %v7440
    %7442 = vmatmul.bf16.gmra.mxu0 %v6204
    %v7443 = vpop.f32.mrf.mxu0
    %v7444 = vadd.f32 %v6371, %v7443
    %v7445 = vpop.f32.mrf.mxu0
    %v7446 = vadd.f32 %v6371, %v7445
    %7447 = vmatmul.bf16.gmra.mxu0 %v6206
    %v7448 = vpop.f32.mrf.mxu0
    %v7449 = vadd.f32 %v6371, %v7448
    %v7450 = vpop.f32.mrf.mxu0
    %v7451 = vadd.f32 %v6371, %v7450
    %7452 = vmatmul.bf16.gmra.mxu0 %v6208
    %v7453 = vpop.f32.mrf.mxu0
    %v7454 = vadd.f32 %v6371, %v7453
    %v7455 = vpop.f32.mrf.mxu0
    %v7456 = vadd.f32 %v6371, %v7455
    %7457 = vmatmul.bf16.gmra.mxu0 %v6210
    %v7458 = vpop.f32.mrf.mxu0
    %v7459 = vadd.f32 %v6371, %v7458
    %v7460 = vpop.f32.mrf.mxu0
    %v7461 = vadd.f32 %v6371, %v7460
    %7462 = vmatmul.bf16.gmra.mxu0 %v6212
    %v7463 = vpop.f32.mrf.mxu0
    %v7464 = vadd.f32 %v6371, %v7463
    %v7465 = vpop.f32.mrf.mxu0
    %v7466 = vadd.f32 %v6371, %v7465
    %7467 = vmatmul.bf16.gmra.mxu0 %v6214
    %v7468 = vpop.f32.mrf.mxu0
    %v7469 = vadd.f32 %v6371, %v7468
    %v7470 = vpop.f32.mrf.mxu0
    %v7471 = vadd.f32 %v6371, %v7470
    %7472 = vmatmul.bf16.gmra.mxu0 %v6216
    %v7473 = vpop.f32.mrf.mxu0
    %v7474 = vadd.f32 %v6371, %v7473
    %v7475 = vpop.f32.mrf.mxu0
    %v7476 = vadd.f32 %v6371, %v7475
    %7477 = vmatmul.bf16.gmra.mxu0 %v6218
    %v7478 = vpop.f32.mrf.mxu0
    %v7479 = vadd.f32 %v6371, %v7478
    %v7480 = vpop.f32.mrf.mxu0
    %v7481 = vadd.f32 %v6371, %v7480
    %7482 = vmatmul.bf16.gmra.mxu0 %v6220
    %v7483 = vpop.f32.mrf.mxu0
    %v7484 = vadd.f32 %v6371, %v7483
    %v7485 = vpop.f32.mrf.mxu0
    %v7486 = vadd.f32 %v6371, %v7485
    %7487 = vmatmul.bf16.gmra.mxu0 %v6222
    %v7488 = vpop.f32.mrf.mxu0
    %v7489 = vadd.f32 %v6371, %v7488
    %v7490 = vpop.f32.mrf.mxu0
    %v7491 = vadd.f32 %v6371, %v7490
    %7492 = vmatmul.bf16.gmra.mxu0 %v6224
    %v7493 = vpop.f32.mrf.mxu0
    %v7494 = vadd.f32 %v6371, %v7493
    %v7495 = vpop.f32.mrf.mxu0
    %v7496 = vadd.f32 %v6371, %v7495
    %7497 = vmatmul.bf16.gmra.mxu0 %v6226
    %v7498 = vpop.f32.mrf.mxu0
    %v7499 = vadd.f32 %v6371, %v7498
    %v7500 = vpop.f32.mrf.mxu0
    %v7501 = vadd.f32 %v6371, %v7500
    %7502 = vmatmul.bf16.gmra.mxu0 %v6228
    %v7503 = vpop.f32.mrf.mxu0
    %v7504 = vadd.f32 %v6371, %v7503
    %v7505 = vpop.f32.mrf.mxu0
    %v7506 = vadd.f32 %v6371, %v7505
    %7507 = vmatmul.bf16.gmra.mxu0 %v6230
    %v7508 = vpop.f32.mrf.mxu0
    %v7509 = vadd.f32 %v6371, %v7508
    %v7510 = vpop.f32.mrf.mxu0
    %v7511 = vadd.f32 %v6371, %v7510
    %7512 = vmatmul.bf16.gmra.mxu0 %v6232
    %v7513 = vpop.f32.mrf.mxu0
    %v7514 = vadd.f32 %v6371, %v7513
    %v7515 = vpop.f32.mrf.mxu0
    %v7516 = vadd.f32 %v6371, %v7515
    %7517 = vmatmul.bf16.gmra.mxu0 %v6234
    %v7518 = vpop.f32.mrf.mxu0
    %v7519 = vadd.f32 %v6371, %v7518
    %v7520 = vpop.f32.mrf.mxu0
    %v7521 = vadd.f32 %v6371, %v7520
    %7522 = vmatmul.bf16.gmra.mxu0 %v6236
    %v7523 = vpop.f32.mrf.mxu0
    %v7524 = vadd.f32 %v6371, %v7523
    %v7525 = vpop.f32.mrf.mxu0
    %v7526 = vadd.f32 %v6371, %v7525
    %7527 = vmatmul.bf16.gmra.mxu0 %v6238
    %v7528 = vpop.f32.mrf.mxu0
    %v7529 = vadd.f32 %v6371, %v7528
    %v7530 = vpop.f32.mrf.mxu0
    %v7531 = vadd.f32 %v6371, %v7530
    %7532 = vdwg.mxu0
    %7533 = vmatpush.bf16.msra.mxu0 %v6891
    %7534 = vmatpush.bf16.msra.mxu0 %v6883
    %7535 = vmatpush.bf16.msra.mxu0 %v6875
    %7536 = vmatpush.bf16.msra.mxu0 %v6867
    %7537 = vmatpush.bf16.msra.mxu0 %v6859
    %7538 = vmatpush.bf16.msra.mxu0 %v6851
    %7539 = vmatpush.bf16.msra.mxu0 %v6843
    %7540 = vmatpush.bf16.msra.mxu0 %v6835
    %7541 = vmatmul.bf16.gmra.mxu0 %v6177
    %v7542 = vpop.f32.mrf.mxu0
    %v7543 = vadd.f32 %v7374, %v7542
    %v7544 = vpop.f32.mrf.mxu0
    %v7545 = vadd.f32 %v7376, %v7544
    %7546 = vmatmul.bf16.gmra.mxu0 %v6179
    %v7547 = vpop.f32.mrf.mxu0
    %v7548 = vadd.f32 %v7379, %v7547
    %v7549 = vpop.f32.mrf.mxu0
    %v7550 = vadd.f32 %v7381, %v7549
    %7551 = vmatmul.bf16.gmra.mxu0 %v6181
    %v7552 = vpop.f32.mrf.mxu0
    %v7553 = vadd.f32 %v7384, %v7552
    %v7554 = vpop.f32.mrf.mxu0
    %v7555 = vadd.f32 %v7386, %v7554
    %7556 = vmatmul.bf16.gmra.mxu0 %v6183
    %v7557 = vpop.f32.mrf.mxu0
    %v7558 = vadd.f32 %v7389, %v7557
    %v7559 = vpop.f32.mrf.mxu0
    %v7560 = vadd.f32 %v7391, %v7559
    %7561 = vmatmul.bf16.gmra.mxu0 %v6185
    %v7562 = vpop.f32.mrf.mxu0
    %v7563 = vadd.f32 %v7394, %v7562
    %v7564 = vpop.f32.mrf.mxu0
    %v7565 = vadd.f32 %v7396, %v7564
    %7566 = vmatmul.bf16.gmra.mxu0 %v6187
    %v7567 = vpop.f32.mrf.mxu0
    %v7568 = vadd.f32 %v7399, %v7567
    %v7569 = vpop.f32.mrf.mxu0
    %v7570 = vadd.f32 %v7401, %v7569
    %7571 = vmatmul.bf16.gmra.mxu0 %v6189
    %v7572 = vpop.f32.mrf.mxu0
    %v7573 = vadd.f32 %v7404, %v7572
    %v7574 = vpop.f32.mrf.mxu0
    %v7575 = vadd.f32 %v7406, %v7574
    %7576 = vmatmul.bf16.gmra.mxu0 %v6191
    %v7577 = vpop.f32.mrf.mxu0
    %v7578 = vadd.f32 %v7409, %v7577
    %v7579 = vpop.f32.mrf.mxu0
    %v7580 = vadd.f32 %v7411, %v7579
    %7581 = vmatmul.bf16.gmra.mxu0 %v6193
    %v7582 = vpop.f32.mrf.mxu0
    %v7583 = vadd.f32 %v7414, %v7582
    %v7584 = vpop.f32.mrf.mxu0
    %v7585 = vadd.f32 %v7416, %v7584
    %7586 = vmatmul.bf16.gmra.mxu0 %v6195
    %v7587 = vpop.f32.mrf.mxu0
    %v7588 = vadd.f32 %v7419, %v7587
    %v7589 = vpop.f32.mrf.mxu0
    %v7590 = vadd.f32 %v7421, %v7589
    %7591 = vmatmul.bf16.gmra.mxu0 %v6197
    %v7592 = vpop.f32.mrf.mxu0
    %v7593 = vadd.f32 %v7424, %v7592
    %v7594 = vpop.f32.mrf.mxu0
    %v7595 = vadd.f32 %v7426, %v7594
    %7596 = vmatmul.bf16.gmra.mxu0 %v6199
    %v7597 = vpop.f32.mrf.mxu0
    %v7598 = vadd.f32 %v7429, %v7597
    %v7599 = vpop.f32.mrf.mxu0
    %v7600 = vadd.f32 %v7431, %v7599
    %7601 = vmatmul.bf16.gmra.mxu0 %v6201
    %v7602 = vpop.f32.mrf.mxu0
    %v7603 = vadd.f32 %v7434, %v7602
    %v7604 = vpop.f32.mrf.mxu0
    %v7605 = vadd.f32 %v7436, %v7604
    %7606 = vmatmul.bf16.gmra.mxu0 %v6203
    %v7607 = vpop.f32.mrf.mxu0
    %v7608 = vadd.f32 %v7439, %v7607
    %v7609 = vpop.f32.mrf.mxu0
    %v7610 = vadd.f32 %v7441, %v7609
    %7611 = vmatmul.bf16.gmra.mxu0 %v6205
    %v7612 = vpop.f32.mrf.mxu0
    %v7613 = vadd.f32 %v7444, %v7612
    %v7614 = vpop.f32.mrf.mxu0
    %v7615 = vadd.f32 %v7446, %v7614
    %7616 = vmatmul.bf16.gmra.mxu0 %v6207
    %v7617 = vpop.f32.mrf.mxu0
    %v7618 = vadd.f32 %v7449, %v7617
    %v7619 = vpop.f32.mrf.mxu0
    %v7620 = vadd.f32 %v7451, %v7619
    %7621 = vmatmul.bf16.gmra.mxu0 %v6209
    %v7622 = vpop.f32.mrf.mxu0
    %v7623 = vadd.f32 %v7454, %v7622
    %v7624 = vpop.f32.mrf.mxu0
    %v7625 = vadd.f32 %v7456, %v7624
    %7626 = vmatmul.bf16.gmra.mxu0 %v6211
    %v7627 = vpop.f32.mrf.mxu0
    %v7628 = vadd.f32 %v7459, %v7627
    %v7629 = vpop.f32.mrf.mxu0
    %v7630 = vadd.f32 %v7461, %v7629
    %7631 = vmatmul.bf16.gmra.mxu0 %v6213
    %v7632 = vpop.f32.mrf.mxu0
    %v7633 = vadd.f32 %v7464, %v7632
    %v7634 = vpop.f32.mrf.mxu0
    %v7635 = vadd.f32 %v7466, %v7634
    %7636 = vmatmul.bf16.gmra.mxu0 %v6215
    %v7637 = vpop.f32.mrf.mxu0
    %v7638 = vadd.f32 %v7469, %v7637
    %v7639 = vpop.f32.mrf.mxu0
    %v7640 = vadd.f32 %v7471, %v7639
    %7641 = vmatmul.bf16.gmra.mxu0 %v6217
    %v7642 = vpop.f32.mrf.mxu0
    %v7643 = vadd.f32 %v7474, %v7642
    %v7644 = vpop.f32.mrf.mxu0
    %v7645 = vadd.f32 %v7476, %v7644
    %7646 = vmatmul.bf16.gmra.mxu0 %v6219
    %v7647 = vpop.f32.mrf.mxu0
    %v7648 = vadd.f32 %v7479, %v7647
    %v7649 = vpop.f32.mrf.mxu0
    %v7650 = vadd.f32 %v7481, %v7649
    %7651 = vmatmul.bf16.gmra.mxu0 %v6221
    %v7652 = vpop.f32.mrf.mxu0
    %v7653 = vadd.f32 %v7484, %v7652
    %v7654 = vpop.f32.mrf.mxu0
    %v7655 = vadd.f32 %v7486, %v7654
    %7656 = vmatmul.bf16.gmra.mxu0 %v6223
    %v7657 = vpop.f32.mrf.mxu0
    %v7658 = vadd.f32 %v7489, %v7657
    %v7659 = vpop.f32.mrf.mxu0
    %v7660 = vadd.f32 %v7491, %v7659
    %7661 = vmatmul.bf16.gmra.mxu0 %v6225
    %v7662 = vpop.f32.mrf.mxu0
    %v7663 = vadd.f32 %v7494, %v7662
    %v7664 = vpop.f32.mrf.mxu0
    %v7665 = vadd.f32 %v7496, %v7664
    %7666 = vmatmul.bf16.gmra.mxu0 %v6227
    %v7667 = vpop.f32.mrf.mxu0
    %v7668 = vadd.f32 %v7499, %v7667
    %v7669 = vpop.f32.mrf.mxu0
    %v7670 = vadd.f32 %v7501, %v7669
    %7671 = vmatmul.bf16.gmra.mxu0 %v6229
    %v7672 = vpop.f32.mrf.mxu0
    %v7673 = vadd.f32 %v7504, %v7672
    %v7674 = vpop.f32.mrf.mxu0
    %v7675 = vadd.f32 %v7506, %v7674
    %7676 = vmatmul.bf16.gmra.mxu0 %v6231
    %v7677 = vpop.f32.mrf.mxu0
    %v7678 = vadd.f32 %v7509, %v7677
    %v7679 = vpop.f32.mrf.mxu0
    %v7680 = vadd.f32 %v7511, %v7679
    %7681 = vmatmul.bf16.gmra.mxu0 %v6233
    %v7682 = vpop.f32.mrf.mxu0
    %v7683 = vadd.f32 %v7514, %v7682
    %v7684 = vpop.f32.mrf.mxu0
    %v7685 = vadd.f32 %v7516, %v7684
    %7686 = vmatmul.bf16.gmra.mxu0 %v6235
    %v7687 = vpop.f32.mrf.mxu0
    %v7688 = vadd.f32 %v7519, %v7687
    %v7689 = vpop.f32.mrf.mxu0
    %v7690 = vadd.f32 %v7521, %v7689
    %7691 = vmatmul.bf16.gmra.mxu0 %v6237
    %v7692 = vpop.f32.mrf.mxu0
    %v7693 = vadd.f32 %v7524, %v7692
    %v7694 = vpop.f32.mrf.mxu0
    %v7695 = vadd.f32 %v7526, %v7694
    %7696 = vmatmul.bf16.gmra.mxu0 %v6239
    %v7697 = vpop.f32.mrf.mxu0
    %v7698 = vadd.f32 %v7529, %v7697
    %v7699 = vpop.f32.mrf.mxu0
    %v7700 = vadd.f32 %v7531, %v7699
    %7701 = vdwg.mxu0
    %7702 = vmatpush.bf16.msra.mxu0 %v6828
    %7703 = vmatpush.bf16.msra.mxu0 %v6820
    %7704 = vmatpush.bf16.msra.mxu0 %v6812
    %7705 = vmatpush.bf16.msra.mxu0 %v6804
    %7706 = vmatpush.bf16.msra.mxu0 %v6796
    %7707 = vmatpush.bf16.msra.mxu0 %v6788
    %7708 = vmatpush.bf16.msra.mxu0 %v6780
    %7709 = vmatpush.bf16.msra.mxu0 %v6772
    %7710 = vmatmul.bf16.gmra.mxu0 %v6176
    %v7711 = vpop.f32.mrf.mxu0
    %v7712 = vadd.f32 %v6372, %v7711
    %v7713 = vpop.f32.mrf.mxu0
    %v7714 = vadd.f32 %v6372, %v7713
    %7715 = vmatmul.bf16.gmra.mxu0 %v6178
    %v7716 = vpop.f32.mrf.mxu0
    %v7717 = vadd.f32 %v6372, %v7716
    %v7718 = vpop.f32.mrf.mxu0
    %v7719 = vadd.f32 %v6372, %v7718
    %7720 = vmatmul.bf16.gmra.mxu0 %v6180
    %v7721 = vpop.f32.mrf.mxu0
    %v7722 = vadd.f32 %v6372, %v7721
    %v7723 = vpop.f32.mrf.mxu0
    %v7724 = vadd.f32 %v6372, %v7723
    %7725 = vmatmul.bf16.gmra.mxu0 %v6182
    %v7726 = vpop.f32.mrf.mxu0
    %v7727 = vadd.f32 %v6372, %v7726
    %v7728 = vpop.f32.mrf.mxu0
    %v7729 = vadd.f32 %v6372, %v7728
    %7730 = vmatmul.bf16.gmra.mxu0 %v6184
    %v7731 = vpop.f32.mrf.mxu0
    %v7732 = vadd.f32 %v6372, %v7731
    %v7733 = vpop.f32.mrf.mxu0
    %v7734 = vadd.f32 %v6372, %v7733
    %7735 = vmatmul.bf16.gmra.mxu0 %v6186
    %v7736 = vpop.f32.mrf.mxu0
    %v7737 = vadd.f32 %v6372, %v7736
    %v7738 = vpop.f32.mrf.mxu0
    %v7739 = vadd.f32 %v6372, %v7738
    %7740 = vmatmul.bf16.gmra.mxu0 %v6188
    %v7741 = vpop.f32.mrf.mxu0
    %v7742 = vadd.f32 %v6372, %v7741
    %v7743 = vpop.f32.mrf.mxu0
    %v7744 = vadd.f32 %v6372, %v7743
    %7745 = vmatmul.bf16.gmra.mxu0 %v6190
    %v7746 = vpop.f32.mrf.mxu0
    %v7747 = vadd.f32 %v6372, %v7746
    %v7748 = vpop.f32.mrf.mxu0
    %v7749 = vadd.f32 %v6372, %v7748
    %7750 = vmatmul.bf16.gmra.mxu0 %v6192
    %v7751 = vpop.f32.mrf.mxu0
    %v7752 = vadd.f32 %v6372, %v7751
    %v7753 = vpop.f32.mrf.mxu0
    %v7754 = vadd.f32 %v6372, %v7753
    %7755 = vmatmul.bf16.gmra.mxu0 %v6194
    %v7756 = vpop.f32.mrf.mxu0
    %v7757 = vadd.f32 %v6372, %v7756
    %v7758 = vpop.f32.mrf.mxu0
    %v7759 = vadd.f32 %v6372, %v7758
    %7760 = vmatmul.bf16.gmra.mxu0 %v6196
    %v7761 = vpop.f32.mrf.mxu0
    %v7762 = vadd.f32 %v6372, %v7761
    %v7763 = vpop.f32.mrf.mxu0
    %v7764 = vadd.f32 %v6372, %v7763
    %7765 = vmatmul.bf16.gmra.mxu0 %v6198
    %v7766 = vpop.f32.mrf.mxu0
    %v7767 = vadd.f32 %v6372, %v7766
    %v7768 = vpop.f32.mrf.mxu0
    %v7769 = vadd.f32 %v6372, %v7768
    %7770 = vmatmul.bf16.gmra.mxu0 %v6200
    %v7771 = vpop.f32.mrf.mxu0
    %v7772 = vadd.f32 %v6372, %v7771
    %v7773 = vpop.f32.mrf.mxu0
    %v7774 = vadd.f32 %v6372, %v7773
    %7775 = vmatmul.bf16.gmra.mxu0 %v6202
    %v7776 = vpop.f32.mrf.mxu0
    %v7777 = vadd.f32 %v6372, %v7776
    %v7778 = vpop.f32.mrf.mxu0
    %v7779 = vadd.f32 %v6372, %v7778
    %7780 = vmatmul.bf16.gmra.mxu0 %v6204
    %v7781 = vpop.f32.mrf.mxu0
    %v7782 = vadd.f32 %v6372, %v7781
    %v7783 = vpop.f32.mrf.mxu0
    %v7784 = vadd.f32 %v6372, %v7783
    %7785 = vmatmul.bf16.gmra.mxu0 %v6206
    %v7786 = vpop.f32.mrf.mxu0
    %v7787 = vadd.f32 %v6372, %v7786
    %v7788 = vpop.f32.mrf.mxu0
    %v7789 = vadd.f32 %v6372, %v7788
    %7790 = vmatmul.bf16.gmra.mxu0 %v6208
    %v7791 = vpop.f32.mrf.mxu0
    %v7792 = vadd.f32 %v6372, %v7791
    %v7793 = vpop.f32.mrf.mxu0
    %v7794 = vadd.f32 %v6372, %v7793
    %7795 = vmatmul.bf16.gmra.mxu0 %v6210
    %v7796 = vpop.f32.mrf.mxu0
    %v7797 = vadd.f32 %v6372, %v7796
    %v7798 = vpop.f32.mrf.mxu0
    %v7799 = vadd.f32 %v6372, %v7798
    %7800 = vmatmul.bf16.gmra.mxu0 %v6212
    %v7801 = vpop.f32.mrf.mxu0
    %v7802 = vadd.f32 %v6372, %v7801
    %v7803 = vpop.f32.mrf.mxu0
    %v7804 = vadd.f32 %v6372, %v7803
    %7805 = vmatmul.bf16.gmra.mxu0 %v6214
    %v7806 = vpop.f32.mrf.mxu0
    %v7807 = vadd.f32 %v6372, %v7806
    %v7808 = vpop.f32.mrf.mxu0
    %v7809 = vadd.f32 %v6372, %v7808
    %7810 = vmatmul.bf16.gmra.mxu0 %v6216
    %v7811 = vpop.f32.mrf.mxu0
    %v7812 = vadd.f32 %v6372, %v7811
    %v7813 = vpop.f32.mrf.mxu0
    %v7814 = vadd.f32 %v6372, %v7813
    %7815 = vmatmul.bf16.gmra.mxu0 %v6218
    %v7816 = vpop.f32.mrf.mxu0
    %v7817 = vadd.f32 %v6372, %v7816
    %v7818 = vpop.f32.mrf.mxu0
    %v7819 = vadd.f32 %v6372, %v7818
    %7820 = vmatmul.bf16.gmra.mxu0 %v6220
    %v7821 = vpop.f32.mrf.mxu0
    %v7822 = vadd.f32 %v6372, %v7821
    %v7823 = vpop.f32.mrf.mxu0
    %v7824 = vadd.f32 %v6372, %v7823
    %7825 = vmatmul.bf16.gmra.mxu0 %v6222
    %v7826 = vpop.f32.mrf.mxu0
    %v7827 = vadd.f32 %v6372, %v7826
    %v7828 = vpop.f32.mrf.mxu0
    %v7829 = vadd.f32 %v6372, %v7828
    %7830 = vmatmul.bf16.gmra.mxu0 %v6224
    %v7831 = vpop.f32.mrf.mxu0
    %v7832 = vadd.f32 %v6372, %v7831
    %v7833 = vpop.f32.mrf.mxu0
    %v7834 = vadd.f32 %v6372, %v7833
    %7835 = vmatmul.bf16.gmra.mxu0 %v6226
    %v7836 = vpop.f32.mrf.mxu0
    %v7837 = vadd.f32 %v6372, %v7836
    %v7838 = vpop.f32.mrf.mxu0
    %v7839 = vadd.f32 %v6372, %v7838
    %7840 = vmatmul.bf16.gmra.mxu0 %v6228
    %v7841 = vpop.f32.mrf.mxu0
    %v7842 = vadd.f32 %v6372, %v7841
    %v7843 = vpop.f32.mrf.mxu0
    %v7844 = vadd.f32 %v6372, %v7843
    %7845 = vmatmul.bf16.gmra.mxu0 %v6230
    %v7846 = vpop.f32.mrf.mxu0
    %v7847 = vadd.f32 %v6372, %v7846
    %v7848 = vpop.f32.mrf.mxu0
    %v7849 = vadd.f32 %v6372, %v7848
    %7850 = vmatmul.bf16.gmra.mxu0 %v6232
    %v7851 = vpop.f32.mrf.mxu0
    %v7852 = vadd.f32 %v6372, %v7851
    %v7853 = vpop.f32.mrf.mxu0
    %v7854 = vadd.f32 %v6372, %v7853
    %7855 = vmatmul.bf16.gmra.mxu0 %v6234
    %v7856 = vpop.f32.mrf.mxu0
    %v7857 = vadd.f32 %v6372, %v7856
    %v7858 = vpop.f32.mrf.mxu0
    %v7859 = vadd.f32 %v6372, %v7858
    %7860 = vmatmul.bf16.gmra.mxu0 %v6236
    %v7861 = vpop.f32.mrf.mxu0
    %v7862 = vadd.f32 %v6372, %v7861
    %v7863 = vpop.f32.mrf.mxu0
    %v7864 = vadd.f32 %v6372, %v7863
    %7865 = vmatmul.bf16.gmra.mxu0 %v6238
    %v7866 = vpop.f32.mrf.mxu0
    %v7867 = vadd.f32 %v6372, %v7866
    %v7868 = vpop.f32.mrf.mxu0
    %v7869 = vadd.f32 %v6372, %v7868
    %7870 = vdwg.mxu0
    %7871 = vmatpush.bf16.msra.mxu0 %v6892
    %7872 = vmatpush.bf16.msra.mxu0 %v6884
    %7873 = vmatpush.bf16.msra.mxu0 %v6876
    %7874 = vmatpush.bf16.msra.mxu0 %v6868
    %7875 = vmatpush.bf16.msra.mxu0 %v6860
    %7876 = vmatpush.bf16.msra.mxu0 %v6852
    %7877 = vmatpush.bf16.msra.mxu0 %v6844
    %7878 = vmatpush.bf16.msra.mxu0 %v6836
    %7879 = vmatmul.bf16.gmra.mxu0 %v6177
    %v7880 = vpop.f32.mrf.mxu0
    %v7881 = vadd.f32 %v7712, %v7880
    %v7882 = vpop.f32.mrf.mxu0
    %v7883 = vadd.f32 %v7714, %v7882
    %7884 = vmatmul.bf16.gmra.mxu0 %v6179
    %v7885 = vpop.f32.mrf.mxu0
    %v7886 = vadd.f32 %v7717, %v7885
    %v7887 = vpop.f32.mrf.mxu0
    %v7888 = vadd.f32 %v7719, %v7887
    %7889 = vmatmul.bf16.gmra.mxu0 %v6181
    %v7890 = vpop.f32.mrf.mxu0
    %v7891 = vadd.f32 %v7722, %v7890
    %v7892 = vpop.f32.mrf.mxu0
    %v7893 = vadd.f32 %v7724, %v7892
    %7894 = vmatmul.bf16.gmra.mxu0 %v6183
    %v7895 = vpop.f32.mrf.mxu0
    %v7896 = vadd.f32 %v7727, %v7895
    %v7897 = vpop.f32.mrf.mxu0
    %v7898 = vadd.f32 %v7729, %v7897
    %7899 = vmatmul.bf16.gmra.mxu0 %v6185
    %v7900 = vpop.f32.mrf.mxu0
    %v7901 = vadd.f32 %v7732, %v7900
    %v7902 = vpop.f32.mrf.mxu0
    %v7903 = vadd.f32 %v7734, %v7902
    %7904 = vmatmul.bf16.gmra.mxu0 %v6187
    %v7905 = vpop.f32.mrf.mxu0
    %v7906 = vadd.f32 %v7737, %v7905
    %v7907 = vpop.f32.mrf.mxu0
    %v7908 = vadd.f32 %v7739, %v7907
    %7909 = vmatmul.bf16.gmra.mxu0 %v6189
    %v7910 = vpop.f32.mrf.mxu0
    %v7911 = vadd.f32 %v7742, %v7910
    %v7912 = vpop.f32.mrf.mxu0
    %v7913 = vadd.f32 %v7744, %v7912
    %7914 = vmatmul.bf16.gmra.mxu0 %v6191
    %v7915 = vpop.f32.mrf.mxu0
    %v7916 = vadd.f32 %v7747, %v7915
    %v7917 = vpop.f32.mrf.mxu0
    %v7918 = vadd.f32 %v7749, %v7917
    %7919 = vmatmul.bf16.gmra.mxu0 %v6193
    %v7920 = vpop.f32.mrf.mxu0
    %v7921 = vadd.f32 %v7752, %v7920
    %v7922 = vpop.f32.mrf.mxu0
    %v7923 = vadd.f32 %v7754, %v7922
    %7924 = vmatmul.bf16.gmra.mxu0 %v6195
    %v7925 = vpop.f32.mrf.mxu0
    %v7926 = vadd.f32 %v7757, %v7925
    %v7927 = vpop.f32.mrf.mxu0
    %v7928 = vadd.f32 %v7759, %v7927
    %7929 = vmatmul.bf16.gmra.mxu0 %v6197
    %v7930 = vpop.f32.mrf.mxu0
    %v7931 = vadd.f32 %v7762, %v7930
    %v7932 = vpop.f32.mrf.mxu0
    %v7933 = vadd.f32 %v7764, %v7932
    %7934 = vmatmul.bf16.gmra.mxu0 %v6199
    %v7935 = vpop.f32.mrf.mxu0
    %v7936 = vadd.f32 %v7767, %v7935
    %v7937 = vpop.f32.mrf.mxu0
    %v7938 = vadd.f32 %v7769, %v7937
    %7939 = vmatmul.bf16.gmra.mxu0 %v6201
    %v7940 = vpop.f32.mrf.mxu0
    %v7941 = vadd.f32 %v7772, %v7940
    %v7942 = vpop.f32.mrf.mxu0
    %v7943 = vadd.f32 %v7774, %v7942
    %7944 = vmatmul.bf16.gmra.mxu0 %v6203
    %v7945 = vpop.f32.mrf.mxu0
    %v7946 = vadd.f32 %v7777, %v7945
    %v7947 = vpop.f32.mrf.mxu0
    %v7948 = vadd.f32 %v7779, %v7947
    %7949 = vmatmul.bf16.gmra.mxu0 %v6205
    %v7950 = vpop.f32.mrf.mxu0
    %v7951 = vadd.f32 %v7782, %v7950
    %v7952 = vpop.f32.mrf.mxu0
    %v7953 = vadd.f32 %v7784, %v7952
    %7954 = vmatmul.bf16.gmra.mxu0 %v6207
    %v7955 = vpop.f32.mrf.mxu0
    %v7956 = vadd.f32 %v7787, %v7955
    %v7957 = vpop.f32.mrf.mxu0
    %v7958 = vadd.f32 %v7789, %v7957
    %7959 = vmatmul.bf16.gmra.mxu0 %v6209
    %v7960 = vpop.f32.mrf.mxu0
    %v7961 = vadd.f32 %v7792, %v7960
    %v7962 = vpop.f32.mrf.mxu0
    %v7963 = vadd.f32 %v7794, %v7962
    %7964 = vmatmul.bf16.gmra.mxu0 %v6211
    %v7965 = vpop.f32.mrf.mxu0
    %v7966 = vadd.f32 %v7797, %v7965
    %v7967 = vpop.f32.mrf.mxu0
    %v7968 = vadd.f32 %v7799, %v7967
    %7969 = vmatmul.bf16.gmra.mxu0 %v6213
    %v7970 = vpop.f32.mrf.mxu0
    %v7971 = vadd.f32 %v7802, %v7970
    %v7972 = vpop.f32.mrf.mxu0
    %v7973 = vadd.f32 %v7804, %v7972
    %7974 = vmatmul.bf16.gmra.mxu0 %v6215
    %v7975 = vpop.f32.mrf.mxu0
    %v7976 = vadd.f32 %v7807, %v7975
    %v7977 = vpop.f32.mrf.mxu0
    %v7978 = vadd.f32 %v7809, %v7977
    %7979 = vmatmul.bf16.gmra.mxu0 %v6217
    %v7980 = vpop.f32.mrf.mxu0
    %v7981 = vadd.f32 %v7812, %v7980
    %v7982 = vpop.f32.mrf.mxu0
    %v7983 = vadd.f32 %v7814, %v7982
    %7984 = vmatmul.bf16.gmra.mxu0 %v6219
    %v7985 = vpop.f32.mrf.mxu0
    %v7986 = vadd.f32 %v7817, %v7985
    %v7987 = vpop.f32.mrf.mxu0
    %v7988 = vadd.f32 %v7819, %v7987
    %7989 = vmatmul.bf16.gmra.mxu0 %v6221
    %v7990 = vpop.f32.mrf.mxu0
    %v7991 = vadd.f32 %v7822, %v7990
    %v7992 = vpop.f32.mrf.mxu0
    %v7993 = vadd.f32 %v7824, %v7992
    %7994 = vmatmul.bf16.gmra.mxu0 %v6223
    %v7995 = vpop.f32.mrf.mxu0
    %v7996 = vadd.f32 %v7827, %v7995
    %v7997 = vpop.f32.mrf.mxu0
    %v7998 = vadd.f32 %v7829, %v7997
    %7999 = vmatmul.bf16.gmra.mxu0 %v6225
    %v8000 = vpop.f32.mrf.mxu0
    %v8001 = vadd.f32 %v7832, %v8000
    %v8002 = vpop.f32.mrf.mxu0
    %v8003 = vadd.f32 %v7834, %v8002
    %8004 = vmatmul.bf16.gmra.mxu0 %v6227
    %v8005 = vpop.f32.mrf.mxu0
    %v8006 = vadd.f32 %v7837, %v8005
    %v8007 = vpop.f32.mrf.mxu0
    %v8008 = vadd.f32 %v7839, %v8007
    %8009 = vmatmul.bf16.gmra.mxu0 %v6229
    %v8010 = vpop.f32.mrf.mxu0
    %v8011 = vadd.f32 %v7842, %v8010
    %v8012 = vpop.f32.mrf.mxu0
    %v8013 = vadd.f32 %v7844, %v8012
    %8014 = vmatmul.bf16.gmra.mxu0 %v6231
    %v8015 = vpop.f32.mrf.mxu0
    %v8016 = vadd.f32 %v7847, %v8015
    %v8017 = vpop.f32.mrf.mxu0
    %v8018 = vadd.f32 %v7849, %v8017
    %8019 = vmatmul.bf16.gmra.mxu0 %v6233
    %v8020 = vpop.f32.mrf.mxu0
    %v8021 = vadd.f32 %v7852, %v8020
    %v8022 = vpop.f32.mrf.mxu0
    %v8023 = vadd.f32 %v7854, %v8022
    %8024 = vmatmul.bf16.gmra.mxu0 %v6235
    %v8025 = vpop.f32.mrf.mxu0
    %v8026 = vadd.f32 %v7857, %v8025
    %v8027 = vpop.f32.mrf.mxu0
    %v8028 = vadd.f32 %v7859, %v8027
    %8029 = vmatmul.bf16.gmra.mxu0 %v6237
    %v8030 = vpop.f32.mrf.mxu0
    %v8031 = vadd.f32 %v7862, %v8030
    %v8032 = vpop.f32.mrf.mxu0
    %v8033 = vadd.f32 %v7864, %v8032
    %8034 = vmatmul.bf16.gmra.mxu0 %v6239
    %v8035 = vpop.f32.mrf.mxu0
    %v8036 = vadd.f32 %v7867, %v8035
    %v8037 = vpop.f32.mrf.mxu0
    %v8038 = vadd.f32 %v7869, %v8037
    %8039 = vdwg.mxu0
    %8040 = vmatpush.bf16.msra.mxu0 %v6829
    %8041 = vmatpush.bf16.msra.mxu0 %v6821
    %8042 = vmatpush.bf16.msra.mxu0 %v6813
    %8043 = vmatpush.bf16.msra.mxu0 %v6805
    %8044 = vmatpush.bf16.msra.mxu0 %v6797
    %8045 = vmatpush.bf16.msra.mxu0 %v6789
    %8046 = vmatpush.bf16.msra.mxu0 %v6781
    %8047 = vmatpush.bf16.msra.mxu0 %v6773
    %8048 = vmatmul.bf16.gmra.mxu0 %v6176
    %v8049 = vpop.f32.mrf.mxu0
    %v8050 = vadd.f32 %v6373, %v8049
    %v8051 = vpop.f32.mrf.mxu0
    %v8052 = vadd.f32 %v6373, %v8051
    %8053 = vmatmul.bf16.gmra.mxu0 %v6178
    %v8054 = vpop.f32.mrf.mxu0
    %v8055 = vadd.f32 %v6373, %v8054
    %v8056 = vpop.f32.mrf.mxu0
    %v8057 = vadd.f32 %v6373, %v8056
    %8058 = vmatmul.bf16.gmra.mxu0 %v6180
    %v8059 = vpop.f32.mrf.mxu0
    %v8060 = vadd.f32 %v6373, %v8059
    %v8061 = vpop.f32.mrf.mxu0
    %v8062 = vadd.f32 %v6373, %v8061
    %8063 = vmatmul.bf16.gmra.mxu0 %v6182
    %v8064 = vpop.f32.mrf.mxu0
    %v8065 = vadd.f32 %v6373, %v8064
    %v8066 = vpop.f32.mrf.mxu0
    %v8067 = vadd.f32 %v6373, %v8066
    %8068 = vmatmul.bf16.gmra.mxu0 %v6184
    %v8069 = vpop.f32.mrf.mxu0
    %v8070 = vadd.f32 %v6373, %v8069
    %v8071 = vpop.f32.mrf.mxu0
    %v8072 = vadd.f32 %v6373, %v8071
    %8073 = vmatmul.bf16.gmra.mxu0 %v6186
    %v8074 = vpop.f32.mrf.mxu0
    %v8075 = vadd.f32 %v6373, %v8074
    %v8076 = vpop.f32.mrf.mxu0
    %v8077 = vadd.f32 %v6373, %v8076
    %8078 = vmatmul.bf16.gmra.mxu0 %v6188
    %v8079 = vpop.f32.mrf.mxu0
    %v8080 = vadd.f32 %v6373, %v8079
    %v8081 = vpop.f32.mrf.mxu0
    %v8082 = vadd.f32 %v6373, %v8081
    %8083 = vmatmul.bf16.gmra.mxu0 %v6190
    %v8084 = vpop.f32.mrf.mxu0
    %v8085 = vadd.f32 %v6373, %v8084
    %v8086 = vpop.f32.mrf.mxu0
    %v8087 = vadd.f32 %v6373, %v8086
    %8088 = vmatmul.bf16.gmra.mxu0 %v6192
    %v8089 = vpop.f32.mrf.mxu0
    %v8090 = vadd.f32 %v6373, %v8089
    %v8091 = vpop.f32.mrf.mxu0
    %v8092 = vadd.f32 %v6373, %v8091
    %8093 = vmatmul.bf16.gmra.mxu0 %v6194
    %v8094 = vpop.f32.mrf.mxu0
    %v8095 = vadd.f32 %v6373, %v8094
    %v8096 = vpop.f32.mrf.mxu0
    %v8097 = vadd.f32 %v6373, %v8096
    %8098 = vmatmul.bf16.gmra.mxu0 %v6196
    %v8099 = vpop.f32.mrf.mxu0
    %v8100 = vadd.f32 %v6373, %v8099
    %v8101 = vpop.f32.mrf.mxu0
    %v8102 = vadd.f32 %v6373, %v8101
    %8103 = vmatmul.bf16.gmra.mxu0 %v6198
    %v8104 = vpop.f32.mrf.mxu0
    %v8105 = vadd.f32 %v6373, %v8104
    %v8106 = vpop.f32.mrf.mxu0
    %v8107 = vadd.f32 %v6373, %v8106
    %8108 = vmatmul.bf16.gmra.mxu0 %v6200
    %v8109 = vpop.f32.mrf.mxu0
    %v8110 = vadd.f32 %v6373, %v8109
    %v8111 = vpop.f32.mrf.mxu0
    %v8112 = vadd.f32 %v6373, %v8111
    %8113 = vmatmul.bf16.gmra.mxu0 %v6202
    %v8114 = vpop.f32.mrf.mxu0
    %v8115 = vadd.f32 %v6373, %v8114
    %v8116 = vpop.f32.mrf.mxu0
    %v8117 = vadd.f32 %v6373, %v8116
    %8118 = vmatmul.bf16.gmra.mxu0 %v6204
    %v8119 = vpop.f32.mrf.mxu0
    %v8120 = vadd.f32 %v6373, %v8119
    %v8121 = vpop.f32.mrf.mxu0
    %v8122 = vadd.f32 %v6373, %v8121
    %8123 = vmatmul.bf16.gmra.mxu0 %v6206
    %v8124 = vpop.f32.mrf.mxu0
    %v8125 = vadd.f32 %v6373, %v8124
    %v8126 = vpop.f32.mrf.mxu0
    %v8127 = vadd.f32 %v6373, %v8126
    %8128 = vmatmul.bf16.gmra.mxu0 %v6208
    %v8129 = vpop.f32.mrf.mxu0
    %v8130 = vadd.f32 %v6373, %v8129
    %v8131 = vpop.f32.mrf.mxu0
    %v8132 = vadd.f32 %v6373, %v8131
    %8133 = vmatmul.bf16.gmra.mxu0 %v6210
    %v8134 = vpop.f32.mrf.mxu0
    %v8135 = vadd.f32 %v6373, %v8134
    %v8136 = vpop.f32.mrf.mxu0
    %v8137 = vadd.f32 %v6373, %v8136
    %8138 = vmatmul.bf16.gmra.mxu0 %v6212
    %v8139 = vpop.f32.mrf.mxu0
    %v8140 = vadd.f32 %v6373, %v8139
    %v8141 = vpop.f32.mrf.mxu0
    %v8142 = vadd.f32 %v6373, %v8141
    %8143 = vmatmul.bf16.gmra.mxu0 %v6214
    %v8144 = vpop.f32.mrf.mxu0
    %v8145 = vadd.f32 %v6373, %v8144
    %v8146 = vpop.f32.mrf.mxu0
    %v8147 = vadd.f32 %v6373, %v8146
    %8148 = vmatmul.bf16.gmra.mxu0 %v6216
    %v8149 = vpop.f32.mrf.mxu0
    %v8150 = vadd.f32 %v6373, %v8149
    %v8151 = vpop.f32.mrf.mxu0
    %v8152 = vadd.f32 %v6373, %v8151
    %8153 = vmatmul.bf16.gmra.mxu0 %v6218
    %v8154 = vpop.f32.mrf.mxu0
    %v8155 = vadd.f32 %v6373, %v8154
    %v8156 = vpop.f32.mrf.mxu0
    %v8157 = vadd.f32 %v6373, %v8156
    %8158 = vmatmul.bf16.gmra.mxu0 %v6220
    %v8159 = vpop.f32.mrf.mxu0
    %v8160 = vadd.f32 %v6373, %v8159
    %v8161 = vpop.f32.mrf.mxu0
    %v8162 = vadd.f32 %v6373, %v8161
    %8163 = vmatmul.bf16.gmra.mxu0 %v6222
    %v8164 = vpop.f32.mrf.mxu0
    %v8165 = vadd.f32 %v6373, %v8164
    %v8166 = vpop.f32.mrf.mxu0
    %v8167 = vadd.f32 %v6373, %v8166
    %8168 = vmatmul.bf16.gmra.mxu0 %v6224
    %v8169 = vpop.f32.mrf.mxu0
    %v8170 = vadd.f32 %v6373, %v8169
    %v8171 = vpop.f32.mrf.mxu0
    %v8172 = vadd.f32 %v6373, %v8171
    %8173 = vmatmul.bf16.gmra.mxu0 %v6226
    %v8174 = vpop.f32.mrf.mxu0
    %v8175 = vadd.f32 %v6373, %v8174
    %v8176 = vpop.f32.mrf.mxu0
    %v8177 = vadd.f32 %v6373, %v8176
    %8178 = vmatmul.bf16.gmra.mxu0 %v6228
    %v8179 = vpop.f32.mrf.mxu0
    %v8180 = vadd.f32 %v6373, %v8179
    %v8181 = vpop.f32.mrf.mxu0
    %v8182 = vadd.f32 %v6373, %v8181
    %8183 = vmatmul.bf16.gmra.mxu0 %v6230
    %v8184 = vpop.f32.mrf.mxu0
    %v8185 = vadd.f32 %v6373, %v8184
    %v8186 = vpop.f32.mrf.mxu0
    %v8187 = vadd.f32 %v6373, %v8186
    %8188 = vmatmul.bf16.gmra.mxu0 %v6232
    %v8189 = vpop.f32.mrf.mxu0
    %v8190 = vadd.f32 %v6373, %v8189
    %v8191 = vpop.f32.mrf.mxu0
    %v8192 = vadd.f32 %v6373, %v8191
    %8193 = vmatmul.bf16.gmra.mxu0 %v6234
    %v8194 = vpop.f32.mrf.mxu0
    %v8195 = vadd.f32 %v6373, %v8194
    %v8196 = vpop.f32.mrf.mxu0
    %v8197 = vadd.f32 %v6373, %v8196
    %8198 = vmatmul.bf16.gmra.mxu0 %v6236
    %v8199 = vpop.f32.mrf.mxu0
    %v8200 = vadd.f32 %v6373, %v8199
    %v8201 = vpop.f32.mrf.mxu0
    %v8202 = vadd.f32 %v6373, %v8201
    %8203 = vmatmul.bf16.gmra.mxu0 %v6238
    %v8204 = vpop.f32.mrf.mxu0
    %v8205 = vadd.f32 %v6373, %v8204
    %v8206 = vpop.f32.mrf.mxu0
    %v8207 = vadd.f32 %v6373, %v8206
    %8208 = vdwg.mxu0
    %8209 = vmatpush.bf16.msra.mxu0 %v6893
    %8210 = vmatpush.bf16.msra.mxu0 %v6885
    %8211 = vmatpush.bf16.msra.mxu0 %v6877
    %8212 = vmatpush.bf16.msra.mxu0 %v6869
    %8213 = vmatpush.bf16.msra.mxu0 %v6861
    %8214 = vmatpush.bf16.msra.mxu0 %v6853
    %8215 = vmatpush.bf16.msra.mxu0 %v6845
    %8216 = vmatpush.bf16.msra.mxu0 %v6837
    %8217 = vmatmul.bf16.gmra.mxu0 %v6177
    %v8218 = vpop.f32.mrf.mxu0
    %v8219 = vadd.f32 %v8050, %v8218
    %v8220 = vpop.f32.mrf.mxu0
    %v8221 = vadd.f32 %v8052, %v8220
    %8222 = vmatmul.bf16.gmra.mxu0 %v6179
    %v8223 = vpop.f32.mrf.mxu0
    %v8224 = vadd.f32 %v8055, %v8223
    %v8225 = vpop.f32.mrf.mxu0
    %v8226 = vadd.f32 %v8057, %v8225
    %8227 = vmatmul.bf16.gmra.mxu0 %v6181
    %v8228 = vpop.f32.mrf.mxu0
    %v8229 = vadd.f32 %v8060, %v8228
    %v8230 = vpop.f32.mrf.mxu0
    %v8231 = vadd.f32 %v8062, %v8230
    %8232 = vmatmul.bf16.gmra.mxu0 %v6183
    %v8233 = vpop.f32.mrf.mxu0
    %v8234 = vadd.f32 %v8065, %v8233
    %v8235 = vpop.f32.mrf.mxu0
    %v8236 = vadd.f32 %v8067, %v8235
    %8237 = vmatmul.bf16.gmra.mxu0 %v6185
    %v8238 = vpop.f32.mrf.mxu0
    %v8239 = vadd.f32 %v8070, %v8238
    %v8240 = vpop.f32.mrf.mxu0
    %v8241 = vadd.f32 %v8072, %v8240
    %8242 = vmatmul.bf16.gmra.mxu0 %v6187
    %v8243 = vpop.f32.mrf.mxu0
    %v8244 = vadd.f32 %v8075, %v8243
    %v8245 = vpop.f32.mrf.mxu0
    %v8246 = vadd.f32 %v8077, %v8245
    %8247 = vmatmul.bf16.gmra.mxu0 %v6189
    %v8248 = vpop.f32.mrf.mxu0
    %v8249 = vadd.f32 %v8080, %v8248
    %v8250 = vpop.f32.mrf.mxu0
    %v8251 = vadd.f32 %v8082, %v8250
    %8252 = vmatmul.bf16.gmra.mxu0 %v6191
    %v8253 = vpop.f32.mrf.mxu0
    %v8254 = vadd.f32 %v8085, %v8253
    %v8255 = vpop.f32.mrf.mxu0
    %v8256 = vadd.f32 %v8087, %v8255
    %8257 = vmatmul.bf16.gmra.mxu0 %v6193
    %v8258 = vpop.f32.mrf.mxu0
    %v8259 = vadd.f32 %v8090, %v8258
    %v8260 = vpop.f32.mrf.mxu0
    %v8261 = vadd.f32 %v8092, %v8260
    %8262 = vmatmul.bf16.gmra.mxu0 %v6195
    %v8263 = vpop.f32.mrf.mxu0
    %v8264 = vadd.f32 %v8095, %v8263
    %v8265 = vpop.f32.mrf.mxu0
    %v8266 = vadd.f32 %v8097, %v8265
    %8267 = vmatmul.bf16.gmra.mxu0 %v6197
    %v8268 = vpop.f32.mrf.mxu0
    %v8269 = vadd.f32 %v8100, %v8268
    %v8270 = vpop.f32.mrf.mxu0
    %v8271 = vadd.f32 %v8102, %v8270
    %8272 = vmatmul.bf16.gmra.mxu0 %v6199
    %v8273 = vpop.f32.mrf.mxu0
    %v8274 = vadd.f32 %v8105, %v8273
    %v8275 = vpop.f32.mrf.mxu0
    %v8276 = vadd.f32 %v8107, %v8275
    %8277 = vmatmul.bf16.gmra.mxu0 %v6201
    %v8278 = vpop.f32.mrf.mxu0
    %v8279 = vadd.f32 %v8110, %v8278
    %v8280 = vpop.f32.mrf.mxu0
    %v8281 = vadd.f32 %v8112, %v8280
    %8282 = vmatmul.bf16.gmra.mxu0 %v6203
    %v8283 = vpop.f32.mrf.mxu0
    %v8284 = vadd.f32 %v8115, %v8283
    %v8285 = vpop.f32.mrf.mxu0
    %v8286 = vadd.f32 %v8117, %v8285
    %8287 = vmatmul.bf16.gmra.mxu0 %v6205
    %v8288 = vpop.f32.mrf.mxu0
    %v8289 = vadd.f32 %v8120, %v8288
    %v8290 = vpop.f32.mrf.mxu0
    %v8291 = vadd.f32 %v8122, %v8290
    %8292 = vmatmul.bf16.gmra.mxu0 %v6207
    %v8293 = vpop.f32.mrf.mxu0
    %v8294 = vadd.f32 %v8125, %v8293
    %v8295 = vpop.f32.mrf.mxu0
    %v8296 = vadd.f32 %v8127, %v8295
    %8297 = vmatmul.bf16.gmra.mxu0 %v6209
    %v8298 = vpop.f32.mrf.mxu0
    %v8299 = vadd.f32 %v8130, %v8298
    %v8300 = vpop.f32.mrf.mxu0
    %v8301 = vadd.f32 %v8132, %v8300
    %8302 = vmatmul.bf16.gmra.mxu0 %v6211
    %v8303 = vpop.f32.mrf.mxu0
    %v8304 = vadd.f32 %v8135, %v8303
    %v8305 = vpop.f32.mrf.mxu0
    %v8306 = vadd.f32 %v8137, %v8305
    %8307 = vmatmul.bf16.gmra.mxu0 %v6213
    %v8308 = vpop.f32.mrf.mxu0
    %v8309 = vadd.f32 %v8140, %v8308
    %v8310 = vpop.f32.mrf.mxu0
    %v8311 = vadd.f32 %v8142, %v8310
    %8312 = vmatmul.bf16.gmra.mxu0 %v6215
    %v8313 = vpop.f32.mrf.mxu0
    %v8314 = vadd.f32 %v8145, %v8313
    %v8315 = vpop.f32.mrf.mxu0
    %v8316 = vadd.f32 %v8147, %v8315
    %8317 = vmatmul.bf16.gmra.mxu0 %v6217
    %v8318 = vpop.f32.mrf.mxu0
    %v8319 = vadd.f32 %v8150, %v8318
    %v8320 = vpop.f32.mrf.mxu0
    %v8321 = vadd.f32 %v8152, %v8320
    %8322 = vmatmul.bf16.gmra.mxu0 %v6219
    %v8323 = vpop.f32.mrf.mxu0
    %v8324 = vadd.f32 %v8155, %v8323
    %v8325 = vpop.f32.mrf.mxu0
    %v8326 = vadd.f32 %v8157, %v8325
    %8327 = vmatmul.bf16.gmra.mxu0 %v6221
    %v8328 = vpop.f32.mrf.mxu0
    %v8329 = vadd.f32 %v8160, %v8328
    %v8330 = vpop.f32.mrf.mxu0
    %v8331 = vadd.f32 %v8162, %v8330
    %8332 = vmatmul.bf16.gmra.mxu0 %v6223
    %v8333 = vpop.f32.mrf.mxu0
    %v8334 = vadd.f32 %v8165, %v8333
    %v8335 = vpop.f32.mrf.mxu0
    %v8336 = vadd.f32 %v8167, %v8335
    %8337 = vmatmul.bf16.gmra.mxu0 %v6225
    %v8338 = vpop.f32.mrf.mxu0
    %v8339 = vadd.f32 %v8170, %v8338
    %v8340 = vpop.f32.mrf.mxu0
    %v8341 = vadd.f32 %v8172, %v8340
    %8342 = vmatmul.bf16.gmra.mxu0 %v6227
    %v8343 = vpop.f32.mrf.mxu0
    %v8344 = vadd.f32 %v8175, %v8343
    %v8345 = vpop.f32.mrf.mxu0
    %v8346 = vadd.f32 %v8177, %v8345
    %8347 = vmatmul.bf16.gmra.mxu0 %v6229
    %v8348 = vpop.f32.mrf.mxu0
    %v8349 = vadd.f32 %v8180, %v8348
    %v8350 = vpop.f32.mrf.mxu0
    %v8351 = vadd.f32 %v8182, %v8350
    %8352 = vmatmul.bf16.gmra.mxu0 %v6231
    %v8353 = vpop.f32.mrf.mxu0
    %v8354 = vadd.f32 %v8185, %v8353
    %v8355 = vpop.f32.mrf.mxu0
    %v8356 = vadd.f32 %v8187, %v8355
    %8357 = vmatmul.bf16.gmra.mxu0 %v6233
    %v8358 = vpop.f32.mrf.mxu0
    %v8359 = vadd.f32 %v8190, %v8358
    %v8360 = vpop.f32.mrf.mxu0
    %v8361 = vadd.f32 %v8192, %v8360
    %8362 = vmatmul.bf16.gmra.mxu0 %v6235
    %v8363 = vpop.f32.mrf.mxu0
    %v8364 = vadd.f32 %v8195, %v8363
    %v8365 = vpop.f32.mrf.mxu0
    %v8366 = vadd.f32 %v8197, %v8365
    %8367 = vmatmul.bf16.gmra.mxu0 %v6237
    %v8368 = vpop.f32.mrf.mxu0
    %v8369 = vadd.f32 %v8200, %v8368
    %v8370 = vpop.f32.mrf.mxu0
    %v8371 = vadd.f32 %v8202, %v8370
    %8372 = vmatmul.bf16.gmra.mxu0 %v6239
    %v8373 = vpop.f32.mrf.mxu0
    %v8374 = vadd.f32 %v8205, %v8373
    %v8375 = vpop.f32.mrf.mxu0
    %v8376 = vadd.f32 %v8207, %v8375
    %8377 = vdwg.mxu0
    %8378 = vmatpush.bf16.msra.mxu0 %v6830
    %8379 = vmatpush.bf16.msra.mxu0 %v6822
    %8380 = vmatpush.bf16.msra.mxu0 %v6814
    %8381 = vmatpush.bf16.msra.mxu0 %v6806
    %8382 = vmatpush.bf16.msra.mxu0 %v6798
    %8383 = vmatpush.bf16.msra.mxu0 %v6790
    %8384 = vmatpush.bf16.msra.mxu0 %v6782
    %8385 = vmatpush.bf16.msra.mxu0 %v6774
    %8386 = vmatmul.bf16.gmra.mxu0 %v6176
    %v8387 = vpop.f32.mrf.mxu0
    %v8388 = vadd.f32 %v6374, %v8387
    %v8389 = vpop.f32.mrf.mxu0
    %v8390 = vadd.f32 %v6374, %v8389
    %8391 = vmatmul.bf16.gmra.mxu0 %v6178
    %v8392 = vpop.f32.mrf.mxu0
    %v8393 = vadd.f32 %v6374, %v8392
    %v8394 = vpop.f32.mrf.mxu0
    %v8395 = vadd.f32 %v6374, %v8394
    %8396 = vmatmul.bf16.gmra.mxu0 %v6180
    %v8397 = vpop.f32.mrf.mxu0
    %v8398 = vadd.f32 %v6374, %v8397
    %v8399 = vpop.f32.mrf.mxu0
    %v8400 = vadd.f32 %v6374, %v8399
    %8401 = vmatmul.bf16.gmra.mxu0 %v6182
    %v8402 = vpop.f32.mrf.mxu0
    %v8403 = vadd.f32 %v6374, %v8402
    %v8404 = vpop.f32.mrf.mxu0
    %v8405 = vadd.f32 %v6374, %v8404
    %8406 = vmatmul.bf16.gmra.mxu0 %v6184
    %v8407 = vpop.f32.mrf.mxu0
    %v8408 = vadd.f32 %v6374, %v8407
    %v8409 = vpop.f32.mrf.mxu0
    %v8410 = vadd.f32 %v6374, %v8409
    %8411 = vmatmul.bf16.gmra.mxu0 %v6186
    %v8412 = vpop.f32.mrf.mxu0
    %v8413 = vadd.f32 %v6374, %v8412
    %v8414 = vpop.f32.mrf.mxu0
    %v8415 = vadd.f32 %v6374, %v8414
    %8416 = vmatmul.bf16.gmra.mxu0 %v6188
    %v8417 = vpop.f32.mrf.mxu0
    %v8418 = vadd.f32 %v6374, %v8417
    %v8419 = vpop.f32.mrf.mxu0
    %v8420 = vadd.f32 %v6374, %v8419
    %8421 = vmatmul.bf16.gmra.mxu0 %v6190
    %v8422 = vpop.f32.mrf.mxu0
    %v8423 = vadd.f32 %v6374, %v8422
    %v8424 = vpop.f32.mrf.mxu0
    %v8425 = vadd.f32 %v6374, %v8424
    %8426 = vmatmul.bf16.gmra.mxu0 %v6192
    %v8427 = vpop.f32.mrf.mxu0
    %v8428 = vadd.f32 %v6374, %v8427
    %v8429 = vpop.f32.mrf.mxu0
    %v8430 = vadd.f32 %v6374, %v8429
    %8431 = vmatmul.bf16.gmra.mxu0 %v6194
    %v8432 = vpop.f32.mrf.mxu0
    %v8433 = vadd.f32 %v6374, %v8432
    %v8434 = vpop.f32.mrf.mxu0
    %v8435 = vadd.f32 %v6374, %v8434
    %8436 = vmatmul.bf16.gmra.mxu0 %v6196
    %v8437 = vpop.f32.mrf.mxu0
    %v8438 = vadd.f32 %v6374, %v8437
    %v8439 = vpop.f32.mrf.mxu0
    %v8440 = vadd.f32 %v6374, %v8439
    %8441 = vmatmul.bf16.gmra.mxu0 %v6198
    %v8442 = vpop.f32.mrf.mxu0
    %v8443 = vadd.f32 %v6374, %v8442
    %v8444 = vpop.f32.mrf.mxu0
    %v8445 = vadd.f32 %v6374, %v8444
    %8446 = vmatmul.bf16.gmra.mxu0 %v6200
    %v8447 = vpop.f32.mrf.mxu0
    %v8448 = vadd.f32 %v6374, %v8447
    %v8449 = vpop.f32.mrf.mxu0
    %v8450 = vadd.f32 %v6374, %v8449
    %8451 = vmatmul.bf16.gmra.mxu0 %v6202
    %v8452 = vpop.f32.mrf.mxu0
    %v8453 = vadd.f32 %v6374, %v8452
    %v8454 = vpop.f32.mrf.mxu0
    %v8455 = vadd.f32 %v6374, %v8454
    %8456 = vmatmul.bf16.gmra.mxu0 %v6204
    %v8457 = vpop.f32.mrf.mxu0
    %v8458 = vadd.f32 %v6374, %v8457
    %v8459 = vpop.f32.mrf.mxu0
    %v8460 = vadd.f32 %v6374, %v8459
    %8461 = vmatmul.bf16.gmra.mxu0 %v6206
    %v8462 = vpop.f32.mrf.mxu0
    %v8463 = vadd.f32 %v6374, %v8462
    %v8464 = vpop.f32.mrf.mxu0
    %v8465 = vadd.f32 %v6374, %v8464
    %8466 = vmatmul.bf16.gmra.mxu0 %v6208
    %v8467 = vpop.f32.mrf.mxu0
    %v8468 = vadd.f32 %v6374, %v8467
    %v8469 = vpop.f32.mrf.mxu0
    %v8470 = vadd.f32 %v6374, %v8469
    %8471 = vmatmul.bf16.gmra.mxu0 %v6210
    %v8472 = vpop.f32.mrf.mxu0
    %v8473 = vadd.f32 %v6374, %v8472
    %v8474 = vpop.f32.mrf.mxu0
    %v8475 = vadd.f32 %v6374, %v8474
    %8476 = vmatmul.bf16.gmra.mxu0 %v6212
    %v8477 = vpop.f32.mrf.mxu0
    %v8478 = vadd.f32 %v6374, %v8477
    %v8479 = vpop.f32.mrf.mxu0
    %v8480 = vadd.f32 %v6374, %v8479
    %8481 = vmatmul.bf16.gmra.mxu0 %v6214
    %v8482 = vpop.f32.mrf.mxu0
    %v8483 = vadd.f32 %v6374, %v8482
    %v8484 = vpop.f32.mrf.mxu0
    %v8485 = vadd.f32 %v6374, %v8484
    %8486 = vmatmul.bf16.gmra.mxu0 %v6216
    %v8487 = vpop.f32.mrf.mxu0
    %v8488 = vadd.f32 %v6374, %v8487
    %v8489 = vpop.f32.mrf.mxu0
    %v8490 = vadd.f32 %v6374, %v8489
    %8491 = vmatmul.bf16.gmra.mxu0 %v6218
    %v8492 = vpop.f32.mrf.mxu0
    %v8493 = vadd.f32 %v6374, %v8492
    %v8494 = vpop.f32.mrf.mxu0
    %v8495 = vadd.f32 %v6374, %v8494
    %8496 = vmatmul.bf16.gmra.mxu0 %v6220
    %v8497 = vpop.f32.mrf.mxu0
    %v8498 = vadd.f32 %v6374, %v8497
    %v8499 = vpop.f32.mrf.mxu0
    %v8500 = vadd.f32 %v6374, %v8499
    %8501 = vmatmul.bf16.gmra.mxu0 %v6222
    %v8502 = vpop.f32.mrf.mxu0
    %v8503 = vadd.f32 %v6374, %v8502
    %v8504 = vpop.f32.mrf.mxu0
    %v8505 = vadd.f32 %v6374, %v8504
    %8506 = vmatmul.bf16.gmra.mxu0 %v6224
    %v8507 = vpop.f32.mrf.mxu0
    %v8508 = vadd.f32 %v6374, %v8507
    %v8509 = vpop.f32.mrf.mxu0
    %v8510 = vadd.f32 %v6374, %v8509
    %8511 = vmatmul.bf16.gmra.mxu0 %v6226
    %v8512 = vpop.f32.mrf.mxu0
    %v8513 = vadd.f32 %v6374, %v8512
    %v8514 = vpop.f32.mrf.mxu0
    %v8515 = vadd.f32 %v6374, %v8514
    %8516 = vmatmul.bf16.gmra.mxu0 %v6228
    %v8517 = vpop.f32.mrf.mxu0
    %v8518 = vadd.f32 %v6374, %v8517
    %v8519 = vpop.f32.mrf.mxu0
    %v8520 = vadd.f32 %v6374, %v8519
    %8521 = vmatmul.bf16.gmra.mxu0 %v6230
    %v8522 = vpop.f32.mrf.mxu0
    %v8523 = vadd.f32 %v6374, %v8522
    %v8524 = vpop.f32.mrf.mxu0
    %v8525 = vadd.f32 %v6374, %v8524
    %8526 = vmatmul.bf16.gmra.mxu0 %v6232
    %v8527 = vpop.f32.mrf.mxu0
    %v8528 = vadd.f32 %v6374, %v8527
    %v8529 = vpop.f32.mrf.mxu0
    %v8530 = vadd.f32 %v6374, %v8529
    %8531 = vmatmul.bf16.gmra.mxu0 %v6234
    %v8532 = vpop.f32.mrf.mxu0
    %v8533 = vadd.f32 %v6374, %v8532
    %v8534 = vpop.f32.mrf.mxu0
    %v8535 = vadd.f32 %v6374, %v8534
    %8536 = vmatmul.bf16.gmra.mxu0 %v6236
    %v8537 = vpop.f32.mrf.mxu0
    %v8538 = vadd.f32 %v6374, %v8537
    %v8539 = vpop.f32.mrf.mxu0
    %v8540 = vadd.f32 %v6374, %v8539
    %8541 = vmatmul.bf16.gmra.mxu0 %v6238
    %v8542 = vpop.f32.mrf.mxu0
    %v8543 = vadd.f32 %v6374, %v8542
    %v8544 = vpop.f32.mrf.mxu0
    %v8545 = vadd.f32 %v6374, %v8544
    %8546 = vdwg.mxu0
    %8547 = vmatpush.bf16.msra.mxu0 %v6894
    %8548 = vmatpush.bf16.msra.mxu0 %v6886
    %8549 = vmatpush.bf16.msra.mxu0 %v6878
    %8550 = vmatpush.bf16.msra.mxu0 %v6870
    %8551 = vmatpush.bf16.msra.mxu0 %v6862
    %8552 = vmatpush.bf16.msra.mxu0 %v6854
    %8553 = vmatpush.bf16.msra.mxu0 %v6846
    %8554 = vmatpush.bf16.msra.mxu0 %v6838
    %8555 = vmatmul.bf16.gmra.mxu0 %v6177
    %v8556 = vpop.f32.mrf.mxu0
    %v8557 = vadd.f32 %v8388, %v8556
    %v8558 = vpop.f32.mrf.mxu0
    %v8559 = vadd.f32 %v8390, %v8558
    %8560 = vmatmul.bf16.gmra.mxu0 %v6179
    %v8561 = vpop.f32.mrf.mxu0
    %v8562 = vadd.f32 %v8393, %v8561
    %v8563 = vpop.f32.mrf.mxu0
    %v8564 = vadd.f32 %v8395, %v8563
    %8565 = vmatmul.bf16.gmra.mxu0 %v6181
    %v8566 = vpop.f32.mrf.mxu0
    %v8567 = vadd.f32 %v8398, %v8566
    %v8568 = vpop.f32.mrf.mxu0
    %v8569 = vadd.f32 %v8400, %v8568
    %8570 = vmatmul.bf16.gmra.mxu0 %v6183
    %v8571 = vpop.f32.mrf.mxu0
    %v8572 = vadd.f32 %v8403, %v8571
    %v8573 = vpop.f32.mrf.mxu0
    %v8574 = vadd.f32 %v8405, %v8573
    %8575 = vmatmul.bf16.gmra.mxu0 %v6185
    %v8576 = vpop.f32.mrf.mxu0
    %v8577 = vadd.f32 %v8408, %v8576
    %v8578 = vpop.f32.mrf.mxu0
    %v8579 = vadd.f32 %v8410, %v8578
    %8580 = vmatmul.bf16.gmra.mxu0 %v6187
    %v8581 = vpop.f32.mrf.mxu0
    %v8582 = vadd.f32 %v8413, %v8581
    %v8583 = vpop.f32.mrf.mxu0
    %v8584 = vadd.f32 %v8415, %v8583
    %8585 = vmatmul.bf16.gmra.mxu0 %v6189
    %v8586 = vpop.f32.mrf.mxu0
    %v8587 = vadd.f32 %v8418, %v8586
    %v8588 = vpop.f32.mrf.mxu0
    %v8589 = vadd.f32 %v8420, %v8588
    %8590 = vmatmul.bf16.gmra.mxu0 %v6191
    %v8591 = vpop.f32.mrf.mxu0
    %v8592 = vadd.f32 %v8423, %v8591
    %v8593 = vpop.f32.mrf.mxu0
    %v8594 = vadd.f32 %v8425, %v8593
    %8595 = vmatmul.bf16.gmra.mxu0 %v6193
    %v8596 = vpop.f32.mrf.mxu0
    %v8597 = vadd.f32 %v8428, %v8596
    %v8598 = vpop.f32.mrf.mxu0
    %v8599 = vadd.f32 %v8430, %v8598
    %8600 = vmatmul.bf16.gmra.mxu0 %v6195
    %v8601 = vpop.f32.mrf.mxu0
    %v8602 = vadd.f32 %v8433, %v8601
    %v8603 = vpop.f32.mrf.mxu0
    %v8604 = vadd.f32 %v8435, %v8603
    %8605 = vmatmul.bf16.gmra.mxu0 %v6197
    %v8606 = vpop.f32.mrf.mxu0
    %v8607 = vadd.f32 %v8438, %v8606
    %v8608 = vpop.f32.mrf.mxu0
    %v8609 = vadd.f32 %v8440, %v8608
    %8610 = vmatmul.bf16.gmra.mxu0 %v6199
    %v8611 = vpop.f32.mrf.mxu0
    %v8612 = vadd.f32 %v8443, %v8611
    %v8613 = vpop.f32.mrf.mxu0
    %v8614 = vadd.f32 %v8445, %v8613
    %8615 = vmatmul.bf16.gmra.mxu0 %v6201
    %v8616 = vpop.f32.mrf.mxu0
    %v8617 = vadd.f32 %v8448, %v8616
    %v8618 = vpop.f32.mrf.mxu0
    %v8619 = vadd.f32 %v8450, %v8618
    %8620 = vmatmul.bf16.gmra.mxu0 %v6203
    %v8621 = vpop.f32.mrf.mxu0
    %v8622 = vadd.f32 %v8453, %v8621
    %v8623 = vpop.f32.mrf.mxu0
    %v8624 = vadd.f32 %v8455, %v8623
    %8625 = vmatmul.bf16.gmra.mxu0 %v6205
    %v8626 = vpop.f32.mrf.mxu0
    %v8627 = vadd.f32 %v8458, %v8626
    %v8628 = vpop.f32.mrf.mxu0
    %v8629 = vadd.f32 %v8460, %v8628
    %8630 = vmatmul.bf16.gmra.mxu0 %v6207
    %v8631 = vpop.f32.mrf.mxu0
    %v8632 = vadd.f32 %v8463, %v8631
    %v8633 = vpop.f32.mrf.mxu0
    %v8634 = vadd.f32 %v8465, %v8633
    %8635 = vmatmul.bf16.gmra.mxu0 %v6209
    %v8636 = vpop.f32.mrf.mxu0
    %v8637 = vadd.f32 %v8468, %v8636
    %v8638 = vpop.f32.mrf.mxu0
    %v8639 = vadd.f32 %v8470, %v8638
    %8640 = vmatmul.bf16.gmra.mxu0 %v6211
    %v8641 = vpop.f32.mrf.mxu0
    %v8642 = vadd.f32 %v8473, %v8641
    %v8643 = vpop.f32.mrf.mxu0
    %v8644 = vadd.f32 %v8475, %v8643
    %8645 = vmatmul.bf16.gmra.mxu0 %v6213
    %v8646 = vpop.f32.mrf.mxu0
    %v8647 = vadd.f32 %v8478, %v8646
    %v8648 = vpop.f32.mrf.mxu0
    %v8649 = vadd.f32 %v8480, %v8648
    %8650 = vmatmul.bf16.gmra.mxu0 %v6215
    %v8651 = vpop.f32.mrf.mxu0
    %v8652 = vadd.f32 %v8483, %v8651
    %v8653 = vpop.f32.mrf.mxu0
    %v8654 = vadd.f32 %v8485, %v8653
    %8655 = vmatmul.bf16.gmra.mxu0 %v6217
    %v8656 = vpop.f32.mrf.mxu0
    %v8657 = vadd.f32 %v8488, %v8656
    %v8658 = vpop.f32.mrf.mxu0
    %v8659 = vadd.f32 %v8490, %v8658
    %8660 = vmatmul.bf16.gmra.mxu0 %v6219
    %v8661 = vpop.f32.mrf.mxu0
    %v8662 = vadd.f32 %v8493, %v8661
    %v8663 = vpop.f32.mrf.mxu0
    %v8664 = vadd.f32 %v8495, %v8663
    %8665 = vmatmul.bf16.gmra.mxu0 %v6221
    %v8666 = vpop.f32.mrf.mxu0
    %v8667 = vadd.f32 %v8498, %v8666
    %v8668 = vpop.f32.mrf.mxu0
    %v8669 = vadd.f32 %v8500, %v8668
    %8670 = vmatmul.bf16.gmra.mxu0 %v6223
    %v8671 = vpop.f32.mrf.mxu0
    %v8672 = vadd.f32 %v8503, %v8671
    %v8673 = vpop.f32.mrf.mxu0
    %v8674 = vadd.f32 %v8505, %v8673
    %8675 = vmatmul.bf16.gmra.mxu0 %v6225
    %v8676 = vpop.f32.mrf.mxu0
    %v8677 = vadd.f32 %v8508, %v8676
    %v8678 = vpop.f32.mrf.mxu0
    %v8679 = vadd.f32 %v8510, %v8678
    %8680 = vmatmul.bf16.gmra.mxu0 %v6227
    %v8681 = vpop.f32.mrf.mxu0
    %v8682 = vadd.f32 %v8513, %v8681
    %v8683 = vpop.f32.mrf.mxu0
    %v8684 = vadd.f32 %v8515, %v8683
    %8685 = vmatmul.bf16.gmra.mxu0 %v6229
    %v8686 = vpop.f32.mrf.mxu0
    %v8687 = vadd.f32 %v8518, %v8686
    %v8688 = vpop.f32.mrf.mxu0
    %v8689 = vadd.f32 %v8520, %v8688
    %8690 = vmatmul.bf16.gmra.mxu0 %v6231
    %v8691 = vpop.f32.mrf.mxu0
    %v8692 = vadd.f32 %v8523, %v8691
    %v8693 = vpop.f32.mrf.mxu0
    %v8694 = vadd.f32 %v8525, %v8693
    %8695 = vmatmul.bf16.gmra.mxu0 %v6233
    %v8696 = vpop.f32.mrf.mxu0
    %v8697 = vadd.f32 %v8528, %v8696
    %v8698 = vpop.f32.mrf.mxu0
    %v8699 = vadd.f32 %v8530, %v8698
    %8700 = vmatmul.bf16.gmra.mxu0 %v6235
    %v8701 = vpop.f32.mrf.mxu0
    %v8702 = vadd.f32 %v8533, %v8701
    %v8703 = vpop.f32.mrf.mxu0
    %v8704 = vadd.f32 %v8535, %v8703
    %8705 = vmatmul.bf16.gmra.mxu0 %v6237
    %v8706 = vpop.f32.mrf.mxu0
    %v8707 = vadd.f32 %v8538, %v8706
    %v8708 = vpop.f32.mrf.mxu0
    %v8709 = vadd.f32 %v8540, %v8708
    %8710 = vmatmul.bf16.gmra.mxu0 %v6239
    %v8711 = vpop.f32.mrf.mxu0
    %v8712 = vadd.f32 %v8543, %v8711
    %v8713 = vpop.f32.mrf.mxu0
    %v8714 = vadd.f32 %v8545, %v8713
    %8715 = vdwg.mxu0
    %8716 = vmatpush.bf16.msra.mxu0 %v6831
    %8717 = vmatpush.bf16.msra.mxu0 %v6823
    %8718 = vmatpush.bf16.msra.mxu0 %v6815
    %8719 = vmatpush.bf16.msra.mxu0 %v6807
    %8720 = vmatpush.bf16.msra.mxu0 %v6799
    %8721 = vmatpush.bf16.msra.mxu0 %v6791
    %8722 = vmatpush.bf16.msra.mxu0 %v6783
    %8723 = vmatpush.bf16.msra.mxu0 %v6775
    %8724 = vmatmul.bf16.gmra.mxu0 %v6176
    %v8725 = vpop.f32.mrf.mxu0
    %v8726 = vadd.f32 %v6375, %v8725
    %v8727 = vpop.f32.mrf.mxu0
    %v8728 = vadd.f32 %v6375, %v8727
    %8729 = vmatmul.bf16.gmra.mxu0 %v6178
    %v8730 = vpop.f32.mrf.mxu0
    %v8731 = vadd.f32 %v6375, %v8730
    %v8732 = vpop.f32.mrf.mxu0
    %v8733 = vadd.f32 %v6375, %v8732
    %8734 = vmatmul.bf16.gmra.mxu0 %v6180
    %v8735 = vpop.f32.mrf.mxu0
    %v8736 = vadd.f32 %v6375, %v8735
    %v8737 = vpop.f32.mrf.mxu0
    %v8738 = vadd.f32 %v6375, %v8737
    %8739 = vmatmul.bf16.gmra.mxu0 %v6182
    %v8740 = vpop.f32.mrf.mxu0
    %v8741 = vadd.f32 %v6375, %v8740
    %v8742 = vpop.f32.mrf.mxu0
    %v8743 = vadd.f32 %v6375, %v8742
    %8744 = vmatmul.bf16.gmra.mxu0 %v6184
    %v8745 = vpop.f32.mrf.mxu0
    %v8746 = vadd.f32 %v6375, %v8745
    %v8747 = vpop.f32.mrf.mxu0
    %v8748 = vadd.f32 %v6375, %v8747
    %8749 = vmatmul.bf16.gmra.mxu0 %v6186
    %v8750 = vpop.f32.mrf.mxu0
    %v8751 = vadd.f32 %v6375, %v8750
    %v8752 = vpop.f32.mrf.mxu0
    %v8753 = vadd.f32 %v6375, %v8752
    %8754 = vmatmul.bf16.gmra.mxu0 %v6188
    %v8755 = vpop.f32.mrf.mxu0
    %v8756 = vadd.f32 %v6375, %v8755
    %v8757 = vpop.f32.mrf.mxu0
    %v8758 = vadd.f32 %v6375, %v8757
    %8759 = vmatmul.bf16.gmra.mxu0 %v6190
    %v8760 = vpop.f32.mrf.mxu0
    %v8761 = vadd.f32 %v6375, %v8760
    %v8762 = vpop.f32.mrf.mxu0
    %v8763 = vadd.f32 %v6375, %v8762
    %8764 = vmatmul.bf16.gmra.mxu0 %v6192
    %v8765 = vpop.f32.mrf.mxu0
    %v8766 = vadd.f32 %v6375, %v8765
    %v8767 = vpop.f32.mrf.mxu0
    %v8768 = vadd.f32 %v6375, %v8767
    %8769 = vmatmul.bf16.gmra.mxu0 %v6194
    %v8770 = vpop.f32.mrf.mxu0
    %v8771 = vadd.f32 %v6375, %v8770
    %v8772 = vpop.f32.mrf.mxu0
    %v8773 = vadd.f32 %v6375, %v8772
    %8774 = vmatmul.bf16.gmra.mxu0 %v6196
    %v8775 = vpop.f32.mrf.mxu0
    %v8776 = vadd.f32 %v6375, %v8775
    %v8777 = vpop.f32.mrf.mxu0
    %v8778 = vadd.f32 %v6375, %v8777
    %8779 = vmatmul.bf16.gmra.mxu0 %v6198
    %v8780 = vpop.f32.mrf.mxu0
    %v8781 = vadd.f32 %v6375, %v8780
    %v8782 = vpop.f32.mrf.mxu0
    %v8783 = vadd.f32 %v6375, %v8782
    %8784 = vmatmul.bf16.gmra.mxu0 %v6200
    %v8785 = vpop.f32.mrf.mxu0
    %v8786 = vadd.f32 %v6375, %v8785
    %v8787 = vpop.f32.mrf.mxu0
    %v8788 = vadd.f32 %v6375, %v8787
    %8789 = vmatmul.bf16.gmra.mxu0 %v6202
    %v8790 = vpop.f32.mrf.mxu0
    %v8791 = vadd.f32 %v6375, %v8790
    %v8792 = vpop.f32.mrf.mxu0
    %v8793 = vadd.f32 %v6375, %v8792
    %8794 = vmatmul.bf16.gmra.mxu0 %v6204
    %v8795 = vpop.f32.mrf.mxu0
    %v8796 = vadd.f32 %v6375, %v8795
    %v8797 = vpop.f32.mrf.mxu0
    %v8798 = vadd.f32 %v6375, %v8797
    %8799 = vmatmul.bf16.gmra.mxu0 %v6206
    %v8800 = vpop.f32.mrf.mxu0
    %v8801 = vadd.f32 %v6375, %v8800
    %v8802 = vpop.f32.mrf.mxu0
    %v8803 = vadd.f32 %v6375, %v8802
    %8804 = vmatmul.bf16.gmra.mxu0 %v6208
    %v8805 = vpop.f32.mrf.mxu0
    %v8806 = vadd.f32 %v6375, %v8805
    %v8807 = vpop.f32.mrf.mxu0
    %v8808 = vadd.f32 %v6375, %v8807
    %8809 = vmatmul.bf16.gmra.mxu0 %v6210
    %v8810 = vpop.f32.mrf.mxu0
    %v8811 = vadd.f32 %v6375, %v8810
    %v8812 = vpop.f32.mrf.mxu0
    %v8813 = vadd.f32 %v6375, %v8812
    %8814 = vmatmul.bf16.gmra.mxu0 %v6212
    %v8815 = vpop.f32.mrf.mxu0
    %v8816 = vadd.f32 %v6375, %v8815
    %v8817 = vpop.f32.mrf.mxu0
    %v8818 = vadd.f32 %v6375, %v8817
    %8819 = vmatmul.bf16.gmra.mxu0 %v6214
    %v8820 = vpop.f32.mrf.mxu0
    %v8821 = vadd.f32 %v6375, %v8820
    %v8822 = vpop.f32.mrf.mxu0
    %v8823 = vadd.f32 %v6375, %v8822
    %8824 = vmatmul.bf16.gmra.mxu0 %v6216
    %v8825 = vpop.f32.mrf.mxu0
    %v8826 = vadd.f32 %v6375, %v8825
    %v8827 = vpop.f32.mrf.mxu0
    %v8828 = vadd.f32 %v6375, %v8827
    %8829 = vmatmul.bf16.gmra.mxu0 %v6218
    %v8830 = vpop.f32.mrf.mxu0
    %v8831 = vadd.f32 %v6375, %v8830
    %v8832 = vpop.f32.mrf.mxu0
    %v8833 = vadd.f32 %v6375, %v8832
    %8834 = vmatmul.bf16.gmra.mxu0 %v6220
    %v8835 = vpop.f32.mrf.mxu0
    %v8836 = vadd.f32 %v6375, %v8835
    %v8837 = vpop.f32.mrf.mxu0
    %v8838 = vadd.f32 %v6375, %v8837
    %8839 = vmatmul.bf16.gmra.mxu0 %v6222
    %v8840 = vpop.f32.mrf.mxu0
    %v8841 = vadd.f32 %v6375, %v8840
    %v8842 = vpop.f32.mrf.mxu0
    %v8843 = vadd.f32 %v6375, %v8842
    %8844 = vmatmul.bf16.gmra.mxu0 %v6224
    %v8845 = vpop.f32.mrf.mxu0
    %v8846 = vadd.f32 %v6375, %v8845
    %v8847 = vpop.f32.mrf.mxu0
    %v8848 = vadd.f32 %v6375, %v8847
    %8849 = vmatmul.bf16.gmra.mxu0 %v6226
    %v8850 = vpop.f32.mrf.mxu0
    %v8851 = vadd.f32 %v6375, %v8850
    %v8852 = vpop.f32.mrf.mxu0
    %v8853 = vadd.f32 %v6375, %v8852
    %8854 = vmatmul.bf16.gmra.mxu0 %v6228
    %v8855 = vpop.f32.mrf.mxu0
    %v8856 = vadd.f32 %v6375, %v8855
    %v8857 = vpop.f32.mrf.mxu0
    %v8858 = vadd.f32 %v6375, %v8857
    %8859 = vmatmul.bf16.gmra.mxu0 %v6230
    %v8860 = vpop.f32.mrf.mxu0
    %v8861 = vadd.f32 %v6375, %v8860
    %v8862 = vpop.f32.mrf.mxu0
    %v8863 = vadd.f32 %v6375, %v8862
    %8864 = vmatmul.bf16.gmra.mxu0 %v6232
    %v8865 = vpop.f32.mrf.mxu0
    %v8866 = vadd.f32 %v6375, %v8865
    %v8867 = vpop.f32.mrf.mxu0
    %v8868 = vadd.f32 %v6375, %v8867
    %8869 = vmatmul.bf16.gmra.mxu0 %v6234
    %v8870 = vpop.f32.mrf.mxu0
    %v8871 = vadd.f32 %v6375, %v8870
    %v8872 = vpop.f32.mrf.mxu0
    %v8873 = vadd.f32 %v6375, %v8872
    %8874 = vmatmul.bf16.gmra.mxu0 %v6236
    %v8875 = vpop.f32.mrf.mxu0
    %v8876 = vadd.f32 %v6375, %v8875
    %v8877 = vpop.f32.mrf.mxu0
    %v8878 = vadd.f32 %v6375, %v8877
    %8879 = vmatmul.bf16.gmra.mxu0 %v6238
    %v8880 = vpop.f32.mrf.mxu0
    %v8881 = vadd.f32 %v6375, %v8880
    %v8882 = vpop.f32.mrf.mxu0
    %v8883 = vadd.f32 %v6375, %v8882
    %8884 = vdwg.mxu0
    %8885 = vmatpush.bf16.msra.mxu0 %v6895
    %8886 = vmatpush.bf16.msra.mxu0 %v6887
    %8887 = vmatpush.bf16.msra.mxu0 %v6879
    %8888 = vmatpush.bf16.msra.mxu0 %v6871
    %8889 = vmatpush.bf16.msra.mxu0 %v6863
    %8890 = vmatpush.bf16.msra.mxu0 %v6855
    %8891 = vmatpush.bf16.msra.mxu0 %v6847
    %8892 = vmatpush.bf16.msra.mxu0 %v6839
    %8893 = vmatmul.bf16.gmra.mxu0 %v6177
    %v8894 = vpop.f32.mrf.mxu0
    %v8895 = vadd.f32 %v8726, %v8894
    %v8896 = vpop.f32.mrf.mxu0
    %v8897 = vadd.f32 %v8728, %v8896
    %8898 = vmatmul.bf16.gmra.mxu0 %v6179
    %v8899 = vpop.f32.mrf.mxu0
    %v8900 = vadd.f32 %v8731, %v8899
    %v8901 = vpop.f32.mrf.mxu0
    %v8902 = vadd.f32 %v8733, %v8901
    %8903 = vmatmul.bf16.gmra.mxu0 %v6181
    %v8904 = vpop.f32.mrf.mxu0
    %v8905 = vadd.f32 %v8736, %v8904
    %v8906 = vpop.f32.mrf.mxu0
    %v8907 = vadd.f32 %v8738, %v8906
    %8908 = vmatmul.bf16.gmra.mxu0 %v6183
    %v8909 = vpop.f32.mrf.mxu0
    %v8910 = vadd.f32 %v8741, %v8909
    %v8911 = vpop.f32.mrf.mxu0
    %v8912 = vadd.f32 %v8743, %v8911
    %8913 = vmatmul.bf16.gmra.mxu0 %v6185
    %v8914 = vpop.f32.mrf.mxu0
    %v8915 = vadd.f32 %v8746, %v8914
    %v8916 = vpop.f32.mrf.mxu0
    %v8917 = vadd.f32 %v8748, %v8916
    %8918 = vmatmul.bf16.gmra.mxu0 %v6187
    %v8919 = vpop.f32.mrf.mxu0
    %v8920 = vadd.f32 %v8751, %v8919
    %v8921 = vpop.f32.mrf.mxu0
    %v8922 = vadd.f32 %v8753, %v8921
    %8923 = vmatmul.bf16.gmra.mxu0 %v6189
    %v8924 = vpop.f32.mrf.mxu0
    %v8925 = vadd.f32 %v8756, %v8924
    %v8926 = vpop.f32.mrf.mxu0
    %v8927 = vadd.f32 %v8758, %v8926
    %8928 = vmatmul.bf16.gmra.mxu0 %v6191
    %v8929 = vpop.f32.mrf.mxu0
    %v8930 = vadd.f32 %v8761, %v8929
    %v8931 = vpop.f32.mrf.mxu0
    %v8932 = vadd.f32 %v8763, %v8931
    %8933 = vmatmul.bf16.gmra.mxu0 %v6193
    %v8934 = vpop.f32.mrf.mxu0
    %v8935 = vadd.f32 %v8766, %v8934
    %v8936 = vpop.f32.mrf.mxu0
    %v8937 = vadd.f32 %v8768, %v8936
    %8938 = vmatmul.bf16.gmra.mxu0 %v6195
    %v8939 = vpop.f32.mrf.mxu0
    %v8940 = vadd.f32 %v8771, %v8939
    %v8941 = vpop.f32.mrf.mxu0
    %v8942 = vadd.f32 %v8773, %v8941
    %8943 = vmatmul.bf16.gmra.mxu0 %v6197
    %v8944 = vpop.f32.mrf.mxu0
    %v8945 = vadd.f32 %v8776, %v8944
    %v8946 = vpop.f32.mrf.mxu0
    %v8947 = vadd.f32 %v8778, %v8946
    %8948 = vmatmul.bf16.gmra.mxu0 %v6199
    %v8949 = vpop.f32.mrf.mxu0
    %v8950 = vadd.f32 %v8781, %v8949
    %v8951 = vpop.f32.mrf.mxu0
    %v8952 = vadd.f32 %v8783, %v8951
    %8953 = vmatmul.bf16.gmra.mxu0 %v6201
    %v8954 = vpop.f32.mrf.mxu0
    %v8955 = vadd.f32 %v8786, %v8954
    %v8956 = vpop.f32.mrf.mxu0
    %v8957 = vadd.f32 %v8788, %v8956
    %8958 = vmatmul.bf16.gmra.mxu0 %v6203
    %v8959 = vpop.f32.mrf.mxu0
    %v8960 = vadd.f32 %v8791, %v8959
    %v8961 = vpop.f32.mrf.mxu0
    %v8962 = vadd.f32 %v8793, %v8961
    %8963 = vmatmul.bf16.gmra.mxu0 %v6205
    %v8964 = vpop.f32.mrf.mxu0
    %v8965 = vadd.f32 %v8796, %v8964
    %v8966 = vpop.f32.mrf.mxu0
    %v8967 = vadd.f32 %v8798, %v8966
    %8968 = vmatmul.bf16.gmra.mxu0 %v6207
    %v8969 = vpop.f32.mrf.mxu0
    %v8970 = vadd.f32 %v8801, %v8969
    %v8971 = vpop.f32.mrf.mxu0
    %v8972 = vadd.f32 %v8803, %v8971
    %8973 = vmatmul.bf16.gmra.mxu0 %v6209
    %v8974 = vpop.f32.mrf.mxu0
    %v8975 = vadd.f32 %v8806, %v8974
    %v8976 = vpop.f32.mrf.mxu0
    %v8977 = vadd.f32 %v8808, %v8976
    %8978 = vmatmul.bf16.gmra.mxu0 %v6211
    %v8979 = vpop.f32.mrf.mxu0
    %v8980 = vadd.f32 %v8811, %v8979
    %v8981 = vpop.f32.mrf.mxu0
    %v8982 = vadd.f32 %v8813, %v8981
    %8983 = vmatmul.bf16.gmra.mxu0 %v6213
    %v8984 = vpop.f32.mrf.mxu0
    %v8985 = vadd.f32 %v8816, %v8984
    %v8986 = vpop.f32.mrf.mxu0
    %v8987 = vadd.f32 %v8818, %v8986
    %8988 = vmatmul.bf16.gmra.mxu0 %v6215
    %v8989 = vpop.f32.mrf.mxu0
    %v8990 = vadd.f32 %v8821, %v8989
    %v8991 = vpop.f32.mrf.mxu0
    %v8992 = vadd.f32 %v8823, %v8991
    %8993 = vmatmul.bf16.gmra.mxu0 %v6217
    %v8994 = vpop.f32.mrf.mxu0
    %v8995 = vadd.f32 %v8826, %v8994
    %v8996 = vpop.f32.mrf.mxu0
    %v8997 = vadd.f32 %v8828, %v8996
    %8998 = vmatmul.bf16.gmra.mxu0 %v6219
    %v8999 = vpop.f32.mrf.mxu0
    %v9000 = vadd.f32 %v8831, %v8999
    %v9001 = vpop.f32.mrf.mxu0
    %v9002 = vadd.f32 %v8833, %v9001
    %9003 = vmatmul.bf16.gmra.mxu0 %v6221
    %v9004 = vpop.f32.mrf.mxu0
    %v9005 = vadd.f32 %v8836, %v9004
    %v9006 = vpop.f32.mrf.mxu0
    %v9007 = vadd.f32 %v8838, %v9006
    %9008 = vmatmul.bf16.gmra.mxu0 %v6223
    %v9009 = vpop.f32.mrf.mxu0
    %v9010 = vadd.f32 %v8841, %v9009
    %v9011 = vpop.f32.mrf.mxu0
    %v9012 = vadd.f32 %v8843, %v9011
    %9013 = vmatmul.bf16.gmra.mxu0 %v6225
    %v9014 = vpop.f32.mrf.mxu0
    %v9015 = vadd.f32 %v8846, %v9014
    %v9016 = vpop.f32.mrf.mxu0
    %v9017 = vadd.f32 %v8848, %v9016
    %9018 = vmatmul.bf16.gmra.mxu0 %v6227
    %v9019 = vpop.f32.mrf.mxu0
    %v9020 = vadd.f32 %v8851, %v9019
    %v9021 = vpop.f32.mrf.mxu0
    %v9022 = vadd.f32 %v8853, %v9021
    %9023 = vmatmul.bf16.gmra.mxu0 %v6229
    %v9024 = vpop.f32.mrf.mxu0
    %v9025 = vadd.f32 %v8856, %v9024
    %v9026 = vpop.f32.mrf.mxu0
    %v9027 = vadd.f32 %v8858, %v9026
    %9028 = vmatmul.bf16.gmra.mxu0 %v6231
    %v9029 = vpop.f32.mrf.mxu0
    %v9030 = vadd.f32 %v8861, %v9029
    %v9031 = vpop.f32.mrf.mxu0
    %v9032 = vadd.f32 %v8863, %v9031
    %9033 = vmatmul.bf16.gmra.mxu0 %v6233
    %v9034 = vpop.f32.mrf.mxu0
    %v9035 = vadd.f32 %v8866, %v9034
    %v9036 = vpop.f32.mrf.mxu0
    %v9037 = vadd.f32 %v8868, %v9036
    %9038 = vmatmul.bf16.gmra.mxu0 %v6235
    %v9039 = vpop.f32.mrf.mxu0
    %v9040 = vadd.f32 %v8871, %v9039
    %v9041 = vpop.f32.mrf.mxu0
    %v9042 = vadd.f32 %v8873, %v9041
    %9043 = vmatmul.bf16.gmra.mxu0 %v6237
    %v9044 = vpop.f32.mrf.mxu0
    %v9045 = vadd.f32 %v8876, %v9044
    %v9046 = vpop.f32.mrf.mxu0
    %v9047 = vadd.f32 %v8878, %v9046
    %9048 = vmatmul.bf16.gmra.mxu0 %v6239
    %v9049 = vpop.f32.mrf.mxu0
    %v9050 = vadd.f32 %v8881, %v9049
    %v9051 = vpop.f32.mrf.mxu0
    %v9052 = vadd.f32 %v8883, %v9051
    %9053 = vdwg.mxu0
    %9054 = vmatpush.bf16.msra.mxu0 %v6832
    %9055 = vmatpush.bf16.msra.mxu0 %v6824
    %9056 = vmatpush.bf16.msra.mxu0 %v6816
    %9057 = vmatpush.bf16.msra.mxu0 %v6808
    %9058 = vmatpush.bf16.msra.mxu0 %v6800
    %9059 = vmatpush.bf16.msra.mxu0 %v6792
    %9060 = vmatpush.bf16.msra.mxu0 %v6784
    %9061 = vmatpush.bf16.msra.mxu0 %v6776
    %9062 = vmatmul.bf16.gmra.mxu0 %v6176
    %v9063 = vpop.f32.mrf.mxu0
    %v9064 = vadd.f32 %v6376, %v9063
    %v9065 = vpop.f32.mrf.mxu0
    %v9066 = vadd.f32 %v6376, %v9065
    %9067 = vmatmul.bf16.gmra.mxu0 %v6178
    %v9068 = vpop.f32.mrf.mxu0
    %v9069 = vadd.f32 %v6376, %v9068
    %v9070 = vpop.f32.mrf.mxu0
    %v9071 = vadd.f32 %v6376, %v9070
    %9072 = vmatmul.bf16.gmra.mxu0 %v6180
    %v9073 = vpop.f32.mrf.mxu0
    %v9074 = vadd.f32 %v6376, %v9073
    %v9075 = vpop.f32.mrf.mxu0
    %v9076 = vadd.f32 %v6376, %v9075
    %9077 = vmatmul.bf16.gmra.mxu0 %v6182
    %v9078 = vpop.f32.mrf.mxu0
    %v9079 = vadd.f32 %v6376, %v9078
    %v9080 = vpop.f32.mrf.mxu0
    %v9081 = vadd.f32 %v6376, %v9080
    %9082 = vmatmul.bf16.gmra.mxu0 %v6184
    %v9083 = vpop.f32.mrf.mxu0
    %v9084 = vadd.f32 %v6376, %v9083
    %v9085 = vpop.f32.mrf.mxu0
    %v9086 = vadd.f32 %v6376, %v9085
    %9087 = vmatmul.bf16.gmra.mxu0 %v6186
    %v9088 = vpop.f32.mrf.mxu0
    %v9089 = vadd.f32 %v6376, %v9088
    %v9090 = vpop.f32.mrf.mxu0
    %v9091 = vadd.f32 %v6376, %v9090
    %9092 = vmatmul.bf16.gmra.mxu0 %v6188
    %v9093 = vpop.f32.mrf.mxu0
    %v9094 = vadd.f32 %v6376, %v9093
    %v9095 = vpop.f32.mrf.mxu0
    %v9096 = vadd.f32 %v6376, %v9095
    %9097 = vmatmul.bf16.gmra.mxu0 %v6190
    %v9098 = vpop.f32.mrf.mxu0
    %v9099 = vadd.f32 %v6376, %v9098
    %v9100 = vpop.f32.mrf.mxu0
    %v9101 = vadd.f32 %v6376, %v9100
    %9102 = vmatmul.bf16.gmra.mxu0 %v6192
    %v9103 = vpop.f32.mrf.mxu0
    %v9104 = vadd.f32 %v6376, %v9103
    %v9105 = vpop.f32.mrf.mxu0
    %v9106 = vadd.f32 %v6376, %v9105
    %9107 = vmatmul.bf16.gmra.mxu0 %v6194
    %v9108 = vpop.f32.mrf.mxu0
    %v9109 = vadd.f32 %v6376, %v9108
    %v9110 = vpop.f32.mrf.mxu0
    %v9111 = vadd.f32 %v6376, %v9110
    %9112 = vmatmul.bf16.gmra.mxu0 %v6196
    %v9113 = vpop.f32.mrf.mxu0
    %v9114 = vadd.f32 %v6376, %v9113
    %v9115 = vpop.f32.mrf.mxu0
    %v9116 = vadd.f32 %v6376, %v9115
    %9117 = vmatmul.bf16.gmra.mxu0 %v6198
    %v9118 = vpop.f32.mrf.mxu0
    %v9119 = vadd.f32 %v6376, %v9118
    %v9120 = vpop.f32.mrf.mxu0
    %v9121 = vadd.f32 %v6376, %v9120
    %9122 = vmatmul.bf16.gmra.mxu0 %v6200
    %v9123 = vpop.f32.mrf.mxu0
    %v9124 = vadd.f32 %v6376, %v9123
    %v9125 = vpop.f32.mrf.mxu0
    %v9126 = vadd.f32 %v6376, %v9125
    %9127 = vmatmul.bf16.gmra.mxu0 %v6202
    %v9128 = vpop.f32.mrf.mxu0
    %v9129 = vadd.f32 %v6376, %v9128
    %v9130 = vpop.f32.mrf.mxu0
    %v9131 = vadd.f32 %v6376, %v9130
    %9132 = vmatmul.bf16.gmra.mxu0 %v6204
    %v9133 = vpop.f32.mrf.mxu0
    %v9134 = vadd.f32 %v6376, %v9133
    %v9135 = vpop.f32.mrf.mxu0
    %v9136 = vadd.f32 %v6376, %v9135
    %9137 = vmatmul.bf16.gmra.mxu0 %v6206
    %v9138 = vpop.f32.mrf.mxu0
    %v9139 = vadd.f32 %v6376, %v9138
    %v9140 = vpop.f32.mrf.mxu0
    %v9141 = vadd.f32 %v6376, %v9140
    %9142 = vmatmul.bf16.gmra.mxu0 %v6208
    %v9143 = vpop.f32.mrf.mxu0
    %v9144 = vadd.f32 %v6376, %v9143
    %v9145 = vpop.f32.mrf.mxu0
    %v9146 = vadd.f32 %v6376, %v9145
    %9147 = vmatmul.bf16.gmra.mxu0 %v6210
    %v9148 = vpop.f32.mrf.mxu0
    %v9149 = vadd.f32 %v6376, %v9148
    %v9150 = vpop.f32.mrf.mxu0
    %v9151 = vadd.f32 %v6376, %v9150
    %9152 = vmatmul.bf16.gmra.mxu0 %v6212
    %v9153 = vpop.f32.mrf.mxu0
    %v9154 = vadd.f32 %v6376, %v9153
    %v9155 = vpop.f32.mrf.mxu0
    %v9156 = vadd.f32 %v6376, %v9155
    %9157 = vmatmul.bf16.gmra.mxu0 %v6214
    %v9158 = vpop.f32.mrf.mxu0
    %v9159 = vadd.f32 %v6376, %v9158
    %v9160 = vpop.f32.mrf.mxu0
    %v9161 = vadd.f32 %v6376, %v9160
    %9162 = vmatmul.bf16.gmra.mxu0 %v6216
    %v9163 = vpop.f32.mrf.mxu0
    %v9164 = vadd.f32 %v6376, %v9163
    %v9165 = vpop.f32.mrf.mxu0
    %v9166 = vadd.f32 %v6376, %v9165
    %9167 = vmatmul.bf16.gmra.mxu0 %v6218
    %v9168 = vpop.f32.mrf.mxu0
    %v9169 = vadd.f32 %v6376, %v9168
    %v9170 = vpop.f32.mrf.mxu0
    %v9171 = vadd.f32 %v6376, %v9170
    %9172 = vmatmul.bf16.gmra.mxu0 %v6220
    %v9173 = vpop.f32.mrf.mxu0
    %v9174 = vadd.f32 %v6376, %v9173
    %v9175 = vpop.f32.mrf.mxu0
    %v9176 = vadd.f32 %v6376, %v9175
    %9177 = vmatmul.bf16.gmra.mxu0 %v6222
    %v9178 = vpop.f32.mrf.mxu0
    %v9179 = vadd.f32 %v6376, %v9178
    %v9180 = vpop.f32.mrf.mxu0
    %v9181 = vadd.f32 %v6376, %v9180
    %9182 = vmatmul.bf16.gmra.mxu0 %v6224
    %v9183 = vpop.f32.mrf.mxu0
    %v9184 = vadd.f32 %v6376, %v9183
    %v9185 = vpop.f32.mrf.mxu0
    %v9186 = vadd.f32 %v6376, %v9185
    %9187 = vmatmul.bf16.gmra.mxu0 %v6226
    %v9188 = vpop.f32.mrf.mxu0
    %v9189 = vadd.f32 %v6376, %v9188
    %v9190 = vpop.f32.mrf.mxu0
    %v9191 = vadd.f32 %v6376, %v9190
    %9192 = vmatmul.bf16.gmra.mxu0 %v6228
    %v9193 = vpop.f32.mrf.mxu0
    %v9194 = vadd.f32 %v6376, %v9193
    %v9195 = vpop.f32.mrf.mxu0
    %v9196 = vadd.f32 %v6376, %v9195
    %9197 = vmatmul.bf16.gmra.mxu0 %v6230
    %v9198 = vpop.f32.mrf.mxu0
    %v9199 = vadd.f32 %v6376, %v9198
    %v9200 = vpop.f32.mrf.mxu0
    %v9201 = vadd.f32 %v6376, %v9200
    %9202 = vmatmul.bf16.gmra.mxu0 %v6232
    %v9203 = vpop.f32.mrf.mxu0
    %v9204 = vadd.f32 %v6376, %v9203
    %v9205 = vpop.f32.mrf.mxu0
    %v9206 = vadd.f32 %v6376, %v9205
    %9207 = vmatmul.bf16.gmra.mxu0 %v6234
    %v9208 = vpop.f32.mrf.mxu0
    %v9209 = vadd.f32 %v6376, %v9208
    %v9210 = vpop.f32.mrf.mxu0
    %v9211 = vadd.f32 %v6376, %v9210
    %9212 = vmatmul.bf16.gmra.mxu0 %v6236
    %v9213 = vpop.f32.mrf.mxu0
    %v9214 = vadd.f32 %v6376, %v9213
    %v9215 = vpop.f32.mrf.mxu0
    %v9216 = vadd.f32 %v6376, %v9215
    %9217 = vmatmul.bf16.gmra.mxu0 %v6238
    %v9218 = vpop.f32.mrf.mxu0
    %v9219 = vadd.f32 %v6376, %v9218
    %v9220 = vpop.f32.mrf.mxu0
    %v9221 = vadd.f32 %v6376, %v9220
    %9222 = vdwg.mxu0
    %9223 = vmatpush.bf16.msra.mxu0 %v6896
    %9224 = vmatpush.bf16.msra.mxu0 %v6888
    %9225 = vmatpush.bf16.msra.mxu0 %v6880
    %9226 = vmatpush.bf16.msra.mxu0 %v6872
    %9227 = vmatpush.bf16.msra.mxu0 %v6864
    %9228 = vmatpush.bf16.msra.mxu0 %v6856
    %9229 = vmatpush.bf16.msra.mxu0 %v6848
    %9230 = vmatpush.bf16.msra.mxu0 %v6840
    %9231 = vmatmul.bf16.gmra.mxu0 %v6177
    %v9232 = vpop.f32.mrf.mxu0
    %v9233 = vadd.f32 %v9064, %v9232
    %v9234 = vpop.f32.mrf.mxu0
    %v9235 = vadd.f32 %v9066, %v9234
    %9236 = vmatmul.bf16.gmra.mxu0 %v6179
    %v9237 = vpop.f32.mrf.mxu0
    %v9238 = vadd.f32 %v9069, %v9237
    %v9239 = vpop.f32.mrf.mxu0
    %v9240 = vadd.f32 %v9071, %v9239
    %9241 = vmatmul.bf16.gmra.mxu0 %v6181
    %v9242 = vpop.f32.mrf.mxu0
    %v9243 = vadd.f32 %v9074, %v9242
    %v9244 = vpop.f32.mrf.mxu0
    %v9245 = vadd.f32 %v9076, %v9244
    %9246 = vmatmul.bf16.gmra.mxu0 %v6183
    %v9247 = vpop.f32.mrf.mxu0
    %v9248 = vadd.f32 %v9079, %v9247
    %v9249 = vpop.f32.mrf.mxu0
    %v9250 = vadd.f32 %v9081, %v9249
    %9251 = vmatmul.bf16.gmra.mxu0 %v6185
    %v9252 = vpop.f32.mrf.mxu0
    %v9253 = vadd.f32 %v9084, %v9252
    %v9254 = vpop.f32.mrf.mxu0
    %v9255 = vadd.f32 %v9086, %v9254
    %9256 = vmatmul.bf16.gmra.mxu0 %v6187
    %v9257 = vpop.f32.mrf.mxu0
    %v9258 = vadd.f32 %v9089, %v9257
    %v9259 = vpop.f32.mrf.mxu0
    %v9260 = vadd.f32 %v9091, %v9259
    %9261 = vmatmul.bf16.gmra.mxu0 %v6189
    %v9262 = vpop.f32.mrf.mxu0
    %v9263 = vadd.f32 %v9094, %v9262
    %v9264 = vpop.f32.mrf.mxu0
    %v9265 = vadd.f32 %v9096, %v9264
    %9266 = vmatmul.bf16.gmra.mxu0 %v6191
    %v9267 = vpop.f32.mrf.mxu0
    %v9268 = vadd.f32 %v9099, %v9267
    %v9269 = vpop.f32.mrf.mxu0
    %v9270 = vadd.f32 %v9101, %v9269
    %9271 = vmatmul.bf16.gmra.mxu0 %v6193
    %v9272 = vpop.f32.mrf.mxu0
    %v9273 = vadd.f32 %v9104, %v9272
    %v9274 = vpop.f32.mrf.mxu0
    %v9275 = vadd.f32 %v9106, %v9274
    %9276 = vmatmul.bf16.gmra.mxu0 %v6195
    %v9277 = vpop.f32.mrf.mxu0
    %v9278 = vadd.f32 %v9109, %v9277
    %v9279 = vpop.f32.mrf.mxu0
    %v9280 = vadd.f32 %v9111, %v9279
    %9281 = vmatmul.bf16.gmra.mxu0 %v6197
    %v9282 = vpop.f32.mrf.mxu0
    %v9283 = vadd.f32 %v9114, %v9282
    %v9284 = vpop.f32.mrf.mxu0
    %v9285 = vadd.f32 %v9116, %v9284
    %9286 = vmatmul.bf16.gmra.mxu0 %v6199
    %v9287 = vpop.f32.mrf.mxu0
    %v9288 = vadd.f32 %v9119, %v9287
    %v9289 = vpop.f32.mrf.mxu0
    %v9290 = vadd.f32 %v9121, %v9289
    %9291 = vmatmul.bf16.gmra.mxu0 %v6201
    %v9292 = vpop.f32.mrf.mxu0
    %v9293 = vadd.f32 %v9124, %v9292
    %v9294 = vpop.f32.mrf.mxu0
    %v9295 = vadd.f32 %v9126, %v9294
    %9296 = vmatmul.bf16.gmra.mxu0 %v6203
    %v9297 = vpop.f32.mrf.mxu0
    %v9298 = vadd.f32 %v9129, %v9297
    %v9299 = vpop.f32.mrf.mxu0
    %v9300 = vadd.f32 %v9131, %v9299
    %9301 = vmatmul.bf16.gmra.mxu0 %v6205
    %v9302 = vpop.f32.mrf.mxu0
    %v9303 = vadd.f32 %v9134, %v9302
    %v9304 = vpop.f32.mrf.mxu0
    %v9305 = vadd.f32 %v9136, %v9304
    %9306 = vmatmul.bf16.gmra.mxu0 %v6207
    %v9307 = vpop.f32.mrf.mxu0
    %v9308 = vadd.f32 %v9139, %v9307
    %v9309 = vpop.f32.mrf.mxu0
    %v9310 = vadd.f32 %v9141, %v9309
    %9311 = vmatmul.bf16.gmra.mxu0 %v6209
    %v9312 = vpop.f32.mrf.mxu0
    %v9313 = vadd.f32 %v9144, %v9312
    %v9314 = vpop.f32.mrf.mxu0
    %v9315 = vadd.f32 %v9146, %v9314
    %9316 = vmatmul.bf16.gmra.mxu0 %v6211
    %v9317 = vpop.f32.mrf.mxu0
    %v9318 = vadd.f32 %v9149, %v9317
    %v9319 = vpop.f32.mrf.mxu0
    %v9320 = vadd.f32 %v9151, %v9319
    %9321 = vmatmul.bf16.gmra.mxu0 %v6213
    %v9322 = vpop.f32.mrf.mxu0
    %v9323 = vadd.f32 %v9154, %v9322
    %v9324 = vpop.f32.mrf.mxu0
    %v9325 = vadd.f32 %v9156, %v9324
    %9326 = vmatmul.bf16.gmra.mxu0 %v6215
    %v9327 = vpop.f32.mrf.mxu0
    %v9328 = vadd.f32 %v9159, %v9327
    %v9329 = vpop.f32.mrf.mxu0
    %v9330 = vadd.f32 %v9161, %v9329
    %9331 = vmatmul.bf16.gmra.mxu0 %v6217
    %v9332 = vpop.f32.mrf.mxu0
    %v9333 = vadd.f32 %v9164, %v9332
    %v9334 = vpop.f32.mrf.mxu0
    %v9335 = vadd.f32 %v9166, %v9334
    %9336 = vmatmul.bf16.gmra.mxu0 %v6219
    %v9337 = vpop.f32.mrf.mxu0
    %v9338 = vadd.f32 %v9169, %v9337
    %v9339 = vpop.f32.mrf.mxu0
    %v9340 = vadd.f32 %v9171, %v9339
    %9341 = vmatmul.bf16.gmra.mxu0 %v6221
    %v9342 = vpop.f32.mrf.mxu0
    %v9343 = vadd.f32 %v9174, %v9342
    %v9344 = vpop.f32.mrf.mxu0
    %v9345 = vadd.f32 %v9176, %v9344
    %9346 = vmatmul.bf16.gmra.mxu0 %v6223
    %v9347 = vpop.f32.mrf.mxu0
    %v9348 = vadd.f32 %v9179, %v9347
    %v9349 = vpop.f32.mrf.mxu0
    %v9350 = vadd.f32 %v9181, %v9349
    %9351 = vmatmul.bf16.gmra.mxu0 %v6225
    %v9352 = vpop.f32.mrf.mxu0
    %v9353 = vadd.f32 %v9184, %v9352
    %v9354 = vpop.f32.mrf.mxu0
    %v9355 = vadd.f32 %v9186, %v9354
    %9356 = vmatmul.bf16.gmra.mxu0 %v6227
    %v9357 = vpop.f32.mrf.mxu0
    %v9358 = vadd.f32 %v9189, %v9357
    %v9359 = vpop.f32.mrf.mxu0
    %v9360 = vadd.f32 %v9191, %v9359
    %9361 = vmatmul.bf16.gmra.mxu0 %v6229
    %v9362 = vpop.f32.mrf.mxu0
    %v9363 = vadd.f32 %v9194, %v9362
    %v9364 = vpop.f32.mrf.mxu0
    %v9365 = vadd.f32 %v9196, %v9364
    %9366 = vmatmul.bf16.gmra.mxu0 %v6231
    %v9367 = vpop.f32.mrf.mxu0
    %v9368 = vadd.f32 %v9199, %v9367
    %v9369 = vpop.f32.mrf.mxu0
    %v9370 = vadd.f32 %v9201, %v9369
    %9371 = vmatmul.bf16.gmra.mxu0 %v6233
    %v9372 = vpop.f32.mrf.mxu0
    %v9373 = vadd.f32 %v9204, %v9372
    %v9374 = vpop.f32.mrf.mxu0
    %v9375 = vadd.f32 %v9206, %v9374
    %9376 = vmatmul.bf16.gmra.mxu0 %v6235
    %v9377 = vpop.f32.mrf.mxu0
    %v9378 = vadd.f32 %v9209, %v9377
    %v9379 = vpop.f32.mrf.mxu0
    %v9380 = vadd.f32 %v9211, %v9379
    %9381 = vmatmul.bf16.gmra.mxu0 %v6237
    %v9382 = vpop.f32.mrf.mxu0
    %v9383 = vadd.f32 %v9214, %v9382
    %v9384 = vpop.f32.mrf.mxu0
    %v9385 = vadd.f32 %v9216, %v9384
    %9386 = vmatmul.bf16.gmra.mxu0 %v6239
    %v9387 = vpop.f32.mrf.mxu0
    %v9388 = vadd.f32 %v9219, %v9387
    %v9389 = vpop.f32.mrf.mxu0
    %v9390 = vadd.f32 %v9221, %v9389
    %9391 = vdwg.mxu0
    %9392 = vmatpush.bf16.msra.mxu0 %v6833
    %9393 = vmatpush.bf16.msra.mxu0 %v6825
    %9394 = vmatpush.bf16.msra.mxu0 %v6817
    %9395 = vmatpush.bf16.msra.mxu0 %v6809
    %9396 = vmatpush.bf16.msra.mxu0 %v6801
    %9397 = vmatpush.bf16.msra.mxu0 %v6793
    %9398 = vmatpush.bf16.msra.mxu0 %v6785
    %9399 = vmatpush.bf16.msra.mxu0 %v6777
    %9400 = vmatmul.bf16.gmra.mxu0 %v6176
    %v9401 = vpop.f32.mrf.mxu0
    %v9402 = vadd.f32 %v6377, %v9401
    %v9403 = vpop.f32.mrf.mxu0
    %v9404 = vadd.f32 %v6377, %v9403
    %9405 = vmatmul.bf16.gmra.mxu0 %v6178
    %v9406 = vpop.f32.mrf.mxu0
    %v9407 = vadd.f32 %v6377, %v9406
    %v9408 = vpop.f32.mrf.mxu0
    %v9409 = vadd.f32 %v6377, %v9408
    %9410 = vmatmul.bf16.gmra.mxu0 %v6180
    %v9411 = vpop.f32.mrf.mxu0
    %v9412 = vadd.f32 %v6377, %v9411
    %v9413 = vpop.f32.mrf.mxu0
    %v9414 = vadd.f32 %v6377, %v9413
    %9415 = vmatmul.bf16.gmra.mxu0 %v6182
    %v9416 = vpop.f32.mrf.mxu0
    %v9417 = vadd.f32 %v6377, %v9416
    %v9418 = vpop.f32.mrf.mxu0
    %v9419 = vadd.f32 %v6377, %v9418
    %9420 = vmatmul.bf16.gmra.mxu0 %v6184
    %v9421 = vpop.f32.mrf.mxu0
    %v9422 = vadd.f32 %v6377, %v9421
    %v9423 = vpop.f32.mrf.mxu0
    %v9424 = vadd.f32 %v6377, %v9423
    %9425 = vmatmul.bf16.gmra.mxu0 %v6186
    %v9426 = vpop.f32.mrf.mxu0
    %v9427 = vadd.f32 %v6377, %v9426
    %v9428 = vpop.f32.mrf.mxu0
    %v9429 = vadd.f32 %v6377, %v9428
    %9430 = vmatmul.bf16.gmra.mxu0 %v6188
    %v9431 = vpop.f32.mrf.mxu0
    %v9432 = vadd.f32 %v6377, %v9431
    %v9433 = vpop.f32.mrf.mxu0
    %v9434 = vadd.f32 %v6377, %v9433
    %9435 = vmatmul.bf16.gmra.mxu0 %v6190
    %v9436 = vpop.f32.mrf.mxu0
    %v9437 = vadd.f32 %v6377, %v9436
    %v9438 = vpop.f32.mrf.mxu0
    %v9439 = vadd.f32 %v6377, %v9438
    %9440 = vmatmul.bf16.gmra.mxu0 %v6192
    %v9441 = vpop.f32.mrf.mxu0
    %v9442 = vadd.f32 %v6377, %v9441
    %v9443 = vpop.f32.mrf.mxu0
    %v9444 = vadd.f32 %v6377, %v9443
    %9445 = vmatmul.bf16.gmra.mxu0 %v6194
    %v9446 = vpop.f32.mrf.mxu0
    %v9447 = vadd.f32 %v6377, %v9446
    %v9448 = vpop.f32.mrf.mxu0
    %v9449 = vadd.f32 %v6377, %v9448
    %9450 = vmatmul.bf16.gmra.mxu0 %v6196
    %v9451 = vpop.f32.mrf.mxu0
    %v9452 = vadd.f32 %v6377, %v9451
    %v9453 = vpop.f32.mrf.mxu0
    %v9454 = vadd.f32 %v6377, %v9453
    %9455 = vmatmul.bf16.gmra.mxu0 %v6198
    %v9456 = vpop.f32.mrf.mxu0
    %v9457 = vadd.f32 %v6377, %v9456
    %v9458 = vpop.f32.mrf.mxu0
    %v9459 = vadd.f32 %v6377, %v9458
    %9460 = vmatmul.bf16.gmra.mxu0 %v6200
    %v9461 = vpop.f32.mrf.mxu0
    %v9462 = vadd.f32 %v6377, %v9461
    %v9463 = vpop.f32.mrf.mxu0
    %v9464 = vadd.f32 %v6377, %v9463
    %9465 = vmatmul.bf16.gmra.mxu0 %v6202
    %v9466 = vpop.f32.mrf.mxu0
    %v9467 = vadd.f32 %v6377, %v9466
    %v9468 = vpop.f32.mrf.mxu0
    %v9469 = vadd.f32 %v6377, %v9468
    %9470 = vmatmul.bf16.gmra.mxu0 %v6204
    %v9471 = vpop.f32.mrf.mxu0
    %v9472 = vadd.f32 %v6377, %v9471
    %v9473 = vpop.f32.mrf.mxu0
    %v9474 = vadd.f32 %v6377, %v9473
    %9475 = vmatmul.bf16.gmra.mxu0 %v6206
    %v9476 = vpop.f32.mrf.mxu0
    %v9477 = vadd.f32 %v6377, %v9476
    %v9478 = vpop.f32.mrf.mxu0
    %v9479 = vadd.f32 %v6377, %v9478
    %9480 = vmatmul.bf16.gmra.mxu0 %v6208
    %v9481 = vpop.f32.mrf.mxu0
    %v9482 = vadd.f32 %v6377, %v9481
    %v9483 = vpop.f32.mrf.mxu0
    %v9484 = vadd.f32 %v6377, %v9483
    %9485 = vmatmul.bf16.gmra.mxu0 %v6210
    %v9486 = vpop.f32.mrf.mxu0
    %v9487 = vadd.f32 %v6377, %v9486
    %v9488 = vpop.f32.mrf.mxu0
    %v9489 = vadd.f32 %v6377, %v9488
    %9490 = vmatmul.bf16.gmra.mxu0 %v6212
    %v9491 = vpop.f32.mrf.mxu0
    %v9492 = vadd.f32 %v6377, %v9491
    %v9493 = vpop.f32.mrf.mxu0
    %v9494 = vadd.f32 %v6377, %v9493
    %9495 = vmatmul.bf16.gmra.mxu0 %v6214
    %v9496 = vpop.f32.mrf.mxu0
    %v9497 = vadd.f32 %v6377, %v9496
    %v9498 = vpop.f32.mrf.mxu0
    %v9499 = vadd.f32 %v6377, %v9498
    %9500 = vmatmul.bf16.gmra.mxu0 %v6216
    %v9501 = vpop.f32.mrf.mxu0
    %v9502 = vadd.f32 %v6377, %v9501
    %v9503 = vpop.f32.mrf.mxu0
    %v9504 = vadd.f32 %v6377, %v9503
    %9505 = vmatmul.bf16.gmra.mxu0 %v6218
    %v9506 = vpop.f32.mrf.mxu0
    %v9507 = vadd.f32 %v6377, %v9506
    %v9508 = vpop.f32.mrf.mxu0
    %v9509 = vadd.f32 %v6377, %v9508
    %9510 = vmatmul.bf16.gmra.mxu0 %v6220
    %v9511 = vpop.f32.mrf.mxu0
    %v9512 = vadd.f32 %v6377, %v9511
    %v9513 = vpop.f32.mrf.mxu0
    %v9514 = vadd.f32 %v6377, %v9513
    %9515 = vmatmul.bf16.gmra.mxu0 %v6222
    %v9516 = vpop.f32.mrf.mxu0
    %v9517 = vadd.f32 %v6377, %v9516
    %v9518 = vpop.f32.mrf.mxu0
    %v9519 = vadd.f32 %v6377, %v9518
    %9520 = vmatmul.bf16.gmra.mxu0 %v6224
    %v9521 = vpop.f32.mrf.mxu0
    %v9522 = vadd.f32 %v6377, %v9521
    %v9523 = vpop.f32.mrf.mxu0
    %v9524 = vadd.f32 %v6377, %v9523
    %9525 = vmatmul.bf16.gmra.mxu0 %v6226
    %v9526 = vpop.f32.mrf.mxu0
    %v9527 = vadd.f32 %v6377, %v9526
    %v9528 = vpop.f32.mrf.mxu0
    %v9529 = vadd.f32 %v6377, %v9528
    %9530 = vmatmul.bf16.gmra.mxu0 %v6228
    %v9531 = vpop.f32.mrf.mxu0
    %v9532 = vadd.f32 %v6377, %v9531
    %v9533 = vpop.f32.mrf.mxu0
    %v9534 = vadd.f32 %v6377, %v9533
    %9535 = vmatmul.bf16.gmra.mxu0 %v6230
    %v9536 = vpop.f32.mrf.mxu0
    %v9537 = vadd.f32 %v6377, %v9536
    %v9538 = vpop.f32.mrf.mxu0
    %v9539 = vadd.f32 %v6377, %v9538
    %9540 = vmatmul.bf16.gmra.mxu0 %v6232
    %v9541 = vpop.f32.mrf.mxu0
    %v9542 = vadd.f32 %v6377, %v9541
    %v9543 = vpop.f32.mrf.mxu0
    %v9544 = vadd.f32 %v6377, %v9543
    %9545 = vmatmul.bf16.gmra.mxu0 %v6234
    %v9546 = vpop.f32.mrf.mxu0
    %v9547 = vadd.f32 %v6377, %v9546
    %v9548 = vpop.f32.mrf.mxu0
    %v9549 = vadd.f32 %v6377, %v9548
    %9550 = vmatmul.bf16.gmra.mxu0 %v6236
    %v9551 = vpop.f32.mrf.mxu0
    %v9552 = vadd.f32 %v6377, %v9551
    %v9553 = vpop.f32.mrf.mxu0
    %v9554 = vadd.f32 %v6377, %v9553
    %9555 = vmatmul.bf16.gmra.mxu0 %v6238
    %v9556 = vpop.f32.mrf.mxu0
    %v9557 = vadd.f32 %v6377, %v9556
    %v9558 = vpop.f32.mrf.mxu0
    %v9559 = vadd.f32 %v6377, %v9558
    %9560 = vdwg.mxu0
    %9561 = vmatpush.bf16.msra.mxu0 %v6897
    %9562 = vmatpush.bf16.msra.mxu0 %v6889
    %9563 = vmatpush.bf16.msra.mxu0 %v6881
    %9564 = vmatpush.bf16.msra.mxu0 %v6873
    %9565 = vmatpush.bf16.msra.mxu0 %v6865
    %9566 = vmatpush.bf16.msra.mxu0 %v6857
    %9567 = vmatpush.bf16.msra.mxu0 %v6849
    %9568 = vmatpush.bf16.msra.mxu0 %v6841
    %9569 = vmatmul.bf16.gmra.mxu0 %v6177
    %v9570 = vpop.f32.mrf.mxu0
    %v9571 = vadd.f32 %v9402, %v9570
    %v9572 = vpop.f32.mrf.mxu0
    %v9573 = vadd.f32 %v9404, %v9572
    %9574 = vmatmul.bf16.gmra.mxu0 %v6179
    %v9575 = vpop.f32.mrf.mxu0
    %v9576 = vadd.f32 %v9407, %v9575
    %v9577 = vpop.f32.mrf.mxu0
    %v9578 = vadd.f32 %v9409, %v9577
    %9579 = vmatmul.bf16.gmra.mxu0 %v6181
    %v9580 = vpop.f32.mrf.mxu0
    %v9581 = vadd.f32 %v9412, %v9580
    %v9582 = vpop.f32.mrf.mxu0
    %v9583 = vadd.f32 %v9414, %v9582
    %9584 = vmatmul.bf16.gmra.mxu0 %v6183
    %v9585 = vpop.f32.mrf.mxu0
    %v9586 = vadd.f32 %v9417, %v9585
    %v9587 = vpop.f32.mrf.mxu0
    %v9588 = vadd.f32 %v9419, %v9587
    %9589 = vmatmul.bf16.gmra.mxu0 %v6185
    %v9590 = vpop.f32.mrf.mxu0
    %v9591 = vadd.f32 %v9422, %v9590
    %v9592 = vpop.f32.mrf.mxu0
    %v9593 = vadd.f32 %v9424, %v9592
    %9594 = vmatmul.bf16.gmra.mxu0 %v6187
    %v9595 = vpop.f32.mrf.mxu0
    %v9596 = vadd.f32 %v9427, %v9595
    %v9597 = vpop.f32.mrf.mxu0
    %v9598 = vadd.f32 %v9429, %v9597
    %9599 = vmatmul.bf16.gmra.mxu0 %v6189
    %v9600 = vpop.f32.mrf.mxu0
    %v9601 = vadd.f32 %v9432, %v9600
    %v9602 = vpop.f32.mrf.mxu0
    %v9603 = vadd.f32 %v9434, %v9602
    %9604 = vmatmul.bf16.gmra.mxu0 %v6191
    %v9605 = vpop.f32.mrf.mxu0
    %v9606 = vadd.f32 %v9437, %v9605
    %v9607 = vpop.f32.mrf.mxu0
    %v9608 = vadd.f32 %v9439, %v9607
    %9609 = vmatmul.bf16.gmra.mxu0 %v6193
    %v9610 = vpop.f32.mrf.mxu0
    %v9611 = vadd.f32 %v9442, %v9610
    %v9612 = vpop.f32.mrf.mxu0
    %v9613 = vadd.f32 %v9444, %v9612
    %9614 = vmatmul.bf16.gmra.mxu0 %v6195
    %v9615 = vpop.f32.mrf.mxu0
    %v9616 = vadd.f32 %v9447, %v9615
    %v9617 = vpop.f32.mrf.mxu0
    %v9618 = vadd.f32 %v9449, %v9617
    %9619 = vmatmul.bf16.gmra.mxu0 %v6197
    %v9620 = vpop.f32.mrf.mxu0
    %v9621 = vadd.f32 %v9452, %v9620
    %v9622 = vpop.f32.mrf.mxu0
    %v9623 = vadd.f32 %v9454, %v9622
    %9624 = vmatmul.bf16.gmra.mxu0 %v6199
    %v9625 = vpop.f32.mrf.mxu0
    %v9626 = vadd.f32 %v9457, %v9625
    %v9627 = vpop.f32.mrf.mxu0
    %v9628 = vadd.f32 %v9459, %v9627
    %9629 = vmatmul.bf16.gmra.mxu0 %v6201
    %v9630 = vpop.f32.mrf.mxu0
    %v9631 = vadd.f32 %v9462, %v9630
    %v9632 = vpop.f32.mrf.mxu0
    %v9633 = vadd.f32 %v9464, %v9632
    %9634 = vmatmul.bf16.gmra.mxu0 %v6203
    %v9635 = vpop.f32.mrf.mxu0
    %v9636 = vadd.f32 %v9467, %v9635
    %v9637 = vpop.f32.mrf.mxu0
    %v9638 = vadd.f32 %v9469, %v9637
    %9639 = vmatmul.bf16.gmra.mxu0 %v6205
    %v9640 = vpop.f32.mrf.mxu0
    %v9641 = vadd.f32 %v9472, %v9640
    %v9642 = vpop.f32.mrf.mxu0
    %v9643 = vadd.f32 %v9474, %v9642
    %9644 = vmatmul.bf16.gmra.mxu0 %v6207
    %v9645 = vpop.f32.mrf.mxu0
    %v9646 = vadd.f32 %v9477, %v9645
    %v9647 = vpop.f32.mrf.mxu0
    %v9648 = vadd.f32 %v9479, %v9647
    %9649 = vmatmul.bf16.gmra.mxu0 %v6209
    %v9650 = vpop.f32.mrf.mxu0
    %v9651 = vadd.f32 %v9482, %v9650
    %v9652 = vpop.f32.mrf.mxu0
    %v9653 = vadd.f32 %v9484, %v9652
    %9654 = vmatmul.bf16.gmra.mxu0 %v6211
    %v9655 = vpop.f32.mrf.mxu0
    %v9656 = vadd.f32 %v9487, %v9655
    %v9657 = vpop.f32.mrf.mxu0
    %v9658 = vadd.f32 %v9489, %v9657
    %9659 = vmatmul.bf16.gmra.mxu0 %v6213
    %v9660 = vpop.f32.mrf.mxu0
    %v9661 = vadd.f32 %v9492, %v9660
    %v9662 = vpop.f32.mrf.mxu0
    %v9663 = vadd.f32 %v9494, %v9662
    %9664 = vmatmul.bf16.gmra.mxu0 %v6215
    %v9665 = vpop.f32.mrf.mxu0
    %v9666 = vadd.f32 %v9497, %v9665
    %v9667 = vpop.f32.mrf.mxu0
    %v9668 = vadd.f32 %v9499, %v9667
    %9669 = vmatmul.bf16.gmra.mxu0 %v6217
    %v9670 = vpop.f32.mrf.mxu0
    %v9671 = vadd.f32 %v9502, %v9670
    %v9672 = vpop.f32.mrf.mxu0
    %v9673 = vadd.f32 %v9504, %v9672
    %9674 = vmatmul.bf16.gmra.mxu0 %v6219
    %v9675 = vpop.f32.mrf.mxu0
    %v9676 = vadd.f32 %v9507, %v9675
    %v9677 = vpop.f32.mrf.mxu0
    %v9678 = vadd.f32 %v9509, %v9677
    %9679 = vmatmul.bf16.gmra.mxu0 %v6221
    %v9680 = vpop.f32.mrf.mxu0
    %v9681 = vadd.f32 %v9512, %v9680
    %v9682 = vpop.f32.mrf.mxu0
    %v9683 = vadd.f32 %v9514, %v9682
    %9684 = vmatmul.bf16.gmra.mxu0 %v6223
    %v9685 = vpop.f32.mrf.mxu0
    %v9686 = vadd.f32 %v9517, %v9685
    %v9687 = vpop.f32.mrf.mxu0
    %v9688 = vadd.f32 %v9519, %v9687
    %9689 = vmatmul.bf16.gmra.mxu0 %v6225
    %v9690 = vpop.f32.mrf.mxu0
    %v9691 = vadd.f32 %v9522, %v9690
    %v9692 = vpop.f32.mrf.mxu0
    %v9693 = vadd.f32 %v9524, %v9692
    %9694 = vmatmul.bf16.gmra.mxu0 %v6227
    %v9695 = vpop.f32.mrf.mxu0
    %v9696 = vadd.f32 %v9527, %v9695
    %v9697 = vpop.f32.mrf.mxu0
    %v9698 = vadd.f32 %v9529, %v9697
    %9699 = vmatmul.bf16.gmra.mxu0 %v6229
    %v9700 = vpop.f32.mrf.mxu0
    %v9701 = vadd.f32 %v9532, %v9700
    %v9702 = vpop.f32.mrf.mxu0
    %v9703 = vadd.f32 %v9534, %v9702
    %9704 = vmatmul.bf16.gmra.mxu0 %v6231
    %v9705 = vpop.f32.mrf.mxu0
    %v9706 = vadd.f32 %v9537, %v9705
    %v9707 = vpop.f32.mrf.mxu0
    %v9708 = vadd.f32 %v9539, %v9707
    %9709 = vmatmul.bf16.gmra.mxu0 %v6233
    %v9710 = vpop.f32.mrf.mxu0
    %v9711 = vadd.f32 %v9542, %v9710
    %v9712 = vpop.f32.mrf.mxu0
    %v9713 = vadd.f32 %v9544, %v9712
    %9714 = vmatmul.bf16.gmra.mxu0 %v6235
    %v9715 = vpop.f32.mrf.mxu0
    %v9716 = vadd.f32 %v9547, %v9715
    %v9717 = vpop.f32.mrf.mxu0
    %v9718 = vadd.f32 %v9549, %v9717
    %9719 = vmatmul.bf16.gmra.mxu0 %v6237
    %v9720 = vpop.f32.mrf.mxu0
    %v9721 = vadd.f32 %v9552, %v9720
    %v9722 = vpop.f32.mrf.mxu0
    %v9723 = vadd.f32 %v9554, %v9722
    %9724 = vmatmul.bf16.gmra.mxu0 %v6239
    %v9725 = vpop.f32.mrf.mxu0
    %v9726 = vadd.f32 %v9557, %v9725
    %v9727 = vpop.f32.mrf.mxu0
    %v9728 = vadd.f32 %v9559, %v9727
    %9729 = vdwg.mxu0
    %v9730 = vld [vmem:[#allocation2] sm:$0xff]
    %v9731 = vld [vmem:[#allocation2 + $0x8] sm:$0xff]
    %v9732 = vld [vmem:[#allocation2 + $0x10] sm:$0xff]
    %v9733 = vld [vmem:[#allocation2 + $0x18] sm:$0xff]
    %v9734 = vld [vmem:[#allocation2 + $0x20] sm:$0xff]
    %v9735 = vld [vmem:[#allocation2 + $0x28] sm:$0xff]
    %v9736 = vld [vmem:[#allocation2 + $0x30] sm:$0xff]
    %v9737 = vld [vmem:[#allocation2 + $0x38] sm:$0xff]
    %v9738 = vld [vmem:[#allocation2 + $0x40] sm:$0xff]
    %v9739 = vld [vmem:[#allocation2 + $0x48] sm:$0xff]
    %v9740 = vld [vmem:[#allocation2 + $0x50] sm:$0xff]
    %v9741 = vld [vmem:[#allocation2 + $0x58] sm:$0xff]
    %v9742 = vld [vmem:[#allocation2 + $0x60] sm:$0xff]
    %v9743 = vld [vmem:[#allocation2 + $0x68] sm:$0xff]
    %v9744 = vld [vmem:[#allocation2 + $0x70] sm:$0xff]
    %v9745 = vld [vmem:[#allocation2 + $0x78] sm:$0xff]
    %v9746 = vld [vmem:[%s1] sm:$0xff]
    %v9747 = vld [vmem:[%s1 + $0x8] sm:$0xff]
    %v9748 = vld [vmem:[%s1 + $0x10] sm:$0xff]
    %v9749 = vld [vmem:[%s1 + $0x18] sm:$0xff]
    %v9750 = vpack.c.bf16 %v7207, %v7205
    %v9751 = vpack.c.bf16 %v7545, %v7543
    %v9752 = vpack.c.bf16 %v7883, %v7881
    %v9753 = vpack.c.bf16 %v8221, %v8219
    %v9754 = vpack.c.bf16 %v8559, %v8557
    %v9755 = vpack.c.bf16 %v8897, %v8895
    %v9756 = vpack.c.bf16 %v9235, %v9233
    %v9757 = vpack.c.bf16 %v9573, %v9571
    %v9758 = vpack.c.bf16 %v7212, %v7210
    %v9759 = vpack.c.bf16 %v7550, %v7548
    %v9760 = vpack.c.bf16 %v7888, %v7886
    %v9761 = vpack.c.bf16 %v8226, %v8224
    %v9762 = vpack.c.bf16 %v8564, %v8562
    %v9763 = vpack.c.bf16 %v8902, %v8900
    %v9764 = vpack.c.bf16 %v9240, %v9238
    %v9765 = vpack.c.bf16 %v9578, %v9576
    %v9766 = vpack.c.bf16 %v7217, %v7215
    %v9767 = vpack.c.bf16 %v7555, %v7553
    %v9768 = vpack.c.bf16 %v7893, %v7891
    %v9769 = vpack.c.bf16 %v8231, %v8229
    %v9770 = vpack.c.bf16 %v8569, %v8567
    %v9771 = vpack.c.bf16 %v8907, %v8905
    %v9772 = vpack.c.bf16 %v9245, %v9243
    %v9773 = vpack.c.bf16 %v9583, %v9581
    %v9774 = vpack.c.bf16 %v7222, %v7220
    %v9775 = vpack.c.bf16 %v7560, %v7558
    %v9776 = vpack.c.bf16 %v7898, %v7896
    %v9777 = vpack.c.bf16 %v8236, %v8234
    %v9778 = vpack.c.bf16 %v8574, %v8572
    %v9779 = vpack.c.bf16 %v8912, %v8910
    %v9780 = vpack.c.bf16 %v9250, %v9248
    %v9781 = vpack.c.bf16 %v9588, %v9586
    %v9782 = vpack.c.bf16 %v7227, %v7225
    %v9783 = vpack.c.bf16 %v7565, %v7563
    %v9784 = vpack.c.bf16 %v7903, %v7901
    %v9785 = vpack.c.bf16 %v8241, %v8239
    %v9786 = vpack.c.bf16 %v8579, %v8577
    %v9787 = vpack.c.bf16 %v8917, %v8915
    %v9788 = vpack.c.bf16 %v9255, %v9253
    %v9789 = vpack.c.bf16 %v9593, %v9591
    %v9790 = vpack.c.bf16 %v7232, %v7230
    %v9791 = vpack.c.bf16 %v7570, %v7568
    %v9792 = vpack.c.bf16 %v7908, %v7906
    %v9793 = vpack.c.bf16 %v8246, %v8244
    %v9794 = vpack.c.bf16 %v8584, %v8582
    %v9795 = vpack.c.bf16 %v8922, %v8920
    %v9796 = vpack.c.bf16 %v9260, %v9258
    %v9797 = vpack.c.bf16 %v9598, %v9596
    %v9798 = vpack.c.bf16 %v7237, %v7235
    %v9799 = vpack.c.bf16 %v7575, %v7573
    %v9800 = vpack.c.bf16 %v7913, %v7911
    %v9801 = vpack.c.bf16 %v8251, %v8249
    %v9802 = vpack.c.bf16 %v8589, %v8587
    %v9803 = vpack.c.bf16 %v8927, %v8925
    %v9804 = vpack.c.bf16 %v9265, %v9263
    %v9805 = vpack.c.bf16 %v9603, %v9601
    %v9806 = vpack.c.bf16 %v7242, %v7240
    %v9807 = vpack.c.bf16 %v7580, %v7578
    %v9808 = vpack.c.bf16 %v7918, %v7916
    %v9809 = vpack.c.bf16 %v8256, %v8254
    %v9810 = vpack.c.bf16 %v8594, %v8592
    %v9811 = vpack.c.bf16 %v8932, %v8930
    %v9812 = vpack.c.bf16 %v9270, %v9268
    %v9813 = vpack.c.bf16 %v9608, %v9606
    %v9814 = vpack.c.bf16 %v7247, %v7245
    %v9815 = vpack.c.bf16 %v7585, %v7583
    %v9816 = vpack.c.bf16 %v7923, %v7921
    %v9817 = vpack.c.bf16 %v8261, %v8259
    %v9818 = vpack.c.bf16 %v8599, %v8597
    %v9819 = vpack.c.bf16 %v8937, %v8935
    %v9820 = vpack.c.bf16 %v9275, %v9273
    %v9821 = vpack.c.bf16 %v9613, %v9611
    %v9822 = vpack.c.bf16 %v7252, %v7250
    %v9823 = vpack.c.bf16 %v7590, %v7588
    %v9824 = vpack.c.bf16 %v7928, %v7926
    %v9825 = vpack.c.bf16 %v8266, %v8264
    %v9826 = vpack.c.bf16 %v8604, %v8602
    %v9827 = vpack.c.bf16 %v8942, %v8940
    %v9828 = vpack.c.bf16 %v9280, %v9278
    %v9829 = vpack.c.bf16 %v9618, %v9616
    %v9830 = vpack.c.bf16 %v7257, %v7255
    %v9831 = vpack.c.bf16 %v7595, %v7593
    %v9832 = vpack.c.bf16 %v7933, %v7931
    %v9833 = vpack.c.bf16 %v8271, %v8269
    %v9834 = vpack.c.bf16 %v8609, %v8607
    %v9835 = vpack.c.bf16 %v8947, %v8945
    %v9836 = vpack.c.bf16 %v9285, %v9283
    %v9837 = vpack.c.bf16 %v9623, %v9621
    %v9838 = vpack.c.bf16 %v7262, %v7260
    %v9839 = vpack.c.bf16 %v7600, %v7598
    %v9840 = vpack.c.bf16 %v7938, %v7936
    %v9841 = vpack.c.bf16 %v8276, %v8274
    %v9842 = vpack.c.bf16 %v8614, %v8612
    %v9843 = vpack.c.bf16 %v8952, %v8950
    %v9844 = vpack.c.bf16 %v9290, %v9288
    %v9845 = vpack.c.bf16 %v9628, %v9626
    %v9846 = vpack.c.bf16 %v7267, %v7265
    %v9847 = vpack.c.bf16 %v7605, %v7603
    %v9848 = vpack.c.bf16 %v7943, %v7941
    %v9849 = vpack.c.bf16 %v8281, %v8279
    %v9850 = vpack.c.bf16 %v8619, %v8617
    %v9851 = vpack.c.bf16 %v8957, %v8955
    %v9852 = vpack.c.bf16 %v9295, %v9293
    %v9853 = vpack.c.bf16 %v9633, %v9631
    %v9854 = vpack.c.bf16 %v7272, %v7270
    %v9855 = vpack.c.bf16 %v7610, %v7608
    %v9856 = vpack.c.bf16 %v7948, %v7946
    %v9857 = vpack.c.bf16 %v8286, %v8284
    %v9858 = vpack.c.bf16 %v8624, %v8622
    %v9859 = vpack.c.bf16 %v8962, %v8960
    %v9860 = vpack.c.bf16 %v9300, %v9298
    %v9861 = vpack.c.bf16 %v9638, %v9636
    %v9862 = vpack.c.bf16 %v7277, %v7275
    %v9863 = vpack.c.bf16 %v7615, %v7613
    %v9864 = vpack.c.bf16 %v7953, %v7951
    %v9865 = vpack.c.bf16 %v8291, %v8289
    %v9866 = vpack.c.bf16 %v8629, %v8627
    %v9867 = vpack.c.bf16 %v8967, %v8965
    %v9868 = vpack.c.bf16 %v9305, %v9303
    %v9869 = vpack.c.bf16 %v9643, %v9641
    %v9870 = vpack.c.bf16 %v7282, %v7280
    %v9871 = vpack.c.bf16 %v7620, %v7618
    %v9872 = vpack.c.bf16 %v7958, %v7956
    %v9873 = vpack.c.bf16 %v8296, %v8294
    %v9874 = vpack.c.bf16 %v8634, %v8632
    %v9875 = vpack.c.bf16 %v8972, %v8970
    %v9876 = vpack.c.bf16 %v9310, %v9308
    %v9877 = vpack.c.bf16 %v9648, %v9646
    %v9878 = vpack.c.bf16 %v7287, %v7285
    %v9879 = vpack.c.bf16 %v7625, %v7623
    %v9880 = vpack.c.bf16 %v7963, %v7961
    %v9881 = vpack.c.bf16 %v8301, %v8299
    %v9882 = vpack.c.bf16 %v8639, %v8637
    %v9883 = vpack.c.bf16 %v8977, %v8975
    %v9884 = vpack.c.bf16 %v9315, %v9313
    %v9885 = vpack.c.bf16 %v9653, %v9651
    %v9886 = vpack.c.bf16 %v7292, %v7290
    %v9887 = vpack.c.bf16 %v7630, %v7628
    %v9888 = vpack.c.bf16 %v7968, %v7966
    %v9889 = vpack.c.bf16 %v8306, %v8304
    %v9890 = vpack.c.bf16 %v8644, %v8642
    %v9891 = vpack.c.bf16 %v8982, %v8980
    %v9892 = vpack.c.bf16 %v9320, %v9318
    %v9893 = vpack.c.bf16 %v9658, %v9656
    %v9894 = vpack.c.bf16 %v7297, %v7295
    %v9895 = vpack.c.bf16 %v7635, %v7633
    %v9896 = vpack.c.bf16 %v7973, %v7971
    %v9897 = vpack.c.bf16 %v8311, %v8309
    %v9898 = vpack.c.bf16 %v8649, %v8647
    %v9899 = vpack.c.bf16 %v8987, %v8985
    %v9900 = vpack.c.bf16 %v9325, %v9323
    %v9901 = vpack.c.bf16 %v9663, %v9661
    %v9902 = vpack.c.bf16 %v7302, %v7300
    %v9903 = vpack.c.bf16 %v7640, %v7638
    %v9904 = vpack.c.bf16 %v7978, %v7976
    %v9905 = vpack.c.bf16 %v8316, %v8314
    %v9906 = vpack.c.bf16 %v8654, %v8652
    %v9907 = vpack.c.bf16 %v8992, %v8990
    %v9908 = vpack.c.bf16 %v9330, %v9328
    %v9909 = vpack.c.bf16 %v9668, %v9666
    %v9910 = vpack.c.bf16 %v7307, %v7305
    %v9911 = vpack.c.bf16 %v7645, %v7643
    %v9912 = vpack.c.bf16 %v7983, %v7981
    %v9913 = vpack.c.bf16 %v8321, %v8319
    %v9914 = vpack.c.bf16 %v8659, %v8657
    %v9915 = vpack.c.bf16 %v8997, %v8995
    %v9916 = vpack.c.bf16 %v9335, %v9333
    %v9917 = vpack.c.bf16 %v9673, %v9671
    %v9918 = vpack.c.bf16 %v7312, %v7310
    %v9919 = vpack.c.bf16 %v7650, %v7648
    %v9920 = vpack.c.bf16 %v7988, %v7986
    %v9921 = vpack.c.bf16 %v8326, %v8324
    %v9922 = vpack.c.bf16 %v8664, %v8662
    %v9923 = vpack.c.bf16 %v9002, %v9000
    %v9924 = vpack.c.bf16 %v9340, %v9338
    %v9925 = vpack.c.bf16 %v9678, %v9676
    %v9926 = vpack.c.bf16 %v7317, %v7315
    %v9927 = vpack.c.bf16 %v7655, %v7653
    %v9928 = vpack.c.bf16 %v7993, %v7991
    %v9929 = vpack.c.bf16 %v8331, %v8329
    %v9930 = vpack.c.bf16 %v8669, %v8667
    %v9931 = vpack.c.bf16 %v9007, %v9005
    %v9932 = vpack.c.bf16 %v9345, %v9343
    %v9933 = vpack.c.bf16 %v9683, %v9681
    %v9934 = vpack.c.bf16 %v7322, %v7320
    %v9935 = vpack.c.bf16 %v7660, %v7658
    %v9936 = vpack.c.bf16 %v7998, %v7996
    %v9937 = vpack.c.bf16 %v8336, %v8334
    %v9938 = vpack.c.bf16 %v8674, %v8672
    %v9939 = vpack.c.bf16 %v9012, %v9010
    %v9940 = vpack.c.bf16 %v9350, %v9348
    %v9941 = vpack.c.bf16 %v9688, %v9686
    %v9942 = vpack.c.bf16 %v7327, %v7325
    %v9943 = vpack.c.bf16 %v7665, %v7663
    %v9944 = vpack.c.bf16 %v8003, %v8001
    %v9945 = vpack.c.bf16 %v8341, %v8339
    %v9946 = vpack.c.bf16 %v8679, %v8677
    %v9947 = vpack.c.bf16 %v9017, %v9015
    %v9948 = vpack.c.bf16 %v9355, %v9353
    %v9949 = vpack.c.bf16 %v9693, %v9691
    %v9950 = vpack.c.bf16 %v7332, %v7330
    %v9951 = vpack.c.bf16 %v7670, %v7668
    %v9952 = vpack.c.bf16 %v8008, %v8006
    %v9953 = vpack.c.bf16 %v8346, %v8344
    %v9954 = vpack.c.bf16 %v8684, %v8682
    %v9955 = vpack.c.bf16 %v9022, %v9020
    %v9956 = vpack.c.bf16 %v9360, %v9358
    %v9957 = vpack.c.bf16 %v9698, %v9696
    %v9958 = vpack.c.bf16 %v7337, %v7335
    %v9959 = vpack.c.bf16 %v7675, %v7673
    %v9960 = vpack.c.bf16 %v8013, %v8011
    %v9961 = vpack.c.bf16 %v8351, %v8349
    %v9962 = vpack.c.bf16 %v8689, %v8687
    %v9963 = vpack.c.bf16 %v9027, %v9025
    %v9964 = vpack.c.bf16 %v9365, %v9363
    %v9965 = vpack.c.bf16 %v9703, %v9701
    %v9966 = vpack.c.bf16 %v7342, %v7340
    %v9967 = vpack.c.bf16 %v7680, %v7678
    %v9968 = vpack.c.bf16 %v8018, %v8016
    %v9969 = vpack.c.bf16 %v8356, %v8354
    %v9970 = vpack.c.bf16 %v8694, %v8692
    %v9971 = vpack.c.bf16 %v9032, %v9030
    %v9972 = vpack.c.bf16 %v9370, %v9368
    %v9973 = vpack.c.bf16 %v9708, %v9706
    %v9974 = vpack.c.bf16 %v7347, %v7345
    %v9975 = vpack.c.bf16 %v7685, %v7683
    %v9976 = vpack.c.bf16 %v8023, %v8021
    %v9977 = vpack.c.bf16 %v8361, %v8359
    %v9978 = vpack.c.bf16 %v8699, %v8697
    %v9979 = vpack.c.bf16 %v9037, %v9035
    %v9980 = vpack.c.bf16 %v9375, %v9373
    %v9981 = vpack.c.bf16 %v9713, %v9711
    %v9982 = vpack.c.bf16 %v7352, %v7350
    %v9983 = vpack.c.bf16 %v7690, %v7688
    %v9984 = vpack.c.bf16 %v8028, %v8026
    %v9985 = vpack.c.bf16 %v8366, %v8364
    %v9986 = vpack.c.bf16 %v8704, %v8702
    %v9987 = vpack.c.bf16 %v9042, %v9040
    %v9988 = vpack.c.bf16 %v9380, %v9378
    %v9989 = vpack.c.bf16 %v9718, %v9716
    %v9990 = vpack.c.bf16 %v7357, %v7355
    %v9991 = vpack.c.bf16 %v7695, %v7693
    %v9992 = vpack.c.bf16 %v8033, %v8031
    %v9993 = vpack.c.bf16 %v8371, %v8369
    %v9994 = vpack.c.bf16 %v8709, %v8707
    %v9995 = vpack.c.bf16 %v9047, %v9045
    %v9996 = vpack.c.bf16 %v9385, %v9383
    %v9997 = vpack.c.bf16 %v9723, %v9721
    %v9998 = vpack.c.bf16 %v7362, %v7360
    %v9999 = vpack.c.bf16 %v7700, %v7698
    %v10000 = vpack.c.bf16 %v8038, %v8036
    %v10001 = vpack.c.bf16 %v8376, %v8374
    %v10002 = vpack.c.bf16 %v8714, %v8712
    %v10003 = vpack.c.bf16 %v9052, %v9050
    %v10004 = vpack.c.bf16 %v9390, %v9388
    %v10005 = vpack.c.bf16 %v9728, %v9726
    %v10010 = vunpack.c.l.b16 %v9746
    %v10011 = vunpack.c.h.b16 %v9746
    %v10012 = vunpack.c.l.b16 %v9747
    %v10013 = vunpack.c.h.b16 %v9747
    %v10014 = vunpack.c.l.b16 %v9748
    %v10015 = vunpack.c.h.b16 %v9748
    %v10016 = vunpack.c.l.b16 %v9749
    %v10017 = vunpack.c.h.b16 %v9749
    %v10018 = vpack.c.b16 %v10014, %v10010
    %v10019 = vpack.c.b16 %v10015, %v10011
    %v10020 = vpack.c.b16 %v10016, %v10012
    %v10021 = vpack.c.b16 %v10017, %v10013
    %10026 = vmatpush.bf16.msra.mxu0 %v9806
    %10027 = vmatpush.bf16.msra.mxu0 %v9798
    %10028 = vmatpush.bf16.msra.mxu0 %v9790
    %10029 = vmatpush.bf16.msra.mxu0 %v9782
    %10030 = vmatpush.bf16.msra.mxu0 %v9774
    %10031 = vmatpush.bf16.msra.mxu0 %v9766
    %10032 = vmatpush.bf16.msra.mxu0 %v9758
    %10033 = vmatpush.bf16.msra.mxu0 %v9750
    %10034 = vmatmul.bf16.gmra.mxu0 %v10018
    %v10035 = vpop.f32.mrf.mxu0
    %v10036 = vadd.f32 0.0, %v10035
    %v10037 = vpop.f32.mrf.mxu0
    %v10038 = vadd.f32 0.0, %v10037
    %10039 = vdwg.mxu0
    %10040 = vmatpush.bf16.msra.mxu0 %v9870
    %10041 = vmatpush.bf16.msra.mxu0 %v9862
    %10042 = vmatpush.bf16.msra.mxu0 %v9854
    %10043 = vmatpush.bf16.msra.mxu0 %v9846
    %10044 = vmatpush.bf16.msra.mxu0 %v9838
    %10045 = vmatpush.bf16.msra.mxu0 %v9830
    %10046 = vmatpush.bf16.msra.mxu0 %v9822
    %10047 = vmatpush.bf16.msra.mxu0 %v9814
    %10048 = vmatmul.bf16.gmra.mxu0 %v10019
    %v10049 = vpop.f32.mrf.mxu0
    %v10050 = vadd.f32 %v10036, %v10049
    %v10051 = vpop.f32.mrf.mxu0
    %v10052 = vadd.f32 %v10038, %v10051
    %10053 = vdwg.mxu0
    %10054 = vmatpush.bf16.msra.mxu0 %v9934
    %10055 = vmatpush.bf16.msra.mxu0 %v9926
    %10056 = vmatpush.bf16.msra.mxu0 %v9918
    %10057 = vmatpush.bf16.msra.mxu0 %v9910
    %10058 = vmatpush.bf16.msra.mxu0 %v9902
    %10059 = vmatpush.bf16.msra.mxu0 %v9894
    %10060 = vmatpush.bf16.msra.mxu0 %v9886
    %10061 = vmatpush.bf16.msra.mxu0 %v9878
    %10062 = vmatmul.bf16.gmra.mxu0 %v10020
    %v10063 = vpop.f32.mrf.mxu0
    %v10064 = vadd.f32 %v10050, %v10063
    %v10065 = vpop.f32.mrf.mxu0
    %v10066 = vadd.f32 %v10052, %v10065
    %10067 = vdwg.mxu0
    %10068 = vmatpush.bf16.msra.mxu0 %v9998
    %10069 = vmatpush.bf16.msra.mxu0 %v9990
    %10070 = vmatpush.bf16.msra.mxu0 %v9982
    %10071 = vmatpush.bf16.msra.mxu0 %v9974
    %10072 = vmatpush.bf16.msra.mxu0 %v9966
    %10073 = vmatpush.bf16.msra.mxu0 %v9958
    %10074 = vmatpush.bf16.msra.mxu0 %v9950
    %10075 = vmatpush.bf16.msra.mxu0 %v9942
    %10076 = vmatmul.bf16.gmra.mxu0 %v10021
    %v10077 = vpop.f32.mrf.mxu0
    %v10078 = vadd.f32 %v10064, %v10077
    %v10079 = vpop.f32.mrf.mxu0
    %v10080 = vadd.f32 %v10066, %v10079
    %10081 = vdwg.mxu0
    %10082 = vmatpush.bf16.msra.mxu0 %v9807
    %10083 = vmatpush.bf16.msra.mxu0 %v9799
    %10084 = vmatpush.bf16.msra.mxu0 %v9791
    %10085 = vmatpush.bf16.msra.mxu0 %v9783
    %10086 = vmatpush.bf16.msra.mxu0 %v9775
    %10087 = vmatpush.bf16.msra.mxu0 %v9767
    %10088 = vmatpush.bf16.msra.mxu0 %v9759
    %10089 = vmatpush.bf16.msra.mxu0 %v9751
    %10090 = vmatmul.bf16.gmra.mxu0 %v10018
    %v10091 = vpop.f32.mrf.mxu0
    %v10092 = vadd.f32 0.0, %v10091
    %v10093 = vpop.f32.mrf.mxu0
    %v10094 = vadd.f32 0.0, %v10093
    %10095 = vdwg.mxu0
    %10096 = vmatpush.bf16.msra.mxu0 %v9871
    %10097 = vmatpush.bf16.msra.mxu0 %v9863
    %10098 = vmatpush.bf16.msra.mxu0 %v9855
    %10099 = vmatpush.bf16.msra.mxu0 %v9847
    %10100 = vmatpush.bf16.msra.mxu0 %v9839
    %10101 = vmatpush.bf16.msra.mxu0 %v9831
    %10102 = vmatpush.bf16.msra.mxu0 %v9823
    %10103 = vmatpush.bf16.msra.mxu0 %v9815
    %10104 = vmatmul.bf16.gmra.mxu0 %v10019
    %v10105 = vpop.f32.mrf.mxu0
    %v10106 = vadd.f32 %v10092, %v10105
    %v10107 = vpop.f32.mrf.mxu0
    %v10108 = vadd.f32 %v10094, %v10107
    %10109 = vdwg.mxu0
    %10110 = vmatpush.bf16.msra.mxu0 %v9935
    %10111 = vmatpush.bf16.msra.mxu0 %v9927
    %10112 = vmatpush.bf16.msra.mxu0 %v9919
    %10113 = vmatpush.bf16.msra.mxu0 %v9911
    %10114 = vmatpush.bf16.msra.mxu0 %v9903
    %10115 = vmatpush.bf16.msra.mxu0 %v9895
    %10116 = vmatpush.bf16.msra.mxu0 %v9887
    %10117 = vmatpush.bf16.msra.mxu0 %v9879
    %10118 = vmatmul.bf16.gmra.mxu0 %v10020
    %v10119 = vpop.f32.mrf.mxu0
    %v10120 = vadd.f32 %v10106, %v10119
    %v10121 = vpop.f32.mrf.mxu0
    %v10122 = vadd.f32 %v10108, %v10121
    %10123 = vdwg.mxu0
    %10124 = vmatpush.bf16.msra.mxu0 %v9999
    %10125 = vmatpush.bf16.msra.mxu0 %v9991
    %10126 = vmatpush.bf16.msra.mxu0 %v9983
    %10127 = vmatpush.bf16.msra.mxu0 %v9975
    %10128 = vmatpush.bf16.msra.mxu0 %v9967
    %10129 = vmatpush.bf16.msra.mxu0 %v9959
    %10130 = vmatpush.bf16.msra.mxu0 %v9951
    %10131 = vmatpush.bf16.msra.mxu0 %v9943
    %10132 = vmatmul.bf16.gmra.mxu0 %v10021
    %v10133 = vpop.f32.mrf.mxu0
    %v10134 = vadd.f32 %v10120, %v10133
    %v10135 = vpop.f32.mrf.mxu0
    %v10136 = vadd.f32 %v10122, %v10135
    %10137 = vdwg.mxu0
    %10138 = vmatpush.bf16.msra.mxu0 %v9808
    %10139 = vmatpush.bf16.msra.mxu0 %v9800
    %10140 = vmatpush.bf16.msra.mxu0 %v9792
    %10141 = vmatpush.bf16.msra.mxu0 %v9784
    %10142 = vmatpush.bf16.msra.mxu0 %v9776
    %10143 = vmatpush.bf16.msra.mxu0 %v9768
    %10144 = vmatpush.bf16.msra.mxu0 %v9760
    %10145 = vmatpush.bf16.msra.mxu0 %v9752
    %10146 = vmatmul.bf16.gmra.mxu0 %v10018
    %v10147 = vpop.f32.mrf.mxu0
    %v10148 = vadd.f32 0.0, %v10147
    %v10149 = vpop.f32.mrf.mxu0
    %v10150 = vadd.f32 0.0, %v10149
    %10151 = vdwg.mxu0
    %10152 = vmatpush.bf16.msra.mxu0 %v9872
    %10153 = vmatpush.bf16.msra.mxu0 %v9864
    %10154 = vmatpush.bf16.msra.mxu0 %v9856
    %10155 = vmatpush.bf16.msra.mxu0 %v9848
    %10156 = vmatpush.bf16.msra.mxu0 %v9840
    %10157 = vmatpush.bf16.msra.mxu0 %v9832
    %10158 = vmatpush.bf16.msra.mxu0 %v9824
    %10159 = vmatpush.bf16.msra.mxu0 %v9816
    %10160 = vmatmul.bf16.gmra.mxu0 %v10019
    %v10161 = vpop.f32.mrf.mxu0
    %v10162 = vadd.f32 %v10148, %v10161
    %v10163 = vpop.f32.mrf.mxu0
    %v10164 = vadd.f32 %v10150, %v10163
    %10165 = vdwg.mxu0
    %10166 = vmatpush.bf16.msra.mxu0 %v9936
    %10167 = vmatpush.bf16.msra.mxu0 %v9928
    %10168 = vmatpush.bf16.msra.mxu0 %v9920
    %10169 = vmatpush.bf16.msra.mxu0 %v9912
    %10170 = vmatpush.bf16.msra.mxu0 %v9904
    %10171 = vmatpush.bf16.msra.mxu0 %v9896
    %10172 = vmatpush.bf16.msra.mxu0 %v9888
    %10173 = vmatpush.bf16.msra.mxu0 %v9880
    %10174 = vmatmul.bf16.gmra.mxu0 %v10020
    %v10175 = vpop.f32.mrf.mxu0
    %v10176 = vadd.f32 %v10162, %v10175
    %v10177 = vpop.f32.mrf.mxu0
    %v10178 = vadd.f32 %v10164, %v10177
    %10179 = vdwg.mxu0
    %10180 = vmatpush.bf16.msra.mxu0 %v10000
    %10181 = vmatpush.bf16.msra.mxu0 %v9992
    %10182 = vmatpush.bf16.msra.mxu0 %v9984
    %10183 = vmatpush.bf16.msra.mxu0 %v9976
    %10184 = vmatpush.bf16.msra.mxu0 %v9968
    %10185 = vmatpush.bf16.msra.mxu0 %v9960
    %10186 = vmatpush.bf16.msra.mxu0 %v9952
    %10187 = vmatpush.bf16.msra.mxu0 %v9944
    %10188 = vmatmul.bf16.gmra.mxu0 %v10021
    %v10189 = vpop.f32.mrf.mxu0
    %v10190 = vadd.f32 %v10176, %v10189
    %v10191 = vpop.f32.mrf.mxu0
    %v10192 = vadd.f32 %v10178, %v10191
    %10193 = vdwg.mxu0
    %10194 = vmatpush.bf16.msra.mxu0 %v9809
    %10195 = vmatpush.bf16.msra.mxu0 %v9801
    %10196 = vmatpush.bf16.msra.mxu0 %v9793
    %10197 = vmatpush.bf16.msra.mxu0 %v9785
    %10198 = vmatpush.bf16.msra.mxu0 %v9777
    %10199 = vmatpush.bf16.msra.mxu0 %v9769
    %10200 = vmatpush.bf16.msra.mxu0 %v9761
    %10201 = vmatpush.bf16.msra.mxu0 %v9753
    %10202 = vmatmul.bf16.gmra.mxu0 %v10018
    %v10203 = vpop.f32.mrf.mxu0
    %v10204 = vadd.f32 0.0, %v10203
    %v10205 = vpop.f32.mrf.mxu0
    %v10206 = vadd.f32 0.0, %v10205
    %10207 = vdwg.mxu0
    %10208 = vmatpush.bf16.msra.mxu0 %v9873
    %10209 = vmatpush.bf16.msra.mxu0 %v9865
    %10210 = vmatpush.bf16.msra.mxu0 %v9857
    %10211 = vmatpush.bf16.msra.mxu0 %v9849
    %10212 = vmatpush.bf16.msra.mxu0 %v9841
    %10213 = vmatpush.bf16.msra.mxu0 %v9833
    %10214 = vmatpush.bf16.msra.mxu0 %v9825
    %10215 = vmatpush.bf16.msra.mxu0 %v9817
    %10216 = vmatmul.bf16.gmra.mxu0 %v10019
    %v10217 = vpop.f32.mrf.mxu0
    %v10218 = vadd.f32 %v10204, %v10217
    %v10219 = vpop.f32.mrf.mxu0
    %v10220 = vadd.f32 %v10206, %v10219
    %10221 = vdwg.mxu0
    %10222 = vmatpush.bf16.msra.mxu0 %v9937
    %10223 = vmatpush.bf16.msra.mxu0 %v9929
    %10224 = vmatpush.bf16.msra.mxu0 %v9921
    %10225 = vmatpush.bf16.msra.mxu0 %v9913
    %10226 = vmatpush.bf16.msra.mxu0 %v9905
    %10227 = vmatpush.bf16.msra.mxu0 %v9897
    %10228 = vmatpush.bf16.msra.mxu0 %v9889
    %10229 = vmatpush.bf16.msra.mxu0 %v9881
    %10230 = vmatmul.bf16.gmra.mxu0 %v10020
    %v10231 = vpop.f32.mrf.mxu0
    %v10232 = vadd.f32 %v10218, %v10231
    %v10233 = vpop.f32.mrf.mxu0
    %v10234 = vadd.f32 %v10220, %v10233
    %10235 = vdwg.mxu0
    %10236 = vmatpush.bf16.msra.mxu0 %v10001
    %10237 = vmatpush.bf16.msra.mxu0 %v9993
    %10238 = vmatpush.bf16.msra.mxu0 %v9985
    %10239 = vmatpush.bf16.msra.mxu0 %v9977
    %10240 = vmatpush.bf16.msra.mxu0 %v9969
    %10241 = vmatpush.bf16.msra.mxu0 %v9961
    %10242 = vmatpush.bf16.msra.mxu0 %v9953
    %10243 = vmatpush.bf16.msra.mxu0 %v9945
    %10244 = vmatmul.bf16.gmra.mxu0 %v10021
    %v10245 = vpop.f32.mrf.mxu0
    %v10246 = vadd.f32 %v10232, %v10245
    %v10247 = vpop.f32.mrf.mxu0
    %v10248 = vadd.f32 %v10234, %v10247
    %10249 = vdwg.mxu0
    %10250 = vmatpush.bf16.msra.mxu0 %v9810
    %10251 = vmatpush.bf16.msra.mxu0 %v9802
    %10252 = vmatpush.bf16.msra.mxu0 %v9794
    %10253 = vmatpush.bf16.msra.mxu0 %v9786
    %10254 = vmatpush.bf16.msra.mxu0 %v9778
    %10255 = vmatpush.bf16.msra.mxu0 %v9770
    %10256 = vmatpush.bf16.msra.mxu0 %v9762
    %10257 = vmatpush.bf16.msra.mxu0 %v9754
    %10258 = vmatmul.bf16.gmra.mxu0 %v10018
    %v10259 = vpop.f32.mrf.mxu0
    %v10260 = vadd.f32 0.0, %v10259
    %v10261 = vpop.f32.mrf.mxu0
    %v10262 = vadd.f32 0.0, %v10261
    %10263 = vdwg.mxu0
    %10264 = vmatpush.bf16.msra.mxu0 %v9874
    %10265 = vmatpush.bf16.msra.mxu0 %v9866
    %10266 = vmatpush.bf16.msra.mxu0 %v9858
    %10267 = vmatpush.bf16.msra.mxu0 %v9850
    %10268 = vmatpush.bf16.msra.mxu0 %v9842
    %10269 = vmatpush.bf16.msra.mxu0 %v9834
    %10270 = vmatpush.bf16.msra.mxu0 %v9826
    %10271 = vmatpush.bf16.msra.mxu0 %v9818
    %10272 = vmatmul.bf16.gmra.mxu0 %v10019
    %v10273 = vpop.f32.mrf.mxu0
    %v10274 = vadd.f32 %v10260, %v10273
    %v10275 = vpop.f32.mrf.mxu0
    %v10276 = vadd.f32 %v10262, %v10275
    %10277 = vdwg.mxu0
    %10278 = vmatpush.bf16.msra.mxu0 %v9938
    %10279 = vmatpush.bf16.msra.mxu0 %v9930
    %10280 = vmatpush.bf16.msra.mxu0 %v9922
    %10281 = vmatpush.bf16.msra.mxu0 %v9914
    %10282 = vmatpush.bf16.msra.mxu0 %v9906
    %10283 = vmatpush.bf16.msra.mxu0 %v9898
    %10284 = vmatpush.bf16.msra.mxu0 %v9890
    %10285 = vmatpush.bf16.msra.mxu0 %v9882
    %10286 = vmatmul.bf16.gmra.mxu0 %v10020
    %v10287 = vpop.f32.mrf.mxu0
    %v10288 = vadd.f32 %v10274, %v10287
    %v10289 = vpop.f32.mrf.mxu0
    %v10290 = vadd.f32 %v10276, %v10289
    %10291 = vdwg.mxu0
    %10292 = vmatpush.bf16.msra.mxu0 %v10002
    %10293 = vmatpush.bf16.msra.mxu0 %v9994
    %10294 = vmatpush.bf16.msra.mxu0 %v9986
    %10295 = vmatpush.bf16.msra.mxu0 %v9978
    %10296 = vmatpush.bf16.msra.mxu0 %v9970
    %10297 = vmatpush.bf16.msra.mxu0 %v9962
    %10298 = vmatpush.bf16.msra.mxu0 %v9954
    %10299 = vmatpush.bf16.msra.mxu0 %v9946
    %10300 = vmatmul.bf16.gmra.mxu0 %v10021
    %v10301 = vpop.f32.mrf.mxu0
    %v10302 = vadd.f32 %v10288, %v10301
    %v10303 = vpop.f32.mrf.mxu0
    %v10304 = vadd.f32 %v10290, %v10303
    %10305 = vdwg.mxu0
    %10306 = vmatpush.bf16.msra.mxu0 %v9811
    %10307 = vmatpush.bf16.msra.mxu0 %v9803
    %10308 = vmatpush.bf16.msra.mxu0 %v9795
    %10309 = vmatpush.bf16.msra.mxu0 %v9787
    %10310 = vmatpush.bf16.msra.mxu0 %v9779
    %10311 = vmatpush.bf16.msra.mxu0 %v9771
    %10312 = vmatpush.bf16.msra.mxu0 %v9763
    %10313 = vmatpush.bf16.msra.mxu0 %v9755
    %10314 = vmatmul.bf16.gmra.mxu0 %v10018
    %v10315 = vpop.f32.mrf.mxu0
    %v10316 = vadd.f32 0.0, %v10315
    %v10317 = vpop.f32.mrf.mxu0
    %v10318 = vadd.f32 0.0, %v10317
    %10319 = vdwg.mxu0
    %10320 = vmatpush.bf16.msra.mxu0 %v9875
    %10321 = vmatpush.bf16.msra.mxu0 %v9867
    %10322 = vmatpush.bf16.msra.mxu0 %v9859
    %10323 = vmatpush.bf16.msra.mxu0 %v9851
    %10324 = vmatpush.bf16.msra.mxu0 %v9843
    %10325 = vmatpush.bf16.msra.mxu0 %v9835
    %10326 = vmatpush.bf16.msra.mxu0 %v9827
    %10327 = vmatpush.bf16.msra.mxu0 %v9819
    %10328 = vmatmul.bf16.gmra.mxu0 %v10019
    %v10329 = vpop.f32.mrf.mxu0
    %v10330 = vadd.f32 %v10316, %v10329
    %v10331 = vpop.f32.mrf.mxu0
    %v10332 = vadd.f32 %v10318, %v10331
    %10333 = vdwg.mxu0
    %10334 = vmatpush.bf16.msra.mxu0 %v9939
    %10335 = vmatpush.bf16.msra.mxu0 %v9931
    %10336 = vmatpush.bf16.msra.mxu0 %v9923
    %10337 = vmatpush.bf16.msra.mxu0 %v9915
    %10338 = vmatpush.bf16.msra.mxu0 %v9907
    %10339 = vmatpush.bf16.msra.mxu0 %v9899
    %10340 = vmatpush.bf16.msra.mxu0 %v9891
    %10341 = vmatpush.bf16.msra.mxu0 %v9883
    %10342 = vmatmul.bf16.gmra.mxu0 %v10020
    %v10343 = vpop.f32.mrf.mxu0
    %v10344 = vadd.f32 %v10330, %v10343
    %v10345 = vpop.f32.mrf.mxu0
    %v10346 = vadd.f32 %v10332, %v10345
    %10347 = vdwg.mxu0
    %10348 = vmatpush.bf16.msra.mxu0 %v10003
    %10349 = vmatpush.bf16.msra.mxu0 %v9995
    %10350 = vmatpush.bf16.msra.mxu0 %v9987
    %10351 = vmatpush.bf16.msra.mxu0 %v9979
    %10352 = vmatpush.bf16.msra.mxu0 %v9971
    %10353 = vmatpush.bf16.msra.mxu0 %v9963
    %10354 = vmatpush.bf16.msra.mxu0 %v9955
    %10355 = vmatpush.bf16.msra.mxu0 %v9947
    %10356 = vmatmul.bf16.gmra.mxu0 %v10021
    %v10357 = vpop.f32.mrf.mxu0
    %v10358 = vadd.f32 %v10344, %v10357
    %v10359 = vpop.f32.mrf.mxu0
    %v10360 = vadd.f32 %v10346, %v10359
    %10361 = vdwg.mxu0
    %10362 = vmatpush.bf16.msra.mxu0 %v9812
    %10363 = vmatpush.bf16.msra.mxu0 %v9804
    %10364 = vmatpush.bf16.msra.mxu0 %v9796
    %10365 = vmatpush.bf16.msra.mxu0 %v9788
    %10366 = vmatpush.bf16.msra.mxu0 %v9780
    %10367 = vmatpush.bf16.msra.mxu0 %v9772
    %10368 = vmatpush.bf16.msra.mxu0 %v9764
    %10369 = vmatpush.bf16.msra.mxu0 %v9756
    %10370 = vmatmul.bf16.gmra.mxu0 %v10018
    %v10371 = vpop.f32.mrf.mxu0
    %v10372 = vadd.f32 0.0, %v10371
    %v10373 = vpop.f32.mrf.mxu0
    %v10374 = vadd.f32 0.0, %v10373
    %10375 = vdwg.mxu0
    %10376 = vmatpush.bf16.msra.mxu0 %v9876
    %10377 = vmatpush.bf16.msra.mxu0 %v9868
    %10378 = vmatpush.bf16.msra.mxu0 %v9860
    %10379 = vmatpush.bf16.msra.mxu0 %v9852
    %10380 = vmatpush.bf16.msra.mxu0 %v9844
    %10381 = vmatpush.bf16.msra.mxu0 %v9836
    %10382 = vmatpush.bf16.msra.mxu0 %v9828
    %10383 = vmatpush.bf16.msra.mxu0 %v9820
    %10384 = vmatmul.bf16.gmra.mxu0 %v10019
    %v10385 = vpop.f32.mrf.mxu0
    %v10386 = vadd.f32 %v10372, %v10385
    %v10387 = vpop.f32.mrf.mxu0
    %v10388 = vadd.f32 %v10374, %v10387
    %10389 = vdwg.mxu0
    %10390 = vmatpush.bf16.msra.mxu0 %v9940
    %10391 = vmatpush.bf16.msra.mxu0 %v9932
    %10392 = vmatpush.bf16.msra.mxu0 %v9924
    %10393 = vmatpush.bf16.msra.mxu0 %v9916
    %10394 = vmatpush.bf16.msra.mxu0 %v9908
    %10395 = vmatpush.bf16.msra.mxu0 %v9900
    %10396 = vmatpush.bf16.msra.mxu0 %v9892
    %10397 = vmatpush.bf16.msra.mxu0 %v9884
    %10398 = vmatmul.bf16.gmra.mxu0 %v10020
    %v10399 = vpop.f32.mrf.mxu0
    %v10400 = vadd.f32 %v10386, %v10399
    %v10401 = vpop.f32.mrf.mxu0
    %v10402 = vadd.f32 %v10388, %v10401
    %10403 = vdwg.mxu0
    %10404 = vmatpush.bf16.msra.mxu0 %v10004
    %10405 = vmatpush.bf16.msra.mxu0 %v9996
    %10406 = vmatpush.bf16.msra.mxu0 %v9988
    %10407 = vmatpush.bf16.msra.mxu0 %v9980
    %10408 = vmatpush.bf16.msra.mxu0 %v9972
    %10409 = vmatpush.bf16.msra.mxu0 %v9964
    %10410 = vmatpush.bf16.msra.mxu0 %v9956
    %10411 = vmatpush.bf16.msra.mxu0 %v9948
    %10412 = vmatmul.bf16.gmra.mxu0 %v10021
    %v10413 = vpop.f32.mrf.mxu0
    %v10414 = vadd.f32 %v10400, %v10413
    %v10415 = vpop.f32.mrf.mxu0
    %v10416 = vadd.f32 %v10402, %v10415
    %10417 = vdwg.mxu0
    %10418 = vmatpush.bf16.msra.mxu0 %v9813
    %10419 = vmatpush.bf16.msra.mxu0 %v9805
    %10420 = vmatpush.bf16.msra.mxu0 %v9797
    %10421 = vmatpush.bf16.msra.mxu0 %v9789
    %10422 = vmatpush.bf16.msra.mxu0 %v9781
    %10423 = vmatpush.bf16.msra.mxu0 %v9773
    %10424 = vmatpush.bf16.msra.mxu0 %v9765
    %10425 = vmatpush.bf16.msra.mxu0 %v9757
    %10426 = vmatmul.bf16.gmra.mxu0 %v10018
    %v10427 = vpop.f32.mrf.mxu0
    %v10428 = vadd.f32 0.0, %v10427
    %v10429 = vpop.f32.mrf.mxu0
    %v10430 = vadd.f32 0.0, %v10429
    %10431 = vdwg.mxu0
    %10432 = vmatpush.bf16.msra.mxu0 %v9877
    %10433 = vmatpush.bf16.msra.mxu0 %v9869
    %10434 = vmatpush.bf16.msra.mxu0 %v9861
    %10435 = vmatpush.bf16.msra.mxu0 %v9853
    %10436 = vmatpush.bf16.msra.mxu0 %v9845
    %10437 = vmatpush.bf16.msra.mxu0 %v9837
    %10438 = vmatpush.bf16.msra.mxu0 %v9829
    %10439 = vmatpush.bf16.msra.mxu0 %v9821
    %10440 = vmatmul.bf16.gmra.mxu0 %v10019
    %v10441 = vpop.f32.mrf.mxu0
    %v10442 = vadd.f32 %v10428, %v10441
    %v10443 = vpop.f32.mrf.mxu0
    %v10444 = vadd.f32 %v10430, %v10443
    %10445 = vdwg.mxu0
    %10446 = vmatpush.bf16.msra.mxu0 %v9941
    %10447 = vmatpush.bf16.msra.mxu0 %v9933
    %10448 = vmatpush.bf16.msra.mxu0 %v9925
    %10449 = vmatpush.bf16.msra.mxu0 %v9917
    %10450 = vmatpush.bf16.msra.mxu0 %v9909
    %10451 = vmatpush.bf16.msra.mxu0 %v9901
    %10452 = vmatpush.bf16.msra.mxu0 %v9893
    %10453 = vmatpush.bf16.msra.mxu0 %v9885
    %10454 = vmatmul.bf16.gmra.mxu0 %v10020
    %v10455 = vpop.f32.mrf.mxu0
    %v10456 = vadd.f32 %v10442, %v10455
    %v10457 = vpop.f32.mrf.mxu0
    %v10458 = vadd.f32 %v10444, %v10457
    %10459 = vdwg.mxu0
    %10460 = vmatpush.bf16.msra.mxu0 %v10005
    %10461 = vmatpush.bf16.msra.mxu0 %v9997
    %10462 = vmatpush.bf16.msra.mxu0 %v9989
    %10463 = vmatpush.bf16.msra.mxu0 %v9981
    %10464 = vmatpush.bf16.msra.mxu0 %v9973
    %10465 = vmatpush.bf16.msra.mxu0 %v9965
    %10466 = vmatpush.bf16.msra.mxu0 %v9957
    %10467 = vmatpush.bf16.msra.mxu0 %v9949
    %10468 = vmatmul.bf16.gmra.mxu0 %v10021
    %v10469 = vpop.f32.mrf.mxu0
    %v10470 = vadd.f32 %v10456, %v10469
    %v10471 = vpop.f32.mrf.mxu0
    %v10472 = vadd.f32 %v10458, %v10471
    %10473 = vdwg.mxu0
    %v10474 = vadd.f32 %v9730, %v10078
    %v10475 = vadd.f32 %v9731, %v10134
    %v10476 = vadd.f32 %v9732, %v10190
    %v10477 = vadd.f32 %v9733, %v10246
    %v10478 = vadd.f32 %v9734, %v10302
    %v10479 = vadd.f32 %v9735, %v10358
    %v10480 = vadd.f32 %v9736, %v10414
    %v10481 = vadd.f32 %v9737, %v10470
    %v10482 = vadd.f32 %v9738, %v10080
    %v10483 = vadd.f32 %v9739, %v10136
    %v10484 = vadd.f32 %v9740, %v10192
    %v10485 = vadd.f32 %v9741, %v10248
    %v10486 = vadd.f32 %v9742, %v10304
    %v10487 = vadd.f32 %v9743, %v10360
    %v10488 = vadd.f32 %v9744, %v10416
    %v10489 = vadd.f32 %v9745, %v10472
    %10490 = vst [vmem:[#allocation2] sm:$0xff] %v10474
    %10491 = vst [vmem:[#allocation2 + $0x8] sm:$0xff] %v10475
    %10492 = vst [vmem:[#allocation2 + $0x10] sm:$0xff] %v10476
    %10493 = vst [vmem:[#allocation2 + $0x18] sm:$0xff] %v10477
    %10494 = vst [vmem:[#allocation2 + $0x20] sm:$0xff] %v10478
    %10495 = vst [vmem:[#allocation2 + $0x28] sm:$0xff] %v10479
    %10496 = vst [vmem:[#allocation2 + $0x30] sm:$0xff] %v10480
    %10497 = vst [vmem:[#allocation2 + $0x38] sm:$0xff] %v10481
    %10498 = vst [vmem:[#allocation2 + $0x40] sm:$0xff] %v10482
    %10499 = vst [vmem:[#allocation2 + $0x48] sm:$0xff] %v10483
    %10500 = vst [vmem:[#allocation2 + $0x50] sm:$0xff] %v10484
    %10501 = vst [vmem:[#allocation2 + $0x58] sm:$0xff] %v10485
    %10502 = vst [vmem:[#allocation2 + $0x60] sm:$0xff] %v10486
    %10503 = vst [vmem:[#allocation2 + $0x68] sm:$0xff] %v10487
    %10504 = vst [vmem:[#allocation2 + $0x70] sm:$0xff] %v10488
    %10505 = vst [vmem:[#allocation2 + $0x78] sm:$0xff] %v10489
    // Predicated region
    $region86: #{tpu_custom_call.1} parent=1 // pred_check
      %p10506 = pneg %p104
    $region87: #{tpu_custom_call.1} parent=1 // pred_check_branch
      %10508 = sbr.rel (%p10506) target = $region89
    $region88: #{tpu_custom_call.1} parent=1 // pred_region
      %v10509 = vld [vmem:[#allocation2] sm:$0xff]
      %v10510 = vld [vmem:[#allocation2 + $0x8] sm:$0xff]
      %v10511 = vld [vmem:[#allocation2 + $0x10] sm:$0xff]
      %v10512 = vld [vmem:[#allocation2 + $0x18] sm:$0xff]
      %v10513 = vld [vmem:[#allocation2 + $0x20] sm:$0xff]
      %v10514 = vld [vmem:[#allocation2 + $0x28] sm:$0xff]
      %v10515 = vld [vmem:[#allocation2 + $0x30] sm:$0xff]
      %v10516 = vld [vmem:[#allocation2 + $0x38] sm:$0xff]
      %v10517 = vld [vmem:[#allocation2 + $0x40] sm:$0xff]
      %v10518 = vld [vmem:[#allocation2 + $0x48] sm:$0xff]
      %v10519 = vld [vmem:[#allocation2 + $0x50] sm:$0xff]
      %v10520 = vld [vmem:[#allocation2 + $0x58] sm:$0xff]
      %v10521 = vld [vmem:[#allocation2 + $0x60] sm:$0xff]
      %v10522 = vld [vmem:[#allocation2 + $0x68] sm:$0xff]
      %v10523 = vld [vmem:[#allocation2 + $0x70] sm:$0xff]
      %v10524 = vld [vmem:[#allocation2 + $0x78] sm:$0xff]
      %v10525 = vld [vmem:[%s2] sm:$0xff]
      %v10526 = vld [vmem:[%s2 + $0x8] sm:$0xff]
      %10528 = vset.pattern.permute.xlu0 0
      %10529 = vperm.xlu0 %10528, %v10525
      %v10530 = vpop.permute.xlu0 %10529
      %10533 = vset.pattern.permute.xlu0 0
      %10534 = vperm.xlu0 %10533, %v10526
      %v10535 = vpop.permute.xlu0 %10534
      %v10537 = vmul.f32 %v10509, %v10530
      %v10538 = vmul.f32 %v10510, %v10530
      %v10539 = vmul.f32 %v10511, %v10530
      %v10540 = vmul.f32 %v10512, %v10530
      %v10541 = vmul.f32 %v10513, %v10530
      %v10542 = vmul.f32 %v10514, %v10530
      %v10543 = vmul.f32 %v10515, %v10530
      %v10544 = vmul.f32 %v10516, %v10530
      %v10545 = vmul.f32 %v10517, %v10535
      %v10546 = vmul.f32 %v10518, %v10535
      %v10547 = vmul.f32 %v10519, %v10535
      %v10548 = vmul.f32 %v10520, %v10535
      %v10549 = vmul.f32 %v10521, %v10535
      %v10550 = vmul.f32 %v10522, %v10535
      %v10551 = vmul.f32 %v10523, %v10535
      %v10552 = vmul.f32 %v10524, %v10535
      %v10553 = vpack.c.bf16 %v10545, %v10537
      %v10554 = vpack.c.bf16 %v10546, %v10538
      %v10555 = vpack.c.bf16 %v10547, %v10539
      %v10556 = vpack.c.bf16 %v10548, %v10540
      %v10557 = vpack.c.bf16 %v10549, %v10541
      %v10558 = vpack.c.bf16 %v10550, %v10542
      %v10559 = vpack.c.bf16 %v10551, %v10543
      %v10560 = vpack.c.bf16 %v10552, %v10544
      %v10561 = vld [vmem:[#allocation7] sm:$0xff]
      %v10562 = vld [vmem:[#allocation7 + $0x8] sm:$0xff]
      %v10563 = vld [vmem:[#allocation7 + $0x10] sm:$0xff]
      %v10564 = vld [vmem:[#allocation7 + $0x18] sm:$0xff]
      %v10565 = vld [vmem:[#allocation7 + $0x20] sm:$0xff]
      %v10566 = vld [vmem:[#allocation7 + $0x28] sm:$0xff]
      %v10567 = vld [vmem:[#allocation7 + $0x30] sm:$0xff]
      %v10568 = vld [vmem:[#allocation7 + $0x38] sm:$0xff]
      %v10569 = vld [vmem:[#allocation7 + $0x40] sm:$0xff]
      %v10570 = vld [vmem:[#allocation7 + $0x48] sm:$0xff]
      %v10571 = vld [vmem:[#allocation7 + $0x50] sm:$0xff]
      %v10572 = vld [vmem:[#allocation7 + $0x58] sm:$0xff]
      %v10573 = vld [vmem:[#allocation7 + $0x60] sm:$0xff]
      %v10574 = vld [vmem:[#allocation7 + $0x68] sm:$0xff]
      %v10575 = vld [vmem:[#allocation7 + $0x70] sm:$0xff]
      %v10576 = vld [vmem:[#allocation7 + $0x78] sm:$0xff]
      %v10577 = vld [vmem:[#allocation7 + $0x80] sm:$0xff]
      %v10578 = vld [vmem:[#allocation7 + $0x88] sm:$0xff]
      %v10579 = vld [vmem:[#allocation7 + $0x90] sm:$0xff]
      %v10580 = vld [vmem:[#allocation7 + $0x98] sm:$0xff]
      %v10581 = vld [vmem:[#allocation7 + $0xa0] sm:$0xff]
      %v10582 = vld [vmem:[#allocation7 + $0xa8] sm:$0xff]
      %v10583 = vld [vmem:[#allocation7 + $0xb0] sm:$0xff]
      %v10584 = vld [vmem:[#allocation7 + $0xb8] sm:$0xff]
      %v10585 = vld [vmem:[#allocation7 + $0xc0] sm:$0xff]
      %v10586 = vld [vmem:[#allocation7 + $0xc8] sm:$0xff]
      %v10587 = vld [vmem:[#allocation7 + $0xd0] sm:$0xff]
      %v10588 = vld [vmem:[#allocation7 + $0xd8] sm:$0xff]
      %v10589 = vld [vmem:[#allocation7 + $0xe0] sm:$0xff]
      %v10590 = vld [vmem:[#allocation7 + $0xe8] sm:$0xff]
      %v10591 = vld [vmem:[#allocation7 + $0xf0] sm:$0xff]
      %v10592 = vld [vmem:[#allocation7 + $0xf8] sm:$0xff]
      %v10593 = vld [vmem:[#allocation7 + $0x100] sm:$0xff]
      %v10594 = vld [vmem:[#allocation7 + $0x108] sm:$0xff]
      %v10595 = vld [vmem:[#allocation7 + $0x110] sm:$0xff]
      %v10596 = vld [vmem:[#allocation7 + $0x118] sm:$0xff]
      %v10597 = vld [vmem:[#allocation7 + $0x120] sm:$0xff]
      %v10598 = vld [vmem:[#allocation7 + $0x128] sm:$0xff]
      %v10599 = vld [vmem:[#allocation7 + $0x130] sm:$0xff]
      %v10600 = vld [vmem:[#allocation7 + $0x138] sm:$0xff]
      %v10601 = vld [vmem:[#allocation7 + $0x140] sm:$0xff]
      %v10602 = vld [vmem:[#allocation7 + $0x148] sm:$0xff]
      %v10603 = vld [vmem:[#allocation7 + $0x150] sm:$0xff]
      %v10604 = vld [vmem:[#allocation7 + $0x158] sm:$0xff]
      %v10605 = vld [vmem:[#allocation7 + $0x160] sm:$0xff]
      %v10606 = vld [vmem:[#allocation7 + $0x168] sm:$0xff]
      %v10607 = vld [vmem:[#allocation7 + $0x170] sm:$0xff]
      %v10608 = vld [vmem:[#allocation7 + $0x178] sm:$0xff]
      %v10609 = vld [vmem:[#allocation7 + $0x180] sm:$0xff]
      %v10610 = vld [vmem:[#allocation7 + $0x188] sm:$0xff]
      %v10611 = vld [vmem:[#allocation7 + $0x190] sm:$0xff]
      %v10612 = vld [vmem:[#allocation7 + $0x198] sm:$0xff]
      %v10613 = vld [vmem:[#allocation7 + $0x1a0] sm:$0xff]
      %v10614 = vld [vmem:[#allocation7 + $0x1a8] sm:$0xff]
      %v10615 = vld [vmem:[#allocation7 + $0x1b0] sm:$0xff]
      %v10616 = vld [vmem:[#allocation7 + $0x1b8] sm:$0xff]
      %v10617 = vld [vmem:[#allocation7 + $0x1c0] sm:$0xff]
      %v10618 = vld [vmem:[#allocation7 + $0x1c8] sm:$0xff]
      %v10619 = vld [vmem:[#allocation7 + $0x1d0] sm:$0xff]
      %v10620 = vld [vmem:[#allocation7 + $0x1d8] sm:$0xff]
      %v10621 = vld [vmem:[#allocation7 + $0x1e0] sm:$0xff]
      %v10622 = vld [vmem:[#allocation7 + $0x1e8] sm:$0xff]
      %v10623 = vld [vmem:[#allocation7 + $0x1f0] sm:$0xff]
      %v10624 = vld [vmem:[#allocation7 + $0x1f8] sm:$0xff]
      %v10625 = vld [vmem:[#allocation7 + $0x200] sm:$0xff]
      %v10626 = vld [vmem:[#allocation7 + $0x208] sm:$0xff]
      %v10627 = vld [vmem:[#allocation7 + $0x210] sm:$0xff]
      %v10628 = vld [vmem:[#allocation7 + $0x218] sm:$0xff]
      %v10629 = vld [vmem:[#allocation7 + $0x220] sm:$0xff]
      %v10630 = vld [vmem:[#allocation7 + $0x228] sm:$0xff]
      %v10631 = vld [vmem:[#allocation7 + $0x230] sm:$0xff]
      %v10632 = vld [vmem:[#allocation7 + $0x238] sm:$0xff]
      %v10633 = vld [vmem:[#allocation7 + $0x240] sm:$0xff]
      %v10634 = vld [vmem:[#allocation7 + $0x248] sm:$0xff]
      %v10635 = vld [vmem:[#allocation7 + $0x250] sm:$0xff]
      %v10636 = vld [vmem:[#allocation7 + $0x258] sm:$0xff]
      %v10637 = vld [vmem:[#allocation7 + $0x260] sm:$0xff]
      %v10638 = vld [vmem:[#allocation7 + $0x268] sm:$0xff]
      %v10639 = vld [vmem:[#allocation7 + $0x270] sm:$0xff]
      %v10640 = vld [vmem:[#allocation7 + $0x278] sm:$0xff]
      %v10641 = vld [vmem:[#allocation7 + $0x280] sm:$0xff]
      %v10642 = vld [vmem:[#allocation7 + $0x288] sm:$0xff]
      %v10643 = vld [vmem:[#allocation7 + $0x290] sm:$0xff]
      %v10644 = vld [vmem:[#allocation7 + $0x298] sm:$0xff]
      %v10645 = vld [vmem:[#allocation7 + $0x2a0] sm:$0xff]
      %v10646 = vld [vmem:[#allocation7 + $0x2a8] sm:$0xff]
      %v10647 = vld [vmem:[#allocation7 + $0x2b0] sm:$0xff]
      %v10648 = vld [vmem:[#allocation7 + $0x2b8] sm:$0xff]
      %v10649 = vld [vmem:[#allocation7 + $0x2c0] sm:$0xff]
      %v10650 = vld [vmem:[#allocation7 + $0x2c8] sm:$0xff]
      %v10651 = vld [vmem:[#allocation7 + $0x2d0] sm:$0xff]
      %v10652 = vld [vmem:[#allocation7 + $0x2d8] sm:$0xff]
      %v10653 = vld [vmem:[#allocation7 + $0x2e0] sm:$0xff]
      %v10654 = vld [vmem:[#allocation7 + $0x2e8] sm:$0xff]
      %v10655 = vld [vmem:[#allocation7 + $0x2f0] sm:$0xff]
      %v10656 = vld [vmem:[#allocation7 + $0x2f8] sm:$0xff]
      %v10657 = vld [vmem:[#allocation7 + $0x300] sm:$0xff]
      %v10658 = vld [vmem:[#allocation7 + $0x308] sm:$0xff]
      %v10659 = vld [vmem:[#allocation7 + $0x310] sm:$0xff]
      %v10660 = vld [vmem:[#allocation7 + $0x318] sm:$0xff]
      %v10661 = vld [vmem:[#allocation7 + $0x320] sm:$0xff]
      %v10662 = vld [vmem:[#allocation7 + $0x328] sm:$0xff]
      %v10663 = vld [vmem:[#allocation7 + $0x330] sm:$0xff]
      %v10664 = vld [vmem:[#allocation7 + $0x338] sm:$0xff]
      %v10665 = vld [vmem:[#allocation7 + $0x340] sm:$0xff]
      %v10666 = vld [vmem:[#allocation7 + $0x348] sm:$0xff]
      %v10667 = vld [vmem:[#allocation7 + $0x350] sm:$0xff]
      %v10668 = vld [vmem:[#allocation7 + $0x358] sm:$0xff]
      %v10669 = vld [vmem:[#allocation7 + $0x360] sm:$0xff]
      %v10670 = vld [vmem:[#allocation7 + $0x368] sm:$0xff]
      %v10671 = vld [vmem:[#allocation7 + $0x370] sm:$0xff]
      %v10672 = vld [vmem:[#allocation7 + $0x378] sm:$0xff]
      %v10673 = vld [vmem:[#allocation7 + $0x380] sm:$0xff]
      %v10674 = vld [vmem:[#allocation7 + $0x388] sm:$0xff]
      %v10675 = vld [vmem:[#allocation7 + $0x390] sm:$0xff]
      %v10676 = vld [vmem:[#allocation7 + $0x398] sm:$0xff]
      %v10677 = vld [vmem:[#allocation7 + $0x3a0] sm:$0xff]
      %v10678 = vld [vmem:[#allocation7 + $0x3a8] sm:$0xff]
      %v10679 = vld [vmem:[#allocation7 + $0x3b0] sm:$0xff]
      %v10680 = vld [vmem:[#allocation7 + $0x3b8] sm:$0xff]
      %v10681 = vld [vmem:[#allocation7 + $0x3c0] sm:$0xff]
      %v10682 = vld [vmem:[#allocation7 + $0x3c8] sm:$0xff]
      %v10683 = vld [vmem:[#allocation7 + $0x3d0] sm:$0xff]
      %v10684 = vld [vmem:[#allocation7 + $0x3d8] sm:$0xff]
      %v10685 = vld [vmem:[#allocation7 + $0x3e0] sm:$0xff]
      %v10686 = vld [vmem:[#allocation7 + $0x3e8] sm:$0xff]
      %v10687 = vld [vmem:[#allocation7 + $0x3f0] sm:$0xff]
      %v10688 = vld [vmem:[#allocation7 + $0x3f8] sm:$0xff]
      %v10689 = vld [vmem:[#allocation7 + $0x400] sm:$0xff]
      %v10690 = vld [vmem:[#allocation7 + $0x408] sm:$0xff]
      %v10691 = vld [vmem:[#allocation7 + $0x410] sm:$0xff]
      %v10692 = vld [vmem:[#allocation7 + $0x418] sm:$0xff]
      %v10693 = vld [vmem:[#allocation7 + $0x420] sm:$0xff]
      %v10694 = vld [vmem:[#allocation7 + $0x428] sm:$0xff]
      %v10695 = vld [vmem:[#allocation7 + $0x430] sm:$0xff]
      %v10696 = vld [vmem:[#allocation7 + $0x438] sm:$0xff]
      %v10697 = vld [vmem:[#allocation7 + $0x440] sm:$0xff]
      %v10698 = vld [vmem:[#allocation7 + $0x448] sm:$0xff]
      %v10699 = vld [vmem:[#allocation7 + $0x450] sm:$0xff]
      %v10700 = vld [vmem:[#allocation7 + $0x458] sm:$0xff]
      %v10701 = vld [vmem:[#allocation7 + $0x460] sm:$0xff]
      %v10702 = vld [vmem:[#allocation7 + $0x468] sm:$0xff]
      %v10703 = vld [vmem:[#allocation7 + $0x470] sm:$0xff]
      %v10704 = vld [vmem:[#allocation7 + $0x478] sm:$0xff]
      %v10705 = vld [vmem:[#allocation7 + $0x480] sm:$0xff]
      %v10706 = vld [vmem:[#allocation7 + $0x488] sm:$0xff]
      %v10707 = vld [vmem:[#allocation7 + $0x490] sm:$0xff]
      %v10708 = vld [vmem:[#allocation7 + $0x498] sm:$0xff]
      %v10709 = vld [vmem:[#allocation7 + $0x4a0] sm:$0xff]
      %v10710 = vld [vmem:[#allocation7 + $0x4a8] sm:$0xff]
      %v10711 = vld [vmem:[#allocation7 + $0x4b0] sm:$0xff]
      %v10712 = vld [vmem:[#allocation7 + $0x4b8] sm:$0xff]
      %v10713 = vld [vmem:[#allocation7 + $0x4c0] sm:$0xff]
      %v10714 = vld [vmem:[#allocation7 + $0x4c8] sm:$0xff]
      %v10715 = vld [vmem:[#allocation7 + $0x4d0] sm:$0xff]
      %v10716 = vld [vmem:[#allocation7 + $0x4d8] sm:$0xff]
      %v10717 = vld [vmem:[#allocation7 + $0x4e0] sm:$0xff]
      %v10718 = vld [vmem:[#allocation7 + $0x4e8] sm:$0xff]
      %v10719 = vld [vmem:[#allocation7 + $0x4f0] sm:$0xff]
      %v10720 = vld [vmem:[#allocation7 + $0x4f8] sm:$0xff]
      %v10721 = vld [vmem:[#allocation7 + $0x500] sm:$0xff]
      %v10722 = vld [vmem:[#allocation7 + $0x508] sm:$0xff]
      %v10723 = vld [vmem:[#allocation7 + $0x510] sm:$0xff]
      %v10724 = vld [vmem:[#allocation7 + $0x518] sm:$0xff]
      %v10725 = vld [vmem:[#allocation7 + $0x520] sm:$0xff]
      %v10726 = vld [vmem:[#allocation7 + $0x528] sm:$0xff]
      %v10727 = vld [vmem:[#allocation7 + $0x530] sm:$0xff]
      %v10728 = vld [vmem:[#allocation7 + $0x538] sm:$0xff]
      %v10729 = vld [vmem:[#allocation7 + $0x540] sm:$0xff]
      %v10730 = vld [vmem:[#allocation7 + $0x548] sm:$0xff]
      %v10731 = vld [vmem:[#allocation7 + $0x550] sm:$0xff]
      %v10732 = vld [vmem:[#allocation7 + $0x558] sm:$0xff]
      %v10733 = vld [vmem:[#allocation7 + $0x560] sm:$0xff]
      %v10734 = vld [vmem:[#allocation7 + $0x568] sm:$0xff]
      %v10735 = vld [vmem:[#allocation7 + $0x570] sm:$0xff]
      %v10736 = vld [vmem:[#allocation7 + $0x578] sm:$0xff]
      %v10737 = vld [vmem:[#allocation7 + $0x580] sm:$0xff]
      %v10738 = vld [vmem:[#allocation7 + $0x588] sm:$0xff]
      %v10739 = vld [vmem:[#allocation7 + $0x590] sm:$0xff]
      %v10740 = vld [vmem:[#allocation7 + $0x598] sm:$0xff]
      %v10741 = vld [vmem:[#allocation7 + $0x5a0] sm:$0xff]
      %v10742 = vld [vmem:[#allocation7 + $0x5a8] sm:$0xff]
      %v10743 = vld [vmem:[#allocation7 + $0x5b0] sm:$0xff]
      %v10744 = vld [vmem:[#allocation7 + $0x5b8] sm:$0xff]
      %v10745 = vld [vmem:[#allocation7 + $0x5c0] sm:$0xff]
      %v10746 = vld [vmem:[#allocation7 + $0x5c8] sm:$0xff]
      %v10747 = vld [vmem:[#allocation7 + $0x5d0] sm:$0xff]
      %v10748 = vld [vmem:[#allocation7 + $0x5d8] sm:$0xff]
      %v10749 = vld [vmem:[#allocation7 + $0x5e0] sm:$0xff]
      %v10750 = vld [vmem:[#allocation7 + $0x5e8] sm:$0xff]
      %v10751 = vld [vmem:[#allocation7 + $0x5f0] sm:$0xff]
      %v10752 = vld [vmem:[#allocation7 + $0x5f8] sm:$0xff]
      %v10753 = vld [vmem:[#allocation7 + $0x600] sm:$0xff]
      %v10754 = vld [vmem:[#allocation7 + $0x608] sm:$0xff]
      %v10755 = vld [vmem:[#allocation7 + $0x610] sm:$0xff]
      %v10756 = vld [vmem:[#allocation7 + $0x618] sm:$0xff]
      %v10757 = vld [vmem:[#allocation7 + $0x620] sm:$0xff]
      %v10758 = vld [vmem:[#allocation7 + $0x628] sm:$0xff]
      %v10759 = vld [vmem:[#allocation7 + $0x630] sm:$0xff]
      %v10760 = vld [vmem:[#allocation7 + $0x638] sm:$0xff]
      %v10761 = vld [vmem:[#allocation7 + $0x640] sm:$0xff]
      %v10762 = vld [vmem:[#allocation7 + $0x648] sm:$0xff]
      %v10763 = vld [vmem:[#allocation7 + $0x650] sm:$0xff]
      %v10764 = vld [vmem:[#allocation7 + $0x658] sm:$0xff]
      %v10765 = vld [vmem:[#allocation7 + $0x660] sm:$0xff]
      %v10766 = vld [vmem:[#allocation7 + $0x668] sm:$0xff]
      %v10767 = vld [vmem:[#allocation7 + $0x670] sm:$0xff]
      %v10768 = vld [vmem:[#allocation7 + $0x678] sm:$0xff]
      %v10769 = vld [vmem:[#allocation7 + $0x680] sm:$0xff]
      %v10770 = vld [vmem:[#allocation7 + $0x688] sm:$0xff]
      %v10771 = vld [vmem:[#allocation7 + $0x690] sm:$0xff]
      %v10772 = vld [vmem:[#allocation7 + $0x698] sm:$0xff]
      %v10773 = vld [vmem:[#allocation7 + $0x6a0] sm:$0xff]
      %v10774 = vld [vmem:[#allocation7 + $0x6a8] sm:$0xff]
      %v10775 = vld [vmem:[#allocation7 + $0x6b0] sm:$0xff]
      %v10776 = vld [vmem:[#allocation7 + $0x6b8] sm:$0xff]
      %v10777 = vld [vmem:[#allocation7 + $0x6c0] sm:$0xff]
      %v10778 = vld [vmem:[#allocation7 + $0x6c8] sm:$0xff]
      %v10779 = vld [vmem:[#allocation7 + $0x6d0] sm:$0xff]
      %v10780 = vld [vmem:[#allocation7 + $0x6d8] sm:$0xff]
      %v10781 = vld [vmem:[#allocation7 + $0x6e0] sm:$0xff]
      %v10782 = vld [vmem:[#allocation7 + $0x6e8] sm:$0xff]
      %v10783 = vld [vmem:[#allocation7 + $0x6f0] sm:$0xff]
      %v10784 = vld [vmem:[#allocation7 + $0x6f8] sm:$0xff]
      %v10785 = vld [vmem:[#allocation7 + $0x700] sm:$0xff]
      %v10786 = vld [vmem:[#allocation7 + $0x708] sm:$0xff]
      %v10787 = vld [vmem:[#allocation7 + $0x710] sm:$0xff]
      %v10788 = vld [vmem:[#allocation7 + $0x718] sm:$0xff]
      %v10789 = vld [vmem:[#allocation7 + $0x720] sm:$0xff]
      %v10790 = vld [vmem:[#allocation7 + $0x728] sm:$0xff]
      %v10791 = vld [vmem:[#allocation7 + $0x730] sm:$0xff]
      %v10792 = vld [vmem:[#allocation7 + $0x738] sm:$0xff]
      %v10793 = vld [vmem:[#allocation7 + $0x740] sm:$0xff]
      %v10794 = vld [vmem:[#allocation7 + $0x748] sm:$0xff]
      %v10795 = vld [vmem:[#allocation7 + $0x750] sm:$0xff]
      %v10796 = vld [vmem:[#allocation7 + $0x758] sm:$0xff]
      %v10797 = vld [vmem:[#allocation7 + $0x760] sm:$0xff]
      %v10798 = vld [vmem:[#allocation7 + $0x768] sm:$0xff]
      %v10799 = vld [vmem:[#allocation7 + $0x770] sm:$0xff]
      %v10800 = vld [vmem:[#allocation7 + $0x778] sm:$0xff]
      %v10801 = vld [vmem:[#allocation7 + $0x780] sm:$0xff]
      %v10802 = vld [vmem:[#allocation7 + $0x788] sm:$0xff]
      %v10803 = vld [vmem:[#allocation7 + $0x790] sm:$0xff]
      %v10804 = vld [vmem:[#allocation7 + $0x798] sm:$0xff]
      %v10805 = vld [vmem:[#allocation7 + $0x7a0] sm:$0xff]
      %v10806 = vld [vmem:[#allocation7 + $0x7a8] sm:$0xff]
      %v10807 = vld [vmem:[#allocation7 + $0x7b0] sm:$0xff]
      %v10808 = vld [vmem:[#allocation7 + $0x7b8] sm:$0xff]
      %v10809 = vld [vmem:[#allocation7 + $0x7c0] sm:$0xff]
      %v10810 = vld [vmem:[#allocation7 + $0x7c8] sm:$0xff]
      %v10811 = vld [vmem:[#allocation7 + $0x7d0] sm:$0xff]
      %v10812 = vld [vmem:[#allocation7 + $0x7d8] sm:$0xff]
      %v10813 = vld [vmem:[#allocation7 + $0x7e0] sm:$0xff]
      %v10814 = vld [vmem:[#allocation7 + $0x7e8] sm:$0xff]
      %v10815 = vld [vmem:[#allocation7 + $0x7f0] sm:$0xff]
      %v10816 = vld [vmem:[#allocation7 + $0x7f8] sm:$0xff]
      %v10817 = vld [vmem:[%s12] sm:$0xf]
      %v10819 = vperm.slane %v10817, 0
      %v10820 = vperm.slane %v10817, 1
      %v10821 = vperm.slane %v10817, 2
      %v10822 = vperm.slane %v10817, 3
      %v11083 = vunpack.c.l.b16 %v10561
      %v11084 = vunpack.c.h.b16 %v10561
      %v11085 = vunpack.c.l.b16 %v10562
      %v11086 = vunpack.c.h.b16 %v10562
      %v11087 = vunpack.c.l.b16 %v10563
      %v11088 = vunpack.c.h.b16 %v10563
      %v11089 = vunpack.c.l.b16 %v10564
      %v11090 = vunpack.c.h.b16 %v10564
      %v11091 = vunpack.c.l.b16 %v10565
      %v11092 = vunpack.c.h.b16 %v10565
      %v11093 = vunpack.c.l.b16 %v10566
      %v11094 = vunpack.c.h.b16 %v10566
      %v11095 = vunpack.c.l.b16 %v10567
      %v11096 = vunpack.c.h.b16 %v10567
      %v11097 = vunpack.c.l.b16 %v10568
      %v11098 = vunpack.c.h.b16 %v10568
      %v11099 = vunpack.c.l.b16 %v10569
      %v11100 = vunpack.c.h.b16 %v10569
      %v11101 = vunpack.c.l.b16 %v10570
      %v11102 = vunpack.c.h.b16 %v10570
      %v11103 = vunpack.c.l.b16 %v10571
      %v11104 = vunpack.c.h.b16 %v10571
      %v11105 = vunpack.c.l.b16 %v10572
      %v11106 = vunpack.c.h.b16 %v10572
      %v11107 = vunpack.c.l.b16 %v10573
      %v11108 = vunpack.c.h.b16 %v10573
      %v11109 = vunpack.c.l.b16 %v10574
      %v11110 = vunpack.c.h.b16 %v10574
      %v11111 = vunpack.c.l.b16 %v10575
      %v11112 = vunpack.c.h.b16 %v10575
      %v11113 = vunpack.c.l.b16 %v10576
      %v11114 = vunpack.c.h.b16 %v10576
      %v11115 = vunpack.c.l.b16 %v10577
      %v11116 = vunpack.c.h.b16 %v10577
      %v11117 = vunpack.c.l.b16 %v10578
      %v11118 = vunpack.c.h.b16 %v10578
      %v11119 = vunpack.c.l.b16 %v10579
      %v11120 = vunpack.c.h.b16 %v10579
      %v11121 = vunpack.c.l.b16 %v10580
      %v11122 = vunpack.c.h.b16 %v10580
      %v11123 = vunpack.c.l.b16 %v10581
      %v11124 = vunpack.c.h.b16 %v10581
      %v11125 = vunpack.c.l.b16 %v10582
      %v11126 = vunpack.c.h.b16 %v10582
      %v11127 = vunpack.c.l.b16 %v10583
      %v11128 = vunpack.c.h.b16 %v10583
      %v11129 = vunpack.c.l.b16 %v10584
      %v11130 = vunpack.c.h.b16 %v10584
      %v11131 = vunpack.c.l.b16 %v10585
      %v11132 = vunpack.c.h.b16 %v10585
      %v11133 = vunpack.c.l.b16 %v10586
      %v11134 = vunpack.c.h.b16 %v10586
      %v11135 = vunpack.c.l.b16 %v10587
      %v11136 = vunpack.c.h.b16 %v10587
      %v11137 = vunpack.c.l.b16 %v10588
      %v11138 = vunpack.c.h.b16 %v10588
      %v11139 = vunpack.c.l.b16 %v10589
      %v11140 = vunpack.c.h.b16 %v10589
      %v11141 = vunpack.c.l.b16 %v10590
      %v11142 = vunpack.c.h.b16 %v10590
      %v11143 = vunpack.c.l.b16 %v10591
      %v11144 = vunpack.c.h.b16 %v10591
      %v11145 = vunpack.c.l.b16 %v10592
      %v11146 = vunpack.c.h.b16 %v10592
      %v11147 = vunpack.c.l.b16 %v10593
      %v11148 = vunpack.c.h.b16 %v10593
      %v11149 = vunpack.c.l.b16 %v10594
      %v11150 = vunpack.c.h.b16 %v10594
      %v11151 = vunpack.c.l.b16 %v10595
      %v11152 = vunpack.c.h.b16 %v10595
      %v11153 = vunpack.c.l.b16 %v10596
      %v11154 = vunpack.c.h.b16 %v10596
      %v11155 = vunpack.c.l.b16 %v10597
      %v11156 = vunpack.c.h.b16 %v10597
      %v11157 = vunpack.c.l.b16 %v10598
      %v11158 = vunpack.c.h.b16 %v10598
      %v11159 = vunpack.c.l.b16 %v10599
      %v11160 = vunpack.c.h.b16 %v10599
      %v11161 = vunpack.c.l.b16 %v10600
      %v11162 = vunpack.c.h.b16 %v10600
      %v11163 = vunpack.c.l.b16 %v10601
      %v11164 = vunpack.c.h.b16 %v10601
      %v11165 = vunpack.c.l.b16 %v10602
      %v11166 = vunpack.c.h.b16 %v10602
      %v11167 = vunpack.c.l.b16 %v10603
      %v11168 = vunpack.c.h.b16 %v10603
      %v11169 = vunpack.c.l.b16 %v10604
      %v11170 = vunpack.c.h.b16 %v10604
      %v11171 = vunpack.c.l.b16 %v10605
      %v11172 = vunpack.c.h.b16 %v10605
      %v11173 = vunpack.c.l.b16 %v10606
      %v11174 = vunpack.c.h.b16 %v10606
      %v11175 = vunpack.c.l.b16 %v10607
      %v11176 = vunpack.c.h.b16 %v10607
      %v11177 = vunpack.c.l.b16 %v10608
      %v11178 = vunpack.c.h.b16 %v10608
      %v11179 = vunpack.c.l.b16 %v10609
      %v11180 = vunpack.c.h.b16 %v10609
      %v11181 = vunpack.c.l.b16 %v10610
      %v11182 = vunpack.c.h.b16 %v10610
      %v11183 = vunpack.c.l.b16 %v10611
      %v11184 = vunpack.c.h.b16 %v10611
      %v11185 = vunpack.c.l.b16 %v10612
      %v11186 = vunpack.c.h.b16 %v10612
      %v11187 = vunpack.c.l.b16 %v10613
      %v11188 = vunpack.c.h.b16 %v10613
      %v11189 = vunpack.c.l.b16 %v10614
      %v11190 = vunpack.c.h.b16 %v10614
      %v11191 = vunpack.c.l.b16 %v10615
      %v11192 = vunpack.c.h.b16 %v10615
      %v11193 = vunpack.c.l.b16 %v10616
      %v11194 = vunpack.c.h.b16 %v10616
      %v11195 = vunpack.c.l.b16 %v10617
      %v11196 = vunpack.c.h.b16 %v10617
      %v11197 = vunpack.c.l.b16 %v10618
      %v11198 = vunpack.c.h.b16 %v10618
      %v11199 = vunpack.c.l.b16 %v10619
      %v11200 = vunpack.c.h.b16 %v10619
      %v11201 = vunpack.c.l.b16 %v10620
      %v11202 = vunpack.c.h.b16 %v10620
      %v11203 = vunpack.c.l.b16 %v10621
      %v11204 = vunpack.c.h.b16 %v10621
      %v11205 = vunpack.c.l.b16 %v10622
      %v11206 = vunpack.c.h.b16 %v10622
      %v11207 = vunpack.c.l.b16 %v10623
      %v11208 = vunpack.c.h.b16 %v10623
      %v11209 = vunpack.c.l.b16 %v10624
      %v11210 = vunpack.c.h.b16 %v10624
      %v11211 = vunpack.c.l.b16 %v10625
      %v11212 = vunpack.c.h.b16 %v10625
      %v11213 = vunpack.c.l.b16 %v10626
      %v11214 = vunpack.c.h.b16 %v10626
      %v11215 = vunpack.c.l.b16 %v10627
      %v11216 = vunpack.c.h.b16 %v10627
      %v11217 = vunpack.c.l.b16 %v10628
      %v11218 = vunpack.c.h.b16 %v10628
      %v11219 = vunpack.c.l.b16 %v10629
      %v11220 = vunpack.c.h.b16 %v10629
      %v11221 = vunpack.c.l.b16 %v10630
      %v11222 = vunpack.c.h.b16 %v10630
      %v11223 = vunpack.c.l.b16 %v10631
      %v11224 = vunpack.c.h.b16 %v10631
      %v11225 = vunpack.c.l.b16 %v10632
      %v11226 = vunpack.c.h.b16 %v10632
      %v11227 = vunpack.c.l.b16 %v10633
      %v11228 = vunpack.c.h.b16 %v10633
      %v11229 = vunpack.c.l.b16 %v10634
      %v11230 = vunpack.c.h.b16 %v10634
      %v11231 = vunpack.c.l.b16 %v10635
      %v11232 = vunpack.c.h.b16 %v10635
      %v11233 = vunpack.c.l.b16 %v10636
      %v11234 = vunpack.c.h.b16 %v10636
      %v11235 = vunpack.c.l.b16 %v10637
      %v11236 = vunpack.c.h.b16 %v10637
      %v11237 = vunpack.c.l.b16 %v10638
      %v11238 = vunpack.c.h.b16 %v10638
      %v11239 = vunpack.c.l.b16 %v10639
      %v11240 = vunpack.c.h.b16 %v10639
      %v11241 = vunpack.c.l.b16 %v10640
      %v11242 = vunpack.c.h.b16 %v10640
      %v11243 = vunpack.c.l.b16 %v10641
      %v11244 = vunpack.c.h.b16 %v10641
      %v11245 = vunpack.c.l.b16 %v10642
      %v11246 = vunpack.c.h.b16 %v10642
      %v11247 = vunpack.c.l.b16 %v10643
      %v11248 = vunpack.c.h.b16 %v10643
      %v11249 = vunpack.c.l.b16 %v10644
      %v11250 = vunpack.c.h.b16 %v10644
      %v11251 = vunpack.c.l.b16 %v10645
      %v11252 = vunpack.c.h.b16 %v10645
      %v11253 = vunpack.c.l.b16 %v10646
      %v11254 = vunpack.c.h.b16 %v10646
      %v11255 = vunpack.c.l.b16 %v10647
      %v11256 = vunpack.c.h.b16 %v10647
      %v11257 = vunpack.c.l.b16 %v10648
      %v11258 = vunpack.c.h.b16 %v10648
      %v11259 = vunpack.c.l.b16 %v10649
      %v11260 = vunpack.c.h.b16 %v10649
      %v11261 = vunpack.c.l.b16 %v10650
      %v11262 = vunpack.c.h.b16 %v10650
      %v11263 = vunpack.c.l.b16 %v10651
      %v11264 = vunpack.c.h.b16 %v10651
      %v11265 = vunpack.c.l.b16 %v10652
      %v11266 = vunpack.c.h.b16 %v10652
      %v11267 = vunpack.c.l.b16 %v10653
      %v11268 = vunpack.c.h.b16 %v10653
      %v11269 = vunpack.c.l.b16 %v10654
      %v11270 = vunpack.c.h.b16 %v10654
      %v11271 = vunpack.c.l.b16 %v10655
      %v11272 = vunpack.c.h.b16 %v10655
      %v11273 = vunpack.c.l.b16 %v10656
      %v11274 = vunpack.c.h.b16 %v10656
      %v11275 = vunpack.c.l.b16 %v10657
      %v11276 = vunpack.c.h.b16 %v10657
      %v11277 = vunpack.c.l.b16 %v10658
      %v11278 = vunpack.c.h.b16 %v10658
      %v11279 = vunpack.c.l.b16 %v10659
      %v11280 = vunpack.c.h.b16 %v10659
      %v11281 = vunpack.c.l.b16 %v10660
      %v11282 = vunpack.c.h.b16 %v10660
      %v11283 = vunpack.c.l.b16 %v10661
      %v11284 = vunpack.c.h.b16 %v10661
      %v11285 = vunpack.c.l.b16 %v10662
      %v11286 = vunpack.c.h.b16 %v10662
      %v11287 = vunpack.c.l.b16 %v10663
      %v11288 = vunpack.c.h.b16 %v10663
      %v11289 = vunpack.c.l.b16 %v10664
      %v11290 = vunpack.c.h.b16 %v10664
      %v11291 = vunpack.c.l.b16 %v10665
      %v11292 = vunpack.c.h.b16 %v10665
      %v11293 = vunpack.c.l.b16 %v10666
      %v11294 = vunpack.c.h.b16 %v10666
      %v11295 = vunpack.c.l.b16 %v10667
      %v11296 = vunpack.c.h.b16 %v10667
      %v11297 = vunpack.c.l.b16 %v10668
      %v11298 = vunpack.c.h.b16 %v10668
      %v11299 = vunpack.c.l.b16 %v10669
      %v11300 = vunpack.c.h.b16 %v10669
      %v11301 = vunpack.c.l.b16 %v10670
      %v11302 = vunpack.c.h.b16 %v10670
      %v11303 = vunpack.c.l.b16 %v10671
      %v11304 = vunpack.c.h.b16 %v10671
      %v11305 = vunpack.c.l.b16 %v10672
      %v11306 = vunpack.c.h.b16 %v10672
      %v11307 = vunpack.c.l.b16 %v10673
      %v11308 = vunpack.c.h.b16 %v10673
      %v11309 = vunpack.c.l.b16 %v10674
      %v11310 = vunpack.c.h.b16 %v10674
      %v11311 = vunpack.c.l.b16 %v10675
      %v11312 = vunpack.c.h.b16 %v10675
      %v11313 = vunpack.c.l.b16 %v10676
      %v11314 = vunpack.c.h.b16 %v10676
      %v11315 = vunpack.c.l.b16 %v10677
      %v11316 = vunpack.c.h.b16 %v10677
      %v11317 = vunpack.c.l.b16 %v10678
      %v11318 = vunpack.c.h.b16 %v10678
      %v11319 = vunpack.c.l.b16 %v10679
      %v11320 = vunpack.c.h.b16 %v10679
      %v11321 = vunpack.c.l.b16 %v10680
      %v11322 = vunpack.c.h.b16 %v10680
      %v11323 = vunpack.c.l.b16 %v10681
      %v11324 = vunpack.c.h.b16 %v10681
      %v11325 = vunpack.c.l.b16 %v10682
      %v11326 = vunpack.c.h.b16 %v10682
      %v11327 = vunpack.c.l.b16 %v10683
      %v11328 = vunpack.c.h.b16 %v10683
      %v11329 = vunpack.c.l.b16 %v10684
      %v11330 = vunpack.c.h.b16 %v10684
      %v11331 = vunpack.c.l.b16 %v10685
      %v11332 = vunpack.c.h.b16 %v10685
      %v11333 = vunpack.c.l.b16 %v10686
      %v11334 = vunpack.c.h.b16 %v10686
      %v11335 = vunpack.c.l.b16 %v10687
      %v11336 = vunpack.c.h.b16 %v10687
      %v11337 = vunpack.c.l.b16 %v10688
      %v11338 = vunpack.c.h.b16 %v10688
      %v11339 = vunpack.c.l.b16 %v10689
      %v11340 = vunpack.c.h.b16 %v10689
      %v11341 = vunpack.c.l.b16 %v10690
      %v11342 = vunpack.c.h.b16 %v10690
      %v11343 = vunpack.c.l.b16 %v10691
      %v11344 = vunpack.c.h.b16 %v10691
      %v11345 = vunpack.c.l.b16 %v10692
      %v11346 = vunpack.c.h.b16 %v10692
      %v11347 = vunpack.c.l.b16 %v10693
      %v11348 = vunpack.c.h.b16 %v10693
      %v11349 = vunpack.c.l.b16 %v10694
      %v11350 = vunpack.c.h.b16 %v10694
      %v11351 = vunpack.c.l.b16 %v10695
      %v11352 = vunpack.c.h.b16 %v10695
      %v11353 = vunpack.c.l.b16 %v10696
      %v11354 = vunpack.c.h.b16 %v10696
      %v11355 = vunpack.c.l.b16 %v10697
      %v11356 = vunpack.c.h.b16 %v10697
      %v11357 = vunpack.c.l.b16 %v10698
      %v11358 = vunpack.c.h.b16 %v10698
      %v11359 = vunpack.c.l.b16 %v10699
      %v11360 = vunpack.c.h.b16 %v10699
      %v11361 = vunpack.c.l.b16 %v10700
      %v11362 = vunpack.c.h.b16 %v10700
      %v11363 = vunpack.c.l.b16 %v10701
      %v11364 = vunpack.c.h.b16 %v10701
      %v11365 = vunpack.c.l.b16 %v10702
      %v11366 = vunpack.c.h.b16 %v10702
      %v11367 = vunpack.c.l.b16 %v10703
      %v11368 = vunpack.c.h.b16 %v10703
      %v11369 = vunpack.c.l.b16 %v10704
      %v11370 = vunpack.c.h.b16 %v10704
      %v11371 = vunpack.c.l.b16 %v10705
      %v11372 = vunpack.c.h.b16 %v10705
      %v11373 = vunpack.c.l.b16 %v10706
      %v11374 = vunpack.c.h.b16 %v10706
      %v11375 = vunpack.c.l.b16 %v10707
      %v11376 = vunpack.c.h.b16 %v10707
      %v11377 = vunpack.c.l.b16 %v10708
      %v11378 = vunpack.c.h.b16 %v10708
      %v11379 = vunpack.c.l.b16 %v10709
      %v11380 = vunpack.c.h.b16 %v10709
      %v11381 = vunpack.c.l.b16 %v10710
      %v11382 = vunpack.c.h.b16 %v10710
      %v11383 = vunpack.c.l.b16 %v10711
      %v11384 = vunpack.c.h.b16 %v10711
      %v11385 = vunpack.c.l.b16 %v10712
      %v11386 = vunpack.c.h.b16 %v10712
      %v11387 = vunpack.c.l.b16 %v10713
      %v11388 = vunpack.c.h.b16 %v10713
      %v11389 = vunpack.c.l.b16 %v10714
      %v11390 = vunpack.c.h.b16 %v10714
      %v11391 = vunpack.c.l.b16 %v10715
      %v11392 = vunpack.c.h.b16 %v10715
      %v11393 = vunpack.c.l.b16 %v10716
      %v11394 = vunpack.c.h.b16 %v10716
      %v11395 = vunpack.c.l.b16 %v10717
      %v11396 = vunpack.c.h.b16 %v10717
      %v11397 = vunpack.c.l.b16 %v10718
      %v11398 = vunpack.c.h.b16 %v10718
      %v11399 = vunpack.c.l.b16 %v10719
      %v11400 = vunpack.c.h.b16 %v10719
      %v11401 = vunpack.c.l.b16 %v10720
      %v11402 = vunpack.c.h.b16 %v10720
      %v11403 = vunpack.c.l.b16 %v10721
      %v11404 = vunpack.c.h.b16 %v10721
      %v11405 = vunpack.c.l.b16 %v10722
      %v11406 = vunpack.c.h.b16 %v10722
      %v11407 = vunpack.c.l.b16 %v10723
      %v11408 = vunpack.c.h.b16 %v10723
      %v11409 = vunpack.c.l.b16 %v10724
      %v11410 = vunpack.c.h.b16 %v10724
      %v11411 = vunpack.c.l.b16 %v10725
      %v11412 = vunpack.c.h.b16 %v10725
      %v11413 = vunpack.c.l.b16 %v10726
      %v11414 = vunpack.c.h.b16 %v10726
      %v11415 = vunpack.c.l.b16 %v10727
      %v11416 = vunpack.c.h.b16 %v10727
      %v11417 = vunpack.c.l.b16 %v10728
      %v11418 = vunpack.c.h.b16 %v10728
      %v11419 = vunpack.c.l.b16 %v10729
      %v11420 = vunpack.c.h.b16 %v10729
      %v11421 = vunpack.c.l.b16 %v10730
      %v11422 = vunpack.c.h.b16 %v10730
      %v11423 = vunpack.c.l.b16 %v10731
      %v11424 = vunpack.c.h.b16 %v10731
      %v11425 = vunpack.c.l.b16 %v10732
      %v11426 = vunpack.c.h.b16 %v10732
      %v11427 = vunpack.c.l.b16 %v10733
      %v11428 = vunpack.c.h.b16 %v10733
      %v11429 = vunpack.c.l.b16 %v10734
      %v11430 = vunpack.c.h.b16 %v10734
      %v11431 = vunpack.c.l.b16 %v10735
      %v11432 = vunpack.c.h.b16 %v10735
      %v11433 = vunpack.c.l.b16 %v10736
      %v11434 = vunpack.c.h.b16 %v10736
      %v11435 = vunpack.c.l.b16 %v10737
      %v11436 = vunpack.c.h.b16 %v10737
      %v11437 = vunpack.c.l.b16 %v10738
      %v11438 = vunpack.c.h.b16 %v10738
      %v11439 = vunpack.c.l.b16 %v10739
      %v11440 = vunpack.c.h.b16 %v10739
      %v11441 = vunpack.c.l.b16 %v10740
      %v11442 = vunpack.c.h.b16 %v10740
      %v11443 = vunpack.c.l.b16 %v10741
      %v11444 = vunpack.c.h.b16 %v10741
      %v11445 = vunpack.c.l.b16 %v10742
      %v11446 = vunpack.c.h.b16 %v10742
      %v11447 = vunpack.c.l.b16 %v10743
      %v11448 = vunpack.c.h.b16 %v10743
      %v11449 = vunpack.c.l.b16 %v10744
      %v11450 = vunpack.c.h.b16 %v10744
      %v11451 = vunpack.c.l.b16 %v10745
      %v11452 = vunpack.c.h.b16 %v10745
      %v11453 = vunpack.c.l.b16 %v10746
      %v11454 = vunpack.c.h.b16 %v10746
      %v11455 = vunpack.c.l.b16 %v10747
      %v11456 = vunpack.c.h.b16 %v10747
      %v11457 = vunpack.c.l.b16 %v10748
      %v11458 = vunpack.c.h.b16 %v10748
      %v11459 = vunpack.c.l.b16 %v10749
      %v11460 = vunpack.c.h.b16 %v10749
      %v11461 = vunpack.c.l.b16 %v10750
      %v11462 = vunpack.c.h.b16 %v10750
      %v11463 = vunpack.c.l.b16 %v10751
      %v11464 = vunpack.c.h.b16 %v10751
      %v11465 = vunpack.c.l.b16 %v10752
      %v11466 = vunpack.c.h.b16 %v10752
      %v11467 = vunpack.c.l.b16 %v10753
      %v11468 = vunpack.c.h.b16 %v10753
      %v11469 = vunpack.c.l.b16 %v10754
      %v11470 = vunpack.c.h.b16 %v10754
      %v11471 = vunpack.c.l.b16 %v10755
      %v11472 = vunpack.c.h.b16 %v10755
      %v11473 = vunpack.c.l.b16 %v10756
      %v11474 = vunpack.c.h.b16 %v10756
      %v11475 = vunpack.c.l.b16 %v10757
      %v11476 = vunpack.c.h.b16 %v10757
      %v11477 = vunpack.c.l.b16 %v10758
      %v11478 = vunpack.c.h.b16 %v10758
      %v11479 = vunpack.c.l.b16 %v10759
      %v11480 = vunpack.c.h.b16 %v10759
      %v11481 = vunpack.c.l.b16 %v10760
      %v11482 = vunpack.c.h.b16 %v10760
      %v11483 = vunpack.c.l.b16 %v10761
      %v11484 = vunpack.c.h.b16 %v10761
      %v11485 = vunpack.c.l.b16 %v10762
      %v11486 = vunpack.c.h.b16 %v10762
      %v11487 = vunpack.c.l.b16 %v10763
      %v11488 = vunpack.c.h.b16 %v10763
      %v11489 = vunpack.c.l.b16 %v10764
      %v11490 = vunpack.c.h.b16 %v10764
      %v11491 = vunpack.c.l.b16 %v10765
      %v11492 = vunpack.c.h.b16 %v10765
      %v11493 = vunpack.c.l.b16 %v10766
      %v11494 = vunpack.c.h.b16 %v10766
      %v11495 = vunpack.c.l.b16 %v10767
      %v11496 = vunpack.c.h.b16 %v10767
      %v11497 = vunpack.c.l.b16 %v10768
      %v11498 = vunpack.c.h.b16 %v10768
      %v11499 = vunpack.c.l.b16 %v10769
      %v11500 = vunpack.c.h.b16 %v10769
      %v11501 = vunpack.c.l.b16 %v10770
      %v11502 = vunpack.c.h.b16 %v10770
      %v11503 = vunpack.c.l.b16 %v10771
      %v11504 = vunpack.c.h.b16 %v10771
      %v11505 = vunpack.c.l.b16 %v10772
      %v11506 = vunpack.c.h.b16 %v10772
      %v11507 = vunpack.c.l.b16 %v10773
      %v11508 = vunpack.c.h.b16 %v10773
      %v11509 = vunpack.c.l.b16 %v10774
      %v11510 = vunpack.c.h.b16 %v10774
      %v11511 = vunpack.c.l.b16 %v10775
      %v11512 = vunpack.c.h.b16 %v10775
      %v11513 = vunpack.c.l.b16 %v10776
      %v11514 = vunpack.c.h.b16 %v10776
      %v11515 = vunpack.c.l.b16 %v10777
      %v11516 = vunpack.c.h.b16 %v10777
      %v11517 = vunpack.c.l.b16 %v10778
      %v11518 = vunpack.c.h.b16 %v10778
      %v11519 = vunpack.c.l.b16 %v10779
      %v11520 = vunpack.c.h.b16 %v10779
      %v11521 = vunpack.c.l.b16 %v10780
      %v11522 = vunpack.c.h.b16 %v10780
      %v11523 = vunpack.c.l.b16 %v10781
      %v11524 = vunpack.c.h.b16 %v10781
      %v11525 = vunpack.c.l.b16 %v10782
      %v11526 = vunpack.c.h.b16 %v10782
      %v11527 = vunpack.c.l.b16 %v10783
      %v11528 = vunpack.c.h.b16 %v10783
      %v11529 = vunpack.c.l.b16 %v10784
      %v11530 = vunpack.c.h.b16 %v10784
      %v11531 = vunpack.c.l.b16 %v10785
      %v11532 = vunpack.c.h.b16 %v10785
      %v11533 = vunpack.c.l.b16 %v10786
      %v11534 = vunpack.c.h.b16 %v10786
      %v11535 = vunpack.c.l.b16 %v10787
      %v11536 = vunpack.c.h.b16 %v10787
      %v11537 = vunpack.c.l.b16 %v10788
      %v11538 = vunpack.c.h.b16 %v10788
      %v11539 = vunpack.c.l.b16 %v10789
      %v11540 = vunpack.c.h.b16 %v10789
      %v11541 = vunpack.c.l.b16 %v10790
      %v11542 = vunpack.c.h.b16 %v10790
      %v11543 = vunpack.c.l.b16 %v10791
      %v11544 = vunpack.c.h.b16 %v10791
      %v11545 = vunpack.c.l.b16 %v10792
      %v11546 = vunpack.c.h.b16 %v10792
      %v11547 = vunpack.c.l.b16 %v10793
      %v11548 = vunpack.c.h.b16 %v10793
      %v11549 = vunpack.c.l.b16 %v10794
      %v11550 = vunpack.c.h.b16 %v10794
      %v11551 = vunpack.c.l.b16 %v10795
      %v11552 = vunpack.c.h.b16 %v10795
      %v11553 = vunpack.c.l.b16 %v10796
      %v11554 = vunpack.c.h.b16 %v10796
      %v11555 = vunpack.c.l.b16 %v10797
      %v11556 = vunpack.c.h.b16 %v10797
      %v11557 = vunpack.c.l.b16 %v10798
      %v11558 = vunpack.c.h.b16 %v10798
      %v11559 = vunpack.c.l.b16 %v10799
      %v11560 = vunpack.c.h.b16 %v10799
      %v11561 = vunpack.c.l.b16 %v10800
      %v11562 = vunpack.c.h.b16 %v10800
      %v11563 = vunpack.c.l.b16 %v10801
      %v11564 = vunpack.c.h.b16 %v10801
      %v11565 = vunpack.c.l.b16 %v10802
      %v11566 = vunpack.c.h.b16 %v10802
      %v11567 = vunpack.c.l.b16 %v10803
      %v11568 = vunpack.c.h.b16 %v10803
      %v11569 = vunpack.c.l.b16 %v10804
      %v11570 = vunpack.c.h.b16 %v10804
      %v11571 = vunpack.c.l.b16 %v10805
      %v11572 = vunpack.c.h.b16 %v10805
      %v11573 = vunpack.c.l.b16 %v10806
      %v11574 = vunpack.c.h.b16 %v10806
      %v11575 = vunpack.c.l.b16 %v10807
      %v11576 = vunpack.c.h.b16 %v10807
      %v11577 = vunpack.c.l.b16 %v10808
      %v11578 = vunpack.c.h.b16 %v10808
      %v11579 = vunpack.c.l.b16 %v10809
      %v11580 = vunpack.c.h.b16 %v10809
      %v11581 = vunpack.c.l.b16 %v10810
      %v11582 = vunpack.c.h.b16 %v10810
      %v11583 = vunpack.c.l.b16 %v10811
      %v11584 = vunpack.c.h.b16 %v10811
      %v11585 = vunpack.c.l.b16 %v10812
      %v11586 = vunpack.c.h.b16 %v10812
      %v11587 = vunpack.c.l.b16 %v10813
      %v11588 = vunpack.c.h.b16 %v10813
      %v11589 = vunpack.c.l.b16 %v10814
      %v11590 = vunpack.c.h.b16 %v10814
      %v11591 = vunpack.c.l.b16 %v10815
      %v11592 = vunpack.c.h.b16 %v10815
      %v11593 = vunpack.c.l.b16 %v10816
      %v11594 = vunpack.c.h.b16 %v10816
      %v11595 = vpack.c.b16 %v11087, %v11083
      %v11596 = vpack.c.b16 %v11088, %v11084
      %v11597 = vpack.c.b16 %v11089, %v11085
      %v11598 = vpack.c.b16 %v11090, %v11086
      %v11599 = vpack.c.b16 %v11095, %v11091
      %v11600 = vpack.c.b16 %v11096, %v11092
      %v11601 = vpack.c.b16 %v11097, %v11093
      %v11602 = vpack.c.b16 %v11098, %v11094
      %v11603 = vpack.c.b16 %v11103, %v11099
      %v11604 = vpack.c.b16 %v11104, %v11100
      %v11605 = vpack.c.b16 %v11105, %v11101
      %v11606 = vpack.c.b16 %v11106, %v11102
      %v11607 = vpack.c.b16 %v11111, %v11107
      %v11608 = vpack.c.b16 %v11112, %v11108
      %v11609 = vpack.c.b16 %v11113, %v11109
      %v11610 = vpack.c.b16 %v11114, %v11110
      %v11611 = vpack.c.b16 %v11119, %v11115
      %v11612 = vpack.c.b16 %v11120, %v11116
      %v11613 = vpack.c.b16 %v11121, %v11117
      %v11614 = vpack.c.b16 %v11122, %v11118
      %v11615 = vpack.c.b16 %v11127, %v11123
      %v11616 = vpack.c.b16 %v11128, %v11124
      %v11617 = vpack.c.b16 %v11129, %v11125
      %v11618 = vpack.c.b16 %v11130, %v11126
      %v11619 = vpack.c.b16 %v11135, %v11131
      %v11620 = vpack.c.b16 %v11136, %v11132
      %v11621 = vpack.c.b16 %v11137, %v11133
      %v11622 = vpack.c.b16 %v11138, %v11134
      %v11623 = vpack.c.b16 %v11143, %v11139
      %v11624 = vpack.c.b16 %v11144, %v11140
      %v11625 = vpack.c.b16 %v11145, %v11141
      %v11626 = vpack.c.b16 %v11146, %v11142
      %v11627 = vpack.c.b16 %v11151, %v11147
      %v11628 = vpack.c.b16 %v11152, %v11148
      %v11629 = vpack.c.b16 %v11153, %v11149
      %v11630 = vpack.c.b16 %v11154, %v11150
      %v11631 = vpack.c.b16 %v11159, %v11155
      %v11632 = vpack.c.b16 %v11160, %v11156
      %v11633 = vpack.c.b16 %v11161, %v11157
      %v11634 = vpack.c.b16 %v11162, %v11158
      %v11635 = vpack.c.b16 %v11167, %v11163
      %v11636 = vpack.c.b16 %v11168, %v11164
      %v11637 = vpack.c.b16 %v11169, %v11165
      %v11638 = vpack.c.b16 %v11170, %v11166
      %v11639 = vpack.c.b16 %v11175, %v11171
      %v11640 = vpack.c.b16 %v11176, %v11172
      %v11641 = vpack.c.b16 %v11177, %v11173
      %v11642 = vpack.c.b16 %v11178, %v11174
      %v11643 = vpack.c.b16 %v11183, %v11179
      %v11644 = vpack.c.b16 %v11184, %v11180
      %v11645 = vpack.c.b16 %v11185, %v11181
      %v11646 = vpack.c.b16 %v11186, %v11182
      %v11647 = vpack.c.b16 %v11191, %v11187
      %v11648 = vpack.c.b16 %v11192, %v11188
      %v11649 = vpack.c.b16 %v11193, %v11189
      %v11650 = vpack.c.b16 %v11194, %v11190
      %v11651 = vpack.c.b16 %v11199, %v11195
      %v11652 = vpack.c.b16 %v11200, %v11196
      %v11653 = vpack.c.b16 %v11201, %v11197
      %v11654 = vpack.c.b16 %v11202, %v11198
      %v11655 = vpack.c.b16 %v11207, %v11203
      %v11656 = vpack.c.b16 %v11208, %v11204
      %v11657 = vpack.c.b16 %v11209, %v11205
      %v11658 = vpack.c.b16 %v11210, %v11206
      %v11659 = vpack.c.b16 %v11215, %v11211
      %v11660 = vpack.c.b16 %v11216, %v11212
      %v11661 = vpack.c.b16 %v11217, %v11213
      %v11662 = vpack.c.b16 %v11218, %v11214
      %v11663 = vpack.c.b16 %v11223, %v11219
      %v11664 = vpack.c.b16 %v11224, %v11220
      %v11665 = vpack.c.b16 %v11225, %v11221
      %v11666 = vpack.c.b16 %v11226, %v11222
      %v11667 = vpack.c.b16 %v11231, %v11227
      %v11668 = vpack.c.b16 %v11232, %v11228
      %v11669 = vpack.c.b16 %v11233, %v11229
      %v11670 = vpack.c.b16 %v11234, %v11230
      %v11671 = vpack.c.b16 %v11239, %v11235
      %v11672 = vpack.c.b16 %v11240, %v11236
      %v11673 = vpack.c.b16 %v11241, %v11237
      %v11674 = vpack.c.b16 %v11242, %v11238
      %v11675 = vpack.c.b16 %v11247, %v11243
      %v11676 = vpack.c.b16 %v11248, %v11244
      %v11677 = vpack.c.b16 %v11249, %v11245
      %v11678 = vpack.c.b16 %v11250, %v11246
      %v11679 = vpack.c.b16 %v11255, %v11251
      %v11680 = vpack.c.b16 %v11256, %v11252
      %v11681 = vpack.c.b16 %v11257, %v11253
      %v11682 = vpack.c.b16 %v11258, %v11254
      %v11683 = vpack.c.b16 %v11263, %v11259
      %v11684 = vpack.c.b16 %v11264, %v11260
      %v11685 = vpack.c.b16 %v11265, %v11261
      %v11686 = vpack.c.b16 %v11266, %v11262
      %v11687 = vpack.c.b16 %v11271, %v11267
      %v11688 = vpack.c.b16 %v11272, %v11268
      %v11689 = vpack.c.b16 %v11273, %v11269
      %v11690 = vpack.c.b16 %v11274, %v11270
      %v11691 = vpack.c.b16 %v11279, %v11275
      %v11692 = vpack.c.b16 %v11280, %v11276
      %v11693 = vpack.c.b16 %v11281, %v11277
      %v11694 = vpack.c.b16 %v11282, %v11278
      %v11695 = vpack.c.b16 %v11287, %v11283
      %v11696 = vpack.c.b16 %v11288, %v11284
      %v11697 = vpack.c.b16 %v11289, %v11285
      %v11698 = vpack.c.b16 %v11290, %v11286
      %v11699 = vpack.c.b16 %v11295, %v11291
      %v11700 = vpack.c.b16 %v11296, %v11292
      %v11701 = vpack.c.b16 %v11297, %v11293
      %v11702 = vpack.c.b16 %v11298, %v11294
      %v11703 = vpack.c.b16 %v11303, %v11299
      %v11704 = vpack.c.b16 %v11304, %v11300
      %v11705 = vpack.c.b16 %v11305, %v11301
      %v11706 = vpack.c.b16 %v11306, %v11302
      %v11707 = vpack.c.b16 %v11311, %v11307
      %v11708 = vpack.c.b16 %v11312, %v11308
      %v11709 = vpack.c.b16 %v11313, %v11309
      %v11710 = vpack.c.b16 %v11314, %v11310
      %v11711 = vpack.c.b16 %v11319, %v11315
      %v11712 = vpack.c.b16 %v11320, %v11316
      %v11713 = vpack.c.b16 %v11321, %v11317
      %v11714 = vpack.c.b16 %v11322, %v11318
      %v11715 = vpack.c.b16 %v11327, %v11323
      %v11716 = vpack.c.b16 %v11328, %v11324
      %v11717 = vpack.c.b16 %v11329, %v11325
      %v11718 = vpack.c.b16 %v11330, %v11326
      %v11719 = vpack.c.b16 %v11335, %v11331
      %v11720 = vpack.c.b16 %v11336, %v11332
      %v11721 = vpack.c.b16 %v11337, %v11333
      %v11722 = vpack.c.b16 %v11338, %v11334
      %v11723 = vpack.c.b16 %v11343, %v11339
      %v11724 = vpack.c.b16 %v11344, %v11340
      %v11725 = vpack.c.b16 %v11345, %v11341
      %v11726 = vpack.c.b16 %v11346, %v11342
      %v11727 = vpack.c.b16 %v11351, %v11347
      %v11728 = vpack.c.b16 %v11352, %v11348
      %v11729 = vpack.c.b16 %v11353, %v11349
      %v11730 = vpack.c.b16 %v11354, %v11350
      %v11731 = vpack.c.b16 %v11359, %v11355
      %v11732 = vpack.c.b16 %v11360, %v11356
      %v11733 = vpack.c.b16 %v11361, %v11357
      %v11734 = vpack.c.b16 %v11362, %v11358
      %v11735 = vpack.c.b16 %v11367, %v11363
      %v11736 = vpack.c.b16 %v11368, %v11364
      %v11737 = vpack.c.b16 %v11369, %v11365
      %v11738 = vpack.c.b16 %v11370, %v11366
      %v11739 = vpack.c.b16 %v11375, %v11371
      %v11740 = vpack.c.b16 %v11376, %v11372
      %v11741 = vpack.c.b16 %v11377, %v11373
      %v11742 = vpack.c.b16 %v11378, %v11374
      %v11743 = vpack.c.b16 %v11383, %v11379
      %v11744 = vpack.c.b16 %v11384, %v11380
      %v11745 = vpack.c.b16 %v11385, %v11381
      %v11746 = vpack.c.b16 %v11386, %v11382
      %v11747 = vpack.c.b16 %v11391, %v11387
      %v11748 = vpack.c.b16 %v11392, %v11388
      %v11749 = vpack.c.b16 %v11393, %v11389
      %v11750 = vpack.c.b16 %v11394, %v11390
      %v11751 = vpack.c.b16 %v11399, %v11395
      %v11752 = vpack.c.b16 %v11400, %v11396
      %v11753 = vpack.c.b16 %v11401, %v11397
      %v11754 = vpack.c.b16 %v11402, %v11398
      %v11755 = vpack.c.b16 %v11407, %v11403
      %v11756 = vpack.c.b16 %v11408, %v11404
      %v11757 = vpack.c.b16 %v11409, %v11405
      %v11758 = vpack.c.b16 %v11410, %v11406
      %v11759 = vpack.c.b16 %v11415, %v11411
      %v11760 = vpack.c.b16 %v11416, %v11412
      %v11761 = vpack.c.b16 %v11417, %v11413
      %v11762 = vpack.c.b16 %v11418, %v11414
      %v11763 = vpack.c.b16 %v11423, %v11419
      %v11764 = vpack.c.b16 %v11424, %v11420
      %v11765 = vpack.c.b16 %v11425, %v11421
      %v11766 = vpack.c.b16 %v11426, %v11422
      %v11767 = vpack.c.b16 %v11431, %v11427
      %v11768 = vpack.c.b16 %v11432, %v11428
      %v11769 = vpack.c.b16 %v11433, %v11429
      %v11770 = vpack.c.b16 %v11434, %v11430
      %v11771 = vpack.c.b16 %v11439, %v11435
      %v11772 = vpack.c.b16 %v11440, %v11436
      %v11773 = vpack.c.b16 %v11441, %v11437
      %v11774 = vpack.c.b16 %v11442, %v11438
      %v11775 = vpack.c.b16 %v11447, %v11443
      %v11776 = vpack.c.b16 %v11448, %v11444
      %v11777 = vpack.c.b16 %v11449, %v11445
      %v11778 = vpack.c.b16 %v11450, %v11446
      %v11779 = vpack.c.b16 %v11455, %v11451
      %v11780 = vpack.c.b16 %v11456, %v11452
      %v11781 = vpack.c.b16 %v11457, %v11453
      %v11782 = vpack.c.b16 %v11458, %v11454
      %v11783 = vpack.c.b16 %v11463, %v11459
      %v11784 = vpack.c.b16 %v11464, %v11460
      %v11785 = vpack.c.b16 %v11465, %v11461
      %v11786 = vpack.c.b16 %v11466, %v11462
      %v11787 = vpack.c.b16 %v11471, %v11467
      %v11788 = vpack.c.b16 %v11472, %v11468
      %v11789 = vpack.c.b16 %v11473, %v11469
      %v11790 = vpack.c.b16 %v11474, %v11470
      %v11791 = vpack.c.b16 %v11479, %v11475
      %v11792 = vpack.c.b16 %v11480, %v11476
      %v11793 = vpack.c.b16 %v11481, %v11477
      %v11794 = vpack.c.b16 %v11482, %v11478
      %v11795 = vpack.c.b16 %v11487, %v11483
      %v11796 = vpack.c.b16 %v11488, %v11484
      %v11797 = vpack.c.b16 %v11489, %v11485
      %v11798 = vpack.c.b16 %v11490, %v11486
      %v11799 = vpack.c.b16 %v11495, %v11491
      %v11800 = vpack.c.b16 %v11496, %v11492
      %v11801 = vpack.c.b16 %v11497, %v11493
      %v11802 = vpack.c.b16 %v11498, %v11494
      %v11803 = vpack.c.b16 %v11503, %v11499
      %v11804 = vpack.c.b16 %v11504, %v11500
      %v11805 = vpack.c.b16 %v11505, %v11501
      %v11806 = vpack.c.b16 %v11506, %v11502
      %v11807 = vpack.c.b16 %v11511, %v11507
      %v11808 = vpack.c.b16 %v11512, %v11508
      %v11809 = vpack.c.b16 %v11513, %v11509
      %v11810 = vpack.c.b16 %v11514, %v11510
      %v11811 = vpack.c.b16 %v11519, %v11515
      %v11812 = vpack.c.b16 %v11520, %v11516
      %v11813 = vpack.c.b16 %v11521, %v11517
      %v11814 = vpack.c.b16 %v11522, %v11518
      %v11815 = vpack.c.b16 %v11527, %v11523
      %v11816 = vpack.c.b16 %v11528, %v11524
      %v11817 = vpack.c.b16 %v11529, %v11525
      %v11818 = vpack.c.b16 %v11530, %v11526
      %v11819 = vpack.c.b16 %v11535, %v11531
      %v11820 = vpack.c.b16 %v11536, %v11532
      %v11821 = vpack.c.b16 %v11537, %v11533
      %v11822 = vpack.c.b16 %v11538, %v11534
      %v11823 = vpack.c.b16 %v11543, %v11539
      %v11824 = vpack.c.b16 %v11544, %v11540
      %v11825 = vpack.c.b16 %v11545, %v11541
      %v11826 = vpack.c.b16 %v11546, %v11542
      %v11827 = vpack.c.b16 %v11551, %v11547
      %v11828 = vpack.c.b16 %v11552, %v11548
      %v11829 = vpack.c.b16 %v11553, %v11549
      %v11830 = vpack.c.b16 %v11554, %v11550
      %v11831 = vpack.c.b16 %v11559, %v11555
      %v11832 = vpack.c.b16 %v11560, %v11556
      %v11833 = vpack.c.b16 %v11561, %v11557
      %v11834 = vpack.c.b16 %v11562, %v11558
      %v11835 = vpack.c.b16 %v11567, %v11563
      %v11836 = vpack.c.b16 %v11568, %v11564
      %v11837 = vpack.c.b16 %v11569, %v11565
      %v11838 = vpack.c.b16 %v11570, %v11566
      %v11839 = vpack.c.b16 %v11575, %v11571
      %v11840 = vpack.c.b16 %v11576, %v11572
      %v11841 = vpack.c.b16 %v11577, %v11573
      %v11842 = vpack.c.b16 %v11578, %v11574
      %v11843 = vpack.c.b16 %v11583, %v11579
      %v11844 = vpack.c.b16 %v11584, %v11580
      %v11845 = vpack.c.b16 %v11585, %v11581
      %v11846 = vpack.c.b16 %v11586, %v11582
      %v11847 = vpack.c.b16 %v11591, %v11587
      %v11848 = vpack.c.b16 %v11592, %v11588
      %v11849 = vpack.c.b16 %v11593, %v11589
      %v11850 = vpack.c.b16 %v11594, %v11590
      %12107 = vmatpush.bf16.msra.mxu0 %v11623
      %12108 = vmatpush.bf16.msra.mxu0 %v11619
      %12109 = vmatpush.bf16.msra.mxu0 %v11615
      %12110 = vmatpush.bf16.msra.mxu0 %v11611
      %12111 = vmatpush.bf16.msra.mxu0 %v11607
      %12112 = vmatpush.bf16.msra.mxu0 %v11603
      %12113 = vmatpush.bf16.msra.mxu0 %v11599
      %12114 = vmatpush.bf16.msra.mxu0 %v11595
      %12115 = vmatmul.bf16.gmra.mxu0 %v10553
      %v12116 = vpop.f32.mrf.mxu0
      %v12117 = vadd.f32 %v10819, %v12116
      %v12118 = vpop.f32.mrf.mxu0
      %v12119 = vadd.f32 %v10819, %v12118
      %12120 = vdwg.mxu0
      %12121 = vmatpush.bf16.msra.mxu0 %v11655
      %12122 = vmatpush.bf16.msra.mxu0 %v11651
      %12123 = vmatpush.bf16.msra.mxu0 %v11647
      %12124 = vmatpush.bf16.msra.mxu0 %v11643
      %12125 = vmatpush.bf16.msra.mxu0 %v11639
      %12126 = vmatpush.bf16.msra.mxu0 %v11635
      %12127 = vmatpush.bf16.msra.mxu0 %v11631
      %12128 = vmatpush.bf16.msra.mxu0 %v11627
      %12129 = vmatmul.bf16.gmra.mxu0 %v10554
      %v12130 = vpop.f32.mrf.mxu0
      %v12131 = vadd.f32 %v12117, %v12130
      %v12132 = vpop.f32.mrf.mxu0
      %v12133 = vadd.f32 %v12119, %v12132
      %12134 = vdwg.mxu0
      %12135 = vmatpush.bf16.msra.mxu0 %v11687
      %12136 = vmatpush.bf16.msra.mxu0 %v11683
      %12137 = vmatpush.bf16.msra.mxu0 %v11679
      %12138 = vmatpush.bf16.msra.mxu0 %v11675
      %12139 = vmatpush.bf16.msra.mxu0 %v11671
      %12140 = vmatpush.bf16.msra.mxu0 %v11667
      %12141 = vmatpush.bf16.msra.mxu0 %v11663
      %12142 = vmatpush.bf16.msra.mxu0 %v11659
      %12143 = vmatmul.bf16.gmra.mxu0 %v10555
      %v12144 = vpop.f32.mrf.mxu0
      %v12145 = vadd.f32 %v12131, %v12144
      %v12146 = vpop.f32.mrf.mxu0
      %v12147 = vadd.f32 %v12133, %v12146
      %12148 = vdwg.mxu0
      %12149 = vmatpush.bf16.msra.mxu0 %v11719
      %12150 = vmatpush.bf16.msra.mxu0 %v11715
      %12151 = vmatpush.bf16.msra.mxu0 %v11711
      %12152 = vmatpush.bf16.msra.mxu0 %v11707
      %12153 = vmatpush.bf16.msra.mxu0 %v11703
      %12154 = vmatpush.bf16.msra.mxu0 %v11699
      %12155 = vmatpush.bf16.msra.mxu0 %v11695
      %12156 = vmatpush.bf16.msra.mxu0 %v11691
      %12157 = vmatmul.bf16.gmra.mxu0 %v10556
      %v12158 = vpop.f32.mrf.mxu0
      %v12159 = vadd.f32 %v12145, %v12158
      %v12160 = vpop.f32.mrf.mxu0
      %v12161 = vadd.f32 %v12147, %v12160
      %12162 = vdwg.mxu0
      %12163 = vmatpush.bf16.msra.mxu0 %v11751
      %12164 = vmatpush.bf16.msra.mxu0 %v11747
      %12165 = vmatpush.bf16.msra.mxu0 %v11743
      %12166 = vmatpush.bf16.msra.mxu0 %v11739
      %12167 = vmatpush.bf16.msra.mxu0 %v11735
      %12168 = vmatpush.bf16.msra.mxu0 %v11731
      %12169 = vmatpush.bf16.msra.mxu0 %v11727
      %12170 = vmatpush.bf16.msra.mxu0 %v11723
      %12171 = vmatmul.bf16.gmra.mxu0 %v10557
      %v12172 = vpop.f32.mrf.mxu0
      %v12173 = vadd.f32 %v12159, %v12172
      %v12174 = vpop.f32.mrf.mxu0
      %v12175 = vadd.f32 %v12161, %v12174
      %12176 = vdwg.mxu0
      %12177 = vmatpush.bf16.msra.mxu0 %v11783
      %12178 = vmatpush.bf16.msra.mxu0 %v11779
      %12179 = vmatpush.bf16.msra.mxu0 %v11775
      %12180 = vmatpush.bf16.msra.mxu0 %v11771
      %12181 = vmatpush.bf16.msra.mxu0 %v11767
      %12182 = vmatpush.bf16.msra.mxu0 %v11763
      %12183 = vmatpush.bf16.msra.mxu0 %v11759
      %12184 = vmatpush.bf16.msra.mxu0 %v11755
      %12185 = vmatmul.bf16.gmra.mxu0 %v10558
      %v12186 = vpop.f32.mrf.mxu0
      %v12187 = vadd.f32 %v12173, %v12186
      %v12188 = vpop.f32.mrf.mxu0
      %v12189 = vadd.f32 %v12175, %v12188
      %12190 = vdwg.mxu0
      %12191 = vmatpush.bf16.msra.mxu0 %v11815
      %12192 = vmatpush.bf16.msra.mxu0 %v11811
      %12193 = vmatpush.bf16.msra.mxu0 %v11807
      %12194 = vmatpush.bf16.msra.mxu0 %v11803
      %12195 = vmatpush.bf16.msra.mxu0 %v11799
      %12196 = vmatpush.bf16.msra.mxu0 %v11795
      %12197 = vmatpush.bf16.msra.mxu0 %v11791
      %12198 = vmatpush.bf16.msra.mxu0 %v11787
      %12199 = vmatmul.bf16.gmra.mxu0 %v10559
      %v12200 = vpop.f32.mrf.mxu0
      %v12201 = vadd.f32 %v12187, %v12200
      %v12202 = vpop.f32.mrf.mxu0
      %v12203 = vadd.f32 %v12189, %v12202
      %12204 = vdwg.mxu0
      %12205 = vmatpush.bf16.msra.mxu0 %v11847
      %12206 = vmatpush.bf16.msra.mxu0 %v11843
      %12207 = vmatpush.bf16.msra.mxu0 %v11839
      %12208 = vmatpush.bf16.msra.mxu0 %v11835
      %12209 = vmatpush.bf16.msra.mxu0 %v11831
      %12210 = vmatpush.bf16.msra.mxu0 %v11827
      %12211 = vmatpush.bf16.msra.mxu0 %v11823
      %12212 = vmatpush.bf16.msra.mxu0 %v11819
      %12213 = vmatmul.bf16.gmra.mxu0 %v10560
      %v12214 = vpop.f32.mrf.mxu0
      %v12215 = vadd.f32 %v12201, %v12214
      %v12216 = vpop.f32.mrf.mxu0
      %v12217 = vadd.f32 %v12203, %v12216
      %12218 = vdwg.mxu0
      %12219 = vmatpush.bf16.msra.mxu0 %v11624
      %12220 = vmatpush.bf16.msra.mxu0 %v11620
      %12221 = vmatpush.bf16.msra.mxu0 %v11616
      %12222 = vmatpush.bf16.msra.mxu0 %v11612
      %12223 = vmatpush.bf16.msra.mxu0 %v11608
      %12224 = vmatpush.bf16.msra.mxu0 %v11604
      %12225 = vmatpush.bf16.msra.mxu0 %v11600
      %12226 = vmatpush.bf16.msra.mxu0 %v11596
      %12227 = vmatmul.bf16.gmra.mxu0 %v10553
      %v12228 = vpop.f32.mrf.mxu0
      %v12229 = vadd.f32 %v10820, %v12228
      %v12230 = vpop.f32.mrf.mxu0
      %v12231 = vadd.f32 %v10820, %v12230
      %12232 = vdwg.mxu0
      %12233 = vmatpush.bf16.msra.mxu0 %v11656
      %12234 = vmatpush.bf16.msra.mxu0 %v11652
      %12235 = vmatpush.bf16.msra.mxu0 %v11648
      %12236 = vmatpush.bf16.msra.mxu0 %v11644
      %12237 = vmatpush.bf16.msra.mxu0 %v11640
      %12238 = vmatpush.bf16.msra.mxu0 %v11636
      %12239 = vmatpush.bf16.msra.mxu0 %v11632
      %12240 = vmatpush.bf16.msra.mxu0 %v11628
      %12241 = vmatmul.bf16.gmra.mxu0 %v10554
      %v12242 = vpop.f32.mrf.mxu0
      %v12243 = vadd.f32 %v12229, %v12242
      %v12244 = vpop.f32.mrf.mxu0
      %v12245 = vadd.f32 %v12231, %v12244
      %12246 = vdwg.mxu0
      %12247 = vmatpush.bf16.msra.mxu0 %v11688
      %12248 = vmatpush.bf16.msra.mxu0 %v11684
      %12249 = vmatpush.bf16.msra.mxu0 %v11680
      %12250 = vmatpush.bf16.msra.mxu0 %v11676
      %12251 = vmatpush.bf16.msra.mxu0 %v11672
      %12252 = vmatpush.bf16.msra.mxu0 %v11668
      %12253 = vmatpush.bf16.msra.mxu0 %v11664
      %12254 = vmatpush.bf16.msra.mxu0 %v11660
      %12255 = vmatmul.bf16.gmra.mxu0 %v10555
      %v12256 = vpop.f32.mrf.mxu0
      %v12257 = vadd.f32 %v12243, %v12256
      %v12258 = vpop.f32.mrf.mxu0
      %v12259 = vadd.f32 %v12245, %v12258
      %12260 = vdwg.mxu0
      %12261 = vmatpush.bf16.msra.mxu0 %v11720
      %12262 = vmatpush.bf16.msra.mxu0 %v11716
      %12263 = vmatpush.bf16.msra.mxu0 %v11712
      %12264 = vmatpush.bf16.msra.mxu0 %v11708
      %12265 = vmatpush.bf16.msra.mxu0 %v11704
      %12266 = vmatpush.bf16.msra.mxu0 %v11700
      %12267 = vmatpush.bf16.msra.mxu0 %v11696
      %12268 = vmatpush.bf16.msra.mxu0 %v11692
      %12269 = vmatmul.bf16.gmra.mxu0 %v10556
      %v12270 = vpop.f32.mrf.mxu0
      %v12271 = vadd.f32 %v12257, %v12270
      %v12272 = vpop.f32.mrf.mxu0
      %v12273 = vadd.f32 %v12259, %v12272
      %12274 = vdwg.mxu0
      %12275 = vmatpush.bf16.msra.mxu0 %v11752
      %12276 = vmatpush.bf16.msra.mxu0 %v11748
      %12277 = vmatpush.bf16.msra.mxu0 %v11744
      %12278 = vmatpush.bf16.msra.mxu0 %v11740
      %12279 = vmatpush.bf16.msra.mxu0 %v11736
      %12280 = vmatpush.bf16.msra.mxu0 %v11732
      %12281 = vmatpush.bf16.msra.mxu0 %v11728
      %12282 = vmatpush.bf16.msra.mxu0 %v11724
      %12283 = vmatmul.bf16.gmra.mxu0 %v10557
      %v12284 = vpop.f32.mrf.mxu0
      %v12285 = vadd.f32 %v12271, %v12284
      %v12286 = vpop.f32.mrf.mxu0
      %v12287 = vadd.f32 %v12273, %v12286
      %12288 = vdwg.mxu0
      %12289 = vmatpush.bf16.msra.mxu0 %v11784
      %12290 = vmatpush.bf16.msra.mxu0 %v11780
      %12291 = vmatpush.bf16.msra.mxu0 %v11776
      %12292 = vmatpush.bf16.msra.mxu0 %v11772
      %12293 = vmatpush.bf16.msra.mxu0 %v11768
      %12294 = vmatpush.bf16.msra.mxu0 %v11764
      %12295 = vmatpush.bf16.msra.mxu0 %v11760
      %12296 = vmatpush.bf16.msra.mxu0 %v11756
      %12297 = vmatmul.bf16.gmra.mxu0 %v10558
      %v12298 = vpop.f32.mrf.mxu0
      %v12299 = vadd.f32 %v12285, %v12298
      %v12300 = vpop.f32.mrf.mxu0
      %v12301 = vadd.f32 %v12287, %v12300
      %12302 = vdwg.mxu0
      %12303 = vmatpush.bf16.msra.mxu0 %v11816
      %12304 = vmatpush.bf16.msra.mxu0 %v11812
      %12305 = vmatpush.bf16.msra.mxu0 %v11808
      %12306 = vmatpush.bf16.msra.mxu0 %v11804
      %12307 = vmatpush.bf16.msra.mxu0 %v11800
      %12308 = vmatpush.bf16.msra.mxu0 %v11796
      %12309 = vmatpush.bf16.msra.mxu0 %v11792
      %12310 = vmatpush.bf16.msra.mxu0 %v11788
      %12311 = vmatmul.bf16.gmra.mxu0 %v10559
      %v12312 = vpop.f32.mrf.mxu0
      %v12313 = vadd.f32 %v12299, %v12312
      %v12314 = vpop.f32.mrf.mxu0
      %v12315 = vadd.f32 %v12301, %v12314
      %12316 = vdwg.mxu0
      %12317 = vmatpush.bf16.msra.mxu0 %v11848
      %12318 = vmatpush.bf16.msra.mxu0 %v11844
      %12319 = vmatpush.bf16.msra.mxu0 %v11840
      %12320 = vmatpush.bf16.msra.mxu0 %v11836
      %12321 = vmatpush.bf16.msra.mxu0 %v11832
      %12322 = vmatpush.bf16.msra.mxu0 %v11828
      %12323 = vmatpush.bf16.msra.mxu0 %v11824
      %12324 = vmatpush.bf16.msra.mxu0 %v11820
      %12325 = vmatmul.bf16.gmra.mxu0 %v10560
      %v12326 = vpop.f32.mrf.mxu0
      %v12327 = vadd.f32 %v12313, %v12326
      %v12328 = vpop.f32.mrf.mxu0
      %v12329 = vadd.f32 %v12315, %v12328
      %12330 = vdwg.mxu0
      %12331 = vmatpush.bf16.msra.mxu0 %v11625
      %12332 = vmatpush.bf16.msra.mxu0 %v11621
      %12333 = vmatpush.bf16.msra.mxu0 %v11617
      %12334 = vmatpush.bf16.msra.mxu0 %v11613
      %12335 = vmatpush.bf16.msra.mxu0 %v11609
      %12336 = vmatpush.bf16.msra.mxu0 %v11605
      %12337 = vmatpush.bf16.msra.mxu0 %v11601
      %12338 = vmatpush.bf16.msra.mxu0 %v11597
      %12339 = vmatmul.bf16.gmra.mxu0 %v10553
      %v12340 = vpop.f32.mrf.mxu0
      %v12341 = vadd.f32 %v10821, %v12340
      %v12342 = vpop.f32.mrf.mxu0
      %v12343 = vadd.f32 %v10821, %v12342
      %12344 = vdwg.mxu0
      %12345 = vmatpush.bf16.msra.mxu0 %v11657
      %12346 = vmatpush.bf16.msra.mxu0 %v11653
      %12347 = vmatpush.bf16.msra.mxu0 %v11649
      %12348 = vmatpush.bf16.msra.mxu0 %v11645
      %12349 = vmatpush.bf16.msra.mxu0 %v11641
      %12350 = vmatpush.bf16.msra.mxu0 %v11637
      %12351 = vmatpush.bf16.msra.mxu0 %v11633
      %12352 = vmatpush.bf16.msra.mxu0 %v11629
      %12353 = vmatmul.bf16.gmra.mxu0 %v10554
      %v12354 = vpop.f32.mrf.mxu0
      %v12355 = vadd.f32 %v12341, %v12354
      %v12356 = vpop.f32.mrf.mxu0
      %v12357 = vadd.f32 %v12343, %v12356
      %12358 = vdwg.mxu0
      %12359 = vmatpush.bf16.msra.mxu0 %v11689
      %12360 = vmatpush.bf16.msra.mxu0 %v11685
      %12361 = vmatpush.bf16.msra.mxu0 %v11681
      %12362 = vmatpush.bf16.msra.mxu0 %v11677
      %12363 = vmatpush.bf16.msra.mxu0 %v11673
      %12364 = vmatpush.bf16.msra.mxu0 %v11669
      %12365 = vmatpush.bf16.msra.mxu0 %v11665
      %12366 = vmatpush.bf16.msra.mxu0 %v11661
      %12367 = vmatmul.bf16.gmra.mxu0 %v10555
      %v12368 = vpop.f32.mrf.mxu0
      %v12369 = vadd.f32 %v12355, %v12368
      %v12370 = vpop.f32.mrf.mxu0
      %v12371 = vadd.f32 %v12357, %v12370
      %12372 = vdwg.mxu0
      %12373 = vmatpush.bf16.msra.mxu0 %v11721
      %12374 = vmatpush.bf16.msra.mxu0 %v11717
      %12375 = vmatpush.bf16.msra.mxu0 %v11713
      %12376 = vmatpush.bf16.msra.mxu0 %v11709
      %12377 = vmatpush.bf16.msra.mxu0 %v11705
      %12378 = vmatpush.bf16.msra.mxu0 %v11701
      %12379 = vmatpush.bf16.msra.mxu0 %v11697
      %12380 = vmatpush.bf16.msra.mxu0 %v11693
      %12381 = vmatmul.bf16.gmra.mxu0 %v10556
      %v12382 = vpop.f32.mrf.mxu0
      %v12383 = vadd.f32 %v12369, %v12382
      %v12384 = vpop.f32.mrf.mxu0
      %v12385 = vadd.f32 %v12371, %v12384
      %12386 = vdwg.mxu0
      %12387 = vmatpush.bf16.msra.mxu0 %v11753
      %12388 = vmatpush.bf16.msra.mxu0 %v11749
      %12389 = vmatpush.bf16.msra.mxu0 %v11745
      %12390 = vmatpush.bf16.msra.mxu0 %v11741
      %12391 = vmatpush.bf16.msra.mxu0 %v11737
      %12392 = vmatpush.bf16.msra.mxu0 %v11733
      %12393 = vmatpush.bf16.msra.mxu0 %v11729
      %12394 = vmatpush.bf16.msra.mxu0 %v11725
      %12395 = vmatmul.bf16.gmra.mxu0 %v10557
      %v12396 = vpop.f32.mrf.mxu0
      %v12397 = vadd.f32 %v12383, %v12396
      %v12398 = vpop.f32.mrf.mxu0
      %v12399 = vadd.f32 %v12385, %v12398
      %12400 = vdwg.mxu0
      %12401 = vmatpush.bf16.msra.mxu0 %v11785
      %12402 = vmatpush.bf16.msra.mxu0 %v11781
      %12403 = vmatpush.bf16.msra.mxu0 %v11777
      %12404 = vmatpush.bf16.msra.mxu0 %v11773
      %12405 = vmatpush.bf16.msra.mxu0 %v11769
      %12406 = vmatpush.bf16.msra.mxu0 %v11765
      %12407 = vmatpush.bf16.msra.mxu0 %v11761
      %12408 = vmatpush.bf16.msra.mxu0 %v11757
      %12409 = vmatmul.bf16.gmra.mxu0 %v10558
      %v12410 = vpop.f32.mrf.mxu0
      %v12411 = vadd.f32 %v12397, %v12410
      %v12412 = vpop.f32.mrf.mxu0
      %v12413 = vadd.f32 %v12399, %v12412
      %12414 = vdwg.mxu0
      %12415 = vmatpush.bf16.msra.mxu0 %v11817
      %12416 = vmatpush.bf16.msra.mxu0 %v11813
      %12417 = vmatpush.bf16.msra.mxu0 %v11809
      %12418 = vmatpush.bf16.msra.mxu0 %v11805
      %12419 = vmatpush.bf16.msra.mxu0 %v11801
      %12420 = vmatpush.bf16.msra.mxu0 %v11797
      %12421 = vmatpush.bf16.msra.mxu0 %v11793
      %12422 = vmatpush.bf16.msra.mxu0 %v11789
      %12423 = vmatmul.bf16.gmra.mxu0 %v10559
      %v12424 = vpop.f32.mrf.mxu0
      %v12425 = vadd.f32 %v12411, %v12424
      %v12426 = vpop.f32.mrf.mxu0
      %v12427 = vadd.f32 %v12413, %v12426
      %12428 = vdwg.mxu0
      %12429 = vmatpush.bf16.msra.mxu0 %v11849
      %12430 = vmatpush.bf16.msra.mxu0 %v11845
      %12431 = vmatpush.bf16.msra.mxu0 %v11841
      %12432 = vmatpush.bf16.msra.mxu0 %v11837
      %12433 = vmatpush.bf16.msra.mxu0 %v11833
      %12434 = vmatpush.bf16.msra.mxu0 %v11829
      %12435 = vmatpush.bf16.msra.mxu0 %v11825
      %12436 = vmatpush.bf16.msra.mxu0 %v11821
      %12437 = vmatmul.bf16.gmra.mxu0 %v10560
      %v12438 = vpop.f32.mrf.mxu0
      %v12439 = vadd.f32 %v12425, %v12438
      %v12440 = vpop.f32.mrf.mxu0
      %v12441 = vadd.f32 %v12427, %v12440
      %12442 = vdwg.mxu0
      %12443 = vmatpush.bf16.msra.mxu0 %v11626
      %12444 = vmatpush.bf16.msra.mxu0 %v11622
      %12445 = vmatpush.bf16.msra.mxu0 %v11618
      %12446 = vmatpush.bf16.msra.mxu0 %v11614
      %12447 = vmatpush.bf16.msra.mxu0 %v11610
      %12448 = vmatpush.bf16.msra.mxu0 %v11606
      %12449 = vmatpush.bf16.msra.mxu0 %v11602
      %12450 = vmatpush.bf16.msra.mxu0 %v11598
      %12451 = vmatmul.bf16.gmra.mxu0 %v10553
      %v12452 = vpop.f32.mrf.mxu0
      %v12453 = vadd.f32 %v10822, %v12452
      %v12454 = vpop.f32.mrf.mxu0
      %v12455 = vadd.f32 %v10822, %v12454
      %12456 = vdwg.mxu0
      %12457 = vmatpush.bf16.msra.mxu0 %v11658
      %12458 = vmatpush.bf16.msra.mxu0 %v11654
      %12459 = vmatpush.bf16.msra.mxu0 %v11650
      %12460 = vmatpush.bf16.msra.mxu0 %v11646
      %12461 = vmatpush.bf16.msra.mxu0 %v11642
      %12462 = vmatpush.bf16.msra.mxu0 %v11638
      %12463 = vmatpush.bf16.msra.mxu0 %v11634
      %12464 = vmatpush.bf16.msra.mxu0 %v11630
      %12465 = vmatmul.bf16.gmra.mxu0 %v10554
      %v12466 = vpop.f32.mrf.mxu0
      %v12467 = vadd.f32 %v12453, %v12466
      %v12468 = vpop.f32.mrf.mxu0
      %v12469 = vadd.f32 %v12455, %v12468
      %12470 = vdwg.mxu0
      %12471 = vmatpush.bf16.msra.mxu0 %v11690
      %12472 = vmatpush.bf16.msra.mxu0 %v11686
      %12473 = vmatpush.bf16.msra.mxu0 %v11682
      %12474 = vmatpush.bf16.msra.mxu0 %v11678
      %12475 = vmatpush.bf16.msra.mxu0 %v11674
      %12476 = vmatpush.bf16.msra.mxu0 %v11670
      %12477 = vmatpush.bf16.msra.mxu0 %v11666
      %12478 = vmatpush.bf16.msra.mxu0 %v11662
      %12479 = vmatmul.bf16.gmra.mxu0 %v10555
      %v12480 = vpop.f32.mrf.mxu0
      %v12481 = vadd.f32 %v12467, %v12480
      %v12482 = vpop.f32.mrf.mxu0
      %v12483 = vadd.f32 %v12469, %v12482
      %12484 = vdwg.mxu0
      %12485 = vmatpush.bf16.msra.mxu0 %v11722
      %12486 = vmatpush.bf16.msra.mxu0 %v11718
      %12487 = vmatpush.bf16.msra.mxu0 %v11714
      %12488 = vmatpush.bf16.msra.mxu0 %v11710
      %12489 = vmatpush.bf16.msra.mxu0 %v11706
      %12490 = vmatpush.bf16.msra.mxu0 %v11702
      %12491 = vmatpush.bf16.msra.mxu0 %v11698
      %12492 = vmatpush.bf16.msra.mxu0 %v11694
      %12493 = vmatmul.bf16.gmra.mxu0 %v10556
      %v12494 = vpop.f32.mrf.mxu0
      %v12495 = vadd.f32 %v12481, %v12494
      %v12496 = vpop.f32.mrf.mxu0
      %v12497 = vadd.f32 %v12483, %v12496
      %12498 = vdwg.mxu0
      %12499 = vmatpush.bf16.msra.mxu0 %v11754
      %12500 = vmatpush.bf16.msra.mxu0 %v11750
      %12501 = vmatpush.bf16.msra.mxu0 %v11746
      %12502 = vmatpush.bf16.msra.mxu0 %v11742
      %12503 = vmatpush.bf16.msra.mxu0 %v11738
      %12504 = vmatpush.bf16.msra.mxu0 %v11734
      %12505 = vmatpush.bf16.msra.mxu0 %v11730
      %12506 = vmatpush.bf16.msra.mxu0 %v11726
      %12507 = vmatmul.bf16.gmra.mxu0 %v10557
      %v12508 = vpop.f32.mrf.mxu0
      %v12509 = vadd.f32 %v12495, %v12508
      %v12510 = vpop.f32.mrf.mxu0
      %v12511 = vadd.f32 %v12497, %v12510
      %12512 = vdwg.mxu0
      %12513 = vmatpush.bf16.msra.mxu0 %v11786
      %12514 = vmatpush.bf16.msra.mxu0 %v11782
      %12515 = vmatpush.bf16.msra.mxu0 %v11778
      %12516 = vmatpush.bf16.msra.mxu0 %v11774
      %12517 = vmatpush.bf16.msra.mxu0 %v11770
      %12518 = vmatpush.bf16.msra.mxu0 %v11766
      %12519 = vmatpush.bf16.msra.mxu0 %v11762
      %12520 = vmatpush.bf16.msra.mxu0 %v11758
      %12521 = vmatmul.bf16.gmra.mxu0 %v10558
      %v12522 = vpop.f32.mrf.mxu0
      %v12523 = vadd.f32 %v12509, %v12522
      %v12524 = vpop.f32.mrf.mxu0
      %v12525 = vadd.f32 %v12511, %v12524
      %12526 = vdwg.mxu0
      %12527 = vmatpush.bf16.msra.mxu0 %v11818
      %12528 = vmatpush.bf16.msra.mxu0 %v11814
      %12529 = vmatpush.bf16.msra.mxu0 %v11810
      %12530 = vmatpush.bf16.msra.mxu0 %v11806
      %12531 = vmatpush.bf16.msra.mxu0 %v11802
      %12532 = vmatpush.bf16.msra.mxu0 %v11798
      %12533 = vmatpush.bf16.msra.mxu0 %v11794
      %12534 = vmatpush.bf16.msra.mxu0 %v11790
      %12535 = vmatmul.bf16.gmra.mxu0 %v10559
      %v12536 = vpop.f32.mrf.mxu0
      %v12537 = vadd.f32 %v12523, %v12536
      %v12538 = vpop.f32.mrf.mxu0
      %v12539 = vadd.f32 %v12525, %v12538
      %12540 = vdwg.mxu0
      %12541 = vmatpush.bf16.msra.mxu0 %v11850
      %12542 = vmatpush.bf16.msra.mxu0 %v11846
      %12543 = vmatpush.bf16.msra.mxu0 %v11842
      %12544 = vmatpush.bf16.msra.mxu0 %v11838
      %12545 = vmatpush.bf16.msra.mxu0 %v11834
      %12546 = vmatpush.bf16.msra.mxu0 %v11830
      %12547 = vmatpush.bf16.msra.mxu0 %v11826
      %12548 = vmatpush.bf16.msra.mxu0 %v11822
      %12549 = vmatmul.bf16.gmra.mxu0 %v10560
      %v12550 = vpop.f32.mrf.mxu0
      %v12551 = vadd.f32 %v12537, %v12550
      %v12552 = vpop.f32.mrf.mxu0
      %v12553 = vadd.f32 %v12539, %v12552
      %12554 = vdwg.mxu0
      %v12555 = vmax.f32 %v12215, 0.0
      %v12556 = vmax.f32 %v12327, 0.0
      %v12557 = vmax.f32 %v12439, 0.0
      %v12558 = vmax.f32 %v12551, 0.0
      %v12559 = vmax.f32 %v12217, 0.0
      %v12560 = vmax.f32 %v12329, 0.0
      %v12561 = vmax.f32 %v12441, 0.0
      %v12562 = vmax.f32 %v12553, 0.0
      %v12563 = vpack.c.bf16 %v12559, %v12555
      %v12564 = vpack.c.bf16 %v12560, %v12556
      %v12565 = vpack.c.bf16 %v12561, %v12557
      %v12566 = vpack.c.bf16 %v12562, %v12558
      %v12567 = vld [vmem:[%s13] sm:$0xf]
      %v12568 = vld [vmem:[%s13 + $0x4] sm:$0xf]
      %v12569 = vld [vmem:[%s13 + $0x8] sm:$0xf]
      %v12570 = vld [vmem:[%s13 + $0xc] sm:$0xf]
      %v12571 = vld [vmem:[%s13 + $0x10] sm:$0xf]
      %v12572 = vld [vmem:[%s13 + $0x14] sm:$0xf]
      %v12573 = vld [vmem:[%s13 + $0x18] sm:$0xf]
      %v12574 = vld [vmem:[%s13 + $0x1c] sm:$0xf]
      %v12575 = vld [vmem:[%s13 + $0x20] sm:$0xf]
      %v12576 = vld [vmem:[%s13 + $0x24] sm:$0xf]
      %v12577 = vld [vmem:[%s13 + $0x28] sm:$0xf]
      %v12578 = vld [vmem:[%s13 + $0x2c] sm:$0xf]
      %v12579 = vld [vmem:[%s13 + $0x30] sm:$0xf]
      %v12580 = vld [vmem:[%s13 + $0x34] sm:$0xf]
      %v12581 = vld [vmem:[%s13 + $0x38] sm:$0xf]
      %v12582 = vld [vmem:[%s13 + $0x3c] sm:$0xf]
      %v12583 = vld [vmem:[%s13 + $0x40] sm:$0xf]
      %v12584 = vld [vmem:[%s13 + $0x44] sm:$0xf]
      %v12585 = vld [vmem:[%s13 + $0x48] sm:$0xf]
      %v12586 = vld [vmem:[%s13 + $0x4c] sm:$0xf]
      %v12587 = vld [vmem:[%s13 + $0x50] sm:$0xf]
      %v12588 = vld [vmem:[%s13 + $0x54] sm:$0xf]
      %v12589 = vld [vmem:[%s13 + $0x58] sm:$0xf]
      %v12590 = vld [vmem:[%s13 + $0x5c] sm:$0xf]
      %v12591 = vld [vmem:[%s13 + $0x60] sm:$0xf]
      %v12592 = vld [vmem:[%s13 + $0x64] sm:$0xf]
      %v12593 = vld [vmem:[%s13 + $0x68] sm:$0xf]
      %v12594 = vld [vmem:[%s13 + $0x6c] sm:$0xf]
      %v12595 = vld [vmem:[%s13 + $0x70] sm:$0xf]
      %v12596 = vld [vmem:[%s13 + $0x74] sm:$0xf]
      %v12597 = vld [vmem:[%s13 + $0x78] sm:$0xf]
      %v12598 = vld [vmem:[%s13 + $0x7c] sm:$0xf]
      %v12599 = vld [vmem:[%s13 + $0x80] sm:$0xf]
      %v12600 = vld [vmem:[%s13 + $0x84] sm:$0xf]
      %v12601 = vld [vmem:[%s13 + $0x88] sm:$0xf]
      %v12602 = vld [vmem:[%s13 + $0x8c] sm:$0xf]
      %v12603 = vld [vmem:[%s13 + $0x90] sm:$0xf]
      %v12604 = vld [vmem:[%s13 + $0x94] sm:$0xf]
      %v12605 = vld [vmem:[%s13 + $0x98] sm:$0xf]
      %v12606 = vld [vmem:[%s13 + $0x9c] sm:$0xf]
      %v12607 = vld [vmem:[%s13 + $0xa0] sm:$0xf]
      %v12608 = vld [vmem:[%s13 + $0xa4] sm:$0xf]
      %v12609 = vld [vmem:[%s13 + $0xa8] sm:$0xf]
      %v12610 = vld [vmem:[%s13 + $0xac] sm:$0xf]
      %v12611 = vld [vmem:[%s13 + $0xb0] sm:$0xf]
      %v12612 = vld [vmem:[%s13 + $0xb4] sm:$0xf]
      %v12613 = vld [vmem:[%s13 + $0xb8] sm:$0xf]
      %v12614 = vld [vmem:[%s13 + $0xbc] sm:$0xf]
      %v12615 = vld [vmem:[%s13 + $0xc0] sm:$0xf]
      %v12616 = vld [vmem:[%s13 + $0xc4] sm:$0xf]
      %v12617 = vld [vmem:[%s13 + $0xc8] sm:$0xf]
      %v12618 = vld [vmem:[%s13 + $0xcc] sm:$0xf]
      %v12619 = vld [vmem:[%s13 + $0xd0] sm:$0xf]
      %v12620 = vld [vmem:[%s13 + $0xd4] sm:$0xf]
      %v12621 = vld [vmem:[%s13 + $0xd8] sm:$0xf]
      %v12622 = vld [vmem:[%s13 + $0xdc] sm:$0xf]
      %v12623 = vld [vmem:[%s13 + $0xe0] sm:$0xf]
      %v12624 = vld [vmem:[%s13 + $0xe4] sm:$0xf]
      %v12625 = vld [vmem:[%s13 + $0xe8] sm:$0xf]
      %v12626 = vld [vmem:[%s13 + $0xec] sm:$0xf]
      %v12627 = vld [vmem:[%s13 + $0xf0] sm:$0xf]
      %v12628 = vld [vmem:[%s13 + $0xf4] sm:$0xf]
      %v12629 = vld [vmem:[%s13 + $0xf8] sm:$0xf]
      %v12630 = vld [vmem:[%s13 + $0xfc] sm:$0xf]
      %v12631 = vld [vmem:[%s14] sm:$0x1]
      %v12633 = vperm.slane %v12631, 0
      %v12699 = vunpack.c.l.b16 %v12567
      %v12700 = vunpack.c.l.b16 %v12568
      %v12701 = vunpack.c.l.b16 %v12569
      %v12702 = vunpack.c.l.b16 %v12570
      %v12703 = vunpack.c.l.b16 %v12571
      %v12704 = vunpack.c.l.b16 %v12572
      %v12705 = vunpack.c.l.b16 %v12573
      %v12706 = vunpack.c.l.b16 %v12574
      %v12707 = vunpack.c.l.b16 %v12575
      %v12708 = vunpack.c.l.b16 %v12576
      %v12709 = vunpack.c.l.b16 %v12577
      %v12710 = vunpack.c.l.b16 %v12578
      %v12711 = vunpack.c.l.b16 %v12579
      %v12712 = vunpack.c.l.b16 %v12580
      %v12713 = vunpack.c.l.b16 %v12581
      %v12714 = vunpack.c.l.b16 %v12582
      %v12715 = vunpack.c.l.b16 %v12583
      %v12716 = vunpack.c.l.b16 %v12584
      %v12717 = vunpack.c.l.b16 %v12585
      %v12718 = vunpack.c.l.b16 %v12586
      %v12719 = vunpack.c.l.b16 %v12587
      %v12720 = vunpack.c.l.b16 %v12588
      %v12721 = vunpack.c.l.b16 %v12589
      %v12722 = vunpack.c.l.b16 %v12590
      %v12723 = vunpack.c.l.b16 %v12591
      %v12724 = vunpack.c.l.b16 %v12592
      %v12725 = vunpack.c.l.b16 %v12593
      %v12726 = vunpack.c.l.b16 %v12594
      %v12727 = vunpack.c.l.b16 %v12595
      %v12728 = vunpack.c.l.b16 %v12596
      %v12729 = vunpack.c.l.b16 %v12597
      %v12730 = vunpack.c.l.b16 %v12598
      %v12731 = vunpack.c.l.b16 %v12599
      %v12732 = vunpack.c.l.b16 %v12600
      %v12733 = vunpack.c.l.b16 %v12601
      %v12734 = vunpack.c.l.b16 %v12602
      %v12735 = vunpack.c.l.b16 %v12603
      %v12736 = vunpack.c.l.b16 %v12604
      %v12737 = vunpack.c.l.b16 %v12605
      %v12738 = vunpack.c.l.b16 %v12606
      %v12739 = vunpack.c.l.b16 %v12607
      %v12740 = vunpack.c.l.b16 %v12608
      %v12741 = vunpack.c.l.b16 %v12609
      %v12742 = vunpack.c.l.b16 %v12610
      %v12743 = vunpack.c.l.b16 %v12611
      %v12744 = vunpack.c.l.b16 %v12612
      %v12745 = vunpack.c.l.b16 %v12613
      %v12746 = vunpack.c.l.b16 %v12614
      %v12747 = vunpack.c.l.b16 %v12615
      %v12748 = vunpack.c.l.b16 %v12616
      %v12749 = vunpack.c.l.b16 %v12617
      %v12750 = vunpack.c.l.b16 %v12618
      %v12751 = vunpack.c.l.b16 %v12619
      %v12752 = vunpack.c.l.b16 %v12620
      %v12753 = vunpack.c.l.b16 %v12621
      %v12754 = vunpack.c.l.b16 %v12622
      %v12755 = vunpack.c.l.b16 %v12623
      %v12756 = vunpack.c.l.b16 %v12624
      %v12757 = vunpack.c.l.b16 %v12625
      %v12758 = vunpack.c.l.b16 %v12626
      %v12759 = vunpack.c.l.b16 %v12627
      %v12760 = vunpack.c.l.b16 %v12628
      %v12761 = vunpack.c.l.b16 %v12629
      %v12762 = vunpack.c.l.b16 %v12630
      %v12763 = vpack.c.b16 %v12700, %v12699
      %v12764 = vpack.c.b16 %v12702, %v12701
      %v12765 = vpack.c.b16 %v12704, %v12703
      %v12766 = vpack.c.b16 %v12706, %v12705
      %v12767 = vpack.c.b16 %v12708, %v12707
      %v12768 = vpack.c.b16 %v12710, %v12709
      %v12769 = vpack.c.b16 %v12712, %v12711
      %v12770 = vpack.c.b16 %v12714, %v12713
      %v12771 = vpack.c.b16 %v12716, %v12715
      %v12772 = vpack.c.b16 %v12718, %v12717
      %v12773 = vpack.c.b16 %v12720, %v12719
      %v12774 = vpack.c.b16 %v12722, %v12721
      %v12775 = vpack.c.b16 %v12724, %v12723
      %v12776 = vpack.c.b16 %v12726, %v12725
      %v12777 = vpack.c.b16 %v12728, %v12727
      %v12778 = vpack.c.b16 %v12730, %v12729
      %v12779 = vpack.c.b16 %v12732, %v12731
      %v12780 = vpack.c.b16 %v12734, %v12733
      %v12781 = vpack.c.b16 %v12736, %v12735
      %v12782 = vpack.c.b16 %v12738, %v12737
      %v12783 = vpack.c.b16 %v12740, %v12739
      %v12784 = vpack.c.b16 %v12742, %v12741
      %v12785 = vpack.c.b16 %v12744, %v12743
      %v12786 = vpack.c.b16 %v12746, %v12745
      %v12787 = vpack.c.b16 %v12748, %v12747
      %v12788 = vpack.c.b16 %v12750, %v12749
      %v12789 = vpack.c.b16 %v12752, %v12751
      %v12790 = vpack.c.b16 %v12754, %v12753
      %v12791 = vpack.c.b16 %v12756, %v12755
      %v12792 = vpack.c.b16 %v12758, %v12757
      %v12793 = vpack.c.b16 %v12760, %v12759
      %v12794 = vpack.c.b16 %v12762, %v12761
      %12827 = vmatpush.bf16.msra.mxu0 %v12770
      %12828 = vmatpush.bf16.msra.mxu0 %v12769
      %12829 = vmatpush.bf16.msra.mxu0 %v12768
      %12830 = vmatpush.bf16.msra.mxu0 %v12767
      %12831 = vmatpush.bf16.msra.mxu0 %v12766
      %12832 = vmatpush.bf16.msra.mxu0 %v12765
      %12833 = vmatpush.bf16.msra.mxu0 %v12764
      %12834 = vmatpush.bf16.msra.mxu0 %v12763
      %12835 = vmatmul.bf16.gmra.mxu0 %v12563
      %v12836 = vpop.f32.mrf.mxu0
      %v12837 = vadd.f32 %v12633, %v12836
      %v12838 = vpop.f32.mrf.mxu0
      %v12839 = vadd.f32 %v12633, %v12838
      %12840 = vdwg.mxu0
      %12841 = vmatpush.bf16.msra.mxu0 %v12778
      %12842 = vmatpush.bf16.msra.mxu0 %v12777
      %12843 = vmatpush.bf16.msra.mxu0 %v12776
      %12844 = vmatpush.bf16.msra.mxu0 %v12775
      %12845 = vmatpush.bf16.msra.mxu0 %v12774
      %12846 = vmatpush.bf16.msra.mxu0 %v12773
      %12847 = vmatpush.bf16.msra.mxu0 %v12772
      %12848 = vmatpush.bf16.msra.mxu0 %v12771
      %12849 = vmatmul.bf16.gmra.mxu0 %v12564
      %v12850 = vpop.f32.mrf.mxu0
      %v12851 = vadd.f32 %v12837, %v12850
      %v12852 = vpop.f32.mrf.mxu0
      %v12853 = vadd.f32 %v12839, %v12852
      %12854 = vdwg.mxu0
      %12855 = vmatpush.bf16.msra.mxu0 %v12786
      %12856 = vmatpush.bf16.msra.mxu0 %v12785
      %12857 = vmatpush.bf16.msra.mxu0 %v12784
      %12858 = vmatpush.bf16.msra.mxu0 %v12783
      %12859 = vmatpush.bf16.msra.mxu0 %v12782
      %12860 = vmatpush.bf16.msra.mxu0 %v12781
      %12861 = vmatpush.bf16.msra.mxu0 %v12780
      %12862 = vmatpush.bf16.msra.mxu0 %v12779
      %12863 = vmatmul.bf16.gmra.mxu0 %v12565
      %v12864 = vpop.f32.mrf.mxu0
      %v12865 = vadd.f32 %v12851, %v12864
      %v12866 = vpop.f32.mrf.mxu0
      %v12867 = vadd.f32 %v12853, %v12866
      %12868 = vdwg.mxu0
      %12869 = vmatpush.bf16.msra.mxu0 %v12794
      %12870 = vmatpush.bf16.msra.mxu0 %v12793
      %12871 = vmatpush.bf16.msra.mxu0 %v12792
      %12872 = vmatpush.bf16.msra.mxu0 %v12791
      %12873 = vmatpush.bf16.msra.mxu0 %v12790
      %12874 = vmatpush.bf16.msra.mxu0 %v12789
      %12875 = vmatpush.bf16.msra.mxu0 %v12788
      %12876 = vmatpush.bf16.msra.mxu0 %v12787
      %12877 = vmatmul.bf16.gmra.mxu0 %v12566
      %v12878 = vpop.f32.mrf.mxu0
      %v12879 = vadd.f32 %v12865, %v12878
      %v12880 = vpop.f32.mrf.mxu0
      %v12881 = vadd.f32 %v12867, %v12880
      %12882 = vdwg.mxu0
      %v12883 = vmax.f32 %v12879, 0.0
      %v12884 = vmax.f32 %v12881, 0.0
      %v12885 = vpack.c.bf16 %v12884, %v12883
      %v12886 = vld [vmem:[%s15] sm:$0xf]
      %v12887 = vld [vmem:[%s15 + $0x4] sm:$0xf]
      %v12888 = vld [vmem:[%s15 + $0x8] sm:$0xf]
      %v12889 = vld [vmem:[%s15 + $0xc] sm:$0xf]
      %v12890 = vld [vmem:[%s16] sm:$0x1]
      %v12892 = vperm.slane %v12890, 0
      %v12898 = vunpack.c.l.b16 %v12886
      %v12899 = vunpack.c.l.b16 %v12887
      %v12900 = vunpack.c.l.b16 %v12888
      %v12901 = vunpack.c.l.b16 %v12889
      %v12902 = vpack.c.b16 %v12899, %v12898
      %v12903 = vpack.c.b16 %v12901, %v12900
      %vm12906 = vcmask 261120
      %v12908 = vsel %vm12906, %v12885, 0
      %12910 = vmatpush.bf16.msra.mxu0 0
      %12911 = vmatpush.bf16.msra.mxu0 0
      %12912 = vmatpush.bf16.msra.mxu0 0
      %12913 = vmatpush.bf16.msra.mxu0 0
      %12914 = vmatpush.bf16.msra.mxu0 0
      %12915 = vmatpush.bf16.msra.mxu0 0
      %12916 = vmatpush.bf16.msra.mxu0 %v12903
      %12917 = vmatpush.bf16.msra.mxu0 %v12902
      %12918 = vmatmul.bf16.gmra.mxu0 %v12908
      %v12919 = vpop.f32.mrf.mxu0
      %v12920 = vadd.f32 %v12892, %v12919
      %v12921 = vpop.f32.mrf.mxu0
      %v12922 = vadd.f32 %v12892, %v12921
      %12923 = vdwg.mxu0
      %vm12924 = vcmask 31744
      %12925 = vst.msk [vmem:[%s17] sm:$0xff] %vm12924, %v12920
      %12926 = vst.msk [vmem:[%s17 + $0x8] sm:$0xff] %vm12924, %v12922
    $region89: #{tpu_custom_call.1} parent=1 // pred_fallthru
      _
    // Predicated region
    $region90: #{tpu_custom_call.1} parent=1 // pred_check
      _
    $region91: #{tpu_custom_call.1} parent=1 // pred_check_branch
      %12928 = sbr.rel (0) target = $region93
    $region92: #{tpu_custom_call.1} parent=1 // pred_region
      _
    $region93: #{tpu_custom_call.1} parent=1 // pred_fallthru
      _
    // Predicated region
    $region94: #{tpu_custom_call.1} parent=1 // pred_check
      _
    $region95: #{tpu_custom_call.1} parent=1 // pred_check_branch
      %12930 = sbr.rel (0) target = $region97
    $region96: #{tpu_custom_call.1} parent=1 // pred_region
      _
    $region97: #{tpu_custom_call.1} parent=1 // pred_fallthru
      _
    %12931 = vsyncpa [#allocation4], 1
    %12932 = vsyncpa [#allocation6], 1

</llo_original>
